<compile_context>
chip_gen: v5e
topology: v5e:2x2
jax: 0.10.0
libtpu: 0.0.40
codegen_flags: <defaults>
</compile_context>

<pallas_src>
import functools
import math

import jax
import jax.numpy as jnp
import numpy as np
from jax.experimental import pallas as pl
from jax.experimental.pallas import tpu as pltpu

E = 64          # embed size (hard-coded to 64 inside CrossNet.__init__)
LN_EPS = 1e-5   # nn.LayerNorm default eps


# ---------------------------------------------------------------------------
# Fused Pallas kernel: whole CrossNet forward for one batch element
# ---------------------------------------------------------------------------
def _crossnet_kernel(x1_ref, x2_ref,
                     wqkv_ref, bqkv_ref, wo_ref, bo_ref,          # 4*L MHA blocks
                     w1_ref, b1_ref, w2_ref, b2_ref,              # 2*L FFN blocks
                     g_ref, beta_ref,                             # 4*L LayerNorms
                     ow_ref, ob_ref,                              # classifier head
                     o_ref, *, n_head, num_layers, eps):
    d = E // n_head

    x1 = x1_ref[0].astype(jnp.float32)   # (S1, E)
    x2 = x2_ref[0].astype(jnp.float32)   # (S2, E)

    def mha(xq, xkv, idx):
        """PyTorch-style MultiheadAttention; scale already folded into Wq/bq."""
        wqkv = wqkv_ref[idx]            # (E, 3E) pre-transposed, q-part pre-scaled
        bqkv = bqkv_ref[idx]            # (1, 3E)
        wo_t = wo_ref[idx]              # (E, E)  pre-transposed

        q = jnp.dot(xq, wqkv[:, :E], preferred_element_type=jnp.float32) + bqkv[:, :E]
        kv = jnp.dot(xkv, wqkv[:, E:], preferred_element_type=jnp.float32) + bqkv[:, E:]
        k = kv[:, :E]
        v = kv[:, E:]

        acc = None
        for h in range(n_head):                         # static loop over heads
            sl = slice(h * d, (h + 1) * d)
            # scores: contract head dim of q and k without explicit transpose
            s = jax.lax.dot_general(q[:, sl], k[:, sl],
                                    (((1,), (1,)), ((), ())),
                                    preferred_element_type=jnp.float32)  # (Sq, Sk)
            s = s - jnp.max(s, axis=-1, keepdims=True)
            p = jnp.exp(s)
            p = p * pl.reciprocal(jnp.sum(p, axis=-1, keepdims=True), approx=True)
            hv = jnp.dot(p, v[:, sl], preferred_element_type=jnp.float32)  # (Sq, d)
            # project this head directly through its slice of W_out (no concat)
            contrib = jnp.dot(hv, wo_t[sl, :], preferred_element_type=jnp.float32)
            acc = contrib if acc is None else acc + contrib
        return acc + bo_ref[idx]                        # (Sq, E)

    def layer_norm(z, lidx):
        mu = jnp.mean(z, axis=-1, keepdims=True)
        var = jnp.mean((z - mu) ** 2, axis=-1, keepdims=True)
        zn = (z - mu) * jax.lax.rsqrt(var + eps)
        return zn * g_ref[lidx] + beta_ref[lidx]

    def encoder(x, mha_idx, ffn_idx, ln_base):
        # post-norm nn.TransformerEncoderLayer (norm_first=False, activation=relu)
        y = layer_norm(x + mha(x, x, mha_idx), ln_base + 0)
        h = jnp.dot(y, w1_ref[ffn_idx], preferred_element_type=jnp.float32) + b1_ref[ffn_idx]
        h = jnp.maximum(h, 0.0)
        f = jnp.dot(h, w2_ref[ffn_idx], preferred_element_type=jnp.float32) + b2_ref[ffn_idx]
        return layer_norm(y + f, ln_base + 1)

    for li in range(num_layers):                        # static loop over layers
        ca1 = mha(x2, x1, 4 * li + 0)                   # query=x2, key/value=x1
        ca2 = mha(x1, x2, 4 * li + 1)                   # query=x1, key/value=x2
        x1 = encoder(ca1, 4 * li + 2, 2 * li + 0, 4 * li + 0)
        x2 = encoder(ca2, 4 * li + 3, 2 * li + 1, 4 * li + 2)

    # mean-pool over sequence, concat (done implicitly by split matmul), classify
    m1 = jnp.mean(x1, axis=0, keepdims=True)            # (1, E)
    m2 = jnp.mean(x2, axis=0, keepdims=True)            # (1, E)
    ow = ow_ref[...]                                    # (2E, 2) pre-transposed
    logits = (jnp.dot(m1, ow[:E, :], preferred_element_type=jnp.float32)
              + jnp.dot(m2, ow[E:, :], preferred_element_type=jnp.float32)
              + ob_ref[...])                            # (1, 2)
    o_ref[0] = logits.astype(o_ref.dtype)


# ---------------------------------------------------------------------------
# Weight packing: pre-transpose, fuse QKV, fold attention scale
# ---------------------------------------------------------------------------
def pack_params(params, n_head):
    d = E // n_head
    scale = 1.0 / math.sqrt(d)
    wqkv_l, bqkv_l, wo_l, bo_l = [], [], [], []
    w1_l, b1_l, w2_l, b2_l, g_l, beta_l = [], [], [], [], [], []

    def add_mha(m):
        # torch Linear weights are (out, in); store x @ W layout, fold scale into q
        wqkv_l.append(jnp.concatenate([m["wq"] * scale, m["wk"], m["wv"]], axis=0).T)  # (E,3E)
        bqkv_l.append(jnp.concatenate([m["bq"] * scale, m["bk"], m["bv"]], axis=1))    # (1,3E)
        wo_l.append(m["wo"].T)     # (E, E)
        bo_l.append(m["bo"])       # (1, E)

    for lp in params["layers"]:
        add_mha(lp["cross1"])          # idx 4*li + 0
        add_mha(lp["cross2"])          # idx 4*li + 1
        add_mha(lp["enc1"]["mha"])     # idx 4*li + 2
        add_mha(lp["enc2"]["mha"])     # idx 4*li + 3
        for ep in (lp["enc1"], lp["enc2"]):
            w1_l.append(ep["w1"].T)    # (E, H)
            b1_l.append(ep["b1"])      # (1, H)
            w2_l.append(ep["w2"].T)    # (H, E)
            b2_l.append(ep["b2"])      # (1, E)
            g_l.append(ep["g1"]);  beta_l.append(ep["beta1"])
            g_l.append(ep["g2"]);  beta_l.append(ep["beta2"])

    return dict(
        wqkv=jnp.stack(wqkv_l), bqkv=jnp.stack(bqkv_l),
        wo=jnp.stack(wo_l), bo=jnp.stack(bo_l),
        w1=jnp.stack(w1_l), b1=jnp.stack(b1_l),
        w2=jnp.stack(w2_l), b2=jnp.stack(b2_l),
        ln_g=jnp.stack(g_l), ln_b=jnp.stack(beta_l),
        out_w=params["out_w"].T,       # (2E, 2)
        out_b=params["out_b"],         # (1, 2)
    )


# ---------------------------------------------------------------------------
# pallas_call wrapper: one launch for the whole forward
# ---------------------------------------------------------------------------
def crossnet_pallas(x1, x2, pk, n_head, num_layers):
    B, S1, _ = x1.shape
    S2 = x2.shape[1]
    H = pk["w1"].shape[-1]
    L4 = pk["wqkv"].shape[0]
    L2 = pk["w1"].shape[0]

    def full(shape):
        return pl.BlockSpec(shape, lambda b, _n=len(shape): (0,) * _n)

    out = pl.pallas_call(
        functools.partial(_crossnet_kernel, n_head=n_head,
                          num_layers=num_layers, eps=LN_EPS),
        out_shape=jax.ShapeDtypeStruct((B, 1, 2), jnp.float32),
        grid=(B,),
        in_specs=[
            pl.BlockSpec((1, S1, E), lambda b: (b, 0, 0)),
            pl.BlockSpec((1, S2, E), lambda b: (b, 0, 0)),
            full((L4, E, 3 * E)),
            full((L4, 1, 3 * E)),
            full((L4, E, E)),
            full((L4, 1, E)),
            full((L2, E, H)),
            full((L2, 1, H)),
            full((L2, H, E)),
            full((L2, 1, E)),
            full((2 * L2, 1, E)),
            full((2 * L2, 1, E)),
            full((2 * E, 2)),
            full((1, 2)),
        ],
        out_specs=pl.BlockSpec((1, 1, 2), lambda b: (b, 0, 0)),
        compiler_params=pltpu.CompilerParams(dimension_semantics=("parallel",)),
    )(x1, x2, pk["wqkv"], pk["bqkv"], pk["wo"], pk["bo"],
      pk["w1"], pk["b1"], pk["w2"], pk["b2"], pk["ln_g"], pk["ln_b"],
      pk["out_w"], pk["out_b"])
    return out.reshape(B, 2)


def crossnet_forward(params, ids1, ids2, n_head):
    # glue: embedding gather + sinusoidal positional encoding add (plain JAX)
    x1 = jnp.take(params["drug_emb"], ids1, axis=0)      # (B, S1, E)
    x2 = jnp.take(params["prot_emb"], ids2, axis=0)      # (B, S2, E)
    pe = params["pos_enc"]
    x1 = x1 + pe[: x1.shape[1]]
    x2 = x2 + pe[: x2.shape[1]]
    pk = pack_params(params, n_head)                     # tiny one-time packing
    return crossnet_pallas(x1, x2, pk, n_head, len(params["layers"]))


# ---------------------------------------------------------------------------
# Pure-JAX reference (for correctness check)
# ---------------------------------------------------------------------------
def _ref_mha(xq, xkv, p, n_head):
    B, Sq, _ = xq.shape
    Sk = xkv.shape[1]
    d = E // n_head
    q = xq @ p["wq"].T + p["bq"][0]
    k = xkv @ p["wk"].T + p["bk"][0]
    v = xkv @ p["wv"].T + p["bv"][0]
    q = q.reshape(B, Sq, n_head, d).transpose(0, 2, 1, 3)
    k = k.reshape(B, Sk, n_head, d).transpose(0, 2, 1, 3)
    v = v.reshape(B, Sk, n_head, d).transpose(0, 2, 1, 3)
    s = jnp.einsum("bhqd,bhkd->bhqk", q, k) / math.sqrt(d)
    a = jax.nn.softmax(s, axis=-1)
    o = jnp.einsum("bhqk,bhkd->bhqd", a, v).transpose(0, 2, 1, 3).reshape(B, Sq, E)
    return o @ p["wo"].T + p["bo"][0]


def _ref_ln(y, g, b):
    mu = jnp.mean(y, axis=-1, keepdims=True)
    var = jnp.mean((y - mu) ** 2, axis=-1, keepdims=True)
    return (y - mu) * jax.lax.rsqrt(var + LN_EPS) * g[0] + b[0]


def _ref_encoder(x, ep, n_head):
    y = _ref_ln(x + _ref_mha(x, x, ep["mha"], n_head), ep["g1"], ep["beta1"])
    f = jnp.maximum(y @ ep["w1"].T + ep["b1"][0], 0.0) @ ep["w2"].T + ep["b2"][0]
    return _ref_ln(y + f, ep["g2"], ep["beta2"])


def crossnet_forward_ref(params, ids1, ids2, n_head):
    x1 = jnp.take(params["drug_emb"], ids1, axis=0)
    x2 = jnp.take(params["prot_emb"], ids2, axis=0)
    pe = params["pos_enc"]
    x1 = x1 + pe[: x1.shape[1]]
    x2 = x2 + pe[: x2.shape[1]]
    for lp in params["layers"]:
        ca1 = _ref_mha(x2, x1, lp["cross1"], n_head)
        ca2 = _ref_mha(x1, x2, lp["cross2"], n_head)
        x1 = _ref_encoder(ca1, lp["enc1"], n_head)
        x2 = _ref_encoder(ca2, lp["enc2"], n_head)
    feat = jnp.concatenate([x1.mean(1), x2.mean(1)], axis=1)
    return feat @ params["out_w"].T + params["out_b"][0]


# ---------------------------------------------------------------------------
# Deterministic parameter initialisation
# ---------------------------------------------------------------------------
def _dense(key, shape, scale=0.05):
    return jax.random.normal(key, shape, jnp.float32) * scale


def init_mha_params(key):
    ks = jax.random.split(key, 8)
    return dict(
        wq=_dense(ks[0], (E, E)), wk=_dense(ks[1], (E, E)), wv=_dense(ks[2], (E, E)),
        bq=_dense(ks[3], (1, E), 0.01), bk=_dense(ks[4], (1, E), 0.01),
        bv=_dense(ks[5], (1, E), 0.01),
        wo=_dense(ks[6], (E, E)), bo=_dense(ks[7], (1, E), 0.01),
    )


def init_encoder_params(key, hidden):
    ks = jax.random.split(key, 7)
    return dict(
        mha=init_mha_params(ks[0]),
        w1=_dense(ks[1], (hidden, E)), b1=_dense(ks[2], (1, hidden), 0.01),
        w2=_dense(ks[3], (E, hidden)), b2=_dense(ks[4], (1, E), 0.01),
        g1=jnp.ones((1, E), jnp.float32) + _dense(ks[5], (1, E), 0.02),
        beta1=_dense(ks[6], (1, E), 0.02),
        g2=jnp.ones((1, E), jnp.float32),
        beta2=jnp.zeros((1, E), jnp.float32),
    )


def make_positional_encoding(d_model, max_len):
    # matches the PyTorch module: sin on odd indices, cos on even indices
    pos = np.arange(max_len, dtype=np.float32)[:, None]
    freqs = 10000.0 ** (np.arange(0, d_model, 2, dtype=np.float32) / d_model)
    enc = np.zeros((max_len, d_model), np.float32)
    enc[:, 1::2] = np.sin(pos / freqs)
    enc[:, 0::2] = np.cos(pos / freqs)
    return jnp.asarray(enc)


def init_crossnet_params(key, hidden_size, n_head, num_layers, vocab_drug, vocab_prot):
    ks = jax.random.split(key, 4 + num_layers)
    layers = []
    for li in range(num_layers):
        lk = jax.random.split(ks[4 + li], 4)
        layers.append(dict(
            cross1=init_mha_params(lk[0]),
            cross2=init_mha_params(lk[1]),
            enc1=init_encoder_params(lk[2], hidden_size),
            enc2=init_encoder_params(lk[3], hidden_size),
        ))
    return dict(
        drug_emb=_dense(ks[0], (vocab_drug, E), 0.5),
        prot_emb=_dense(ks[1], (vocab_prot, E), 0.5),
        out_w=_dense(ks[2], (2, 2 * E)),
        out_b=_dense(ks[3], (1, 2), 0.01),
        pos_enc=make_positional_encoding(E, 128),   # module uses max_len=20000; 128 suffices here
        layers=layers,
    )


# ---------------------------------------------------------------------------
if __name__ == "__main__":
    n_head, hidden_size, num_layers = 4, 32, 2
    vocab_drug, vocab_prot = 32, 48
    B, S1, S2 = 2, 8, 16

    key = jax.random.PRNGKey(0)
    pkey, dkey = jax.random.split(key)
    params = init_crossnet_params(pkey, hidden_size, n_head, num_layers,
                                  vocab_drug, vocab_prot)
    k1, k2 = jax.random.split(dkey)
    ids1 = jax.random.randint(k1, (B, S1), 0, vocab_drug, jnp.int32)   # drug tokens
    ids2 = jax.random.randint(k2, (B, S2), 0, vocab_prot, jnp.int32)   # protein tokens

    fwd = jax.jit(crossnet_forward, static_argnums=(3,))
    logits = jax.block_until_ready(fwd(params, ids1, ids2, n_head))

    ref = jax.block_until_ready(crossnet_forward_ref(params, ids1, ids2, n_head))
    assert logits.shape == (B, 2)
    np.testing.assert_allclose(np.asarray(logits), np.asarray(ref), rtol=0, atol=5e-2)
    print("KERNEL_OK")
</pallas_src>

<mosaic_0001>
module attributes {stable_mosaic.version = 11 : i64} {
  func.func @_crossnet_kernel(%arg0: i32, %arg1: memref<1x8x64xf32, #tpu.memory_space<vmem>>, %arg2: memref<1x16x64xf32, #tpu.memory_space<vmem>>, %arg3: memref<8x64x192xf32, #tpu.memory_space<vmem>>, %arg4: memref<8x1x192xf32, #tpu.memory_space<vmem>>, %arg5: memref<8x64x64xf32, #tpu.memory_space<vmem>>, %arg6: memref<8x1x64xf32, #tpu.memory_space<vmem>>, %arg7: memref<4x64x32xf32, #tpu.memory_space<vmem>>, %arg8: memref<4x1x32xf32, #tpu.memory_space<vmem>>, %arg9: memref<4x32x64xf32, #tpu.memory_space<vmem>>, %arg10: memref<4x1x64xf32, #tpu.memory_space<vmem>>, %arg11: memref<8x1x64xf32, #tpu.memory_space<vmem>>, %arg12: memref<8x1x64xf32, #tpu.memory_space<vmem>>, %arg13: memref<128x2xf32, #tpu.memory_space<vmem>>, %arg14: memref<1x2xf32, #tpu.memory_space<vmem>>, %arg15: memref<1x1x2xf32, #tpu.memory_space<vmem>>) attributes {dimension_semantics = [#tpu.dimension_semantics<parallel>], iteration_bounds = array<i64: 2>, scalar_prefetch = 0 : i64, scratch_operands = 0 : i64, tpu.core_type = #tpu.core_type<tc>, window_params = [{transform_indices = @transform_0, window_bounds = array<i64: 1, 8, 64>}, {transform_indices = @transform_1, window_bounds = array<i64: 1, 16, 64>}, {pipeline_mode = #tpu.pipeline_mode<synchronous>, transform_indices = @transform_2, window_bounds = array<i64: 8, 64, 192>}, {pipeline_mode = #tpu.pipeline_mode<synchronous>, transform_indices = @transform_3, window_bounds = array<i64: 8, 1, 192>}, {pipeline_mode = #tpu.pipeline_mode<synchronous>, transform_indices = @transform_4, window_bounds = array<i64: 8, 64, 64>}, {pipeline_mode = #tpu.pipeline_mode<synchronous>, transform_indices = @transform_5, window_bounds = array<i64: 8, 1, 64>}, {pipeline_mode = #tpu.pipeline_mode<synchronous>, transform_indices = @transform_6, window_bounds = array<i64: 4, 64, 32>}, {pipeline_mode = #tpu.pipeline_mode<synchronous>, transform_indices = @transform_7, window_bounds = array<i64: 4, 1, 32>}, {pipeline_mode = #tpu.pipeline_mode<synchronous>, transform_indices = @transform_8, window_bounds = array<i64: 4, 32, 64>}, {pipeline_mode = #tpu.pipeline_mode<synchronous>, transform_indices = @transform_9, window_bounds = array<i64: 4, 1, 64>}, {pipeline_mode = #tpu.pipeline_mode<synchronous>, transform_indices = @transform_10, window_bounds = array<i64: 8, 1, 64>}, {pipeline_mode = #tpu.pipeline_mode<synchronous>, transform_indices = @transform_11, window_bounds = array<i64: 8, 1, 64>}, {pipeline_mode = #tpu.pipeline_mode<synchronous>, transform_indices = @transform_12, window_bounds = array<i64: 128, 2>}, {pipeline_mode = #tpu.pipeline_mode<synchronous>, transform_indices = @transform_13, window_bounds = array<i64: 1, 2>}, {transform_indices = @transform_14, window_bounds = array<i64: 1, 1, 2>}]} {
    %c0 = arith.constant 0 : index
    %c0_0 = arith.constant 0 : index
    %c0_1 = arith.constant 0 : index
    %0 = vector.load %arg1[%c0, %c0_0, %c0_1] : memref<1x8x64xf32, #tpu.memory_space<vmem>>, vector<1x8x64xf32>
    %1 = vector.shape_cast %0 : vector<1x8x64xf32> to vector<8x64xf32>
    %c0_2 = arith.constant 0 : index
    %c0_3 = arith.constant 0 : index
    %c0_4 = arith.constant 0 : index
    %2 = vector.load %arg2[%c0_2, %c0_3, %c0_4] : memref<1x16x64xf32, #tpu.memory_space<vmem>>, vector<1x16x64xf32>
    %3 = vector.shape_cast %2 : vector<1x16x64xf32> to vector<16x64xf32>
    %c0_5 = arith.constant 0 : index
    %c0_6 = arith.constant 0 : index
    %c0_7 = arith.constant 0 : index
    %4 = vector.load %arg3[%c0_5, %c0_6, %c0_7] : memref<8x64x192xf32, #tpu.memory_space<vmem>>, vector<1x64x192xf32>
    %5 = vector.shape_cast %4 : vector<1x64x192xf32> to vector<64x192xf32>
    %c0_8 = arith.constant 0 : index
    %c0_9 = arith.constant 0 : index
    %c0_10 = arith.constant 0 : index
    %6 = vector.load %arg4[%c0_8, %c0_9, %c0_10] : memref<8x1x192xf32, #tpu.memory_space<vmem>>, vector<1x1x192xf32>
    %7 = vector.shape_cast %6 : vector<1x1x192xf32> to vector<1x192xf32>
    %c0_11 = arith.constant 0 : index
    %c0_12 = arith.constant 0 : index
    %c0_13 = arith.constant 0 : index
    %8 = vector.load %arg5[%c0_11, %c0_12, %c0_13] : memref<8x64x64xf32, #tpu.memory_space<vmem>>, vector<1x64x64xf32>
    %9 = vector.shape_cast %8 : vector<1x64x64xf32> to vector<64x64xf32>
    %10 = vector.extract_strided_slice %5 {offsets = [0, 0], sizes = [64, 64], strides = [1, 1]} : vector<64x192xf32> to vector<64x64xf32>
    %cst = arith.constant dense<0.000000e+00> : vector<16x64xf32>
    %11 = tpu.matmul %3, %10, %cst {dimension_numbers = #tpu.dot_dimension_numbers<[1], [0], [0], [1], [0, 0, 1, 1], [], []>} : vector<16x64xf32>, vector<64x64xf32>, vector<16x64xf32> -> vector<16x64xf32>
    %12 = vector.extract_strided_slice %7 {offsets = [0, 0], sizes = [1, 64], strides = [1, 1]} : vector<1x192xf32> to vector<1x64xf32>
    %13 = vector.broadcast %12 : vector<1x64xf32> to vector<16x64xf32>
    %14 = arith.addf %11, %13 : vector<16x64xf32>
    %15 = vector.extract_strided_slice %5 {offsets = [0, 64], sizes = [64, 128], strides = [1, 1]} : vector<64x192xf32> to vector<64x128xf32>
    %cst_14 = arith.constant dense<0.000000e+00> : vector<8x128xf32>
    %16 = tpu.matmul %1, %15, %cst_14 {dimension_numbers = #tpu.dot_dimension_numbers<[1], [0], [0], [1], [0, 0, 1, 1], [], []>} : vector<8x64xf32>, vector<64x128xf32>, vector<8x128xf32> -> vector<8x128xf32>
    %17 = vector.extract_strided_slice %7 {offsets = [0, 64], sizes = [1, 128], strides = [1, 1]} : vector<1x192xf32> to vector<1x128xf32>
    %18 = vector.broadcast %17 : vector<1x128xf32> to vector<8x128xf32>
    %19 = arith.addf %16, %18 : vector<8x128xf32>
    %20 = vector.extract_strided_slice %19 {offsets = [0, 0], sizes = [8, 64], strides = [1, 1]} : vector<8x128xf32> to vector<8x64xf32>
    %21 = vector.extract_strided_slice %19 {offsets = [0, 64], sizes = [8, 64], strides = [1, 1]} : vector<8x128xf32> to vector<8x64xf32>
    %22 = vector.extract_strided_slice %14 {offsets = [0, 0], sizes = [16, 16], strides = [1, 1]} : vector<16x64xf32> to vector<16x16xf32>
    %23 = vector.extract_strided_slice %20 {offsets = [0, 0], sizes = [8, 16], strides = [1, 1]} : vector<8x64xf32> to vector<8x16xf32>
    %cst_15 = arith.constant dense<0.000000e+00> : vector<16x8xf32>
    %24 = tpu.matmul %22, %23, %cst_15 {dimension_numbers = #tpu.dot_dimension_numbers<[1], [1], [0], [0], [0, 0, 1, 0], [], []>} : vector<16x16xf32>, vector<8x16xf32>, vector<16x8xf32> -> vector<16x8xf32>
    %cst_16 = arith.constant dense<0xFF800000> : vector<16xf32>
    %25 = vector.multi_reduction <maximumf>, %24, %cst_16 [1] : vector<16x8xf32> to vector<16xf32>
    %26 = vector.shape_cast %25 : vector<16xf32> to vector<16x1xf32>
    %27 = vector.broadcast %26 : vector<16x1xf32> to vector<16x8xf32>
    %28 = arith.subf %24, %27 : vector<16x8xf32>
    %29 = math.exp %28 : vector<16x8xf32>
    %cst_17 = arith.constant dense<0.000000e+00> : vector<16xf32>
    %30 = vector.multi_reduction <add>, %29, %cst_17 [1] : vector<16x8xf32> to vector<16xf32>
    %31 = vector.shape_cast %30 : vector<16xf32> to vector<16x1xf32>
    %32 = tpu.reciprocal %31 {approx = true} : vector<16x1xf32> -> vector<16x1xf32>
    %33 = vector.broadcast %32 : vector<16x1xf32> to vector<16x8xf32>
    %34 = arith.mulf %29, %33 : vector<16x8xf32>
    %35 = vector.extract_strided_slice %21 {offsets = [0, 0], sizes = [8, 16], strides = [1, 1]} : vector<8x64xf32> to vector<8x16xf32>
    %cst_18 = arith.constant dense<0.000000e+00> : vector<16x16xf32>
    %36 = tpu.matmul %34, %35, %cst_18 {dimension_numbers = #tpu.dot_dimension_numbers<[1], [0], [0], [1], [0, 0, 1, 1], [], []>} : vector<16x8xf32>, vector<8x16xf32>, vector<16x16xf32> -> vector<16x16xf32>
    %37 = vector.extract_strided_slice %9 {offsets = [0, 0], sizes = [16, 64], strides = [1, 1]} : vector<64x64xf32> to vector<16x64xf32>
    %cst_19 = arith.constant dense<0.000000e+00> : vector<16x64xf32>
    %38 = tpu.matmul %36, %37, %cst_19 {dimension_numbers = #tpu.dot_dimension_numbers<[1], [0], [0], [1], [0, 0, 1, 1], [], []>} : vector<16x16xf32>, vector<16x64xf32>, vector<16x64xf32> -> vector<16x64xf32>
    %39 = vector.extract_strided_slice %14 {offsets = [0, 16], sizes = [16, 16], strides = [1, 1]} : vector<16x64xf32> to vector<16x16xf32>
    %40 = vector.extract_strided_slice %20 {offsets = [0, 16], sizes = [8, 16], strides = [1, 1]} : vector<8x64xf32> to vector<8x16xf32>
    %cst_20 = arith.constant dense<0.000000e+00> : vector<16x8xf32>
    %41 = tpu.matmul %39, %40, %cst_20 {dimension_numbers = #tpu.dot_dimension_numbers<[1], [1], [0], [0], [0, 0, 1, 0], [], []>} : vector<16x16xf32>, vector<8x16xf32>, vector<16x8xf32> -> vector<16x8xf32>
    %cst_21 = arith.constant dense<0xFF800000> : vector<16xf32>
    %42 = vector.multi_reduction <maximumf>, %41, %cst_21 [1] : vector<16x8xf32> to vector<16xf32>
    %43 = vector.shape_cast %42 : vector<16xf32> to vector<16x1xf32>
    %44 = vector.broadcast %43 : vector<16x1xf32> to vector<16x8xf32>
    %45 = arith.subf %41, %44 : vector<16x8xf32>
    %46 = math.exp %45 : vector<16x8xf32>
    %cst_22 = arith.constant dense<0.000000e+00> : vector<16xf32>
    %47 = vector.multi_reduction <add>, %46, %cst_22 [1] : vector<16x8xf32> to vector<16xf32>
    %48 = vector.shape_cast %47 : vector<16xf32> to vector<16x1xf32>
    %49 = tpu.reciprocal %48 {approx = true} : vector<16x1xf32> -> vector<16x1xf32>
    %50 = vector.broadcast %49 : vector<16x1xf32> to vector<16x8xf32>
    %51 = arith.mulf %46, %50 : vector<16x8xf32>
    %52 = vector.extract_strided_slice %21 {offsets = [0, 16], sizes = [8, 16], strides = [1, 1]} : vector<8x64xf32> to vector<8x16xf32>
    %cst_23 = arith.constant dense<0.000000e+00> : vector<16x16xf32>
    %53 = tpu.matmul %51, %52, %cst_23 {dimension_numbers = #tpu.dot_dimension_numbers<[1], [0], [0], [1], [0, 0, 1, 1], [], []>} : vector<16x8xf32>, vector<8x16xf32>, vector<16x16xf32> -> vector<16x16xf32>
    %54 = vector.extract_strided_slice %9 {offsets = [16, 0], sizes = [16, 64], strides = [1, 1]} : vector<64x64xf32> to vector<16x64xf32>
    %cst_24 = arith.constant dense<0.000000e+00> : vector<16x64xf32>
    %55 = tpu.matmul %53, %54, %cst_24 {dimension_numbers = #tpu.dot_dimension_numbers<[1], [0], [0], [1], [0, 0, 1, 1], [], []>} : vector<16x16xf32>, vector<16x64xf32>, vector<16x64xf32> -> vector<16x64xf32>
    %56 = arith.addf %38, %55 : vector<16x64xf32>
    %57 = vector.extract_strided_slice %14 {offsets = [0, 32], sizes = [16, 16], strides = [1, 1]} : vector<16x64xf32> to vector<16x16xf32>
    %58 = vector.extract_strided_slice %20 {offsets = [0, 32], sizes = [8, 16], strides = [1, 1]} : vector<8x64xf32> to vector<8x16xf32>
    %cst_25 = arith.constant dense<0.000000e+00> : vector<16x8xf32>
    %59 = tpu.matmul %57, %58, %cst_25 {dimension_numbers = #tpu.dot_dimension_numbers<[1], [1], [0], [0], [0, 0, 1, 0], [], []>} : vector<16x16xf32>, vector<8x16xf32>, vector<16x8xf32> -> vector<16x8xf32>
    %cst_26 = arith.constant dense<0xFF800000> : vector<16xf32>
    %60 = vector.multi_reduction <maximumf>, %59, %cst_26 [1] : vector<16x8xf32> to vector<16xf32>
    %61 = vector.shape_cast %60 : vector<16xf32> to vector<16x1xf32>
    %62 = vector.broadcast %61 : vector<16x1xf32> to vector<16x8xf32>
    %63 = arith.subf %59, %62 : vector<16x8xf32>
    %64 = math.exp %63 : vector<16x8xf32>
    %cst_27 = arith.constant dense<0.000000e+00> : vector<16xf32>
    %65 = vector.multi_reduction <add>, %64, %cst_27 [1] : vector<16x8xf32> to vector<16xf32>
    %66 = vector.shape_cast %65 : vector<16xf32> to vector<16x1xf32>
    %67 = tpu.reciprocal %66 {approx = true} : vector<16x1xf32> -> vector<16x1xf32>
    %68 = vector.broadcast %67 : vector<16x1xf32> to vector<16x8xf32>
    %69 = arith.mulf %64, %68 : vector<16x8xf32>
    %70 = vector.extract_strided_slice %21 {offsets = [0, 32], sizes = [8, 16], strides = [1, 1]} : vector<8x64xf32> to vector<8x16xf32>
    %cst_28 = arith.constant dense<0.000000e+00> : vector<16x16xf32>
    %71 = tpu.matmul %69, %70, %cst_28 {dimension_numbers = #tpu.dot_dimension_numbers<[1], [0], [0], [1], [0, 0, 1, 1], [], []>} : vector<16x8xf32>, vector<8x16xf32>, vector<16x16xf32> -> vector<16x16xf32>
    %72 = vector.extract_strided_slice %9 {offsets = [32, 0], sizes = [16, 64], strides = [1, 1]} : vector<64x64xf32> to vector<16x64xf32>
    %cst_29 = arith.constant dense<0.000000e+00> : vector<16x64xf32>
    %73 = tpu.matmul %71, %72, %cst_29 {dimension_numbers = #tpu.dot_dimension_numbers<[1], [0], [0], [1], [0, 0, 1, 1], [], []>} : vector<16x16xf32>, vector<16x64xf32>, vector<16x64xf32> -> vector<16x64xf32>
    %74 = arith.addf %56, %73 : vector<16x64xf32>
    %75 = vector.extract_strided_slice %14 {offsets = [0, 48], sizes = [16, 16], strides = [1, 1]} : vector<16x64xf32> to vector<16x16xf32>
    %76 = vector.extract_strided_slice %20 {offsets = [0, 48], sizes = [8, 16], strides = [1, 1]} : vector<8x64xf32> to vector<8x16xf32>
    %cst_30 = arith.constant dense<0.000000e+00> : vector<16x8xf32>
    %77 = tpu.matmul %75, %76, %cst_30 {dimension_numbers = #tpu.dot_dimension_numbers<[1], [1], [0], [0], [0, 0, 1, 0], [], []>} : vector<16x16xf32>, vector<8x16xf32>, vector<16x8xf32> -> vector<16x8xf32>
    %cst_31 = arith.constant dense<0xFF800000> : vector<16xf32>
    %78 = vector.multi_reduction <maximumf>, %77, %cst_31 [1] : vector<16x8xf32> to vector<16xf32>
    %79 = vector.shape_cast %78 : vector<16xf32> to vector<16x1xf32>
    %80 = vector.broadcast %79 : vector<16x1xf32> to vector<16x8xf32>
    %81 = arith.subf %77, %80 : vector<16x8xf32>
    %82 = math.exp %81 : vector<16x8xf32>
    %cst_32 = arith.constant dense<0.000000e+00> : vector<16xf32>
    %83 = vector.multi_reduction <add>, %82, %cst_32 [1] : vector<16x8xf32> to vector<16xf32>
    %84 = vector.shape_cast %83 : vector<16xf32> to vector<16x1xf32>
    %85 = tpu.reciprocal %84 {approx = true} : vector<16x1xf32> -> vector<16x1xf32>
    %86 = vector.broadcast %85 : vector<16x1xf32> to vector<16x8xf32>
    %87 = arith.mulf %82, %86 : vector<16x8xf32>
    %88 = vector.extract_strided_slice %21 {offsets = [0, 48], sizes = [8, 16], strides = [1, 1]} : vector<8x64xf32> to vector<8x16xf32>
    %cst_33 = arith.constant dense<0.000000e+00> : vector<16x16xf32>
    %89 = tpu.matmul %87, %88, %cst_33 {dimension_numbers = #tpu.dot_dimension_numbers<[1], [0], [0], [1], [0, 0, 1, 1], [], []>} : vector<16x8xf32>, vector<8x16xf32>, vector<16x16xf32> -> vector<16x16xf32>
    %90 = vector.extract_strided_slice %9 {offsets = [48, 0], sizes = [16, 64], strides = [1, 1]} : vector<64x64xf32> to vector<16x64xf32>
    %cst_34 = arith.constant dense<0.000000e+00> : vector<16x64xf32>
    %91 = tpu.matmul %89, %90, %cst_34 {dimension_numbers = #tpu.dot_dimension_numbers<[1], [0], [0], [1], [0, 0, 1, 1], [], []>} : vector<16x16xf32>, vector<16x64xf32>, vector<16x64xf32> -> vector<16x64xf32>
    %92 = arith.addf %74, %91 : vector<16x64xf32>
    %c0_35 = arith.constant 0 : index
    %c0_36 = arith.constant 0 : index
    %c0_37 = arith.constant 0 : index
    %93 = vector.load %arg6[%c0_35, %c0_36, %c0_37] : memref<8x1x64xf32, #tpu.memory_space<vmem>>, vector<1x1x64xf32>
    %94 = vector.shape_cast %93 : vector<1x1x64xf32> to vector<1x64xf32>
    %95 = vector.broadcast %94 : vector<1x64xf32> to vector<16x64xf32>
    %96 = arith.addf %92, %95 : vector<16x64xf32>
    %c1 = arith.constant 1 : index
    %c0_38 = arith.constant 0 : index
    %c0_39 = arith.constant 0 : index
    %97 = vector.load %arg3[%c1, %c0_38, %c0_39] : memref<8x64x192xf32, #tpu.memory_space<vmem>>, vector<1x64x192xf32>
    %98 = vector.shape_cast %97 : vector<1x64x192xf32> to vector<64x192xf32>
    %c1_40 = arith.constant 1 : index
    %c0_41 = arith.constant 0 : index
    %c0_42 = arith.constant 0 : index
    %99 = vector.load %arg4[%c1_40, %c0_41, %c0_42] : memref<8x1x192xf32, #tpu.memory_space<vmem>>, vector<1x1x192xf32>
    %100 = vector.shape_cast %99 : vector<1x1x192xf32> to vector<1x192xf32>
    %c1_43 = arith.constant 1 : index
    %c0_44 = arith.constant 0 : index
    %c0_45 = arith.constant 0 : index
    %101 = vector.load %arg5[%c1_43, %c0_44, %c0_45] : memref<8x64x64xf32, #tpu.memory_space<vmem>>, vector<1x64x64xf32>
    %102 = vector.shape_cast %101 : vector<1x64x64xf32> to vector<64x64xf32>
    %103 = vector.extract_strided_slice %98 {offsets = [0, 0], sizes = [64, 64], strides = [1, 1]} : vector<64x192xf32> to vector<64x64xf32>
    %cst_46 = arith.constant dense<0.000000e+00> : vector<8x64xf32>
    %104 = tpu.matmul %1, %103, %cst_46 {dimension_numbers = #tpu.dot_dimension_numbers<[1], [0], [0], [1], [0, 0, 1, 1], [], []>} : vector<8x64xf32>, vector<64x64xf32>, vector<8x64xf32> -> vector<8x64xf32>
    %105 = vector.extract_strided_slice %100 {offsets = [0, 0], sizes = [1, 64], strides = [1, 1]} : vector<1x192xf32> to vector<1x64xf32>
    %106 = vector.broadcast %105 : vector<1x64xf32> to vector<8x64xf32>
    %107 = arith.addf %104, %106 : vector<8x64xf32>
    %108 = vector.extract_strided_slice %98 {offsets = [0, 64], sizes = [64, 128], strides = [1, 1]} : vector<64x192xf32> to vector<64x128xf32>
    %cst_47 = arith.constant dense<0.000000e+00> : vector<16x128xf32>
    %109 = tpu.matmul %3, %108, %cst_47 {dimension_numbers = #tpu.dot_dimension_numbers<[1], [0], [0], [1], [0, 0, 1, 1], [], []>} : vector<16x64xf32>, vector<64x128xf32>, vector<16x128xf32> -> vector<16x128xf32>
    %110 = vector.extract_strided_slice %100 {offsets = [0, 64], sizes = [1, 128], strides = [1, 1]} : vector<1x192xf32> to vector<1x128xf32>
    %111 = vector.broadcast %110 : vector<1x128xf32> to vector<16x128xf32>
    %112 = arith.addf %109, %111 : vector<16x128xf32>
    %113 = vector.extract_strided_slice %112 {offsets = [0, 0], sizes = [16, 64], strides = [1, 1]} : vector<16x128xf32> to vector<16x64xf32>
    %114 = vector.extract_strided_slice %112 {offsets = [0, 64], sizes = [16, 64], strides = [1, 1]} : vector<16x128xf32> to vector<16x64xf32>
    %115 = vector.extract_strided_slice %107 {offsets = [0, 0], sizes = [8, 16], strides = [1, 1]} : vector<8x64xf32> to vector<8x16xf32>
    %116 = vector.extract_strided_slice %113 {offsets = [0, 0], sizes = [16, 16], strides = [1, 1]} : vector<16x64xf32> to vector<16x16xf32>
    %cst_48 = arith.constant dense<0.000000e+00> : vector<8x16xf32>
    %117 = tpu.matmul %115, %116, %cst_48 {dimension_numbers = #tpu.dot_dimension_numbers<[1], [1], [0], [0], [0, 0, 1, 0], [], []>} : vector<8x16xf32>, vector<16x16xf32>, vector<8x16xf32> -> vector<8x16xf32>
    %cst_49 = arith.constant dense<0xFF800000> : vector<8xf32>
    %118 = vector.multi_reduction <maximumf>, %117, %cst_49 [1] : vector<8x16xf32> to vector<8xf32>
    %119 = vector.shape_cast %118 : vector<8xf32> to vector<8x1xf32>
    %120 = vector.broadcast %119 : vector<8x1xf32> to vector<8x16xf32>
    %121 = arith.subf %117, %120 : vector<8x16xf32>
    %122 = math.exp %121 : vector<8x16xf32>
    %cst_50 = arith.constant dense<0.000000e+00> : vector<8xf32>
    %123 = vector.multi_reduction <add>, %122, %cst_50 [1] : vector<8x16xf32> to vector<8xf32>
    %124 = vector.shape_cast %123 : vector<8xf32> to vector<8x1xf32>
    %125 = tpu.reciprocal %124 {approx = true} : vector<8x1xf32> -> vector<8x1xf32>
    %126 = vector.broadcast %125 : vector<8x1xf32> to vector<8x16xf32>
    %127 = arith.mulf %122, %126 : vector<8x16xf32>
    %128 = vector.extract_strided_slice %114 {offsets = [0, 0], sizes = [16, 16], strides = [1, 1]} : vector<16x64xf32> to vector<16x16xf32>
    %cst_51 = arith.constant dense<0.000000e+00> : vector<8x16xf32>
    %129 = tpu.matmul %127, %128, %cst_51 {dimension_numbers = #tpu.dot_dimension_numbers<[1], [0], [0], [1], [0, 0, 1, 1], [], []>} : vector<8x16xf32>, vector<16x16xf32>, vector<8x16xf32> -> vector<8x16xf32>
    %130 = vector.extract_strided_slice %102 {offsets = [0, 0], sizes = [16, 64], strides = [1, 1]} : vector<64x64xf32> to vector<16x64xf32>
    %cst_52 = arith.constant dense<0.000000e+00> : vector<8x64xf32>
    %131 = tpu.matmul %129, %130, %cst_52 {dimension_numbers = #tpu.dot_dimension_numbers<[1], [0], [0], [1], [0, 0, 1, 1], [], []>} : vector<8x16xf32>, vector<16x64xf32>, vector<8x64xf32> -> vector<8x64xf32>
    %132 = vector.extract_strided_slice %107 {offsets = [0, 16], sizes = [8, 16], strides = [1, 1]} : vector<8x64xf32> to vector<8x16xf32>
    %133 = vector.extract_strided_slice %113 {offsets = [0, 16], sizes = [16, 16], strides = [1, 1]} : vector<16x64xf32> to vector<16x16xf32>
    %cst_53 = arith.constant dense<0.000000e+00> : vector<8x16xf32>
    %134 = tpu.matmul %132, %133, %cst_53 {dimension_numbers = #tpu.dot_dimension_numbers<[1], [1], [0], [0], [0, 0, 1, 0], [], []>} : vector<8x16xf32>, vector<16x16xf32>, vector<8x16xf32> -> vector<8x16xf32>
    %cst_54 = arith.constant dense<0xFF800000> : vector<8xf32>
    %135 = vector.multi_reduction <maximumf>, %134, %cst_54 [1] : vector<8x16xf32> to vector<8xf32>
    %136 = vector.shape_cast %135 : vector<8xf32> to vector<8x1xf32>
    %137 = vector.broadcast %136 : vector<8x1xf32> to vector<8x16xf32>
    %138 = arith.subf %134, %137 : vector<8x16xf32>
    %139 = math.exp %138 : vector<8x16xf32>
    %cst_55 = arith.constant dense<0.000000e+00> : vector<8xf32>
    %140 = vector.multi_reduction <add>, %139, %cst_55 [1] : vector<8x16xf32> to vector<8xf32>
    %141 = vector.shape_cast %140 : vector<8xf32> to vector<8x1xf32>
    %142 = tpu.reciprocal %141 {approx = true} : vector<8x1xf32> -> vector<8x1xf32>
    %143 = vector.broadcast %142 : vector<8x1xf32> to vector<8x16xf32>
    %144 = arith.mulf %139, %143 : vector<8x16xf32>
    %145 = vector.extract_strided_slice %114 {offsets = [0, 16], sizes = [16, 16], strides = [1, 1]} : vector<16x64xf32> to vector<16x16xf32>
    %cst_56 = arith.constant dense<0.000000e+00> : vector<8x16xf32>
    %146 = tpu.matmul %144, %145, %cst_56 {dimension_numbers = #tpu.dot_dimension_numbers<[1], [0], [0], [1], [0, 0, 1, 1], [], []>} : vector<8x16xf32>, vector<16x16xf32>, vector<8x16xf32> -> vector<8x16xf32>
    %147 = vector.extract_strided_slice %102 {offsets = [16, 0], sizes = [16, 64], strides = [1, 1]} : vector<64x64xf32> to vector<16x64xf32>
    %cst_57 = arith.constant dense<0.000000e+00> : vector<8x64xf32>
    %148 = tpu.matmul %146, %147, %cst_57 {dimension_numbers = #tpu.dot_dimension_numbers<[1], [0], [0], [1], [0, 0, 1, 1], [], []>} : vector<8x16xf32>, vector<16x64xf32>, vector<8x64xf32> -> vector<8x64xf32>
    %149 = arith.addf %131, %148 : vector<8x64xf32>
    %150 = vector.extract_strided_slice %107 {offsets = [0, 32], sizes = [8, 16], strides = [1, 1]} : vector<8x64xf32> to vector<8x16xf32>
    %151 = vector.extract_strided_slice %113 {offsets = [0, 32], sizes = [16, 16], strides = [1, 1]} : vector<16x64xf32> to vector<16x16xf32>
    %cst_58 = arith.constant dense<0.000000e+00> : vector<8x16xf32>
    %152 = tpu.matmul %150, %151, %cst_58 {dimension_numbers = #tpu.dot_dimension_numbers<[1], [1], [0], [0], [0, 0, 1, 0], [], []>} : vector<8x16xf32>, vector<16x16xf32>, vector<8x16xf32> -> vector<8x16xf32>
    %cst_59 = arith.constant dense<0xFF800000> : vector<8xf32>
    %153 = vector.multi_reduction <maximumf>, %152, %cst_59 [1] : vector<8x16xf32> to vector<8xf32>
    %154 = vector.shape_cast %153 : vector<8xf32> to vector<8x1xf32>
    %155 = vector.broadcast %154 : vector<8x1xf32> to vector<8x16xf32>
    %156 = arith.subf %152, %155 : vector<8x16xf32>
    %157 = math.exp %156 : vector<8x16xf32>
    %cst_60 = arith.constant dense<0.000000e+00> : vector<8xf32>
    %158 = vector.multi_reduction <add>, %157, %cst_60 [1] : vector<8x16xf32> to vector<8xf32>
    %159 = vector.shape_cast %158 : vector<8xf32> to vector<8x1xf32>
    %160 = tpu.reciprocal %159 {approx = true} : vector<8x1xf32> -> vector<8x1xf32>
    %161 = vector.broadcast %160 : vector<8x1xf32> to vector<8x16xf32>
    %162 = arith.mulf %157, %161 : vector<8x16xf32>
    %163 = vector.extract_strided_slice %114 {offsets = [0, 32], sizes = [16, 16], strides = [1, 1]} : vector<16x64xf32> to vector<16x16xf32>
    %cst_61 = arith.constant dense<0.000000e+00> : vector<8x16xf32>
    %164 = tpu.matmul %162, %163, %cst_61 {dimension_numbers = #tpu.dot_dimension_numbers<[1], [0], [0], [1], [0, 0, 1, 1], [], []>} : vector<8x16xf32>, vector<16x16xf32>, vector<8x16xf32> -> vector<8x16xf32>
    %165 = vector.extract_strided_slice %102 {offsets = [32, 0], sizes = [16, 64], strides = [1, 1]} : vector<64x64xf32> to vector<16x64xf32>
    %cst_62 = arith.constant dense<0.000000e+00> : vector<8x64xf32>
    %166 = tpu.matmul %164, %165, %cst_62 {dimension_numbers = #tpu.dot_dimension_numbers<[1], [0], [0], [1], [0, 0, 1, 1], [], []>} : vector<8x16xf32>, vector<16x64xf32>, vector<8x64xf32> -> vector<8x64xf32>
    %167 = arith.addf %149, %166 : vector<8x64xf32>
    %168 = vector.extract_strided_slice %107 {offsets = [0, 48], sizes = [8, 16], strides = [1, 1]} : vector<8x64xf32> to vector<8x16xf32>
    %169 = vector.extract_strided_slice %113 {offsets = [0, 48], sizes = [16, 16], strides = [1, 1]} : vector<16x64xf32> to vector<16x16xf32>
    %cst_63 = arith.constant dense<0.000000e+00> : vector<8x16xf32>
    %170 = tpu.matmul %168, %169, %cst_63 {dimension_numbers = #tpu.dot_dimension_numbers<[1], [1], [0], [0], [0, 0, 1, 0], [], []>} : vector<8x16xf32>, vector<16x16xf32>, vector<8x16xf32> -> vector<8x16xf32>
    %cst_64 = arith.constant dense<0xFF800000> : vector<8xf32>
    %171 = vector.multi_reduction <maximumf>, %170, %cst_64 [1] : vector<8x16xf32> to vector<8xf32>
    %172 = vector.shape_cast %171 : vector<8xf32> to vector<8x1xf32>
    %173 = vector.broadcast %172 : vector<8x1xf32> to vector<8x16xf32>
    %174 = arith.subf %170, %173 : vector<8x16xf32>
    %175 = math.exp %174 : vector<8x16xf32>
    %cst_65 = arith.constant dense<0.000000e+00> : vector<8xf32>
    %176 = vector.multi_reduction <add>, %175, %cst_65 [1] : vector<8x16xf32> to vector<8xf32>
    %177 = vector.shape_cast %176 : vector<8xf32> to vector<8x1xf32>
    %178 = tpu.reciprocal %177 {approx = true} : vector<8x1xf32> -> vector<8x1xf32>
    %179 = vector.broadcast %178 : vector<8x1xf32> to vector<8x16xf32>
    %180 = arith.mulf %175, %179 : vector<8x16xf32>
    %181 = vector.extract_strided_slice %114 {offsets = [0, 48], sizes = [16, 16], strides = [1, 1]} : vector<16x64xf32> to vector<16x16xf32>
    %cst_66 = arith.constant dense<0.000000e+00> : vector<8x16xf32>
    %182 = tpu.matmul %180, %181, %cst_66 {dimension_numbers = #tpu.dot_dimension_numbers<[1], [0], [0], [1], [0, 0, 1, 1], [], []>} : vector<8x16xf32>, vector<16x16xf32>, vector<8x16xf32> -> vector<8x16xf32>
    %183 = vector.extract_strided_slice %102 {offsets = [48, 0], sizes = [16, 64], strides = [1, 1]} : vector<64x64xf32> to vector<16x64xf32>
    %cst_67 = arith.constant dense<0.000000e+00> : vector<8x64xf32>
    %184 = tpu.matmul %182, %183, %cst_67 {dimension_numbers = #tpu.dot_dimension_numbers<[1], [0], [0], [1], [0, 0, 1, 1], [], []>} : vector<8x16xf32>, vector<16x64xf32>, vector<8x64xf32> -> vector<8x64xf32>
    %185 = arith.addf %167, %184 : vector<8x64xf32>
    %c1_68 = arith.constant 1 : index
    %c0_69 = arith.constant 0 : index
    %c0_70 = arith.constant 0 : index
    %186 = vector.load %arg6[%c1_68, %c0_69, %c0_70] : memref<8x1x64xf32, #tpu.memory_space<vmem>>, vector<1x1x64xf32>
    %187 = vector.shape_cast %186 : vector<1x1x64xf32> to vector<1x64xf32>
    %188 = vector.broadcast %187 : vector<1x64xf32> to vector<8x64xf32>
    %189 = arith.addf %185, %188 : vector<8x64xf32>
    %c2 = arith.constant 2 : index
    %c0_71 = arith.constant 0 : index
    %c0_72 = arith.constant 0 : index
    %190 = vector.load %arg3[%c2, %c0_71, %c0_72] : memref<8x64x192xf32, #tpu.memory_space<vmem>>, vector<1x64x192xf32>
    %191 = vector.shape_cast %190 : vector<1x64x192xf32> to vector<64x192xf32>
    %c2_73 = arith.constant 2 : index
    %c0_74 = arith.constant 0 : index
    %c0_75 = arith.constant 0 : index
    %192 = vector.load %arg4[%c2_73, %c0_74, %c0_75] : memref<8x1x192xf32, #tpu.memory_space<vmem>>, vector<1x1x192xf32>
    %193 = vector.shape_cast %192 : vector<1x1x192xf32> to vector<1x192xf32>
    %c2_76 = arith.constant 2 : index
    %c0_77 = arith.constant 0 : index
    %c0_78 = arith.constant 0 : index
    %194 = vector.load %arg5[%c2_76, %c0_77, %c0_78] : memref<8x64x64xf32, #tpu.memory_space<vmem>>, vector<1x64x64xf32>
    %195 = vector.shape_cast %194 : vector<1x64x64xf32> to vector<64x64xf32>
    %196 = vector.extract_strided_slice %191 {offsets = [0, 0], sizes = [64, 64], strides = [1, 1]} : vector<64x192xf32> to vector<64x64xf32>
    %cst_79 = arith.constant dense<0.000000e+00> : vector<16x64xf32>
    %197 = tpu.matmul %96, %196, %cst_79 {dimension_numbers = #tpu.dot_dimension_numbers<[1], [0], [0], [1], [0, 0, 1, 1], [], []>} : vector<16x64xf32>, vector<64x64xf32>, vector<16x64xf32> -> vector<16x64xf32>
    %198 = vector.extract_strided_slice %193 {offsets = [0, 0], sizes = [1, 64], strides = [1, 1]} : vector<1x192xf32> to vector<1x64xf32>
    %199 = vector.broadcast %198 : vector<1x64xf32> to vector<16x64xf32>
    %200 = arith.addf %197, %199 : vector<16x64xf32>
    %201 = vector.extract_strided_slice %191 {offsets = [0, 64], sizes = [64, 128], strides = [1, 1]} : vector<64x192xf32> to vector<64x128xf32>
    %cst_80 = arith.constant dense<0.000000e+00> : vector<16x128xf32>
    %202 = tpu.matmul %96, %201, %cst_80 {dimension_numbers = #tpu.dot_dimension_numbers<[1], [0], [0], [1], [0, 0, 1, 1], [], []>} : vector<16x64xf32>, vector<64x128xf32>, vector<16x128xf32> -> vector<16x128xf32>
    %203 = vector.extract_strided_slice %193 {offsets = [0, 64], sizes = [1, 128], strides = [1, 1]} : vector<1x192xf32> to vector<1x128xf32>
    %204 = vector.broadcast %203 : vector<1x128xf32> to vector<16x128xf32>
    %205 = arith.addf %202, %204 : vector<16x128xf32>
    %206 = vector.extract_strided_slice %205 {offsets = [0, 0], sizes = [16, 64], strides = [1, 1]} : vector<16x128xf32> to vector<16x64xf32>
    %207 = vector.extract_strided_slice %205 {offsets = [0, 64], sizes = [16, 64], strides = [1, 1]} : vector<16x128xf32> to vector<16x64xf32>
    %208 = vector.extract_strided_slice %200 {offsets = [0, 0], sizes = [16, 16], strides = [1, 1]} : vector<16x64xf32> to vector<16x16xf32>
    %209 = vector.extract_strided_slice %206 {offsets = [0, 0], sizes = [16, 16], strides = [1, 1]} : vector<16x64xf32> to vector<16x16xf32>
    %cst_81 = arith.constant dense<0.000000e+00> : vector<16x16xf32>
    %210 = tpu.matmul %208, %209, %cst_81 {dimension_numbers = #tpu.dot_dimension_numbers<[1], [1], [0], [0], [0, 0, 1, 0], [], []>} : vector<16x16xf32>, vector<16x16xf32>, vector<16x16xf32> -> vector<16x16xf32>
    %cst_82 = arith.constant dense<0xFF800000> : vector<16xf32>
    %211 = vector.multi_reduction <maximumf>, %210, %cst_82 [1] : vector<16x16xf32> to vector<16xf32>
    %212 = vector.shape_cast %211 : vector<16xf32> to vector<16x1xf32>
    %213 = vector.broadcast %212 : vector<16x1xf32> to vector<16x16xf32>
    %214 = arith.subf %210, %213 : vector<16x16xf32>
    %215 = math.exp %214 : vector<16x16xf32>
    %cst_83 = arith.constant dense<0.000000e+00> : vector<16xf32>
    %216 = vector.multi_reduction <add>, %215, %cst_83 [1] : vector<16x16xf32> to vector<16xf32>
    %217 = vector.shape_cast %216 : vector<16xf32> to vector<16x1xf32>
    %218 = tpu.reciprocal %217 {approx = true} : vector<16x1xf32> -> vector<16x1xf32>
    %219 = vector.broadcast %218 : vector<16x1xf32> to vector<16x16xf32>
    %220 = arith.mulf %215, %219 : vector<16x16xf32>
    %221 = vector.extract_strided_slice %207 {offsets = [0, 0], sizes = [16, 16], strides = [1, 1]} : vector<16x64xf32> to vector<16x16xf32>
    %cst_84 = arith.constant dense<0.000000e+00> : vector<16x16xf32>
    %222 = tpu.matmul %220, %221, %cst_84 {dimension_numbers = #tpu.dot_dimension_numbers<[1], [0], [0], [1], [0, 0, 1, 1], [], []>} : vector<16x16xf32>, vector<16x16xf32>, vector<16x16xf32> -> vector<16x16xf32>
    %223 = vector.extract_strided_slice %195 {offsets = [0, 0], sizes = [16, 64], strides = [1, 1]} : vector<64x64xf32> to vector<16x64xf32>
    %cst_85 = arith.constant dense<0.000000e+00> : vector<16x64xf32>
    %224 = tpu.matmul %222, %223, %cst_85 {dimension_numbers = #tpu.dot_dimension_numbers<[1], [0], [0], [1], [0, 0, 1, 1], [], []>} : vector<16x16xf32>, vector<16x64xf32>, vector<16x64xf32> -> vector<16x64xf32>
    %225 = vector.extract_strided_slice %200 {offsets = [0, 16], sizes = [16, 16], strides = [1, 1]} : vector<16x64xf32> to vector<16x16xf32>
    %226 = vector.extract_strided_slice %206 {offsets = [0, 16], sizes = [16, 16], strides = [1, 1]} : vector<16x64xf32> to vector<16x16xf32>
    %cst_86 = arith.constant dense<0.000000e+00> : vector<16x16xf32>
    %227 = tpu.matmul %225, %226, %cst_86 {dimension_numbers = #tpu.dot_dimension_numbers<[1], [1], [0], [0], [0, 0, 1, 0], [], []>} : vector<16x16xf32>, vector<16x16xf32>, vector<16x16xf32> -> vector<16x16xf32>
    %cst_87 = arith.constant dense<0xFF800000> : vector<16xf32>
    %228 = vector.multi_reduction <maximumf>, %227, %cst_87 [1] : vector<16x16xf32> to vector<16xf32>
    %229 = vector.shape_cast %228 : vector<16xf32> to vector<16x1xf32>
    %230 = vector.broadcast %229 : vector<16x1xf32> to vector<16x16xf32>
    %231 = arith.subf %227, %230 : vector<16x16xf32>
    %232 = math.exp %231 : vector<16x16xf32>
    %cst_88 = arith.constant dense<0.000000e+00> : vector<16xf32>
    %233 = vector.multi_reduction <add>, %232, %cst_88 [1] : vector<16x16xf32> to vector<16xf32>
    %234 = vector.shape_cast %233 : vector<16xf32> to vector<16x1xf32>
    %235 = tpu.reciprocal %234 {approx = true} : vector<16x1xf32> -> vector<16x1xf32>
    %236 = vector.broadcast %235 : vector<16x1xf32> to vector<16x16xf32>
    %237 = arith.mulf %232, %236 : vector<16x16xf32>
    %238 = vector.extract_strided_slice %207 {offsets = [0, 16], sizes = [16, 16], strides = [1, 1]} : vector<16x64xf32> to vector<16x16xf32>
    %cst_89 = arith.constant dense<0.000000e+00> : vector<16x16xf32>
    %239 = tpu.matmul %237, %238, %cst_89 {dimension_numbers = #tpu.dot_dimension_numbers<[1], [0], [0], [1], [0, 0, 1, 1], [], []>} : vector<16x16xf32>, vector<16x16xf32>, vector<16x16xf32> -> vector<16x16xf32>
    %240 = vector.extract_strided_slice %195 {offsets = [16, 0], sizes = [16, 64], strides = [1, 1]} : vector<64x64xf32> to vector<16x64xf32>
    %cst_90 = arith.constant dense<0.000000e+00> : vector<16x64xf32>
    %241 = tpu.matmul %239, %240, %cst_90 {dimension_numbers = #tpu.dot_dimension_numbers<[1], [0], [0], [1], [0, 0, 1, 1], [], []>} : vector<16x16xf32>, vector<16x64xf32>, vector<16x64xf32> -> vector<16x64xf32>
    %242 = arith.addf %224, %241 : vector<16x64xf32>
    %243 = vector.extract_strided_slice %200 {offsets = [0, 32], sizes = [16, 16], strides = [1, 1]} : vector<16x64xf32> to vector<16x16xf32>
    %244 = vector.extract_strided_slice %206 {offsets = [0, 32], sizes = [16, 16], strides = [1, 1]} : vector<16x64xf32> to vector<16x16xf32>
    %cst_91 = arith.constant dense<0.000000e+00> : vector<16x16xf32>
    %245 = tpu.matmul %243, %244, %cst_91 {dimension_numbers = #tpu.dot_dimension_numbers<[1], [1], [0], [0], [0, 0, 1, 0], [], []>} : vector<16x16xf32>, vector<16x16xf32>, vector<16x16xf32> -> vector<16x16xf32>
    %cst_92 = arith.constant dense<0xFF800000> : vector<16xf32>
    %246 = vector.multi_reduction <maximumf>, %245, %cst_92 [1] : vector<16x16xf32> to vector<16xf32>
    %247 = vector.shape_cast %246 : vector<16xf32> to vector<16x1xf32>
    %248 = vector.broadcast %247 : vector<16x1xf32> to vector<16x16xf32>
    %249 = arith.subf %245, %248 : vector<16x16xf32>
    %250 = math.exp %249 : vector<16x16xf32>
    %cst_93 = arith.constant dense<0.000000e+00> : vector<16xf32>
    %251 = vector.multi_reduction <add>, %250, %cst_93 [1] : vector<16x16xf32> to vector<16xf32>
    %252 = vector.shape_cast %251 : vector<16xf32> to vector<16x1xf32>
    %253 = tpu.reciprocal %252 {approx = true} : vector<16x1xf32> -> vector<16x1xf32>
    %254 = vector.broadcast %253 : vector<16x1xf32> to vector<16x16xf32>
    %255 = arith.mulf %250, %254 : vector<16x16xf32>
    %256 = vector.extract_strided_slice %207 {offsets = [0, 32], sizes = [16, 16], strides = [1, 1]} : vector<16x64xf32> to vector<16x16xf32>
    %cst_94 = arith.constant dense<0.000000e+00> : vector<16x16xf32>
    %257 = tpu.matmul %255, %256, %cst_94 {dimension_numbers = #tpu.dot_dimension_numbers<[1], [0], [0], [1], [0, 0, 1, 1], [], []>} : vector<16x16xf32>, vector<16x16xf32>, vector<16x16xf32> -> vector<16x16xf32>
    %258 = vector.extract_strided_slice %195 {offsets = [32, 0], sizes = [16, 64], strides = [1, 1]} : vector<64x64xf32> to vector<16x64xf32>
    %cst_95 = arith.constant dense<0.000000e+00> : vector<16x64xf32>
    %259 = tpu.matmul %257, %258, %cst_95 {dimension_numbers = #tpu.dot_dimension_numbers<[1], [0], [0], [1], [0, 0, 1, 1], [], []>} : vector<16x16xf32>, vector<16x64xf32>, vector<16x64xf32> -> vector<16x64xf32>
    %260 = arith.addf %242, %259 : vector<16x64xf32>
    %261 = vector.extract_strided_slice %200 {offsets = [0, 48], sizes = [16, 16], strides = [1, 1]} : vector<16x64xf32> to vector<16x16xf32>
    %262 = vector.extract_strided_slice %206 {offsets = [0, 48], sizes = [16, 16], strides = [1, 1]} : vector<16x64xf32> to vector<16x16xf32>
    %cst_96 = arith.constant dense<0.000000e+00> : vector<16x16xf32>
    %263 = tpu.matmul %261, %262, %cst_96 {dimension_numbers = #tpu.dot_dimension_numbers<[1], [1], [0], [0], [0, 0, 1, 0], [], []>} : vector<16x16xf32>, vector<16x16xf32>, vector<16x16xf32> -> vector<16x16xf32>
    %cst_97 = arith.constant dense<0xFF800000> : vector<16xf32>
    %264 = vector.multi_reduction <maximumf>, %263, %cst_97 [1] : vector<16x16xf32> to vector<16xf32>
    %265 = vector.shape_cast %264 : vector<16xf32> to vector<16x1xf32>
    %266 = vector.broadcast %265 : vector<16x1xf32> to vector<16x16xf32>
    %267 = arith.subf %263, %266 : vector<16x16xf32>
    %268 = math.exp %267 : vector<16x16xf32>
    %cst_98 = arith.constant dense<0.000000e+00> : vector<16xf32>
    %269 = vector.multi_reduction <add>, %268, %cst_98 [1] : vector<16x16xf32> to vector<16xf32>
    %270 = vector.shape_cast %269 : vector<16xf32> to vector<16x1xf32>
    %271 = tpu.reciprocal %270 {approx = true} : vector<16x1xf32> -> vector<16x1xf32>
    %272 = vector.broadcast %271 : vector<16x1xf32> to vector<16x16xf32>
    %273 = arith.mulf %268, %272 : vector<16x16xf32>
    %274 = vector.extract_strided_slice %207 {offsets = [0, 48], sizes = [16, 16], strides = [1, 1]} : vector<16x64xf32> to vector<16x16xf32>
    %cst_99 = arith.constant dense<0.000000e+00> : vector<16x16xf32>
    %275 = tpu.matmul %273, %274, %cst_99 {dimension_numbers = #tpu.dot_dimension_numbers<[1], [0], [0], [1], [0, 0, 1, 1], [], []>} : vector<16x16xf32>, vector<16x16xf32>, vector<16x16xf32> -> vector<16x16xf32>
    %276 = vector.extract_strided_slice %195 {offsets = [48, 0], sizes = [16, 64], strides = [1, 1]} : vector<64x64xf32> to vector<16x64xf32>
    %cst_100 = arith.constant dense<0.000000e+00> : vector<16x64xf32>
    %277 = tpu.matmul %275, %276, %cst_100 {dimension_numbers = #tpu.dot_dimension_numbers<[1], [0], [0], [1], [0, 0, 1, 1], [], []>} : vector<16x16xf32>, vector<16x64xf32>, vector<16x64xf32> -> vector<16x64xf32>
    %278 = arith.addf %260, %277 : vector<16x64xf32>
    %c2_101 = arith.constant 2 : index
    %c0_102 = arith.constant 0 : index
    %c0_103 = arith.constant 0 : index
    %279 = vector.load %arg6[%c2_101, %c0_102, %c0_103] : memref<8x1x64xf32, #tpu.memory_space<vmem>>, vector<1x1x64xf32>
    %280 = vector.shape_cast %279 : vector<1x1x64xf32> to vector<1x64xf32>
    %281 = vector.broadcast %280 : vector<1x64xf32> to vector<16x64xf32>
    %282 = arith.addf %278, %281 : vector<16x64xf32>
    %283 = arith.addf %96, %282 : vector<16x64xf32>
    %cst_104 = arith.constant dense<0.000000e+00> : vector<16xf32>
    %284 = vector.multi_reduction <add>, %283, %cst_104 [1] : vector<16x64xf32> to vector<16xf32>
    %285 = vector.shape_cast %284 : vector<16xf32> to vector<16x1xf32>
    %cst_105 = arith.constant 6.400000e+01 : f32
    %286 = vector.broadcast %cst_105 : f32 to vector<16x1xf32>
    %287 = arith.divf %285, %286 : vector<16x1xf32>
    %288 = vector.broadcast %287 : vector<16x1xf32> to vector<16x64xf32>
    %289 = arith.subf %283, %288 : vector<16x64xf32>
    %290 = arith.mulf %289, %289 : vector<16x64xf32>
    %cst_106 = arith.constant dense<0.000000e+00> : vector<16xf32>
    %291 = vector.multi_reduction <add>, %290, %cst_106 [1] : vector<16x64xf32> to vector<16xf32>
    %292 = vector.shape_cast %291 : vector<16xf32> to vector<16x1xf32>
    %cst_107 = arith.constant 6.400000e+01 : f32
    %293 = vector.broadcast %cst_107 : f32 to vector<16x1xf32>
    %294 = arith.divf %292, %293 : vector<16x1xf32>
    %295 = vector.broadcast %287 : vector<16x1xf32> to vector<16x64xf32>
    %296 = arith.subf %283, %295 : vector<16x64xf32>
    %cst_108 = arith.constant 9.99999974E-6 : f32
    %297 = vector.broadcast %cst_108 : f32 to vector<16x1xf32>
    %298 = arith.addf %294, %297 : vector<16x1xf32>
    %299 = math.rsqrt %298 : vector<16x1xf32>
    %300 = vector.broadcast %299 : vector<16x1xf32> to vector<16x64xf32>
    %301 = arith.mulf %296, %300 : vector<16x64xf32>
    %c0_109 = arith.constant 0 : index
    %c0_110 = arith.constant 0 : index
    %c0_111 = arith.constant 0 : index
    %302 = vector.load %arg11[%c0_109, %c0_110, %c0_111] : memref<8x1x64xf32, #tpu.memory_space<vmem>>, vector<1x1x64xf32>
    %303 = vector.shape_cast %302 : vector<1x1x64xf32> to vector<1x64xf32>
    %304 = vector.broadcast %303 : vector<1x64xf32> to vector<16x64xf32>
    %305 = arith.mulf %301, %304 : vector<16x64xf32>
    %c0_112 = arith.constant 0 : index
    %c0_113 = arith.constant 0 : index
    %c0_114 = arith.constant 0 : index
    %306 = vector.load %arg12[%c0_112, %c0_113, %c0_114] : memref<8x1x64xf32, #tpu.memory_space<vmem>>, vector<1x1x64xf32>
    %307 = vector.shape_cast %306 : vector<1x1x64xf32> to vector<1x64xf32>
    %308 = vector.broadcast %307 : vector<1x64xf32> to vector<16x64xf32>
    %309 = arith.addf %305, %308 : vector<16x64xf32>
    %c0_115 = arith.constant 0 : index
    %c0_116 = arith.constant 0 : index
    %c0_117 = arith.constant 0 : index
    %310 = vector.load %arg7[%c0_115, %c0_116, %c0_117] : memref<4x64x32xf32, #tpu.memory_space<vmem>>, vector<1x64x32xf32>
    %311 = vector.shape_cast %310 : vector<1x64x32xf32> to vector<64x32xf32>
    %cst_118 = arith.constant dense<0.000000e+00> : vector<16x32xf32>
    %312 = tpu.matmul %309, %311, %cst_118 {dimension_numbers = #tpu.dot_dimension_numbers<[1], [0], [0], [1], [0, 0, 1, 1], [], []>} : vector<16x64xf32>, vector<64x32xf32>, vector<16x32xf32> -> vector<16x32xf32>
    %c0_119 = arith.constant 0 : index
    %c0_120 = arith.constant 0 : index
    %c0_121 = arith.constant 0 : index
    %313 = vector.load %arg8[%c0_119, %c0_120, %c0_121] : memref<4x1x32xf32, #tpu.memory_space<vmem>>, vector<1x1x32xf32>
    %314 = vector.shape_cast %313 : vector<1x1x32xf32> to vector<1x32xf32>
    %315 = vector.broadcast %314 : vector<1x32xf32> to vector<16x32xf32>
    %316 = arith.addf %312, %315 : vector<16x32xf32>
    %cst_122 = arith.constant 0.000000e+00 : f32
    %317 = vector.broadcast %cst_122 : f32 to vector<16x32xf32>
    %318 = arith.maximumf %316, %317 : vector<16x32xf32>
    %c0_123 = arith.constant 0 : index
    %c0_124 = arith.constant 0 : index
    %c0_125 = arith.constant 0 : index
    %319 = vector.load %arg9[%c0_123, %c0_124, %c0_125] : memref<4x32x64xf32, #tpu.memory_space<vmem>>, vector<1x32x64xf32>
    %320 = vector.shape_cast %319 : vector<1x32x64xf32> to vector<32x64xf32>
    %cst_126 = arith.constant dense<0.000000e+00> : vector<16x64xf32>
    %321 = tpu.matmul %318, %320, %cst_126 {dimension_numbers = #tpu.dot_dimension_numbers<[1], [0], [0], [1], [0, 0, 1, 1], [], []>} : vector<16x32xf32>, vector<32x64xf32>, vector<16x64xf32> -> vector<16x64xf32>
    %c0_127 = arith.constant 0 : index
    %c0_128 = arith.constant 0 : index
    %c0_129 = arith.constant 0 : index
    %322 = vector.load %arg10[%c0_127, %c0_128, %c0_129] : memref<4x1x64xf32, #tpu.memory_space<vmem>>, vector<1x1x64xf32>
    %323 = vector.shape_cast %322 : vector<1x1x64xf32> to vector<1x64xf32>
    %324 = vector.broadcast %323 : vector<1x64xf32> to vector<16x64xf32>
    %325 = arith.addf %321, %324 : vector<16x64xf32>
    %326 = arith.addf %309, %325 : vector<16x64xf32>
    %cst_130 = arith.constant dense<0.000000e+00> : vector<16xf32>
    %327 = vector.multi_reduction <add>, %326, %cst_130 [1] : vector<16x64xf32> to vector<16xf32>
    %328 = vector.shape_cast %327 : vector<16xf32> to vector<16x1xf32>
    %cst_131 = arith.constant 6.400000e+01 : f32
    %329 = vector.broadcast %cst_131 : f32 to vector<16x1xf32>
    %330 = arith.divf %328, %329 : vector<16x1xf32>
    %331 = vector.broadcast %330 : vector<16x1xf32> to vector<16x64xf32>
    %332 = arith.subf %326, %331 : vector<16x64xf32>
    %333 = arith.mulf %332, %332 : vector<16x64xf32>
    %cst_132 = arith.constant dense<0.000000e+00> : vector<16xf32>
    %334 = vector.multi_reduction <add>, %333, %cst_132 [1] : vector<16x64xf32> to vector<16xf32>
    %335 = vector.shape_cast %334 : vector<16xf32> to vector<16x1xf32>
    %cst_133 = arith.constant 6.400000e+01 : f32
    %336 = vector.broadcast %cst_133 : f32 to vector<16x1xf32>
    %337 = arith.divf %335, %336 : vector<16x1xf32>
    %338 = vector.broadcast %330 : vector<16x1xf32> to vector<16x64xf32>
    %339 = arith.subf %326, %338 : vector<16x64xf32>
    %cst_134 = arith.constant 9.99999974E-6 : f32
    %340 = vector.broadcast %cst_134 : f32 to vector<16x1xf32>
    %341 = arith.addf %337, %340 : vector<16x1xf32>
    %342 = math.rsqrt %341 : vector<16x1xf32>
    %343 = vector.broadcast %342 : vector<16x1xf32> to vector<16x64xf32>
    %344 = arith.mulf %339, %343 : vector<16x64xf32>
    %c1_135 = arith.constant 1 : index
    %c0_136 = arith.constant 0 : index
    %c0_137 = arith.constant 0 : index
    %345 = vector.load %arg11[%c1_135, %c0_136, %c0_137] : memref<8x1x64xf32, #tpu.memory_space<vmem>>, vector<1x1x64xf32>
    %346 = vector.shape_cast %345 : vector<1x1x64xf32> to vector<1x64xf32>
    %347 = vector.broadcast %346 : vector<1x64xf32> to vector<16x64xf32>
    %348 = arith.mulf %344, %347 : vector<16x64xf32>
    %c1_138 = arith.constant 1 : index
    %c0_139 = arith.constant 0 : index
    %c0_140 = arith.constant 0 : index
    %349 = vector.load %arg12[%c1_138, %c0_139, %c0_140] : memref<8x1x64xf32, #tpu.memory_space<vmem>>, vector<1x1x64xf32>
    %350 = vector.shape_cast %349 : vector<1x1x64xf32> to vector<1x64xf32>
    %351 = vector.broadcast %350 : vector<1x64xf32> to vector<16x64xf32>
    %352 = arith.addf %348, %351 : vector<16x64xf32>
    %c3 = arith.constant 3 : index
    %c0_141 = arith.constant 0 : index
    %c0_142 = arith.constant 0 : index
    %353 = vector.load %arg3[%c3, %c0_141, %c0_142] : memref<8x64x192xf32, #tpu.memory_space<vmem>>, vector<1x64x192xf32>
    %354 = vector.shape_cast %353 : vector<1x64x192xf32> to vector<64x192xf32>
    %c3_143 = arith.constant 3 : index
    %c0_144 = arith.constant 0 : index
    %c0_145 = arith.constant 0 : index
    %355 = vector.load %arg4[%c3_143, %c0_144, %c0_145] : memref<8x1x192xf32, #tpu.memory_space<vmem>>, vector<1x1x192xf32>
    %356 = vector.shape_cast %355 : vector<1x1x192xf32> to vector<1x192xf32>
    %c3_146 = arith.constant 3 : index
    %c0_147 = arith.constant 0 : index
    %c0_148 = arith.constant 0 : index
    %357 = vector.load %arg5[%c3_146, %c0_147, %c0_148] : memref<8x64x64xf32, #tpu.memory_space<vmem>>, vector<1x64x64xf32>
    %358 = vector.shape_cast %357 : vector<1x64x64xf32> to vector<64x64xf32>
    %359 = vector.extract_strided_slice %354 {offsets = [0, 0], sizes = [64, 64], strides = [1, 1]} : vector<64x192xf32> to vector<64x64xf32>
    %cst_149 = arith.constant dense<0.000000e+00> : vector<8x64xf32>
    %360 = tpu.matmul %189, %359, %cst_149 {dimension_numbers = #tpu.dot_dimension_numbers<[1], [0], [0], [1], [0, 0, 1, 1], [], []>} : vector<8x64xf32>, vector<64x64xf32>, vector<8x64xf32> -> vector<8x64xf32>
    %361 = vector.extract_strided_slice %356 {offsets = [0, 0], sizes = [1, 64], strides = [1, 1]} : vector<1x192xf32> to vector<1x64xf32>
    %362 = vector.broadcast %361 : vector<1x64xf32> to vector<8x64xf32>
    %363 = arith.addf %360, %362 : vector<8x64xf32>
    %364 = vector.extract_strided_slice %354 {offsets = [0, 64], sizes = [64, 128], strides = [1, 1]} : vector<64x192xf32> to vector<64x128xf32>
    %cst_150 = arith.constant dense<0.000000e+00> : vector<8x128xf32>
    %365 = tpu.matmul %189, %364, %cst_150 {dimension_numbers = #tpu.dot_dimension_numbers<[1], [0], [0], [1], [0, 0, 1, 1], [], []>} : vector<8x64xf32>, vector<64x128xf32>, vector<8x128xf32> -> vector<8x128xf32>
    %366 = vector.extract_strided_slice %356 {offsets = [0, 64], sizes = [1, 128], strides = [1, 1]} : vector<1x192xf32> to vector<1x128xf32>
    %367 = vector.broadcast %366 : vector<1x128xf32> to vector<8x128xf32>
    %368 = arith.addf %365, %367 : vector<8x128xf32>
    %369 = vector.extract_strided_slice %368 {offsets = [0, 0], sizes = [8, 64], strides = [1, 1]} : vector<8x128xf32> to vector<8x64xf32>
    %370 = vector.extract_strided_slice %368 {offsets = [0, 64], sizes = [8, 64], strides = [1, 1]} : vector<8x128xf32> to vector<8x64xf32>
    %371 = vector.extract_strided_slice %363 {offsets = [0, 0], sizes = [8, 16], strides = [1, 1]} : vector<8x64xf32> to vector<8x16xf32>
    %372 = vector.extract_strided_slice %369 {offsets = [0, 0], sizes = [8, 16], strides = [1, 1]} : vector<8x64xf32> to vector<8x16xf32>
    %cst_151 = arith.constant dense<0.000000e+00> : vector<8x8xf32>
    %373 = tpu.matmul %371, %372, %cst_151 {dimension_numbers = #tpu.dot_dimension_numbers<[1], [1], [0], [0], [0, 0, 1, 0], [], []>} : vector<8x16xf32>, vector<8x16xf32>, vector<8x8xf32> -> vector<8x8xf32>
    %cst_152 = arith.constant dense<0xFF800000> : vector<8xf32>
    %374 = vector.multi_reduction <maximumf>, %373, %cst_152 [1] : vector<8x8xf32> to vector<8xf32>
    %375 = vector.shape_cast %374 : vector<8xf32> to vector<8x1xf32>
    %376 = vector.broadcast %375 : vector<8x1xf32> to vector<8x8xf32>
    %377 = arith.subf %373, %376 : vector<8x8xf32>
    %378 = math.exp %377 : vector<8x8xf32>
    %cst_153 = arith.constant dense<0.000000e+00> : vector<8xf32>
    %379 = vector.multi_reduction <add>, %378, %cst_153 [1] : vector<8x8xf32> to vector<8xf32>
    %380 = vector.shape_cast %379 : vector<8xf32> to vector<8x1xf32>
    %381 = tpu.reciprocal %380 {approx = true} : vector<8x1xf32> -> vector<8x1xf32>
    %382 = vector.broadcast %381 : vector<8x1xf32> to vector<8x8xf32>
    %383 = arith.mulf %378, %382 : vector<8x8xf32>
    %384 = vector.extract_strided_slice %370 {offsets = [0, 0], sizes = [8, 16], strides = [1, 1]} : vector<8x64xf32> to vector<8x16xf32>
    %cst_154 = arith.constant dense<0.000000e+00> : vector<8x16xf32>
    %385 = tpu.matmul %383, %384, %cst_154 {dimension_numbers = #tpu.dot_dimension_numbers<[1], [0], [0], [1], [0, 0, 1, 1], [], []>} : vector<8x8xf32>, vector<8x16xf32>, vector<8x16xf32> -> vector<8x16xf32>
    %386 = vector.extract_strided_slice %358 {offsets = [0, 0], sizes = [16, 64], strides = [1, 1]} : vector<64x64xf32> to vector<16x64xf32>
    %cst_155 = arith.constant dense<0.000000e+00> : vector<8x64xf32>
    %387 = tpu.matmul %385, %386, %cst_155 {dimension_numbers = #tpu.dot_dimension_numbers<[1], [0], [0], [1], [0, 0, 1, 1], [], []>} : vector<8x16xf32>, vector<16x64xf32>, vector<8x64xf32> -> vector<8x64xf32>
    %388 = vector.extract_strided_slice %363 {offsets = [0, 16], sizes = [8, 16], strides = [1, 1]} : vector<8x64xf32> to vector<8x16xf32>
    %389 = vector.extract_strided_slice %369 {offsets = [0, 16], sizes = [8, 16], strides = [1, 1]} : vector<8x64xf32> to vector<8x16xf32>
    %cst_156 = arith.constant dense<0.000000e+00> : vector<8x8xf32>
    %390 = tpu.matmul %388, %389, %cst_156 {dimension_numbers = #tpu.dot_dimension_numbers<[1], [1], [0], [0], [0, 0, 1, 0], [], []>} : vector<8x16xf32>, vector<8x16xf32>, vector<8x8xf32> -> vector<8x8xf32>
    %cst_157 = arith.constant dense<0xFF800000> : vector<8xf32>
    %391 = vector.multi_reduction <maximumf>, %390, %cst_157 [1] : vector<8x8xf32> to vector<8xf32>
    %392 = vector.shape_cast %391 : vector<8xf32> to vector<8x1xf32>
    %393 = vector.broadcast %392 : vector<8x1xf32> to vector<8x8xf32>
    %394 = arith.subf %390, %393 : vector<8x8xf32>
    %395 = math.exp %394 : vector<8x8xf32>
    %cst_158 = arith.constant dense<0.000000e+00> : vector<8xf32>
    %396 = vector.multi_reduction <add>, %395, %cst_158 [1] : vector<8x8xf32> to vector<8xf32>
    %397 = vector.shape_cast %396 : vector<8xf32> to vector<8x1xf32>
    %398 = tpu.reciprocal %397 {approx = true} : vector<8x1xf32> -> vector<8x1xf32>
    %399 = vector.broadcast %398 : vector<8x1xf32> to vector<8x8xf32>
    %400 = arith.mulf %395, %399 : vector<8x8xf32>
    %401 = vector.extract_strided_slice %370 {offsets = [0, 16], sizes = [8, 16], strides = [1, 1]} : vector<8x64xf32> to vector<8x16xf32>
    %cst_159 = arith.constant dense<0.000000e+00> : vector<8x16xf32>
    %402 = tpu.matmul %400, %401, %cst_159 {dimension_numbers = #tpu.dot_dimension_numbers<[1], [0], [0], [1], [0, 0, 1, 1], [], []>} : vector<8x8xf32>, vector<8x16xf32>, vector<8x16xf32> -> vector<8x16xf32>
    %403 = vector.extract_strided_slice %358 {offsets = [16, 0], sizes = [16, 64], strides = [1, 1]} : vector<64x64xf32> to vector<16x64xf32>
    %cst_160 = arith.constant dense<0.000000e+00> : vector<8x64xf32>
    %404 = tpu.matmul %402, %403, %cst_160 {dimension_numbers = #tpu.dot_dimension_numbers<[1], [0], [0], [1], [0, 0, 1, 1], [], []>} : vector<8x16xf32>, vector<16x64xf32>, vector<8x64xf32> -> vector<8x64xf32>
    %405 = arith.addf %387, %404 : vector<8x64xf32>
    %406 = vector.extract_strided_slice %363 {offsets = [0, 32], sizes = [8, 16], strides = [1, 1]} : vector<8x64xf32> to vector<8x16xf32>
    %407 = vector.extract_strided_slice %369 {offsets = [0, 32], sizes = [8, 16], strides = [1, 1]} : vector<8x64xf32> to vector<8x16xf32>
    %cst_161 = arith.constant dense<0.000000e+00> : vector<8x8xf32>
    %408 = tpu.matmul %406, %407, %cst_161 {dimension_numbers = #tpu.dot_dimension_numbers<[1], [1], [0], [0], [0, 0, 1, 0], [], []>} : vector<8x16xf32>, vector<8x16xf32>, vector<8x8xf32> -> vector<8x8xf32>
    %cst_162 = arith.constant dense<0xFF800000> : vector<8xf32>
    %409 = vector.multi_reduction <maximumf>, %408, %cst_162 [1] : vector<8x8xf32> to vector<8xf32>
    %410 = vector.shape_cast %409 : vector<8xf32> to vector<8x1xf32>
    %411 = vector.broadcast %410 : vector<8x1xf32> to vector<8x8xf32>
    %412 = arith.subf %408, %411 : vector<8x8xf32>
    %413 = math.exp %412 : vector<8x8xf32>
    %cst_163 = arith.constant dense<0.000000e+00> : vector<8xf32>
    %414 = vector.multi_reduction <add>, %413, %cst_163 [1] : vector<8x8xf32> to vector<8xf32>
    %415 = vector.shape_cast %414 : vector<8xf32> to vector<8x1xf32>
    %416 = tpu.reciprocal %415 {approx = true} : vector<8x1xf32> -> vector<8x1xf32>
    %417 = vector.broadcast %416 : vector<8x1xf32> to vector<8x8xf32>
    %418 = arith.mulf %413, %417 : vector<8x8xf32>
    %419 = vector.extract_strided_slice %370 {offsets = [0, 32], sizes = [8, 16], strides = [1, 1]} : vector<8x64xf32> to vector<8x16xf32>
    %cst_164 = arith.constant dense<0.000000e+00> : vector<8x16xf32>
    %420 = tpu.matmul %418, %419, %cst_164 {dimension_numbers = #tpu.dot_dimension_numbers<[1], [0], [0], [1], [0, 0, 1, 1], [], []>} : vector<8x8xf32>, vector<8x16xf32>, vector<8x16xf32> -> vector<8x16xf32>
    %421 = vector.extract_strided_slice %358 {offsets = [32, 0], sizes = [16, 64], strides = [1, 1]} : vector<64x64xf32> to vector<16x64xf32>
    %cst_165 = arith.constant dense<0.000000e+00> : vector<8x64xf32>
    %422 = tpu.matmul %420, %421, %cst_165 {dimension_numbers = #tpu.dot_dimension_numbers<[1], [0], [0], [1], [0, 0, 1, 1], [], []>} : vector<8x16xf32>, vector<16x64xf32>, vector<8x64xf32> -> vector<8x64xf32>
    %423 = arith.addf %405, %422 : vector<8x64xf32>
    %424 = vector.extract_strided_slice %363 {offsets = [0, 48], sizes = [8, 16], strides = [1, 1]} : vector<8x64xf32> to vector<8x16xf32>
    %425 = vector.extract_strided_slice %369 {offsets = [0, 48], sizes = [8, 16], strides = [1, 1]} : vector<8x64xf32> to vector<8x16xf32>
    %cst_166 = arith.constant dense<0.000000e+00> : vector<8x8xf32>
    %426 = tpu.matmul %424, %425, %cst_166 {dimension_numbers = #tpu.dot_dimension_numbers<[1], [1], [0], [0], [0, 0, 1, 0], [], []>} : vector<8x16xf32>, vector<8x16xf32>, vector<8x8xf32> -> vector<8x8xf32>
    %cst_167 = arith.constant dense<0xFF800000> : vector<8xf32>
    %427 = vector.multi_reduction <maximumf>, %426, %cst_167 [1] : vector<8x8xf32> to vector<8xf32>
    %428 = vector.shape_cast %427 : vector<8xf32> to vector<8x1xf32>
    %429 = vector.broadcast %428 : vector<8x1xf32> to vector<8x8xf32>
    %430 = arith.subf %426, %429 : vector<8x8xf32>
    %431 = math.exp %430 : vector<8x8xf32>
    %cst_168 = arith.constant dense<0.000000e+00> : vector<8xf32>
    %432 = vector.multi_reduction <add>, %431, %cst_168 [1] : vector<8x8xf32> to vector<8xf32>
    %433 = vector.shape_cast %432 : vector<8xf32> to vector<8x1xf32>
    %434 = tpu.reciprocal %433 {approx = true} : vector<8x1xf32> -> vector<8x1xf32>
    %435 = vector.broadcast %434 : vector<8x1xf32> to vector<8x8xf32>
    %436 = arith.mulf %431, %435 : vector<8x8xf32>
    %437 = vector.extract_strided_slice %370 {offsets = [0, 48], sizes = [8, 16], strides = [1, 1]} : vector<8x64xf32> to vector<8x16xf32>
    %cst_169 = arith.constant dense<0.000000e+00> : vector<8x16xf32>
    %438 = tpu.matmul %436, %437, %cst_169 {dimension_numbers = #tpu.dot_dimension_numbers<[1], [0], [0], [1], [0, 0, 1, 1], [], []>} : vector<8x8xf32>, vector<8x16xf32>, vector<8x16xf32> -> vector<8x16xf32>
    %439 = vector.extract_strided_slice %358 {offsets = [48, 0], sizes = [16, 64], strides = [1, 1]} : vector<64x64xf32> to vector<16x64xf32>
    %cst_170 = arith.constant dense<0.000000e+00> : vector<8x64xf32>
    %440 = tpu.matmul %438, %439, %cst_170 {dimension_numbers = #tpu.dot_dimension_numbers<[1], [0], [0], [1], [0, 0, 1, 1], [], []>} : vector<8x16xf32>, vector<16x64xf32>, vector<8x64xf32> -> vector<8x64xf32>
    %441 = arith.addf %423, %440 : vector<8x64xf32>
    %c3_171 = arith.constant 3 : index
    %c0_172 = arith.constant 0 : index
    %c0_173 = arith.constant 0 : index
    %442 = vector.load %arg6[%c3_171, %c0_172, %c0_173] : memref<8x1x64xf32, #tpu.memory_space<vmem>>, vector<1x1x64xf32>
    %443 = vector.shape_cast %442 : vector<1x1x64xf32> to vector<1x64xf32>
    %444 = vector.broadcast %443 : vector<1x64xf32> to vector<8x64xf32>
    %445 = arith.addf %441, %444 : vector<8x64xf32>
    %446 = arith.addf %189, %445 : vector<8x64xf32>
    %cst_174 = arith.constant dense<0.000000e+00> : vector<8xf32>
    %447 = vector.multi_reduction <add>, %446, %cst_174 [1] : vector<8x64xf32> to vector<8xf32>
    %448 = vector.shape_cast %447 : vector<8xf32> to vector<8x1xf32>
    %cst_175 = arith.constant 6.400000e+01 : f32
    %449 = vector.broadcast %cst_175 : f32 to vector<8x1xf32>
    %450 = arith.divf %448, %449 : vector<8x1xf32>
    %451 = vector.broadcast %450 : vector<8x1xf32> to vector<8x64xf32>
    %452 = arith.subf %446, %451 : vector<8x64xf32>
    %453 = arith.mulf %452, %452 : vector<8x64xf32>
    %cst_176 = arith.constant dense<0.000000e+00> : vector<8xf32>
    %454 = vector.multi_reduction <add>, %453, %cst_176 [1] : vector<8x64xf32> to vector<8xf32>
    %455 = vector.shape_cast %454 : vector<8xf32> to vector<8x1xf32>
    %cst_177 = arith.constant 6.400000e+01 : f32
    %456 = vector.broadcast %cst_177 : f32 to vector<8x1xf32>
    %457 = arith.divf %455, %456 : vector<8x1xf32>
    %458 = vector.broadcast %450 : vector<8x1xf32> to vector<8x64xf32>
    %459 = arith.subf %446, %458 : vector<8x64xf32>
    %cst_178 = arith.constant 9.99999974E-6 : f32
    %460 = vector.broadcast %cst_178 : f32 to vector<8x1xf32>
    %461 = arith.addf %457, %460 : vector<8x1xf32>
    %462 = math.rsqrt %461 : vector<8x1xf32>
    %463 = vector.broadcast %462 : vector<8x1xf32> to vector<8x64xf32>
    %464 = arith.mulf %459, %463 : vector<8x64xf32>
    %c2_179 = arith.constant 2 : index
    %c0_180 = arith.constant 0 : index
    %c0_181 = arith.constant 0 : index
    %465 = vector.load %arg11[%c2_179, %c0_180, %c0_181] : memref<8x1x64xf32, #tpu.memory_space<vmem>>, vector<1x1x64xf32>
    %466 = vector.shape_cast %465 : vector<1x1x64xf32> to vector<1x64xf32>
    %467 = vector.broadcast %466 : vector<1x64xf32> to vector<8x64xf32>
    %468 = arith.mulf %464, %467 : vector<8x64xf32>
    %c2_182 = arith.constant 2 : index
    %c0_183 = arith.constant 0 : index
    %c0_184 = arith.constant 0 : index
    %469 = vector.load %arg12[%c2_182, %c0_183, %c0_184] : memref<8x1x64xf32, #tpu.memory_space<vmem>>, vector<1x1x64xf32>
    %470 = vector.shape_cast %469 : vector<1x1x64xf32> to vector<1x64xf32>
    %471 = vector.broadcast %470 : vector<1x64xf32> to vector<8x64xf32>
    %472 = arith.addf %468, %471 : vector<8x64xf32>
    %c1_185 = arith.constant 1 : index
    %c0_186 = arith.constant 0 : index
    %c0_187 = arith.constant 0 : index
    %473 = vector.load %arg7[%c1_185, %c0_186, %c0_187] : memref<4x64x32xf32, #tpu.memory_space<vmem>>, vector<1x64x32xf32>
    %474 = vector.shape_cast %473 : vector<1x64x32xf32> to vector<64x32xf32>
    %cst_188 = arith.constant dense<0.000000e+00> : vector<8x32xf32>
    %475 = tpu.matmul %472, %474, %cst_188 {dimension_numbers = #tpu.dot_dimension_numbers<[1], [0], [0], [1], [0, 0, 1, 1], [], []>} : vector<8x64xf32>, vector<64x32xf32>, vector<8x32xf32> -> vector<8x32xf32>
    %c1_189 = arith.constant 1 : index
    %c0_190 = arith.constant 0 : index
    %c0_191 = arith.constant 0 : index
    %476 = vector.load %arg8[%c1_189, %c0_190, %c0_191] : memref<4x1x32xf32, #tpu.memory_space<vmem>>, vector<1x1x32xf32>
    %477 = vector.shape_cast %476 : vector<1x1x32xf32> to vector<1x32xf32>
    %478 = vector.broadcast %477 : vector<1x32xf32> to vector<8x32xf32>
    %479 = arith.addf %475, %478 : vector<8x32xf32>
    %cst_192 = arith.constant 0.000000e+00 : f32
    %480 = vector.broadcast %cst_192 : f32 to vector<8x32xf32>
    %481 = arith.maximumf %479, %480 : vector<8x32xf32>
    %c1_193 = arith.constant 1 : index
    %c0_194 = arith.constant 0 : index
    %c0_195 = arith.constant 0 : index
    %482 = vector.load %arg9[%c1_193, %c0_194, %c0_195] : memref<4x32x64xf32, #tpu.memory_space<vmem>>, vector<1x32x64xf32>
    %483 = vector.shape_cast %482 : vector<1x32x64xf32> to vector<32x64xf32>
    %cst_196 = arith.constant dense<0.000000e+00> : vector<8x64xf32>
    %484 = tpu.matmul %481, %483, %cst_196 {dimension_numbers = #tpu.dot_dimension_numbers<[1], [0], [0], [1], [0, 0, 1, 1], [], []>} : vector<8x32xf32>, vector<32x64xf32>, vector<8x64xf32> -> vector<8x64xf32>
    %c1_197 = arith.constant 1 : index
    %c0_198 = arith.constant 0 : index
    %c0_199 = arith.constant 0 : index
    %485 = vector.load %arg10[%c1_197, %c0_198, %c0_199] : memref<4x1x64xf32, #tpu.memory_space<vmem>>, vector<1x1x64xf32>
    %486 = vector.shape_cast %485 : vector<1x1x64xf32> to vector<1x64xf32>
    %487 = vector.broadcast %486 : vector<1x64xf32> to vector<8x64xf32>
    %488 = arith.addf %484, %487 : vector<8x64xf32>
    %489 = arith.addf %472, %488 : vector<8x64xf32>
    %cst_200 = arith.constant dense<0.000000e+00> : vector<8xf32>
    %490 = vector.multi_reduction <add>, %489, %cst_200 [1] : vector<8x64xf32> to vector<8xf32>
    %491 = vector.shape_cast %490 : vector<8xf32> to vector<8x1xf32>
    %cst_201 = arith.constant 6.400000e+01 : f32
    %492 = vector.broadcast %cst_201 : f32 to vector<8x1xf32>
    %493 = arith.divf %491, %492 : vector<8x1xf32>
    %494 = vector.broadcast %493 : vector<8x1xf32> to vector<8x64xf32>
    %495 = arith.subf %489, %494 : vector<8x64xf32>
    %496 = arith.mulf %495, %495 : vector<8x64xf32>
    %cst_202 = arith.constant dense<0.000000e+00> : vector<8xf32>
    %497 = vector.multi_reduction <add>, %496, %cst_202 [1] : vector<8x64xf32> to vector<8xf32>
    %498 = vector.shape_cast %497 : vector<8xf32> to vector<8x1xf32>
    %cst_203 = arith.constant 6.400000e+01 : f32
    %499 = vector.broadcast %cst_203 : f32 to vector<8x1xf32>
    %500 = arith.divf %498, %499 : vector<8x1xf32>
    %501 = vector.broadcast %493 : vector<8x1xf32> to vector<8x64xf32>
    %502 = arith.subf %489, %501 : vector<8x64xf32>
    %cst_204 = arith.constant 9.99999974E-6 : f32
    %503 = vector.broadcast %cst_204 : f32 to vector<8x1xf32>
    %504 = arith.addf %500, %503 : vector<8x1xf32>
    %505 = math.rsqrt %504 : vector<8x1xf32>
    %506 = vector.broadcast %505 : vector<8x1xf32> to vector<8x64xf32>
    %507 = arith.mulf %502, %506 : vector<8x64xf32>
    %c3_205 = arith.constant 3 : index
    %c0_206 = arith.constant 0 : index
    %c0_207 = arith.constant 0 : index
    %508 = vector.load %arg11[%c3_205, %c0_206, %c0_207] : memref<8x1x64xf32, #tpu.memory_space<vmem>>, vector<1x1x64xf32>
    %509 = vector.shape_cast %508 : vector<1x1x64xf32> to vector<1x64xf32>
    %510 = vector.broadcast %509 : vector<1x64xf32> to vector<8x64xf32>
    %511 = arith.mulf %507, %510 : vector<8x64xf32>
    %c3_208 = arith.constant 3 : index
    %c0_209 = arith.constant 0 : index
    %c0_210 = arith.constant 0 : index
    %512 = vector.load %arg12[%c3_208, %c0_209, %c0_210] : memref<8x1x64xf32, #tpu.memory_space<vmem>>, vector<1x1x64xf32>
    %513 = vector.shape_cast %512 : vector<1x1x64xf32> to vector<1x64xf32>
    %514 = vector.broadcast %513 : vector<1x64xf32> to vector<8x64xf32>
    %515 = arith.addf %511, %514 : vector<8x64xf32>
    %c4 = arith.constant 4 : index
    %c0_211 = arith.constant 0 : index
    %c0_212 = arith.constant 0 : index
    %516 = vector.load %arg3[%c4, %c0_211, %c0_212] : memref<8x64x192xf32, #tpu.memory_space<vmem>>, vector<1x64x192xf32>
    %517 = vector.shape_cast %516 : vector<1x64x192xf32> to vector<64x192xf32>
    %c4_213 = arith.constant 4 : index
    %c0_214 = arith.constant 0 : index
    %c0_215 = arith.constant 0 : index
    %518 = vector.load %arg4[%c4_213, %c0_214, %c0_215] : memref<8x1x192xf32, #tpu.memory_space<vmem>>, vector<1x1x192xf32>
    %519 = vector.shape_cast %518 : vector<1x1x192xf32> to vector<1x192xf32>
    %c4_216 = arith.constant 4 : index
    %c0_217 = arith.constant 0 : index
    %c0_218 = arith.constant 0 : index
    %520 = vector.load %arg5[%c4_216, %c0_217, %c0_218] : memref<8x64x64xf32, #tpu.memory_space<vmem>>, vector<1x64x64xf32>
    %521 = vector.shape_cast %520 : vector<1x64x64xf32> to vector<64x64xf32>
    %522 = vector.extract_strided_slice %517 {offsets = [0, 0], sizes = [64, 64], strides = [1, 1]} : vector<64x192xf32> to vector<64x64xf32>
    %cst_219 = arith.constant dense<0.000000e+00> : vector<8x64xf32>
    %523 = tpu.matmul %515, %522, %cst_219 {dimension_numbers = #tpu.dot_dimension_numbers<[1], [0], [0], [1], [0, 0, 1, 1], [], []>} : vector<8x64xf32>, vector<64x64xf32>, vector<8x64xf32> -> vector<8x64xf32>
    %524 = vector.extract_strided_slice %519 {offsets = [0, 0], sizes = [1, 64], strides = [1, 1]} : vector<1x192xf32> to vector<1x64xf32>
    %525 = vector.broadcast %524 : vector<1x64xf32> to vector<8x64xf32>
    %526 = arith.addf %523, %525 : vector<8x64xf32>
    %527 = vector.extract_strided_slice %517 {offsets = [0, 64], sizes = [64, 128], strides = [1, 1]} : vector<64x192xf32> to vector<64x128xf32>
    %cst_220 = arith.constant dense<0.000000e+00> : vector<16x128xf32>
    %528 = tpu.matmul %352, %527, %cst_220 {dimension_numbers = #tpu.dot_dimension_numbers<[1], [0], [0], [1], [0, 0, 1, 1], [], []>} : vector<16x64xf32>, vector<64x128xf32>, vector<16x128xf32> -> vector<16x128xf32>
    %529 = vector.extract_strided_slice %519 {offsets = [0, 64], sizes = [1, 128], strides = [1, 1]} : vector<1x192xf32> to vector<1x128xf32>
    %530 = vector.broadcast %529 : vector<1x128xf32> to vector<16x128xf32>
    %531 = arith.addf %528, %530 : vector<16x128xf32>
    %532 = vector.extract_strided_slice %531 {offsets = [0, 0], sizes = [16, 64], strides = [1, 1]} : vector<16x128xf32> to vector<16x64xf32>
    %533 = vector.extract_strided_slice %531 {offsets = [0, 64], sizes = [16, 64], strides = [1, 1]} : vector<16x128xf32> to vector<16x64xf32>
    %534 = vector.extract_strided_slice %526 {offsets = [0, 0], sizes = [8, 16], strides = [1, 1]} : vector<8x64xf32> to vector<8x16xf32>
    %535 = vector.extract_strided_slice %532 {offsets = [0, 0], sizes = [16, 16], strides = [1, 1]} : vector<16x64xf32> to vector<16x16xf32>
    %cst_221 = arith.constant dense<0.000000e+00> : vector<8x16xf32>
    %536 = tpu.matmul %534, %535, %cst_221 {dimension_numbers = #tpu.dot_dimension_numbers<[1], [1], [0], [0], [0, 0, 1, 0], [], []>} : vector<8x16xf32>, vector<16x16xf32>, vector<8x16xf32> -> vector<8x16xf32>
    %cst_222 = arith.constant dense<0xFF800000> : vector<8xf32>
    %537 = vector.multi_reduction <maximumf>, %536, %cst_222 [1] : vector<8x16xf32> to vector<8xf32>
    %538 = vector.shape_cast %537 : vector<8xf32> to vector<8x1xf32>
    %539 = vector.broadcast %538 : vector<8x1xf32> to vector<8x16xf32>
    %540 = arith.subf %536, %539 : vector<8x16xf32>
    %541 = math.exp %540 : vector<8x16xf32>
    %cst_223 = arith.constant dense<0.000000e+00> : vector<8xf32>
    %542 = vector.multi_reduction <add>, %541, %cst_223 [1] : vector<8x16xf32> to vector<8xf32>
    %543 = vector.shape_cast %542 : vector<8xf32> to vector<8x1xf32>
    %544 = tpu.reciprocal %543 {approx = true} : vector<8x1xf32> -> vector<8x1xf32>
    %545 = vector.broadcast %544 : vector<8x1xf32> to vector<8x16xf32>
    %546 = arith.mulf %541, %545 : vector<8x16xf32>
    %547 = vector.extract_strided_slice %533 {offsets = [0, 0], sizes = [16, 16], strides = [1, 1]} : vector<16x64xf32> to vector<16x16xf32>
    %cst_224 = arith.constant dense<0.000000e+00> : vector<8x16xf32>
    %548 = tpu.matmul %546, %547, %cst_224 {dimension_numbers = #tpu.dot_dimension_numbers<[1], [0], [0], [1], [0, 0, 1, 1], [], []>} : vector<8x16xf32>, vector<16x16xf32>, vector<8x16xf32> -> vector<8x16xf32>
    %549 = vector.extract_strided_slice %521 {offsets = [0, 0], sizes = [16, 64], strides = [1, 1]} : vector<64x64xf32> to vector<16x64xf32>
    %cst_225 = arith.constant dense<0.000000e+00> : vector<8x64xf32>
    %550 = tpu.matmul %548, %549, %cst_225 {dimension_numbers = #tpu.dot_dimension_numbers<[1], [0], [0], [1], [0, 0, 1, 1], [], []>} : vector<8x16xf32>, vector<16x64xf32>, vector<8x64xf32> -> vector<8x64xf32>
    %551 = vector.extract_strided_slice %526 {offsets = [0, 16], sizes = [8, 16], strides = [1, 1]} : vector<8x64xf32> to vector<8x16xf32>
    %552 = vector.extract_strided_slice %532 {offsets = [0, 16], sizes = [16, 16], strides = [1, 1]} : vector<16x64xf32> to vector<16x16xf32>
    %cst_226 = arith.constant dense<0.000000e+00> : vector<8x16xf32>
    %553 = tpu.matmul %551, %552, %cst_226 {dimension_numbers = #tpu.dot_dimension_numbers<[1], [1], [0], [0], [0, 0, 1, 0], [], []>} : vector<8x16xf32>, vector<16x16xf32>, vector<8x16xf32> -> vector<8x16xf32>
    %cst_227 = arith.constant dense<0xFF800000> : vector<8xf32>
    %554 = vector.multi_reduction <maximumf>, %553, %cst_227 [1] : vector<8x16xf32> to vector<8xf32>
    %555 = vector.shape_cast %554 : vector<8xf32> to vector<8x1xf32>
    %556 = vector.broadcast %555 : vector<8x1xf32> to vector<8x16xf32>
    %557 = arith.subf %553, %556 : vector<8x16xf32>
    %558 = math.exp %557 : vector<8x16xf32>
    %cst_228 = arith.constant dense<0.000000e+00> : vector<8xf32>
    %559 = vector.multi_reduction <add>, %558, %cst_228 [1] : vector<8x16xf32> to vector<8xf32>
    %560 = vector.shape_cast %559 : vector<8xf32> to vector<8x1xf32>
    %561 = tpu.reciprocal %560 {approx = true} : vector<8x1xf32> -> vector<8x1xf32>
    %562 = vector.broadcast %561 : vector<8x1xf32> to vector<8x16xf32>
    %563 = arith.mulf %558, %562 : vector<8x16xf32>
    %564 = vector.extract_strided_slice %533 {offsets = [0, 16], sizes = [16, 16], strides = [1, 1]} : vector<16x64xf32> to vector<16x16xf32>
    %cst_229 = arith.constant dense<0.000000e+00> : vector<8x16xf32>
    %565 = tpu.matmul %563, %564, %cst_229 {dimension_numbers = #tpu.dot_dimension_numbers<[1], [0], [0], [1], [0, 0, 1, 1], [], []>} : vector<8x16xf32>, vector<16x16xf32>, vector<8x16xf32> -> vector<8x16xf32>
    %566 = vector.extract_strided_slice %521 {offsets = [16, 0], sizes = [16, 64], strides = [1, 1]} : vector<64x64xf32> to vector<16x64xf32>
    %cst_230 = arith.constant dense<0.000000e+00> : vector<8x64xf32>
    %567 = tpu.matmul %565, %566, %cst_230 {dimension_numbers = #tpu.dot_dimension_numbers<[1], [0], [0], [1], [0, 0, 1, 1], [], []>} : vector<8x16xf32>, vector<16x64xf32>, vector<8x64xf32> -> vector<8x64xf32>
    %568 = arith.addf %550, %567 : vector<8x64xf32>
    %569 = vector.extract_strided_slice %526 {offsets = [0, 32], sizes = [8, 16], strides = [1, 1]} : vector<8x64xf32> to vector<8x16xf32>
    %570 = vector.extract_strided_slice %532 {offsets = [0, 32], sizes = [16, 16], strides = [1, 1]} : vector<16x64xf32> to vector<16x16xf32>
    %cst_231 = arith.constant dense<0.000000e+00> : vector<8x16xf32>
    %571 = tpu.matmul %569, %570, %cst_231 {dimension_numbers = #tpu.dot_dimension_numbers<[1], [1], [0], [0], [0, 0, 1, 0], [], []>} : vector<8x16xf32>, vector<16x16xf32>, vector<8x16xf32> -> vector<8x16xf32>
    %cst_232 = arith.constant dense<0xFF800000> : vector<8xf32>
    %572 = vector.multi_reduction <maximumf>, %571, %cst_232 [1] : vector<8x16xf32> to vector<8xf32>
    %573 = vector.shape_cast %572 : vector<8xf32> to vector<8x1xf32>
    %574 = vector.broadcast %573 : vector<8x1xf32> to vector<8x16xf32>
    %575 = arith.subf %571, %574 : vector<8x16xf32>
    %576 = math.exp %575 : vector<8x16xf32>
    %cst_233 = arith.constant dense<0.000000e+00> : vector<8xf32>
    %577 = vector.multi_reduction <add>, %576, %cst_233 [1] : vector<8x16xf32> to vector<8xf32>
    %578 = vector.shape_cast %577 : vector<8xf32> to vector<8x1xf32>
    %579 = tpu.reciprocal %578 {approx = true} : vector<8x1xf32> -> vector<8x1xf32>
    %580 = vector.broadcast %579 : vector<8x1xf32> to vector<8x16xf32>
    %581 = arith.mulf %576, %580 : vector<8x16xf32>
    %582 = vector.extract_strided_slice %533 {offsets = [0, 32], sizes = [16, 16], strides = [1, 1]} : vector<16x64xf32> to vector<16x16xf32>
    %cst_234 = arith.constant dense<0.000000e+00> : vector<8x16xf32>
    %583 = tpu.matmul %581, %582, %cst_234 {dimension_numbers = #tpu.dot_dimension_numbers<[1], [0], [0], [1], [0, 0, 1, 1], [], []>} : vector<8x16xf32>, vector<16x16xf32>, vector<8x16xf32> -> vector<8x16xf32>
    %584 = vector.extract_strided_slice %521 {offsets = [32, 0], sizes = [16, 64], strides = [1, 1]} : vector<64x64xf32> to vector<16x64xf32>
    %cst_235 = arith.constant dense<0.000000e+00> : vector<8x64xf32>
    %585 = tpu.matmul %583, %584, %cst_235 {dimension_numbers = #tpu.dot_dimension_numbers<[1], [0], [0], [1], [0, 0, 1, 1], [], []>} : vector<8x16xf32>, vector<16x64xf32>, vector<8x64xf32> -> vector<8x64xf32>
    %586 = arith.addf %568, %585 : vector<8x64xf32>
    %587 = vector.extract_strided_slice %526 {offsets = [0, 48], sizes = [8, 16], strides = [1, 1]} : vector<8x64xf32> to vector<8x16xf32>
    %588 = vector.extract_strided_slice %532 {offsets = [0, 48], sizes = [16, 16], strides = [1, 1]} : vector<16x64xf32> to vector<16x16xf32>
    %cst_236 = arith.constant dense<0.000000e+00> : vector<8x16xf32>
    %589 = tpu.matmul %587, %588, %cst_236 {dimension_numbers = #tpu.dot_dimension_numbers<[1], [1], [0], [0], [0, 0, 1, 0], [], []>} : vector<8x16xf32>, vector<16x16xf32>, vector<8x16xf32> -> vector<8x16xf32>
    %cst_237 = arith.constant dense<0xFF800000> : vector<8xf32>
    %590 = vector.multi_reduction <maximumf>, %589, %cst_237 [1] : vector<8x16xf32> to vector<8xf32>
    %591 = vector.shape_cast %590 : vector<8xf32> to vector<8x1xf32>
    %592 = vector.broadcast %591 : vector<8x1xf32> to vector<8x16xf32>
    %593 = arith.subf %589, %592 : vector<8x16xf32>
    %594 = math.exp %593 : vector<8x16xf32>
    %cst_238 = arith.constant dense<0.000000e+00> : vector<8xf32>
    %595 = vector.multi_reduction <add>, %594, %cst_238 [1] : vector<8x16xf32> to vector<8xf32>
    %596 = vector.shape_cast %595 : vector<8xf32> to vector<8x1xf32>
    %597 = tpu.reciprocal %596 {approx = true} : vector<8x1xf32> -> vector<8x1xf32>
    %598 = vector.broadcast %597 : vector<8x1xf32> to vector<8x16xf32>
    %599 = arith.mulf %594, %598 : vector<8x16xf32>
    %600 = vector.extract_strided_slice %533 {offsets = [0, 48], sizes = [16, 16], strides = [1, 1]} : vector<16x64xf32> to vector<16x16xf32>
    %cst_239 = arith.constant dense<0.000000e+00> : vector<8x16xf32>
    %601 = tpu.matmul %599, %600, %cst_239 {dimension_numbers = #tpu.dot_dimension_numbers<[1], [0], [0], [1], [0, 0, 1, 1], [], []>} : vector<8x16xf32>, vector<16x16xf32>, vector<8x16xf32> -> vector<8x16xf32>
    %602 = vector.extract_strided_slice %521 {offsets = [48, 0], sizes = [16, 64], strides = [1, 1]} : vector<64x64xf32> to vector<16x64xf32>
    %cst_240 = arith.constant dense<0.000000e+00> : vector<8x64xf32>
    %603 = tpu.matmul %601, %602, %cst_240 {dimension_numbers = #tpu.dot_dimension_numbers<[1], [0], [0], [1], [0, 0, 1, 1], [], []>} : vector<8x16xf32>, vector<16x64xf32>, vector<8x64xf32> -> vector<8x64xf32>
    %604 = arith.addf %586, %603 : vector<8x64xf32>
    %c4_241 = arith.constant 4 : index
    %c0_242 = arith.constant 0 : index
    %c0_243 = arith.constant 0 : index
    %605 = vector.load %arg6[%c4_241, %c0_242, %c0_243] : memref<8x1x64xf32, #tpu.memory_space<vmem>>, vector<1x1x64xf32>
    %606 = vector.shape_cast %605 : vector<1x1x64xf32> to vector<1x64xf32>
    %607 = vector.broadcast %606 : vector<1x64xf32> to vector<8x64xf32>
    %608 = arith.addf %604, %607 : vector<8x64xf32>
    %c5 = arith.constant 5 : index
    %c0_244 = arith.constant 0 : index
    %c0_245 = arith.constant 0 : index
    %609 = vector.load %arg3[%c5, %c0_244, %c0_245] : memref<8x64x192xf32, #tpu.memory_space<vmem>>, vector<1x64x192xf32>
    %610 = vector.shape_cast %609 : vector<1x64x192xf32> to vector<64x192xf32>
    %c5_246 = arith.constant 5 : index
    %c0_247 = arith.constant 0 : index
    %c0_248 = arith.constant 0 : index
    %611 = vector.load %arg4[%c5_246, %c0_247, %c0_248] : memref<8x1x192xf32, #tpu.memory_space<vmem>>, vector<1x1x192xf32>
    %612 = vector.shape_cast %611 : vector<1x1x192xf32> to vector<1x192xf32>
    %c5_249 = arith.constant 5 : index
    %c0_250 = arith.constant 0 : index
    %c0_251 = arith.constant 0 : index
    %613 = vector.load %arg5[%c5_249, %c0_250, %c0_251] : memref<8x64x64xf32, #tpu.memory_space<vmem>>, vector<1x64x64xf32>
    %614 = vector.shape_cast %613 : vector<1x64x64xf32> to vector<64x64xf32>
    %615 = vector.extract_strided_slice %610 {offsets = [0, 0], sizes = [64, 64], strides = [1, 1]} : vector<64x192xf32> to vector<64x64xf32>
    %cst_252 = arith.constant dense<0.000000e+00> : vector<16x64xf32>
    %616 = tpu.matmul %352, %615, %cst_252 {dimension_numbers = #tpu.dot_dimension_numbers<[1], [0], [0], [1], [0, 0, 1, 1], [], []>} : vector<16x64xf32>, vector<64x64xf32>, vector<16x64xf32> -> vector<16x64xf32>
    %617 = vector.extract_strided_slice %612 {offsets = [0, 0], sizes = [1, 64], strides = [1, 1]} : vector<1x192xf32> to vector<1x64xf32>
    %618 = vector.broadcast %617 : vector<1x64xf32> to vector<16x64xf32>
    %619 = arith.addf %616, %618 : vector<16x64xf32>
    %620 = vector.extract_strided_slice %610 {offsets = [0, 64], sizes = [64, 128], strides = [1, 1]} : vector<64x192xf32> to vector<64x128xf32>
    %cst_253 = arith.constant dense<0.000000e+00> : vector<8x128xf32>
    %621 = tpu.matmul %515, %620, %cst_253 {dimension_numbers = #tpu.dot_dimension_numbers<[1], [0], [0], [1], [0, 0, 1, 1], [], []>} : vector<8x64xf32>, vector<64x128xf32>, vector<8x128xf32> -> vector<8x128xf32>
    %622 = vector.extract_strided_slice %612 {offsets = [0, 64], sizes = [1, 128], strides = [1, 1]} : vector<1x192xf32> to vector<1x128xf32>
    %623 = vector.broadcast %622 : vector<1x128xf32> to vector<8x128xf32>
    %624 = arith.addf %621, %623 : vector<8x128xf32>
    %625 = vector.extract_strided_slice %624 {offsets = [0, 0], sizes = [8, 64], strides = [1, 1]} : vector<8x128xf32> to vector<8x64xf32>
    %626 = vector.extract_strided_slice %624 {offsets = [0, 64], sizes = [8, 64], strides = [1, 1]} : vector<8x128xf32> to vector<8x64xf32>
    %627 = vector.extract_strided_slice %619 {offsets = [0, 0], sizes = [16, 16], strides = [1, 1]} : vector<16x64xf32> to vector<16x16xf32>
    %628 = vector.extract_strided_slice %625 {offsets = [0, 0], sizes = [8, 16], strides = [1, 1]} : vector<8x64xf32> to vector<8x16xf32>
    %cst_254 = arith.constant dense<0.000000e+00> : vector<16x8xf32>
    %629 = tpu.matmul %627, %628, %cst_254 {dimension_numbers = #tpu.dot_dimension_numbers<[1], [1], [0], [0], [0, 0, 1, 0], [], []>} : vector<16x16xf32>, vector<8x16xf32>, vector<16x8xf32> -> vector<16x8xf32>
    %cst_255 = arith.constant dense<0xFF800000> : vector<16xf32>
    %630 = vector.multi_reduction <maximumf>, %629, %cst_255 [1] : vector<16x8xf32> to vector<16xf32>
    %631 = vector.shape_cast %630 : vector<16xf32> to vector<16x1xf32>
    %632 = vector.broadcast %631 : vector<16x1xf32> to vector<16x8xf32>
    %633 = arith.subf %629, %632 : vector<16x8xf32>
    %634 = math.exp %633 : vector<16x8xf32>
    %cst_256 = arith.constant dense<0.000000e+00> : vector<16xf32>
    %635 = vector.multi_reduction <add>, %634, %cst_256 [1] : vector<16x8xf32> to vector<16xf32>
    %636 = vector.shape_cast %635 : vector<16xf32> to vector<16x1xf32>
    %637 = tpu.reciprocal %636 {approx = true} : vector<16x1xf32> -> vector<16x1xf32>
    %638 = vector.broadcast %637 : vector<16x1xf32> to vector<16x8xf32>
    %639 = arith.mulf %634, %638 : vector<16x8xf32>
    %640 = vector.extract_strided_slice %626 {offsets = [0, 0], sizes = [8, 16], strides = [1, 1]} : vector<8x64xf32> to vector<8x16xf32>
    %cst_257 = arith.constant dense<0.000000e+00> : vector<16x16xf32>
    %641 = tpu.matmul %639, %640, %cst_257 {dimension_numbers = #tpu.dot_dimension_numbers<[1], [0], [0], [1], [0, 0, 1, 1], [], []>} : vector<16x8xf32>, vector<8x16xf32>, vector<16x16xf32> -> vector<16x16xf32>
    %642 = vector.extract_strided_slice %614 {offsets = [0, 0], sizes = [16, 64], strides = [1, 1]} : vector<64x64xf32> to vector<16x64xf32>
    %cst_258 = arith.constant dense<0.000000e+00> : vector<16x64xf32>
    %643 = tpu.matmul %641, %642, %cst_258 {dimension_numbers = #tpu.dot_dimension_numbers<[1], [0], [0], [1], [0, 0, 1, 1], [], []>} : vector<16x16xf32>, vector<16x64xf32>, vector<16x64xf32> -> vector<16x64xf32>
    %644 = vector.extract_strided_slice %619 {offsets = [0, 16], sizes = [16, 16], strides = [1, 1]} : vector<16x64xf32> to vector<16x16xf32>
    %645 = vector.extract_strided_slice %625 {offsets = [0, 16], sizes = [8, 16], strides = [1, 1]} : vector<8x64xf32> to vector<8x16xf32>
    %cst_259 = arith.constant dense<0.000000e+00> : vector<16x8xf32>
    %646 = tpu.matmul %644, %645, %cst_259 {dimension_numbers = #tpu.dot_dimension_numbers<[1], [1], [0], [0], [0, 0, 1, 0], [], []>} : vector<16x16xf32>, vector<8x16xf32>, vector<16x8xf32> -> vector<16x8xf32>
    %cst_260 = arith.constant dense<0xFF800000> : vector<16xf32>
    %647 = vector.multi_reduction <maximumf>, %646, %cst_260 [1] : vector<16x8xf32> to vector<16xf32>
    %648 = vector.shape_cast %647 : vector<16xf32> to vector<16x1xf32>
    %649 = vector.broadcast %648 : vector<16x1xf32> to vector<16x8xf32>
    %650 = arith.subf %646, %649 : vector<16x8xf32>
    %651 = math.exp %650 : vector<16x8xf32>
    %cst_261 = arith.constant dense<0.000000e+00> : vector<16xf32>
    %652 = vector.multi_reduction <add>, %651, %cst_261 [1] : vector<16x8xf32> to vector<16xf32>
    %653 = vector.shape_cast %652 : vector<16xf32> to vector<16x1xf32>
    %654 = tpu.reciprocal %653 {approx = true} : vector<16x1xf32> -> vector<16x1xf32>
    %655 = vector.broadcast %654 : vector<16x1xf32> to vector<16x8xf32>
    %656 = arith.mulf %651, %655 : vector<16x8xf32>
    %657 = vector.extract_strided_slice %626 {offsets = [0, 16], sizes = [8, 16], strides = [1, 1]} : vector<8x64xf32> to vector<8x16xf32>
    %cst_262 = arith.constant dense<0.000000e+00> : vector<16x16xf32>
    %658 = tpu.matmul %656, %657, %cst_262 {dimension_numbers = #tpu.dot_dimension_numbers<[1], [0], [0], [1], [0, 0, 1, 1], [], []>} : vector<16x8xf32>, vector<8x16xf32>, vector<16x16xf32> -> vector<16x16xf32>
    %659 = vector.extract_strided_slice %614 {offsets = [16, 0], sizes = [16, 64], strides = [1, 1]} : vector<64x64xf32> to vector<16x64xf32>
    %cst_263 = arith.constant dense<0.000000e+00> : vector<16x64xf32>
    %660 = tpu.matmul %658, %659, %cst_263 {dimension_numbers = #tpu.dot_dimension_numbers<[1], [0], [0], [1], [0, 0, 1, 1], [], []>} : vector<16x16xf32>, vector<16x64xf32>, vector<16x64xf32> -> vector<16x64xf32>
    %661 = arith.addf %643, %660 : vector<16x64xf32>
    %662 = vector.extract_strided_slice %619 {offsets = [0, 32], sizes = [16, 16], strides = [1, 1]} : vector<16x64xf32> to vector<16x16xf32>
    %663 = vector.extract_strided_slice %625 {offsets = [0, 32], sizes = [8, 16], strides = [1, 1]} : vector<8x64xf32> to vector<8x16xf32>
    %cst_264 = arith.constant dense<0.000000e+00> : vector<16x8xf32>
    %664 = tpu.matmul %662, %663, %cst_264 {dimension_numbers = #tpu.dot_dimension_numbers<[1], [1], [0], [0], [0, 0, 1, 0], [], []>} : vector<16x16xf32>, vector<8x16xf32>, vector<16x8xf32> -> vector<16x8xf32>
    %cst_265 = arith.constant dense<0xFF800000> : vector<16xf32>
    %665 = vector.multi_reduction <maximumf>, %664, %cst_265 [1] : vector<16x8xf32> to vector<16xf32>
    %666 = vector.shape_cast %665 : vector<16xf32> to vector<16x1xf32>
    %667 = vector.broadcast %666 : vector<16x1xf32> to vector<16x8xf32>
    %668 = arith.subf %664, %667 : vector<16x8xf32>
    %669 = math.exp %668 : vector<16x8xf32>
    %cst_266 = arith.constant dense<0.000000e+00> : vector<16xf32>
    %670 = vector.multi_reduction <add>, %669, %cst_266 [1] : vector<16x8xf32> to vector<16xf32>
    %671 = vector.shape_cast %670 : vector<16xf32> to vector<16x1xf32>
    %672 = tpu.reciprocal %671 {approx = true} : vector<16x1xf32> -> vector<16x1xf32>
    %673 = vector.broadcast %672 : vector<16x1xf32> to vector<16x8xf32>
    %674 = arith.mulf %669, %673 : vector<16x8xf32>
    %675 = vector.extract_strided_slice %626 {offsets = [0, 32], sizes = [8, 16], strides = [1, 1]} : vector<8x64xf32> to vector<8x16xf32>
    %cst_267 = arith.constant dense<0.000000e+00> : vector<16x16xf32>
    %676 = tpu.matmul %674, %675, %cst_267 {dimension_numbers = #tpu.dot_dimension_numbers<[1], [0], [0], [1], [0, 0, 1, 1], [], []>} : vector<16x8xf32>, vector<8x16xf32>, vector<16x16xf32> -> vector<16x16xf32>
    %677 = vector.extract_strided_slice %614 {offsets = [32, 0], sizes = [16, 64], strides = [1, 1]} : vector<64x64xf32> to vector<16x64xf32>
    %cst_268 = arith.constant dense<0.000000e+00> : vector<16x64xf32>
    %678 = tpu.matmul %676, %677, %cst_268 {dimension_numbers = #tpu.dot_dimension_numbers<[1], [0], [0], [1], [0, 0, 1, 1], [], []>} : vector<16x16xf32>, vector<16x64xf32>, vector<16x64xf32> -> vector<16x64xf32>
    %679 = arith.addf %661, %678 : vector<16x64xf32>
    %680 = vector.extract_strided_slice %619 {offsets = [0, 48], sizes = [16, 16], strides = [1, 1]} : vector<16x64xf32> to vector<16x16xf32>
    %681 = vector.extract_strided_slice %625 {offsets = [0, 48], sizes = [8, 16], strides = [1, 1]} : vector<8x64xf32> to vector<8x16xf32>
    %cst_269 = arith.constant dense<0.000000e+00> : vector<16x8xf32>
    %682 = tpu.matmul %680, %681, %cst_269 {dimension_numbers = #tpu.dot_dimension_numbers<[1], [1], [0], [0], [0, 0, 1, 0], [], []>} : vector<16x16xf32>, vector<8x16xf32>, vector<16x8xf32> -> vector<16x8xf32>
    %cst_270 = arith.constant dense<0xFF800000> : vector<16xf32>
    %683 = vector.multi_reduction <maximumf>, %682, %cst_270 [1] : vector<16x8xf32> to vector<16xf32>
    %684 = vector.shape_cast %683 : vector<16xf32> to vector<16x1xf32>
    %685 = vector.broadcast %684 : vector<16x1xf32> to vector<16x8xf32>
    %686 = arith.subf %682, %685 : vector<16x8xf32>
    %687 = math.exp %686 : vector<16x8xf32>
    %cst_271 = arith.constant dense<0.000000e+00> : vector<16xf32>
    %688 = vector.multi_reduction <add>, %687, %cst_271 [1] : vector<16x8xf32> to vector<16xf32>
    %689 = vector.shape_cast %688 : vector<16xf32> to vector<16x1xf32>
    %690 = tpu.reciprocal %689 {approx = true} : vector<16x1xf32> -> vector<16x1xf32>
    %691 = vector.broadcast %690 : vector<16x1xf32> to vector<16x8xf32>
    %692 = arith.mulf %687, %691 : vector<16x8xf32>
    %693 = vector.extract_strided_slice %626 {offsets = [0, 48], sizes = [8, 16], strides = [1, 1]} : vector<8x64xf32> to vector<8x16xf32>
    %cst_272 = arith.constant dense<0.000000e+00> : vector<16x16xf32>
    %694 = tpu.matmul %692, %693, %cst_272 {dimension_numbers = #tpu.dot_dimension_numbers<[1], [0], [0], [1], [0, 0, 1, 1], [], []>} : vector<16x8xf32>, vector<8x16xf32>, vector<16x16xf32> -> vector<16x16xf32>
    %695 = vector.extract_strided_slice %614 {offsets = [48, 0], sizes = [16, 64], strides = [1, 1]} : vector<64x64xf32> to vector<16x64xf32>
    %cst_273 = arith.constant dense<0.000000e+00> : vector<16x64xf32>
    %696 = tpu.matmul %694, %695, %cst_273 {dimension_numbers = #tpu.dot_dimension_numbers<[1], [0], [0], [1], [0, 0, 1, 1], [], []>} : vector<16x16xf32>, vector<16x64xf32>, vector<16x64xf32> -> vector<16x64xf32>
    %697 = arith.addf %679, %696 : vector<16x64xf32>
    %c5_274 = arith.constant 5 : index
    %c0_275 = arith.constant 0 : index
    %c0_276 = arith.constant 0 : index
    %698 = vector.load %arg6[%c5_274, %c0_275, %c0_276] : memref<8x1x64xf32, #tpu.memory_space<vmem>>, vector<1x1x64xf32>
    %699 = vector.shape_cast %698 : vector<1x1x64xf32> to vector<1x64xf32>
    %700 = vector.broadcast %699 : vector<1x64xf32> to vector<16x64xf32>
    %701 = arith.addf %697, %700 : vector<16x64xf32>
    %c6 = arith.constant 6 : index
    %c0_277 = arith.constant 0 : index
    %c0_278 = arith.constant 0 : index
    %702 = vector.load %arg3[%c6, %c0_277, %c0_278] : memref<8x64x192xf32, #tpu.memory_space<vmem>>, vector<1x64x192xf32>
    %703 = vector.shape_cast %702 : vector<1x64x192xf32> to vector<64x192xf32>
    %c6_279 = arith.constant 6 : index
    %c0_280 = arith.constant 0 : index
    %c0_281 = arith.constant 0 : index
    %704 = vector.load %arg4[%c6_279, %c0_280, %c0_281] : memref<8x1x192xf32, #tpu.memory_space<vmem>>, vector<1x1x192xf32>
    %705 = vector.shape_cast %704 : vector<1x1x192xf32> to vector<1x192xf32>
    %c6_282 = arith.constant 6 : index
    %c0_283 = arith.constant 0 : index
    %c0_284 = arith.constant 0 : index
    %706 = vector.load %arg5[%c6_282, %c0_283, %c0_284] : memref<8x64x64xf32, #tpu.memory_space<vmem>>, vector<1x64x64xf32>
    %707 = vector.shape_cast %706 : vector<1x64x64xf32> to vector<64x64xf32>
    %708 = vector.extract_strided_slice %703 {offsets = [0, 0], sizes = [64, 64], strides = [1, 1]} : vector<64x192xf32> to vector<64x64xf32>
    %cst_285 = arith.constant dense<0.000000e+00> : vector<8x64xf32>
    %709 = tpu.matmul %608, %708, %cst_285 {dimension_numbers = #tpu.dot_dimension_numbers<[1], [0], [0], [1], [0, 0, 1, 1], [], []>} : vector<8x64xf32>, vector<64x64xf32>, vector<8x64xf32> -> vector<8x64xf32>
    %710 = vector.extract_strided_slice %705 {offsets = [0, 0], sizes = [1, 64], strides = [1, 1]} : vector<1x192xf32> to vector<1x64xf32>
    %711 = vector.broadcast %710 : vector<1x64xf32> to vector<8x64xf32>
    %712 = arith.addf %709, %711 : vector<8x64xf32>
    %713 = vector.extract_strided_slice %703 {offsets = [0, 64], sizes = [64, 128], strides = [1, 1]} : vector<64x192xf32> to vector<64x128xf32>
    %cst_286 = arith.constant dense<0.000000e+00> : vector<8x128xf32>
    %714 = tpu.matmul %608, %713, %cst_286 {dimension_numbers = #tpu.dot_dimension_numbers<[1], [0], [0], [1], [0, 0, 1, 1], [], []>} : vector<8x64xf32>, vector<64x128xf32>, vector<8x128xf32> -> vector<8x128xf32>
    %715 = vector.extract_strided_slice %705 {offsets = [0, 64], sizes = [1, 128], strides = [1, 1]} : vector<1x192xf32> to vector<1x128xf32>
    %716 = vector.broadcast %715 : vector<1x128xf32> to vector<8x128xf32>
    %717 = arith.addf %714, %716 : vector<8x128xf32>
    %718 = vector.extract_strided_slice %717 {offsets = [0, 0], sizes = [8, 64], strides = [1, 1]} : vector<8x128xf32> to vector<8x64xf32>
    %719 = vector.extract_strided_slice %717 {offsets = [0, 64], sizes = [8, 64], strides = [1, 1]} : vector<8x128xf32> to vector<8x64xf32>
    %720 = vector.extract_strided_slice %712 {offsets = [0, 0], sizes = [8, 16], strides = [1, 1]} : vector<8x64xf32> to vector<8x16xf32>
    %721 = vector.extract_strided_slice %718 {offsets = [0, 0], sizes = [8, 16], strides = [1, 1]} : vector<8x64xf32> to vector<8x16xf32>
    %cst_287 = arith.constant dense<0.000000e+00> : vector<8x8xf32>
    %722 = tpu.matmul %720, %721, %cst_287 {dimension_numbers = #tpu.dot_dimension_numbers<[1], [1], [0], [0], [0, 0, 1, 0], [], []>} : vector<8x16xf32>, vector<8x16xf32>, vector<8x8xf32> -> vector<8x8xf32>
    %cst_288 = arith.constant dense<0xFF800000> : vector<8xf32>
    %723 = vector.multi_reduction <maximumf>, %722, %cst_288 [1] : vector<8x8xf32> to vector<8xf32>
    %724 = vector.shape_cast %723 : vector<8xf32> to vector<8x1xf32>
    %725 = vector.broadcast %724 : vector<8x1xf32> to vector<8x8xf32>
    %726 = arith.subf %722, %725 : vector<8x8xf32>
    %727 = math.exp %726 : vector<8x8xf32>
    %cst_289 = arith.constant dense<0.000000e+00> : vector<8xf32>
    %728 = vector.multi_reduction <add>, %727, %cst_289 [1] : vector<8x8xf32> to vector<8xf32>
    %729 = vector.shape_cast %728 : vector<8xf32> to vector<8x1xf32>
    %730 = tpu.reciprocal %729 {approx = true} : vector<8x1xf32> -> vector<8x1xf32>
    %731 = vector.broadcast %730 : vector<8x1xf32> to vector<8x8xf32>
    %732 = arith.mulf %727, %731 : vector<8x8xf32>
    %733 = vector.extract_strided_slice %719 {offsets = [0, 0], sizes = [8, 16], strides = [1, 1]} : vector<8x64xf32> to vector<8x16xf32>
    %cst_290 = arith.constant dense<0.000000e+00> : vector<8x16xf32>
    %734 = tpu.matmul %732, %733, %cst_290 {dimension_numbers = #tpu.dot_dimension_numbers<[1], [0], [0], [1], [0, 0, 1, 1], [], []>} : vector<8x8xf32>, vector<8x16xf32>, vector<8x16xf32> -> vector<8x16xf32>
    %735 = vector.extract_strided_slice %707 {offsets = [0, 0], sizes = [16, 64], strides = [1, 1]} : vector<64x64xf32> to vector<16x64xf32>
    %cst_291 = arith.constant dense<0.000000e+00> : vector<8x64xf32>
    %736 = tpu.matmul %734, %735, %cst_291 {dimension_numbers = #tpu.dot_dimension_numbers<[1], [0], [0], [1], [0, 0, 1, 1], [], []>} : vector<8x16xf32>, vector<16x64xf32>, vector<8x64xf32> -> vector<8x64xf32>
    %737 = vector.extract_strided_slice %712 {offsets = [0, 16], sizes = [8, 16], strides = [1, 1]} : vector<8x64xf32> to vector<8x16xf32>
    %738 = vector.extract_strided_slice %718 {offsets = [0, 16], sizes = [8, 16], strides = [1, 1]} : vector<8x64xf32> to vector<8x16xf32>
    %cst_292 = arith.constant dense<0.000000e+00> : vector<8x8xf32>
    %739 = tpu.matmul %737, %738, %cst_292 {dimension_numbers = #tpu.dot_dimension_numbers<[1], [1], [0], [0], [0, 0, 1, 0], [], []>} : vector<8x16xf32>, vector<8x16xf32>, vector<8x8xf32> -> vector<8x8xf32>
    %cst_293 = arith.constant dense<0xFF800000> : vector<8xf32>
    %740 = vector.multi_reduction <maximumf>, %739, %cst_293 [1] : vector<8x8xf32> to vector<8xf32>
    %741 = vector.shape_cast %740 : vector<8xf32> to vector<8x1xf32>
    %742 = vector.broadcast %741 : vector<8x1xf32> to vector<8x8xf32>
    %743 = arith.subf %739, %742 : vector<8x8xf32>
    %744 = math.exp %743 : vector<8x8xf32>
    %cst_294 = arith.constant dense<0.000000e+00> : vector<8xf32>
    %745 = vector.multi_reduction <add>, %744, %cst_294 [1] : vector<8x8xf32> to vector<8xf32>
    %746 = vector.shape_cast %745 : vector<8xf32> to vector<8x1xf32>
    %747 = tpu.reciprocal %746 {approx = true} : vector<8x1xf32> -> vector<8x1xf32>
    %748 = vector.broadcast %747 : vector<8x1xf32> to vector<8x8xf32>
    %749 = arith.mulf %744, %748 : vector<8x8xf32>
    %750 = vector.extract_strided_slice %719 {offsets = [0, 16], sizes = [8, 16], strides = [1, 1]} : vector<8x64xf32> to vector<8x16xf32>
    %cst_295 = arith.constant dense<0.000000e+00> : vector<8x16xf32>
    %751 = tpu.matmul %749, %750, %cst_295 {dimension_numbers = #tpu.dot_dimension_numbers<[1], [0], [0], [1], [0, 0, 1, 1], [], []>} : vector<8x8xf32>, vector<8x16xf32>, vector<8x16xf32> -> vector<8x16xf32>
    %752 = vector.extract_strided_slice %707 {offsets = [16, 0], sizes = [16, 64], strides = [1, 1]} : vector<64x64xf32> to vector<16x64xf32>
    %cst_296 = arith.constant dense<0.000000e+00> : vector<8x64xf32>
    %753 = tpu.matmul %751, %752, %cst_296 {dimension_numbers = #tpu.dot_dimension_numbers<[1], [0], [0], [1], [0, 0, 1, 1], [], []>} : vector<8x16xf32>, vector<16x64xf32>, vector<8x64xf32> -> vector<8x64xf32>
    %754 = arith.addf %736, %753 : vector<8x64xf32>
    %755 = vector.extract_strided_slice %712 {offsets = [0, 32], sizes = [8, 16], strides = [1, 1]} : vector<8x64xf32> to vector<8x16xf32>
    %756 = vector.extract_strided_slice %718 {offsets = [0, 32], sizes = [8, 16], strides = [1, 1]} : vector<8x64xf32> to vector<8x16xf32>
    %cst_297 = arith.constant dense<0.000000e+00> : vector<8x8xf32>
    %757 = tpu.matmul %755, %756, %cst_297 {dimension_numbers = #tpu.dot_dimension_numbers<[1], [1], [0], [0], [0, 0, 1, 0], [], []>} : vector<8x16xf32>, vector<8x16xf32>, vector<8x8xf32> -> vector<8x8xf32>
    %cst_298 = arith.constant dense<0xFF800000> : vector<8xf32>
    %758 = vector.multi_reduction <maximumf>, %757, %cst_298 [1] : vector<8x8xf32> to vector<8xf32>
    %759 = vector.shape_cast %758 : vector<8xf32> to vector<8x1xf32>
    %760 = vector.broadcast %759 : vector<8x1xf32> to vector<8x8xf32>
    %761 = arith.subf %757, %760 : vector<8x8xf32>
    %762 = math.exp %761 : vector<8x8xf32>
    %cst_299 = arith.constant dense<0.000000e+00> : vector<8xf32>
    %763 = vector.multi_reduction <add>, %762, %cst_299 [1] : vector<8x8xf32> to vector<8xf32>
    %764 = vector.shape_cast %763 : vector<8xf32> to vector<8x1xf32>
    %765 = tpu.reciprocal %764 {approx = true} : vector<8x1xf32> -> vector<8x1xf32>
    %766 = vector.broadcast %765 : vector<8x1xf32> to vector<8x8xf32>
    %767 = arith.mulf %762, %766 : vector<8x8xf32>
    %768 = vector.extract_strided_slice %719 {offsets = [0, 32], sizes = [8, 16], strides = [1, 1]} : vector<8x64xf32> to vector<8x16xf32>
    %cst_300 = arith.constant dense<0.000000e+00> : vector<8x16xf32>
    %769 = tpu.matmul %767, %768, %cst_300 {dimension_numbers = #tpu.dot_dimension_numbers<[1], [0], [0], [1], [0, 0, 1, 1], [], []>} : vector<8x8xf32>, vector<8x16xf32>, vector<8x16xf32> -> vector<8x16xf32>
    %770 = vector.extract_strided_slice %707 {offsets = [32, 0], sizes = [16, 64], strides = [1, 1]} : vector<64x64xf32> to vector<16x64xf32>
    %cst_301 = arith.constant dense<0.000000e+00> : vector<8x64xf32>
    %771 = tpu.matmul %769, %770, %cst_301 {dimension_numbers = #tpu.dot_dimension_numbers<[1], [0], [0], [1], [0, 0, 1, 1], [], []>} : vector<8x16xf32>, vector<16x64xf32>, vector<8x64xf32> -> vector<8x64xf32>
    %772 = arith.addf %754, %771 : vector<8x64xf32>
    %773 = vector.extract_strided_slice %712 {offsets = [0, 48], sizes = [8, 16], strides = [1, 1]} : vector<8x64xf32> to vector<8x16xf32>
    %774 = vector.extract_strided_slice %718 {offsets = [0, 48], sizes = [8, 16], strides = [1, 1]} : vector<8x64xf32> to vector<8x16xf32>
    %cst_302 = arith.constant dense<0.000000e+00> : vector<8x8xf32>
    %775 = tpu.matmul %773, %774, %cst_302 {dimension_numbers = #tpu.dot_dimension_numbers<[1], [1], [0], [0], [0, 0, 1, 0], [], []>} : vector<8x16xf32>, vector<8x16xf32>, vector<8x8xf32> -> vector<8x8xf32>
    %cst_303 = arith.constant dense<0xFF800000> : vector<8xf32>
    %776 = vector.multi_reduction <maximumf>, %775, %cst_303 [1] : vector<8x8xf32> to vector<8xf32>
    %777 = vector.shape_cast %776 : vector<8xf32> to vector<8x1xf32>
    %778 = vector.broadcast %777 : vector<8x1xf32> to vector<8x8xf32>
    %779 = arith.subf %775, %778 : vector<8x8xf32>
    %780 = math.exp %779 : vector<8x8xf32>
    %cst_304 = arith.constant dense<0.000000e+00> : vector<8xf32>
    %781 = vector.multi_reduction <add>, %780, %cst_304 [1] : vector<8x8xf32> to vector<8xf32>
    %782 = vector.shape_cast %781 : vector<8xf32> to vector<8x1xf32>
    %783 = tpu.reciprocal %782 {approx = true} : vector<8x1xf32> -> vector<8x1xf32>
    %784 = vector.broadcast %783 : vector<8x1xf32> to vector<8x8xf32>
    %785 = arith.mulf %780, %784 : vector<8x8xf32>
    %786 = vector.extract_strided_slice %719 {offsets = [0, 48], sizes = [8, 16], strides = [1, 1]} : vector<8x64xf32> to vector<8x16xf32>
    %cst_305 = arith.constant dense<0.000000e+00> : vector<8x16xf32>
    %787 = tpu.matmul %785, %786, %cst_305 {dimension_numbers = #tpu.dot_dimension_numbers<[1], [0], [0], [1], [0, 0, 1, 1], [], []>} : vector<8x8xf32>, vector<8x16xf32>, vector<8x16xf32> -> vector<8x16xf32>
    %788 = vector.extract_strided_slice %707 {offsets = [48, 0], sizes = [16, 64], strides = [1, 1]} : vector<64x64xf32> to vector<16x64xf32>
    %cst_306 = arith.constant dense<0.000000e+00> : vector<8x64xf32>
    %789 = tpu.matmul %787, %788, %cst_306 {dimension_numbers = #tpu.dot_dimension_numbers<[1], [0], [0], [1], [0, 0, 1, 1], [], []>} : vector<8x16xf32>, vector<16x64xf32>, vector<8x64xf32> -> vector<8x64xf32>
    %790 = arith.addf %772, %789 : vector<8x64xf32>
    %c6_307 = arith.constant 6 : index
    %c0_308 = arith.constant 0 : index
    %c0_309 = arith.constant 0 : index
    %791 = vector.load %arg6[%c6_307, %c0_308, %c0_309] : memref<8x1x64xf32, #tpu.memory_space<vmem>>, vector<1x1x64xf32>
    %792 = vector.shape_cast %791 : vector<1x1x64xf32> to vector<1x64xf32>
    %793 = vector.broadcast %792 : vector<1x64xf32> to vector<8x64xf32>
    %794 = arith.addf %790, %793 : vector<8x64xf32>
    %795 = arith.addf %608, %794 : vector<8x64xf32>
    %cst_310 = arith.constant dense<0.000000e+00> : vector<8xf32>
    %796 = vector.multi_reduction <add>, %795, %cst_310 [1] : vector<8x64xf32> to vector<8xf32>
    %797 = vector.shape_cast %796 : vector<8xf32> to vector<8x1xf32>
    %cst_311 = arith.constant 6.400000e+01 : f32
    %798 = vector.broadcast %cst_311 : f32 to vector<8x1xf32>
    %799 = arith.divf %797, %798 : vector<8x1xf32>
    %800 = vector.broadcast %799 : vector<8x1xf32> to vector<8x64xf32>
    %801 = arith.subf %795, %800 : vector<8x64xf32>
    %802 = arith.mulf %801, %801 : vector<8x64xf32>
    %cst_312 = arith.constant dense<0.000000e+00> : vector<8xf32>
    %803 = vector.multi_reduction <add>, %802, %cst_312 [1] : vector<8x64xf32> to vector<8xf32>
    %804 = vector.shape_cast %803 : vector<8xf32> to vector<8x1xf32>
    %cst_313 = arith.constant 6.400000e+01 : f32
    %805 = vector.broadcast %cst_313 : f32 to vector<8x1xf32>
    %806 = arith.divf %804, %805 : vector<8x1xf32>
    %807 = vector.broadcast %799 : vector<8x1xf32> to vector<8x64xf32>
    %808 = arith.subf %795, %807 : vector<8x64xf32>
    %cst_314 = arith.constant 9.99999974E-6 : f32
    %809 = vector.broadcast %cst_314 : f32 to vector<8x1xf32>
    %810 = arith.addf %806, %809 : vector<8x1xf32>
    %811 = math.rsqrt %810 : vector<8x1xf32>
    %812 = vector.broadcast %811 : vector<8x1xf32> to vector<8x64xf32>
    %813 = arith.mulf %808, %812 : vector<8x64xf32>
    %c4_315 = arith.constant 4 : index
    %c0_316 = arith.constant 0 : index
    %c0_317 = arith.constant 0 : index
    %814 = vector.load %arg11[%c4_315, %c0_316, %c0_317] : memref<8x1x64xf32, #tpu.memory_space<vmem>>, vector<1x1x64xf32>
    %815 = vector.shape_cast %814 : vector<1x1x64xf32> to vector<1x64xf32>
    %816 = vector.broadcast %815 : vector<1x64xf32> to vector<8x64xf32>
    %817 = arith.mulf %813, %816 : vector<8x64xf32>
    %c4_318 = arith.constant 4 : index
    %c0_319 = arith.constant 0 : index
    %c0_320 = arith.constant 0 : index
    %818 = vector.load %arg12[%c4_318, %c0_319, %c0_320] : memref<8x1x64xf32, #tpu.memory_space<vmem>>, vector<1x1x64xf32>
    %819 = vector.shape_cast %818 : vector<1x1x64xf32> to vector<1x64xf32>
    %820 = vector.broadcast %819 : vector<1x64xf32> to vector<8x64xf32>
    %821 = arith.addf %817, %820 : vector<8x64xf32>
    %c2_321 = arith.constant 2 : index
    %c0_322 = arith.constant 0 : index
    %c0_323 = arith.constant 0 : index
    %822 = vector.load %arg7[%c2_321, %c0_322, %c0_323] : memref<4x64x32xf32, #tpu.memory_space<vmem>>, vector<1x64x32xf32>
    %823 = vector.shape_cast %822 : vector<1x64x32xf32> to vector<64x32xf32>
    %cst_324 = arith.constant dense<0.000000e+00> : vector<8x32xf32>
    %824 = tpu.matmul %821, %823, %cst_324 {dimension_numbers = #tpu.dot_dimension_numbers<[1], [0], [0], [1], [0, 0, 1, 1], [], []>} : vector<8x64xf32>, vector<64x32xf32>, vector<8x32xf32> -> vector<8x32xf32>
    %c2_325 = arith.constant 2 : index
    %c0_326 = arith.constant 0 : index
    %c0_327 = arith.constant 0 : index
    %825 = vector.load %arg8[%c2_325, %c0_326, %c0_327] : memref<4x1x32xf32, #tpu.memory_space<vmem>>, vector<1x1x32xf32>
    %826 = vector.shape_cast %825 : vector<1x1x32xf32> to vector<1x32xf32>
    %827 = vector.broadcast %826 : vector<1x32xf32> to vector<8x32xf32>
    %828 = arith.addf %824, %827 : vector<8x32xf32>
    %cst_328 = arith.constant 0.000000e+00 : f32
    %829 = vector.broadcast %cst_328 : f32 to vector<8x32xf32>
    %830 = arith.maximumf %828, %829 : vector<8x32xf32>
    %c2_329 = arith.constant 2 : index
    %c0_330 = arith.constant 0 : index
    %c0_331 = arith.constant 0 : index
    %831 = vector.load %arg9[%c2_329, %c0_330, %c0_331] : memref<4x32x64xf32, #tpu.memory_space<vmem>>, vector<1x32x64xf32>
    %832 = vector.shape_cast %831 : vector<1x32x64xf32> to vector<32x64xf32>
    %cst_332 = arith.constant dense<0.000000e+00> : vector<8x64xf32>
    %833 = tpu.matmul %830, %832, %cst_332 {dimension_numbers = #tpu.dot_dimension_numbers<[1], [0], [0], [1], [0, 0, 1, 1], [], []>} : vector<8x32xf32>, vector<32x64xf32>, vector<8x64xf32> -> vector<8x64xf32>
    %c2_333 = arith.constant 2 : index
    %c0_334 = arith.constant 0 : index
    %c0_335 = arith.constant 0 : index
    %834 = vector.load %arg10[%c2_333, %c0_334, %c0_335] : memref<4x1x64xf32, #tpu.memory_space<vmem>>, vector<1x1x64xf32>
    %835 = vector.shape_cast %834 : vector<1x1x64xf32> to vector<1x64xf32>
    %836 = vector.broadcast %835 : vector<1x64xf32> to vector<8x64xf32>
    %837 = arith.addf %833, %836 : vector<8x64xf32>
    %838 = arith.addf %821, %837 : vector<8x64xf32>
    %cst_336 = arith.constant dense<0.000000e+00> : vector<8xf32>
    %839 = vector.multi_reduction <add>, %838, %cst_336 [1] : vector<8x64xf32> to vector<8xf32>
    %840 = vector.shape_cast %839 : vector<8xf32> to vector<8x1xf32>
    %cst_337 = arith.constant 6.400000e+01 : f32
    %841 = vector.broadcast %cst_337 : f32 to vector<8x1xf32>
    %842 = arith.divf %840, %841 : vector<8x1xf32>
    %843 = vector.broadcast %842 : vector<8x1xf32> to vector<8x64xf32>
    %844 = arith.subf %838, %843 : vector<8x64xf32>
    %845 = arith.mulf %844, %844 : vector<8x64xf32>
    %cst_338 = arith.constant dense<0.000000e+00> : vector<8xf32>
    %846 = vector.multi_reduction <add>, %845, %cst_338 [1] : vector<8x64xf32> to vector<8xf32>
    %847 = vector.shape_cast %846 : vector<8xf32> to vector<8x1xf32>
    %cst_339 = arith.constant 6.400000e+01 : f32
    %848 = vector.broadcast %cst_339 : f32 to vector<8x1xf32>
    %849 = arith.divf %847, %848 : vector<8x1xf32>
    %850 = vector.broadcast %842 : vector<8x1xf32> to vector<8x64xf32>
    %851 = arith.subf %838, %850 : vector<8x64xf32>
    %cst_340 = arith.constant 9.99999974E-6 : f32
    %852 = vector.broadcast %cst_340 : f32 to vector<8x1xf32>
    %853 = arith.addf %849, %852 : vector<8x1xf32>
    %854 = math.rsqrt %853 : vector<8x1xf32>
    %855 = vector.broadcast %854 : vector<8x1xf32> to vector<8x64xf32>
    %856 = arith.mulf %851, %855 : vector<8x64xf32>
    %c5_341 = arith.constant 5 : index
    %c0_342 = arith.constant 0 : index
    %c0_343 = arith.constant 0 : index
    %857 = vector.load %arg11[%c5_341, %c0_342, %c0_343] : memref<8x1x64xf32, #tpu.memory_space<vmem>>, vector<1x1x64xf32>
    %858 = vector.shape_cast %857 : vector<1x1x64xf32> to vector<1x64xf32>
    %859 = vector.broadcast %858 : vector<1x64xf32> to vector<8x64xf32>
    %860 = arith.mulf %856, %859 : vector<8x64xf32>
    %c5_344 = arith.constant 5 : index
    %c0_345 = arith.constant 0 : index
    %c0_346 = arith.constant 0 : index
    %861 = vector.load %arg12[%c5_344, %c0_345, %c0_346] : memref<8x1x64xf32, #tpu.memory_space<vmem>>, vector<1x1x64xf32>
    %862 = vector.shape_cast %861 : vector<1x1x64xf32> to vector<1x64xf32>
    %863 = vector.broadcast %862 : vector<1x64xf32> to vector<8x64xf32>
    %864 = arith.addf %860, %863 : vector<8x64xf32>
    %c7 = arith.constant 7 : index
    %c0_347 = arith.constant 0 : index
    %c0_348 = arith.constant 0 : index
    %865 = vector.load %arg3[%c7, %c0_347, %c0_348] : memref<8x64x192xf32, #tpu.memory_space<vmem>>, vector<1x64x192xf32>
    %866 = vector.shape_cast %865 : vector<1x64x192xf32> to vector<64x192xf32>
    %c7_349 = arith.constant 7 : index
    %c0_350 = arith.constant 0 : index
    %c0_351 = arith.constant 0 : index
    %867 = vector.load %arg4[%c7_349, %c0_350, %c0_351] : memref<8x1x192xf32, #tpu.memory_space<vmem>>, vector<1x1x192xf32>
    %868 = vector.shape_cast %867 : vector<1x1x192xf32> to vector<1x192xf32>
    %c7_352 = arith.constant 7 : index
    %c0_353 = arith.constant 0 : index
    %c0_354 = arith.constant 0 : index
    %869 = vector.load %arg5[%c7_352, %c0_353, %c0_354] : memref<8x64x64xf32, #tpu.memory_space<vmem>>, vector<1x64x64xf32>
    %870 = vector.shape_cast %869 : vector<1x64x64xf32> to vector<64x64xf32>
    %871 = vector.extract_strided_slice %866 {offsets = [0, 0], sizes = [64, 64], strides = [1, 1]} : vector<64x192xf32> to vector<64x64xf32>
    %cst_355 = arith.constant dense<0.000000e+00> : vector<16x64xf32>
    %872 = tpu.matmul %701, %871, %cst_355 {dimension_numbers = #tpu.dot_dimension_numbers<[1], [0], [0], [1], [0, 0, 1, 1], [], []>} : vector<16x64xf32>, vector<64x64xf32>, vector<16x64xf32> -> vector<16x64xf32>
    %873 = vector.extract_strided_slice %868 {offsets = [0, 0], sizes = [1, 64], strides = [1, 1]} : vector<1x192xf32> to vector<1x64xf32>
    %874 = vector.broadcast %873 : vector<1x64xf32> to vector<16x64xf32>
    %875 = arith.addf %872, %874 : vector<16x64xf32>
    %876 = vector.extract_strided_slice %866 {offsets = [0, 64], sizes = [64, 128], strides = [1, 1]} : vector<64x192xf32> to vector<64x128xf32>
    %cst_356 = arith.constant dense<0.000000e+00> : vector<16x128xf32>
    %877 = tpu.matmul %701, %876, %cst_356 {dimension_numbers = #tpu.dot_dimension_numbers<[1], [0], [0], [1], [0, 0, 1, 1], [], []>} : vector<16x64xf32>, vector<64x128xf32>, vector<16x128xf32> -> vector<16x128xf32>
    %878 = vector.extract_strided_slice %868 {offsets = [0, 64], sizes = [1, 128], strides = [1, 1]} : vector<1x192xf32> to vector<1x128xf32>
    %879 = vector.broadcast %878 : vector<1x128xf32> to vector<16x128xf32>
    %880 = arith.addf %877, %879 : vector<16x128xf32>
    %881 = vector.extract_strided_slice %880 {offsets = [0, 0], sizes = [16, 64], strides = [1, 1]} : vector<16x128xf32> to vector<16x64xf32>
    %882 = vector.extract_strided_slice %880 {offsets = [0, 64], sizes = [16, 64], strides = [1, 1]} : vector<16x128xf32> to vector<16x64xf32>
    %883 = vector.extract_strided_slice %875 {offsets = [0, 0], sizes = [16, 16], strides = [1, 1]} : vector<16x64xf32> to vector<16x16xf32>
    %884 = vector.extract_strided_slice %881 {offsets = [0, 0], sizes = [16, 16], strides = [1, 1]} : vector<16x64xf32> to vector<16x16xf32>
    %cst_357 = arith.constant dense<0.000000e+00> : vector<16x16xf32>
    %885 = tpu.matmul %883, %884, %cst_357 {dimension_numbers = #tpu.dot_dimension_numbers<[1], [1], [0], [0], [0, 0, 1, 0], [], []>} : vector<16x16xf32>, vector<16x16xf32>, vector<16x16xf32> -> vector<16x16xf32>
    %cst_358 = arith.constant dense<0xFF800000> : vector<16xf32>
    %886 = vector.multi_reduction <maximumf>, %885, %cst_358 [1] : vector<16x16xf32> to vector<16xf32>
    %887 = vector.shape_cast %886 : vector<16xf32> to vector<16x1xf32>
    %888 = vector.broadcast %887 : vector<16x1xf32> to vector<16x16xf32>
    %889 = arith.subf %885, %888 : vector<16x16xf32>
    %890 = math.exp %889 : vector<16x16xf32>
    %cst_359 = arith.constant dense<0.000000e+00> : vector<16xf32>
    %891 = vector.multi_reduction <add>, %890, %cst_359 [1] : vector<16x16xf32> to vector<16xf32>
    %892 = vector.shape_cast %891 : vector<16xf32> to vector<16x1xf32>
    %893 = tpu.reciprocal %892 {approx = true} : vector<16x1xf32> -> vector<16x1xf32>
    %894 = vector.broadcast %893 : vector<16x1xf32> to vector<16x16xf32>
    %895 = arith.mulf %890, %894 : vector<16x16xf32>
    %896 = vector.extract_strided_slice %882 {offsets = [0, 0], sizes = [16, 16], strides = [1, 1]} : vector<16x64xf32> to vector<16x16xf32>
    %cst_360 = arith.constant dense<0.000000e+00> : vector<16x16xf32>
    %897 = tpu.matmul %895, %896, %cst_360 {dimension_numbers = #tpu.dot_dimension_numbers<[1], [0], [0], [1], [0, 0, 1, 1], [], []>} : vector<16x16xf32>, vector<16x16xf32>, vector<16x16xf32> -> vector<16x16xf32>
    %898 = vector.extract_strided_slice %870 {offsets = [0, 0], sizes = [16, 64], strides = [1, 1]} : vector<64x64xf32> to vector<16x64xf32>
    %cst_361 = arith.constant dense<0.000000e+00> : vector<16x64xf32>
    %899 = tpu.matmul %897, %898, %cst_361 {dimension_numbers = #tpu.dot_dimension_numbers<[1], [0], [0], [1], [0, 0, 1, 1], [], []>} : vector<16x16xf32>, vector<16x64xf32>, vector<16x64xf32> -> vector<16x64xf32>
    %900 = vector.extract_strided_slice %875 {offsets = [0, 16], sizes = [16, 16], strides = [1, 1]} : vector<16x64xf32> to vector<16x16xf32>
    %901 = vector.extract_strided_slice %881 {offsets = [0, 16], sizes = [16, 16], strides = [1, 1]} : vector<16x64xf32> to vector<16x16xf32>
    %cst_362 = arith.constant dense<0.000000e+00> : vector<16x16xf32>
    %902 = tpu.matmul %900, %901, %cst_362 {dimension_numbers = #tpu.dot_dimension_numbers<[1], [1], [0], [0], [0, 0, 1, 0], [], []>} : vector<16x16xf32>, vector<16x16xf32>, vector<16x16xf32> -> vector<16x16xf32>
    %cst_363 = arith.constant dense<0xFF800000> : vector<16xf32>
    %903 = vector.multi_reduction <maximumf>, %902, %cst_363 [1] : vector<16x16xf32> to vector<16xf32>
    %904 = vector.shape_cast %903 : vector<16xf32> to vector<16x1xf32>
    %905 = vector.broadcast %904 : vector<16x1xf32> to vector<16x16xf32>
    %906 = arith.subf %902, %905 : vector<16x16xf32>
    %907 = math.exp %906 : vector<16x16xf32>
    %cst_364 = arith.constant dense<0.000000e+00> : vector<16xf32>
    %908 = vector.multi_reduction <add>, %907, %cst_364 [1] : vector<16x16xf32> to vector<16xf32>
    %909 = vector.shape_cast %908 : vector<16xf32> to vector<16x1xf32>
    %910 = tpu.reciprocal %909 {approx = true} : vector<16x1xf32> -> vector<16x1xf32>
    %911 = vector.broadcast %910 : vector<16x1xf32> to vector<16x16xf32>
    %912 = arith.mulf %907, %911 : vector<16x16xf32>
    %913 = vector.extract_strided_slice %882 {offsets = [0, 16], sizes = [16, 16], strides = [1, 1]} : vector<16x64xf32> to vector<16x16xf32>
    %cst_365 = arith.constant dense<0.000000e+00> : vector<16x16xf32>
    %914 = tpu.matmul %912, %913, %cst_365 {dimension_numbers = #tpu.dot_dimension_numbers<[1], [0], [0], [1], [0, 0, 1, 1], [], []>} : vector<16x16xf32>, vector<16x16xf32>, vector<16x16xf32> -> vector<16x16xf32>
    %915 = vector.extract_strided_slice %870 {offsets = [16, 0], sizes = [16, 64], strides = [1, 1]} : vector<64x64xf32> to vector<16x64xf32>
    %cst_366 = arith.constant dense<0.000000e+00> : vector<16x64xf32>
    %916 = tpu.matmul %914, %915, %cst_366 {dimension_numbers = #tpu.dot_dimension_numbers<[1], [0], [0], [1], [0, 0, 1, 1], [], []>} : vector<16x16xf32>, vector<16x64xf32>, vector<16x64xf32> -> vector<16x64xf32>
    %917 = arith.addf %899, %916 : vector<16x64xf32>
    %918 = vector.extract_strided_slice %875 {offsets = [0, 32], sizes = [16, 16], strides = [1, 1]} : vector<16x64xf32> to vector<16x16xf32>
    %919 = vector.extract_strided_slice %881 {offsets = [0, 32], sizes = [16, 16], strides = [1, 1]} : vector<16x64xf32> to vector<16x16xf32>
    %cst_367 = arith.constant dense<0.000000e+00> : vector<16x16xf32>
    %920 = tpu.matmul %918, %919, %cst_367 {dimension_numbers = #tpu.dot_dimension_numbers<[1], [1], [0], [0], [0, 0, 1, 0], [], []>} : vector<16x16xf32>, vector<16x16xf32>, vector<16x16xf32> -> vector<16x16xf32>
    %cst_368 = arith.constant dense<0xFF800000> : vector<16xf32>
    %921 = vector.multi_reduction <maximumf>, %920, %cst_368 [1] : vector<16x16xf32> to vector<16xf32>
    %922 = vector.shape_cast %921 : vector<16xf32> to vector<16x1xf32>
    %923 = vector.broadcast %922 : vector<16x1xf32> to vector<16x16xf32>
    %924 = arith.subf %920, %923 : vector<16x16xf32>
    %925 = math.exp %924 : vector<16x16xf32>
    %cst_369 = arith.constant dense<0.000000e+00> : vector<16xf32>
    %926 = vector.multi_reduction <add>, %925, %cst_369 [1] : vector<16x16xf32> to vector<16xf32>
    %927 = vector.shape_cast %926 : vector<16xf32> to vector<16x1xf32>
    %928 = tpu.reciprocal %927 {approx = true} : vector<16x1xf32> -> vector<16x1xf32>
    %929 = vector.broadcast %928 : vector<16x1xf32> to vector<16x16xf32>
    %930 = arith.mulf %925, %929 : vector<16x16xf32>
    %931 = vector.extract_strided_slice %882 {offsets = [0, 32], sizes = [16, 16], strides = [1, 1]} : vector<16x64xf32> to vector<16x16xf32>
    %cst_370 = arith.constant dense<0.000000e+00> : vector<16x16xf32>
    %932 = tpu.matmul %930, %931, %cst_370 {dimension_numbers = #tpu.dot_dimension_numbers<[1], [0], [0], [1], [0, 0, 1, 1], [], []>} : vector<16x16xf32>, vector<16x16xf32>, vector<16x16xf32> -> vector<16x16xf32>
    %933 = vector.extract_strided_slice %870 {offsets = [32, 0], sizes = [16, 64], strides = [1, 1]} : vector<64x64xf32> to vector<16x64xf32>
    %cst_371 = arith.constant dense<0.000000e+00> : vector<16x64xf32>
    %934 = tpu.matmul %932, %933, %cst_371 {dimension_numbers = #tpu.dot_dimension_numbers<[1], [0], [0], [1], [0, 0, 1, 1], [], []>} : vector<16x16xf32>, vector<16x64xf32>, vector<16x64xf32> -> vector<16x64xf32>
    %935 = arith.addf %917, %934 : vector<16x64xf32>
    %936 = vector.extract_strided_slice %875 {offsets = [0, 48], sizes = [16, 16], strides = [1, 1]} : vector<16x64xf32> to vector<16x16xf32>
    %937 = vector.extract_strided_slice %881 {offsets = [0, 48], sizes = [16, 16], strides = [1, 1]} : vector<16x64xf32> to vector<16x16xf32>
    %cst_372 = arith.constant dense<0.000000e+00> : vector<16x16xf32>
    %938 = tpu.matmul %936, %937, %cst_372 {dimension_numbers = #tpu.dot_dimension_numbers<[1], [1], [0], [0], [0, 0, 1, 0], [], []>} : vector<16x16xf32>, vector<16x16xf32>, vector<16x16xf32> -> vector<16x16xf32>
    %cst_373 = arith.constant dense<0xFF800000> : vector<16xf32>
    %939 = vector.multi_reduction <maximumf>, %938, %cst_373 [1] : vector<16x16xf32> to vector<16xf32>
    %940 = vector.shape_cast %939 : vector<16xf32> to vector<16x1xf32>
    %941 = vector.broadcast %940 : vector<16x1xf32> to vector<16x16xf32>
    %942 = arith.subf %938, %941 : vector<16x16xf32>
    %943 = math.exp %942 : vector<16x16xf32>
    %cst_374 = arith.constant dense<0.000000e+00> : vector<16xf32>
    %944 = vector.multi_reduction <add>, %943, %cst_374 [1] : vector<16x16xf32> to vector<16xf32>
    %945 = vector.shape_cast %944 : vector<16xf32> to vector<16x1xf32>
    %946 = tpu.reciprocal %945 {approx = true} : vector<16x1xf32> -> vector<16x1xf32>
    %947 = vector.broadcast %946 : vector<16x1xf32> to vector<16x16xf32>
    %948 = arith.mulf %943, %947 : vector<16x16xf32>
    %949 = vector.extract_strided_slice %882 {offsets = [0, 48], sizes = [16, 16], strides = [1, 1]} : vector<16x64xf32> to vector<16x16xf32>
    %cst_375 = arith.constant dense<0.000000e+00> : vector<16x16xf32>
    %950 = tpu.matmul %948, %949, %cst_375 {dimension_numbers = #tpu.dot_dimension_numbers<[1], [0], [0], [1], [0, 0, 1, 1], [], []>} : vector<16x16xf32>, vector<16x16xf32>, vector<16x16xf32> -> vector<16x16xf32>
    %951 = vector.extract_strided_slice %870 {offsets = [48, 0], sizes = [16, 64], strides = [1, 1]} : vector<64x64xf32> to vector<16x64xf32>
    %cst_376 = arith.constant dense<0.000000e+00> : vector<16x64xf32>
    %952 = tpu.matmul %950, %951, %cst_376 {dimension_numbers = #tpu.dot_dimension_numbers<[1], [0], [0], [1], [0, 0, 1, 1], [], []>} : vector<16x16xf32>, vector<16x64xf32>, vector<16x64xf32> -> vector<16x64xf32>
    %953 = arith.addf %935, %952 : vector<16x64xf32>
    %c7_377 = arith.constant 7 : index
    %c0_378 = arith.constant 0 : index
    %c0_379 = arith.constant 0 : index
    %954 = vector.load %arg6[%c7_377, %c0_378, %c0_379] : memref<8x1x64xf32, #tpu.memory_space<vmem>>, vector<1x1x64xf32>
    %955 = vector.shape_cast %954 : vector<1x1x64xf32> to vector<1x64xf32>
    %956 = vector.broadcast %955 : vector<1x64xf32> to vector<16x64xf32>
    %957 = arith.addf %953, %956 : vector<16x64xf32>
    %958 = arith.addf %701, %957 : vector<16x64xf32>
    %cst_380 = arith.constant dense<0.000000e+00> : vector<16xf32>
    %959 = vector.multi_reduction <add>, %958, %cst_380 [1] : vector<16x64xf32> to vector<16xf32>
    %960 = vector.shape_cast %959 : vector<16xf32> to vector<16x1xf32>
    %cst_381 = arith.constant 6.400000e+01 : f32
    %961 = vector.broadcast %cst_381 : f32 to vector<16x1xf32>
    %962 = arith.divf %960, %961 : vector<16x1xf32>
    %963 = vector.broadcast %962 : vector<16x1xf32> to vector<16x64xf32>
    %964 = arith.subf %958, %963 : vector<16x64xf32>
    %965 = arith.mulf %964, %964 : vector<16x64xf32>
    %cst_382 = arith.constant dense<0.000000e+00> : vector<16xf32>
    %966 = vector.multi_reduction <add>, %965, %cst_382 [1] : vector<16x64xf32> to vector<16xf32>
    %967 = vector.shape_cast %966 : vector<16xf32> to vector<16x1xf32>
    %cst_383 = arith.constant 6.400000e+01 : f32
    %968 = vector.broadcast %cst_383 : f32 to vector<16x1xf32>
    %969 = arith.divf %967, %968 : vector<16x1xf32>
    %970 = vector.broadcast %962 : vector<16x1xf32> to vector<16x64xf32>
    %971 = arith.subf %958, %970 : vector<16x64xf32>
    %cst_384 = arith.constant 9.99999974E-6 : f32
    %972 = vector.broadcast %cst_384 : f32 to vector<16x1xf32>
    %973 = arith.addf %969, %972 : vector<16x1xf32>
    %974 = math.rsqrt %973 : vector<16x1xf32>
    %975 = vector.broadcast %974 : vector<16x1xf32> to vector<16x64xf32>
    %976 = arith.mulf %971, %975 : vector<16x64xf32>
    %c6_385 = arith.constant 6 : index
    %c0_386 = arith.constant 0 : index
    %c0_387 = arith.constant 0 : index
    %977 = vector.load %arg11[%c6_385, %c0_386, %c0_387] : memref<8x1x64xf32, #tpu.memory_space<vmem>>, vector<1x1x64xf32>
    %978 = vector.shape_cast %977 : vector<1x1x64xf32> to vector<1x64xf32>
    %979 = vector.broadcast %978 : vector<1x64xf32> to vector<16x64xf32>
    %980 = arith.mulf %976, %979 : vector<16x64xf32>
    %c6_388 = arith.constant 6 : index
    %c0_389 = arith.constant 0 : index
    %c0_390 = arith.constant 0 : index
    %981 = vector.load %arg12[%c6_388, %c0_389, %c0_390] : memref<8x1x64xf32, #tpu.memory_space<vmem>>, vector<1x1x64xf32>
    %982 = vector.shape_cast %981 : vector<1x1x64xf32> to vector<1x64xf32>
    %983 = vector.broadcast %982 : vector<1x64xf32> to vector<16x64xf32>
    %984 = arith.addf %980, %983 : vector<16x64xf32>
    %c3_391 = arith.constant 3 : index
    %c0_392 = arith.constant 0 : index
    %c0_393 = arith.constant 0 : index
    %985 = vector.load %arg7[%c3_391, %c0_392, %c0_393] : memref<4x64x32xf32, #tpu.memory_space<vmem>>, vector<1x64x32xf32>
    %986 = vector.shape_cast %985 : vector<1x64x32xf32> to vector<64x32xf32>
    %cst_394 = arith.constant dense<0.000000e+00> : vector<16x32xf32>
    %987 = tpu.matmul %984, %986, %cst_394 {dimension_numbers = #tpu.dot_dimension_numbers<[1], [0], [0], [1], [0, 0, 1, 1], [], []>} : vector<16x64xf32>, vector<64x32xf32>, vector<16x32xf32> -> vector<16x32xf32>
    %c3_395 = arith.constant 3 : index
    %c0_396 = arith.constant 0 : index
    %c0_397 = arith.constant 0 : index
    %988 = vector.load %arg8[%c3_395, %c0_396, %c0_397] : memref<4x1x32xf32, #tpu.memory_space<vmem>>, vector<1x1x32xf32>
    %989 = vector.shape_cast %988 : vector<1x1x32xf32> to vector<1x32xf32>
    %990 = vector.broadcast %989 : vector<1x32xf32> to vector<16x32xf32>
    %991 = arith.addf %987, %990 : vector<16x32xf32>
    %cst_398 = arith.constant 0.000000e+00 : f32
    %992 = vector.broadcast %cst_398 : f32 to vector<16x32xf32>
    %993 = arith.maximumf %991, %992 : vector<16x32xf32>
    %c3_399 = arith.constant 3 : index
    %c0_400 = arith.constant 0 : index
    %c0_401 = arith.constant 0 : index
    %994 = vector.load %arg9[%c3_399, %c0_400, %c0_401] : memref<4x32x64xf32, #tpu.memory_space<vmem>>, vector<1x32x64xf32>
    %995 = vector.shape_cast %994 : vector<1x32x64xf32> to vector<32x64xf32>
    %cst_402 = arith.constant dense<0.000000e+00> : vector<16x64xf32>
    %996 = tpu.matmul %993, %995, %cst_402 {dimension_numbers = #tpu.dot_dimension_numbers<[1], [0], [0], [1], [0, 0, 1, 1], [], []>} : vector<16x32xf32>, vector<32x64xf32>, vector<16x64xf32> -> vector<16x64xf32>
    %c3_403 = arith.constant 3 : index
    %c0_404 = arith.constant 0 : index
    %c0_405 = arith.constant 0 : index
    %997 = vector.load %arg10[%c3_403, %c0_404, %c0_405] : memref<4x1x64xf32, #tpu.memory_space<vmem>>, vector<1x1x64xf32>
    %998 = vector.shape_cast %997 : vector<1x1x64xf32> to vector<1x64xf32>
    %999 = vector.broadcast %998 : vector<1x64xf32> to vector<16x64xf32>
    %1000 = arith.addf %996, %999 : vector<16x64xf32>
    %1001 = arith.addf %984, %1000 : vector<16x64xf32>
    %cst_406 = arith.constant dense<0.000000e+00> : vector<16xf32>
    %1002 = vector.multi_reduction <add>, %1001, %cst_406 [1] : vector<16x64xf32> to vector<16xf32>
    %1003 = vector.shape_cast %1002 : vector<16xf32> to vector<16x1xf32>
    %cst_407 = arith.constant 6.400000e+01 : f32
    %1004 = vector.broadcast %cst_407 : f32 to vector<16x1xf32>
    %1005 = arith.divf %1003, %1004 : vector<16x1xf32>
    %1006 = vector.broadcast %1005 : vector<16x1xf32> to vector<16x64xf32>
    %1007 = arith.subf %1001, %1006 : vector<16x64xf32>
    %1008 = arith.mulf %1007, %1007 : vector<16x64xf32>
    %cst_408 = arith.constant dense<0.000000e+00> : vector<16xf32>
    %1009 = vector.multi_reduction <add>, %1008, %cst_408 [1] : vector<16x64xf32> to vector<16xf32>
    %1010 = vector.shape_cast %1009 : vector<16xf32> to vector<16x1xf32>
    %cst_409 = arith.constant 6.400000e+01 : f32
    %1011 = vector.broadcast %cst_409 : f32 to vector<16x1xf32>
    %1012 = arith.divf %1010, %1011 : vector<16x1xf32>
    %1013 = vector.broadcast %1005 : vector<16x1xf32> to vector<16x64xf32>
    %1014 = arith.subf %1001, %1013 : vector<16x64xf32>
    %cst_410 = arith.constant 9.99999974E-6 : f32
    %1015 = vector.broadcast %cst_410 : f32 to vector<16x1xf32>
    %1016 = arith.addf %1012, %1015 : vector<16x1xf32>
    %1017 = math.rsqrt %1016 : vector<16x1xf32>
    %1018 = vector.broadcast %1017 : vector<16x1xf32> to vector<16x64xf32>
    %1019 = arith.mulf %1014, %1018 : vector<16x64xf32>
    %c7_411 = arith.constant 7 : index
    %c0_412 = arith.constant 0 : index
    %c0_413 = arith.constant 0 : index
    %1020 = vector.load %arg11[%c7_411, %c0_412, %c0_413] : memref<8x1x64xf32, #tpu.memory_space<vmem>>, vector<1x1x64xf32>
    %1021 = vector.shape_cast %1020 : vector<1x1x64xf32> to vector<1x64xf32>
    %1022 = vector.broadcast %1021 : vector<1x64xf32> to vector<16x64xf32>
    %1023 = arith.mulf %1019, %1022 : vector<16x64xf32>
    %c7_414 = arith.constant 7 : index
    %c0_415 = arith.constant 0 : index
    %c0_416 = arith.constant 0 : index
    %1024 = vector.load %arg12[%c7_414, %c0_415, %c0_416] : memref<8x1x64xf32, #tpu.memory_space<vmem>>, vector<1x1x64xf32>
    %1025 = vector.shape_cast %1024 : vector<1x1x64xf32> to vector<1x64xf32>
    %1026 = vector.broadcast %1025 : vector<1x64xf32> to vector<16x64xf32>
    %1027 = arith.addf %1023, %1026 : vector<16x64xf32>
    %cst_417 = arith.constant dense<0.000000e+00> : vector<64xf32>
    %1028 = vector.multi_reduction <add>, %864, %cst_417 [0] : vector<8x64xf32> to vector<64xf32>
    %1029 = vector.shape_cast %1028 : vector<64xf32> to vector<1x64xf32>
    %cst_418 = arith.constant 8.000000e+00 : f32
    %1030 = vector.broadcast %cst_418 : f32 to vector<1x64xf32>
    %1031 = arith.divf %1029, %1030 : vector<1x64xf32>
    %cst_419 = arith.constant dense<0.000000e+00> : vector<64xf32>
    %1032 = vector.multi_reduction <add>, %1027, %cst_419 [0] : vector<16x64xf32> to vector<64xf32>
    %1033 = vector.shape_cast %1032 : vector<64xf32> to vector<1x64xf32>
    %cst_420 = arith.constant 1.600000e+01 : f32
    %1034 = vector.broadcast %cst_420 : f32 to vector<1x64xf32>
    %1035 = arith.divf %1033, %1034 : vector<1x64xf32>
    %c0_421 = arith.constant 0 : index
    %c0_422 = arith.constant 0 : index
    %1036 = vector.load %arg13[%c0_421, %c0_422] : memref<128x2xf32, #tpu.memory_space<vmem>>, vector<128x2xf32>
    %1037 = vector.extract_strided_slice %1036 {offsets = [0, 0], sizes = [64, 2], strides = [1, 1]} : vector<128x2xf32> to vector<64x2xf32>
    %cst_423 = arith.constant dense<0.000000e+00> : vector<1x2xf32>
    %1038 = tpu.matmul %1031, %1037, %cst_423 {dimension_numbers = #tpu.dot_dimension_numbers<[1], [0], [0], [1], [0, 0, 1, 1], [], []>} : vector<1x64xf32>, vector<64x2xf32>, vector<1x2xf32> -> vector<1x2xf32>
    %1039 = vector.extract_strided_slice %1036 {offsets = [64, 0], sizes = [64, 2], strides = [1, 1]} : vector<128x2xf32> to vector<64x2xf32>
    %cst_424 = arith.constant dense<0.000000e+00> : vector<1x2xf32>
    %1040 = tpu.matmul %1035, %1039, %cst_424 {dimension_numbers = #tpu.dot_dimension_numbers<[1], [0], [0], [1], [0, 0, 1, 1], [], []>} : vector<1x64xf32>, vector<64x2xf32>, vector<1x2xf32> -> vector<1x2xf32>
    %1041 = arith.addf %1038, %1040 : vector<1x2xf32>
    %c0_425 = arith.constant 0 : index
    %c0_426 = arith.constant 0 : index
    %1042 = vector.load %arg14[%c0_425, %c0_426] : memref<1x2xf32, #tpu.memory_space<vmem>>, vector<1x2xf32>
    %1043 = arith.addf %1041, %1042 : vector<1x2xf32>
    %c0_427 = arith.constant 0 : index
    %c0_428 = arith.constant 0 : index
    %c0_429 = arith.constant 0 : index
    %1044 = vector.load %arg15[%c0_427, %c0_428, %c0_429] : memref<1x1x2xf32, #tpu.memory_space<vmem>>, vector<1x1x2xf32>
    %1045 = vector.shape_cast %1044 : vector<1x1x2xf32> to vector<1x2xf32>
    %1046 = vector.shape_cast %1043 : vector<1x2xf32> to vector<1x1x2xf32>
    tpu.vector_store %arg15[%c0_427, %c0_428, %c0_429], %1046 {strides = array<i32>} : memref<1x1x2xf32, #tpu.memory_space<vmem>>, vector<1x1x2xf32>,
    return
  }
  func.func @transform_0(%arg0: i32) -> (i32, i32, i32) {
    %c0_i32 = arith.constant 0 : i32
    %c0_i32_0 = arith.constant 0 : i32
    %c0_i32_1 = arith.constant 0 : i32
    return %arg0, %c0_i32, %c0_i32_0 : i32, i32, i32
  }
  func.func @transform_1(%arg0: i32) -> (i32, i32, i32) {
    %c0_i32 = arith.constant 0 : i32
    %c0_i32_0 = arith.constant 0 : i32
    %c0_i32_1 = arith.constant 0 : i32
    return %arg0, %c0_i32, %c0_i32_0 : i32, i32, i32
  }
  func.func @transform_2(%arg0: i32) -> (i32, i32, i32) {
    %c0_i32 = arith.constant 0 : i32
    %c0_i32_0 = arith.constant 0 : i32
    %c0_i32_1 = arith.constant 0 : i32
    %c0_i32_2 = arith.constant 0 : i32
    return %c0_i32, %c0_i32_0, %c0_i32_1 : i32, i32, i32
  }
  func.func @transform_3(%arg0: i32) -> (i32, i32, i32) {
    %c0_i32 = arith.constant 0 : i32
    %c0_i32_0 = arith.constant 0 : i32
    %c0_i32_1 = arith.constant 0 : i32
    %c0_i32_2 = arith.constant 0 : i32
    return %c0_i32, %c0_i32_0, %c0_i32_1 : i32, i32, i32
  }
  func.func @transform_4(%arg0: i32) -> (i32, i32, i32) {
    %c0_i32 = arith.constant 0 : i32
    %c0_i32_0 = arith.constant 0 : i32
    %c0_i32_1 = arith.constant 0 : i32
    %c0_i32_2 = arith.constant 0 : i32
    return %c0_i32, %c0_i32_0, %c0_i32_1 : i32, i32, i32
  }
  func.func @transform_5(%arg0: i32) -> (i32, i32, i32) {
    %c0_i32 = arith.constant 0 : i32
    %c0_i32_0 = arith.constant 0 : i32
    %c0_i32_1 = arith.constant 0 : i32
    %c0_i32_2 = arith.constant 0 : i32
    return %c0_i32, %c0_i32_0, %c0_i32_1 : i32, i32, i32
  }
  func.func @transform_6(%arg0: i32) -> (i32, i32, i32) {
    %c0_i32 = arith.constant 0 : i32
    %c0_i32_0 = arith.constant 0 : i32
    %c0_i32_1 = arith.constant 0 : i32
    %c0_i32_2 = arith.constant 0 : i32
    return %c0_i32, %c0_i32_0, %c0_i32_1 : i32, i32, i32
  }
  func.func @transform_7(%arg0: i32) -> (i32, i32, i32) {
    %c0_i32 = arith.constant 0 : i32
    %c0_i32_0 = arith.constant 0 : i32
    %c0_i32_1 = arith.constant 0 : i32
    %c0_i32_2 = arith.constant 0 : i32
    return %c0_i32, %c0_i32_0, %c0_i32_1 : i32, i32, i32
  }
  func.func @transform_8(%arg0: i32) -> (i32, i32, i32) {
    %c0_i32 = arith.constant 0 : i32
    %c0_i32_0 = arith.constant 0 : i32
    %c0_i32_1 = arith.constant 0 : i32
    %c0_i32_2 = arith.constant 0 : i32
    return %c0_i32, %c0_i32_0, %c0_i32_1 : i32, i32, i32
  }
  func.func @transform_9(%arg0: i32) -> (i32, i32, i32) {
    %c0_i32 = arith.constant 0 : i32
    %c0_i32_0 = arith.constant 0 : i32
    %c0_i32_1 = arith.constant 0 : i32
    %c0_i32_2 = arith.constant 0 : i32
    return %c0_i32, %c0_i32_0, %c0_i32_1 : i32, i32, i32
  }
  func.func @transform_10(%arg0: i32) -> (i32, i32, i32) {
    %c0_i32 = arith.constant 0 : i32
    %c0_i32_0 = arith.constant 0 : i32
    %c0_i32_1 = arith.constant 0 : i32
    %c0_i32_2 = arith.constant 0 : i32
    return %c0_i32, %c0_i32_0, %c0_i32_1 : i32, i32, i32
  }
  func.func @transform_11(%arg0: i32) -> (i32, i32, i32) {
    %c0_i32 = arith.constant 0 : i32
    %c0_i32_0 = arith.constant 0 : i32
    %c0_i32_1 = arith.constant 0 : i32
    %c0_i32_2 = arith.constant 0 : i32
    return %c0_i32, %c0_i32_0, %c0_i32_1 : i32, i32, i32
  }
  func.func @transform_12(%arg0: i32) -> (i32, i32) {
    %c0_i32 = arith.constant 0 : i32
    %c0_i32_0 = arith.constant 0 : i32
    %c0_i32_1 = arith.constant 0 : i32
    return %c0_i32, %c0_i32_0 : i32, i32
  }
  func.func @transform_13(%arg0: i32) -> (i32, i32) {
    %c0_i32 = arith.constant 0 : i32
    %c0_i32_0 = arith.constant 0 : i32
    %c0_i32_1 = arith.constant 0 : i32
    return %c0_i32, %c0_i32_0 : i32, i32
  }
  func.func @transform_14(%arg0: i32) -> (i32, i32, i32) {
    %c0_i32 = arith.constant 0 : i32
    %c0_i32_0 = arith.constant 0 : i32
    %c0_i32_1 = arith.constant 0 : i32
    return %arg0, %c0_i32, %c0_i32_0 : i32, i32, i32
  }
}

</mosaic_0001>

<llo_original>
// kernel: crossnet_forward.1
$region0: #{crossnet_forward.1}
  #allocation0 [shape = 'u32[]', space=smem, size = 0x4, offset = 0x4, fixed_abs, tag = 'smem constant byte address 0x4 - core index']
  #allocation1 [shape = 'u32[72,128]{1,0:T(1,128)}', space=vmem, size = 0x9000, scoped, tag = 'internal scratch']
  %s0 = inlined_call_operand.vmem [shape: f32[2,8,64], index: 0, kind: input, shape index: {}]
  %s1 = inlined_call_operand.vmem [shape: f32[2,16,64], index: 1, kind: input, shape index: {}]
  %s2 = inlined_call_operand.vmem [shape: f32[8,64,192], index: 2, kind: input, shape index: {}]
  %s3 = inlined_call_operand.vmem [shape: f32[8,1,192], index: 3, kind: input, shape index: {}]
  %s4 = inlined_call_operand.vmem [shape: f32[8,64,64], index: 4, kind: input, shape index: {}]
  %s5 = inlined_call_operand.vmem [shape: f32[8,1,64], index: 5, kind: input, shape index: {}]
  %s6 = inlined_call_operand.vmem [shape: f32[4,64,32], index: 6, kind: input, shape index: {}]
  %s7 = inlined_call_operand.vmem [shape: f32[4,1,32], index: 7, kind: input, shape index: {}]
  %s8 = inlined_call_operand.vmem [shape: f32[4,32,64], index: 8, kind: input, shape index: {}]
  %s9 = inlined_call_operand.vmem [shape: f32[4,1,64], index: 9, kind: input, shape index: {}]
  %s10 = inlined_call_operand.vmem [shape: f32[8,1,64], index: 10, kind: input, shape index: {}]
  %s11 = inlined_call_operand.vmem [shape: f32[8,1,64], index: 11, kind: input, shape index: {}]
  %s12 = inlined_call_operand.vmem [shape: f32[128,2], index: 12, kind: input, shape index: {}]
  %s13 = inlined_call_operand.vmem [shape: f32[1,2], index: 13, kind: input, shape index: {}]
  %s14 = inlined_call_operand.hbm [shape: f32[2,1,2], index: 14, kind: output, shape index: {}]
  %s15 = sld [smem:[#allocation0]]
  $region89: #{crossnet_forward.1} parent=0
    _
  %s17 = ssub.s32 1, %s15
  %s18 = scalar_select 0, %s17, %s15
  $region1: #{crossnet_forward.1} parent=0
    #allocation2 [shape = 'u8[1024]{0}', space=vmem, size = 0x400, scoped, tag = 'output window, operand 0']
    #allocation3 [shape = 's32[2]{0}', space=sflag, size = 0x8, scoped, tag = 'scoped memory for crossnet_forward.1']
    %19 = vsyncpa [#allocation3], 0
    %s20 = scalar_lea.sflag [#allocation3], 1
    %21 = vsyncpa %s20, 0
    loop: start=0, step=1, limit=4
    $region2: #{crossnet_forward.1} parent=1 // loop_pre_header
      _
    $region3: #{crossnet_forward.1} parent=1 // loop_header
      %s23 = sphi 0, %s27
      %p24 = scmp.ge.s32.totalorder %s23, 4
      %s33 = sphi 0, %s35
      %s36 = sphi 0, %s33
      %s37 = sphi 0, %s36
      %s53 = sphi 0, %s37
      %s59 = sphi 0, %s61
      %s62 = sphi 0, %s59
      %s63 = sphi 0, %s62
      %s79 = sphi 0, %s63
      %s83 = sphi 0, %s83
      %s85 = sphi 0, %s83
      %s86 = sphi 0, %s85
      %s100 = sphi 0, %s86
      %s104 = sphi 0, %s104
      %s106 = sphi 0, %s104
      %s107 = sphi 0, %s106
      %s121 = sphi 0, %s107
      %s125 = sphi 0, %s125
      %s127 = sphi 0, %s125
      %s128 = sphi 0, %s127
      %s142 = sphi 0, %s128
      %s146 = sphi 0, %s146
      %s148 = sphi 0, %s146
      %s149 = sphi 0, %s148
      %s163 = sphi 0, %s149
      %s167 = sphi 0, %s167
      %s169 = sphi 0, %s167
      %s170 = sphi 0, %s169
      %s184 = sphi 0, %s170
      %s188 = sphi 0, %s188
      %s190 = sphi 0, %s188
      %s191 = sphi 0, %s190
      %s205 = sphi 0, %s191
      %s209 = sphi 0, %s209
      %s211 = sphi 0, %s209
      %s212 = sphi 0, %s211
      %s226 = sphi 0, %s212
      %s230 = sphi 0, %s230
      %s232 = sphi 0, %s230
      %s233 = sphi 0, %s232
      %s247 = sphi 0, %s233
      %s251 = sphi 0, %s251
      %s253 = sphi 0, %s251
      %s254 = sphi 0, %s253
      %s268 = sphi 0, %s254
      %s272 = sphi 0, %s272
      %s274 = sphi 0, %s272
      %s275 = sphi 0, %s274
      %s289 = sphi 0, %s275
      %s293 = sphi 0, %s293
      %s295 = sphi 0, %s293
      %s296 = sphi 0, %s295
      %s310 = sphi 0, %s296
      %s314 = sphi 0, %s314
      %s316 = sphi 0, %s314
      %s317 = sphi 0, %s316
      %s331 = sphi 0, %s317
      %s337 = sphi 0, %s339
      %s340 = sphi 0, %s337
      %s341 = sphi 0, %s340
      %s357 = sphi 0, %s341
    $region4: #{crossnet_forward.1} parent=1 // loop_header_branch
      %26 = sbr.rel (%p24) target = $region8
    $region5: #{crossnet_forward.1} parent=1 // loop_body
      %s28 = ssub.s32 %s23, 1
      %s29 = ssub.s32 %s23, 2
      %s30 = sadd.s32 %s23, 1
      %s31 = ssub.s32 %s23, %s30
      %p32 = scmp.eq.s32.totalorder %s31, 0
      %s34 = sadd.s32 %s33, 1
      %s35 = scalar_select %p32, %s33, %s34
      %p38 = pneg %p32
      %p39 = scmp.eq.s32.totalorder %s23, 1
      %p40 = por %p38, %p39
      %p41 = scmp.ne.s32.totalorder %s33, %s36
      %p42 = scmp.eq.s32.totalorder %s23, 0
      %p43 = por %p41, %p42
      %p44 = scmp.ne.s32.totalorder %s33, %s36
      %p45 = scmp.eq.s32.totalorder %s28, 1
      %p46 = por %p44, %p45
      %p47 = scmp.ne.s32.totalorder %s36, %s37
      %p48 = scmp.eq.s32.totalorder %s28, 0
      %p49 = por %p47, %p48
      %p50 = scmp.ne.s32.totalorder %s36, %s37
      %p51 = scmp.eq.s32.totalorder %s29, 1
      %p52 = por %p50, %p51
      %p54 = scmp.ne.s32.totalorder %s37, %s53
      %p55 = scmp.eq.s32.totalorder %s29, 0
      %p56 = por %p54, %p55
      %s57 = ssub.s32 %s23, %s30
      %p58 = scmp.eq.s32.totalorder %s57, 0
      %s60 = sadd.s32 %s59, 1
      %s61 = scalar_select %p58, %s59, %s60
      %p64 = pneg %p58
      %p65 = scmp.eq.s32.totalorder %s23, 1
      %p66 = por %p64, %p65
      %p67 = scmp.ne.s32.totalorder %s59, %s62
      %p68 = scmp.eq.s32.totalorder %s23, 0
      %p69 = por %p67, %p68
      %p70 = scmp.ne.s32.totalorder %s59, %s62
      %p71 = scmp.eq.s32.totalorder %s28, 1
      %p72 = por %p70, %p71
      %p73 = scmp.ne.s32.totalorder %s62, %s63
      %p74 = scmp.eq.s32.totalorder %s28, 0
      %p75 = por %p73, %p74
      %p76 = scmp.ne.s32.totalorder %s62, %s63
      %p77 = scmp.eq.s32.totalorder %s29, 1
      %p78 = por %p76, %p77
      %p80 = scmp.ne.s32.totalorder %s63, %s79
      %p81 = scmp.eq.s32.totalorder %s29, 0
      %p82 = por %p80, %p81
      %s84 = sadd.s32 %s83, 1
      %p87 = scmp.eq.s32.totalorder %s23, 1
      %p88 = scmp.ne.s32.totalorder %s83, %s85
      %p89 = scmp.eq.s32.totalorder %s23, 0
      %p90 = por %p88, %p89
      %p91 = scmp.ne.s32.totalorder %s83, %s85
      %p92 = scmp.eq.s32.totalorder %s28, 1
      %p93 = por %p91, %p92
      %p94 = scmp.ne.s32.totalorder %s85, %s86
      %p95 = scmp.eq.s32.totalorder %s28, 0
      %p96 = por %p94, %p95
      %p97 = scmp.ne.s32.totalorder %s85, %s86
      %p98 = scmp.eq.s32.totalorder %s29, 1
      %p99 = por %p97, %p98
      %p101 = scmp.ne.s32.totalorder %s86, %s100
      %p102 = scmp.eq.s32.totalorder %s29, 0
      %p103 = por %p101, %p102
      %s105 = sadd.s32 %s104, 1
      %p108 = scmp.eq.s32.totalorder %s23, 1
      %p109 = scmp.ne.s32.totalorder %s104, %s106
      %p110 = scmp.eq.s32.totalorder %s23, 0
      %p111 = por %p109, %p110
      %p112 = scmp.ne.s32.totalorder %s104, %s106
      %p113 = scmp.eq.s32.totalorder %s28, 1
      %p114 = por %p112, %p113
      %p115 = scmp.ne.s32.totalorder %s106, %s107
      %p116 = scmp.eq.s32.totalorder %s28, 0
      %p117 = por %p115, %p116
      %p118 = scmp.ne.s32.totalorder %s106, %s107
      %p119 = scmp.eq.s32.totalorder %s29, 1
      %p120 = por %p118, %p119
      %p122 = scmp.ne.s32.totalorder %s107, %s121
      %p123 = scmp.eq.s32.totalorder %s29, 0
      %p124 = por %p122, %p123
      %s126 = sadd.s32 %s125, 1
      %p129 = scmp.eq.s32.totalorder %s23, 1
      %p130 = scmp.ne.s32.totalorder %s125, %s127
      %p131 = scmp.eq.s32.totalorder %s23, 0
      %p132 = por %p130, %p131
      %p133 = scmp.ne.s32.totalorder %s125, %s127
      %p134 = scmp.eq.s32.totalorder %s28, 1
      %p135 = por %p133, %p134
      %p136 = scmp.ne.s32.totalorder %s127, %s128
      %p137 = scmp.eq.s32.totalorder %s28, 0
      %p138 = por %p136, %p137
      %p139 = scmp.ne.s32.totalorder %s127, %s128
      %p140 = scmp.eq.s32.totalorder %s29, 1
      %p141 = por %p139, %p140
      %p143 = scmp.ne.s32.totalorder %s128, %s142
      %p144 = scmp.eq.s32.totalorder %s29, 0
      %p145 = por %p143, %p144
      %s147 = sadd.s32 %s146, 1
      %p150 = scmp.eq.s32.totalorder %s23, 1
      %p151 = scmp.ne.s32.totalorder %s146, %s148
      %p152 = scmp.eq.s32.totalorder %s23, 0
      %p153 = por %p151, %p152
      %p154 = scmp.ne.s32.totalorder %s146, %s148
      %p155 = scmp.eq.s32.totalorder %s28, 1
      %p156 = por %p154, %p155
      %p157 = scmp.ne.s32.totalorder %s148, %s149
      %p158 = scmp.eq.s32.totalorder %s28, 0
      %p159 = por %p157, %p158
      %p160 = scmp.ne.s32.totalorder %s148, %s149
      %p161 = scmp.eq.s32.totalorder %s29, 1
      %p162 = por %p160, %p161
      %p164 = scmp.ne.s32.totalorder %s149, %s163
      %p165 = scmp.eq.s32.totalorder %s29, 0
      %p166 = por %p164, %p165
      %s168 = sadd.s32 %s167, 1
      %p171 = scmp.eq.s32.totalorder %s23, 1
      %p172 = scmp.ne.s32.totalorder %s167, %s169
      %p173 = scmp.eq.s32.totalorder %s23, 0
      %p174 = por %p172, %p173
      %p175 = scmp.ne.s32.totalorder %s167, %s169
      %p176 = scmp.eq.s32.totalorder %s28, 1
      %p177 = por %p175, %p176
      %p178 = scmp.ne.s32.totalorder %s169, %s170
      %p179 = scmp.eq.s32.totalorder %s28, 0
      %p180 = por %p178, %p179
      %p181 = scmp.ne.s32.totalorder %s169, %s170
      %p182 = scmp.eq.s32.totalorder %s29, 1
      %p183 = por %p181, %p182
      %p185 = scmp.ne.s32.totalorder %s170, %s184
      %p186 = scmp.eq.s32.totalorder %s29, 0
      %p187 = por %p185, %p186
      %s189 = sadd.s32 %s188, 1
      %p192 = scmp.eq.s32.totalorder %s23, 1
      %p193 = scmp.ne.s32.totalorder %s188, %s190
      %p194 = scmp.eq.s32.totalorder %s23, 0
      %p195 = por %p193, %p194
      %p196 = scmp.ne.s32.totalorder %s188, %s190
      %p197 = scmp.eq.s32.totalorder %s28, 1
      %p198 = por %p196, %p197
      %p199 = scmp.ne.s32.totalorder %s190, %s191
      %p200 = scmp.eq.s32.totalorder %s28, 0
      %p201 = por %p199, %p200
      %p202 = scmp.ne.s32.totalorder %s190, %s191
      %p203 = scmp.eq.s32.totalorder %s29, 1
      %p204 = por %p202, %p203
      %p206 = scmp.ne.s32.totalorder %s191, %s205
      %p207 = scmp.eq.s32.totalorder %s29, 0
      %p208 = por %p206, %p207
      %s210 = sadd.s32 %s209, 1
      %p213 = scmp.eq.s32.totalorder %s23, 1
      %p214 = scmp.ne.s32.totalorder %s209, %s211
      %p215 = scmp.eq.s32.totalorder %s23, 0
      %p216 = por %p214, %p215
      %p217 = scmp.ne.s32.totalorder %s209, %s211
      %p218 = scmp.eq.s32.totalorder %s28, 1
      %p219 = por %p217, %p218
      %p220 = scmp.ne.s32.totalorder %s211, %s212
      %p221 = scmp.eq.s32.totalorder %s28, 0
      %p222 = por %p220, %p221
      %p223 = scmp.ne.s32.totalorder %s211, %s212
      %p224 = scmp.eq.s32.totalorder %s29, 1
      %p225 = por %p223, %p224
      %p227 = scmp.ne.s32.totalorder %s212, %s226
      %p228 = scmp.eq.s32.totalorder %s29, 0
      %p229 = por %p227, %p228
      %s231 = sadd.s32 %s230, 1
      %p234 = scmp.eq.s32.totalorder %s23, 1
      %p235 = scmp.ne.s32.totalorder %s230, %s232
      %p236 = scmp.eq.s32.totalorder %s23, 0
      %p237 = por %p235, %p236
      %p238 = scmp.ne.s32.totalorder %s230, %s232
      %p239 = scmp.eq.s32.totalorder %s28, 1
      %p240 = por %p238, %p239
      %p241 = scmp.ne.s32.totalorder %s232, %s233
      %p242 = scmp.eq.s32.totalorder %s28, 0
      %p243 = por %p241, %p242
      %p244 = scmp.ne.s32.totalorder %s232, %s233
      %p245 = scmp.eq.s32.totalorder %s29, 1
      %p246 = por %p244, %p245
      %p248 = scmp.ne.s32.totalorder %s233, %s247
      %p249 = scmp.eq.s32.totalorder %s29, 0
      %p250 = por %p248, %p249
      %s252 = sadd.s32 %s251, 1
      %p255 = scmp.eq.s32.totalorder %s23, 1
      %p256 = scmp.ne.s32.totalorder %s251, %s253
      %p257 = scmp.eq.s32.totalorder %s23, 0
      %p258 = por %p256, %p257
      %p259 = scmp.ne.s32.totalorder %s251, %s253
      %p260 = scmp.eq.s32.totalorder %s28, 1
      %p261 = por %p259, %p260
      %p262 = scmp.ne.s32.totalorder %s253, %s254
      %p263 = scmp.eq.s32.totalorder %s28, 0
      %p264 = por %p262, %p263
      %p265 = scmp.ne.s32.totalorder %s253, %s254
      %p266 = scmp.eq.s32.totalorder %s29, 1
      %p267 = por %p265, %p266
      %p269 = scmp.ne.s32.totalorder %s254, %s268
      %p270 = scmp.eq.s32.totalorder %s29, 0
      %p271 = por %p269, %p270
      %s273 = sadd.s32 %s272, 1
      %p276 = scmp.eq.s32.totalorder %s23, 1
      %p277 = scmp.ne.s32.totalorder %s272, %s274
      %p278 = scmp.eq.s32.totalorder %s23, 0
      %p279 = por %p277, %p278
      %p280 = scmp.ne.s32.totalorder %s272, %s274
      %p281 = scmp.eq.s32.totalorder %s28, 1
      %p282 = por %p280, %p281
      %p283 = scmp.ne.s32.totalorder %s274, %s275
      %p284 = scmp.eq.s32.totalorder %s28, 0
      %p285 = por %p283, %p284
      %p286 = scmp.ne.s32.totalorder %s274, %s275
      %p287 = scmp.eq.s32.totalorder %s29, 1
      %p288 = por %p286, %p287
      %p290 = scmp.ne.s32.totalorder %s275, %s289
      %p291 = scmp.eq.s32.totalorder %s29, 0
      %p292 = por %p290, %p291
      %s294 = sadd.s32 %s293, 1
      %p297 = scmp.eq.s32.totalorder %s23, 1
      %p298 = scmp.ne.s32.totalorder %s293, %s295
      %p299 = scmp.eq.s32.totalorder %s23, 0
      %p300 = por %p298, %p299
      %p301 = scmp.ne.s32.totalorder %s293, %s295
      %p302 = scmp.eq.s32.totalorder %s28, 1
      %p303 = por %p301, %p302
      %p304 = scmp.ne.s32.totalorder %s295, %s296
      %p305 = scmp.eq.s32.totalorder %s28, 0
      %p306 = por %p304, %p305
      %p307 = scmp.ne.s32.totalorder %s295, %s296
      %p308 = scmp.eq.s32.totalorder %s29, 1
      %p309 = por %p307, %p308
      %p311 = scmp.ne.s32.totalorder %s296, %s310
      %p312 = scmp.eq.s32.totalorder %s29, 0
      %p313 = por %p311, %p312
      %s315 = sadd.s32 %s314, 1
      %p318 = scmp.eq.s32.totalorder %s23, 1
      %p319 = scmp.ne.s32.totalorder %s314, %s316
      %p320 = scmp.eq.s32.totalorder %s23, 0
      %p321 = por %p319, %p320
      %p322 = scmp.ne.s32.totalorder %s314, %s316
      %p323 = scmp.eq.s32.totalorder %s28, 1
      %p324 = por %p322, %p323
      %p325 = scmp.ne.s32.totalorder %s316, %s317
      %p326 = scmp.eq.s32.totalorder %s28, 0
      %p327 = por %p325, %p326
      %p328 = scmp.ne.s32.totalorder %s316, %s317
      %p329 = scmp.eq.s32.totalorder %s29, 1
      %p330 = por %p328, %p329
      %p332 = scmp.ne.s32.totalorder %s317, %s331
      %p333 = scmp.eq.s32.totalorder %s29, 0
      %p334 = por %p332, %p333
      %s335 = ssub.s32 %s23, %s30
      %p336 = scmp.eq.s32.totalorder %s335, 0
      %s338 = sadd.s32 %s337, 1
      %s339 = scalar_select %p336, %s337, %s338
      %p342 = pneg %p336
      %p343 = scmp.eq.s32.totalorder %s23, 1
      %p344 = por %p342, %p343
      %p345 = scmp.ne.s32.totalorder %s337, %s340
      %p346 = scmp.eq.s32.totalorder %s23, 0
      %p347 = por %p345, %p346
      %p348 = scmp.ne.s32.totalorder %s337, %s340
      %p349 = scmp.eq.s32.totalorder %s28, 1
      %p350 = por %p348, %p349
      %p351 = scmp.ne.s32.totalorder %s340, %s341
      %p352 = scmp.eq.s32.totalorder %s28, 0
      %p353 = por %p351, %p352
      %p354 = scmp.ne.s32.totalorder %s340, %s341
      %p355 = scmp.eq.s32.totalorder %s29, 1
      %p356 = por %p354, %p355
      %p358 = scmp.ne.s32.totalorder %s341, %s357
      %p359 = scmp.eq.s32.totalorder %s29, 0
      %p360 = por %p358, %p359
      %p361 = scmp.le.s32.totalorder 1, %s23
      %p362 = scmp.lt.s32.totalorder %s23, 3
      %p363 = pnand %p361, %p362
      %p364 = pneg %p363
      // Predicated region
      $region9: #{crossnet_forward.1} parent=5 // pred_check
        _
      $region10: #{crossnet_forward.1} parent=5 // pred_check_branch
        %366 = sbr.rel (%p363) target = $region12
      $region11: #{crossnet_forward.1} parent=5 // pred_region
        %s367 = ssub.s32 %s23, 1
        // Predicated region
        $region13: #{crossnet_forward.1} parent=11 // pred_check
          %p368 = pneg %p96
        $region14: #{crossnet_forward.1} parent=11 // pred_check_branch
          %370 = sbr.rel (%p368) target = $region16
        $region15: #{crossnet_forward.1} parent=11 // pred_region
          _
        $region16: #{crossnet_forward.1} parent=11 // pred_fallthru
          _
        // Predicated region
        $region17: #{crossnet_forward.1} parent=11 // pred_check
          %p371 = pneg %p117
        $region18: #{crossnet_forward.1} parent=11 // pred_check_branch
          %373 = sbr.rel (%p371) target = $region20
        $region19: #{crossnet_forward.1} parent=11 // pred_region
          _
        $region20: #{crossnet_forward.1} parent=11 // pred_fallthru
          _
        // Predicated region
        $region21: #{crossnet_forward.1} parent=11 // pred_check
          %p374 = pneg %p138
        $region22: #{crossnet_forward.1} parent=11 // pred_check_branch
          %376 = sbr.rel (%p374) target = $region24
        $region23: #{crossnet_forward.1} parent=11 // pred_region
          _
        $region24: #{crossnet_forward.1} parent=11 // pred_fallthru
          _
        // Predicated region
        $region25: #{crossnet_forward.1} parent=11 // pred_check
          %p377 = pneg %p159
        $region26: #{crossnet_forward.1} parent=11 // pred_check_branch
          %379 = sbr.rel (%p377) target = $region28
        $region27: #{crossnet_forward.1} parent=11 // pred_region
          _
        $region28: #{crossnet_forward.1} parent=11 // pred_fallthru
          _
        // Predicated region
        $region29: #{crossnet_forward.1} parent=11 // pred_check
          %p380 = pneg %p180
        $region30: #{crossnet_forward.1} parent=11 // pred_check_branch
          %382 = sbr.rel (%p380) target = $region32
        $region31: #{crossnet_forward.1} parent=11 // pred_region
          _
        $region32: #{crossnet_forward.1} parent=11 // pred_fallthru
          _
        // Predicated region
        $region33: #{crossnet_forward.1} parent=11 // pred_check
          %p383 = pneg %p201
        $region34: #{crossnet_forward.1} parent=11 // pred_check_branch
          %385 = sbr.rel (%p383) target = $region36
        $region35: #{crossnet_forward.1} parent=11 // pred_region
          _
        $region36: #{crossnet_forward.1} parent=11 // pred_fallthru
          _
        // Predicated region
        $region37: #{crossnet_forward.1} parent=11 // pred_check
          %p386 = pneg %p222
        $region38: #{crossnet_forward.1} parent=11 // pred_check_branch
          %388 = sbr.rel (%p386) target = $region40
        $region39: #{crossnet_forward.1} parent=11 // pred_region
          _
        $region40: #{crossnet_forward.1} parent=11 // pred_fallthru
          _
        // Predicated region
        $region41: #{crossnet_forward.1} parent=11 // pred_check
          %p389 = pneg %p243
        $region42: #{crossnet_forward.1} parent=11 // pred_check_branch
          %391 = sbr.rel (%p389) target = $region44
        $region43: #{crossnet_forward.1} parent=11 // pred_region
          _
        $region44: #{crossnet_forward.1} parent=11 // pred_fallthru
          _
        // Predicated region
        $region45: #{crossnet_forward.1} parent=11 // pred_check
          %p392 = pneg %p264
        $region46: #{crossnet_forward.1} parent=11 // pred_check_branch
          %394 = sbr.rel (%p392) target = $region48
        $region47: #{crossnet_forward.1} parent=11 // pred_region
          _
        $region48: #{crossnet_forward.1} parent=11 // pred_fallthru
          _
        // Predicated region
        $region49: #{crossnet_forward.1} parent=11 // pred_check
          %p395 = pneg %p285
        $region50: #{crossnet_forward.1} parent=11 // pred_check_branch
          %397 = sbr.rel (%p395) target = $region52
        $region51: #{crossnet_forward.1} parent=11 // pred_region
          _
        $region52: #{crossnet_forward.1} parent=11 // pred_fallthru
          _
        // Predicated region
        $region53: #{crossnet_forward.1} parent=11 // pred_check
          %p398 = pneg %p306
        $region54: #{crossnet_forward.1} parent=11 // pred_check_branch
          %400 = sbr.rel (%p398) target = $region56
        $region55: #{crossnet_forward.1} parent=11 // pred_region
          _
        $region56: #{crossnet_forward.1} parent=11 // pred_fallthru
          _
        // Predicated region
        $region57: #{crossnet_forward.1} parent=11 // pred_check
          %p401 = pneg %p327
        $region58: #{crossnet_forward.1} parent=11 // pred_check_branch
          %403 = sbr.rel (%p401) target = $region60
        $region59: #{crossnet_forward.1} parent=11 // pred_region
          _
        $region60: #{crossnet_forward.1} parent=11 // pred_fallthru
          _
      $region12: #{crossnet_forward.1} parent=5 // pred_fallthru
        _
      %p404 = scmp.lt.s32.totalorder %s23, 2
      // Predicated region
      $region61: #{crossnet_forward.1} parent=5 // pred_check
        %p405 = pneg %p404
      $region62: #{crossnet_forward.1} parent=5 // pred_check_branch
        %407 = sbr.rel (%p405) target = $region64
      $region63: #{crossnet_forward.1} parent=5 // pred_region
        // Predicated region
        $region65: #{crossnet_forward.1} parent=63 // pred_check
          %p408 = pneg %p43
        $region66: #{crossnet_forward.1} parent=63 // pred_check_branch
          %410 = sbr.rel (%p408) target = $region68
        $region67: #{crossnet_forward.1} parent=63 // pred_region
          %p411 = scmp.lt.s32.totalorder %s23, 1
          %s412 = scalar_select %p411, %s23, 1
          %s413 = smul.addr %s412, 8
          %s414 = scalar_lea.vmem %s0, %s413
        $region68: #{crossnet_forward.1} parent=63 // pred_fallthru
          _
        // Predicated region
        $region69: #{crossnet_forward.1} parent=63 // pred_check
          %p415 = pneg %p69
        $region70: #{crossnet_forward.1} parent=63 // pred_check_branch
          %417 = sbr.rel (%p415) target = $region72
        $region71: #{crossnet_forward.1} parent=63 // pred_region
          %p418 = scmp.lt.s32.totalorder %s23, 1
          %s419 = scalar_select %p418, %s23, 1
          %s420 = smul.addr %s419, 2
          %s421 = smul.addr %s420, 8
          %s422 = scalar_lea.vmem %s1, %s421
        $region72: #{crossnet_forward.1} parent=63 // pred_fallthru
          _
      $region64: #{crossnet_forward.1} parent=5 // pred_fallthru
        _
      %p423 = scmp.le.s32.totalorder 1, %s23
      %p424 = scmp.lt.s32.totalorder %s23, 3
      %p425 = pnand %p423, %p424
      %p426 = pneg %p425
      // Predicated region
      $region73: #{crossnet_forward.1} parent=5 // pred_check
        _
      $region74: #{crossnet_forward.1} parent=5 // pred_check_branch
        %428 = sbr.rel (%p425) target = $region76
      $region75: #{crossnet_forward.1} parent=5 // pred_region
        %s429 = ssub.s32 %s23, 1
        %p430 = scmp.lt.s32.totalorder %s28, 1
        %s431 = scalar_select %p430, %s28, 1
        %s432 = smul.addr %s431, 8
        %s433 = scalar_lea.vmem %s0, %s432
        %p434 = pneg %p49
        %p435 = pneg %p46
        %p436 = scmp.lt.s32.totalorder %s28, 1
        %s437 = scalar_select %p436, %s28, 1
        %s438 = smul.addr %s437, 2
        %s439 = smul.addr %s438, 8
        %s440 = scalar_lea.vmem %s1, %s439
        %p441 = pneg %p75
        %p442 = pneg %p72
        %p443 = pneg %p96
        %p444 = pneg %p93
        %p445 = pneg %p117
        %p446 = pneg %p114
        %p447 = pneg %p138
        %p448 = pneg %p135
        %p449 = pneg %p159
        %p450 = pneg %p156
        %p451 = pneg %p180
        %p452 = pneg %p177
        %p453 = pneg %p201
        %p454 = pneg %p198
        %p455 = pneg %p222
        %p456 = pneg %p219
        %p457 = pneg %p243
        %p458 = pneg %p240
        %p459 = pneg %p264
        %p460 = pneg %p261
        %p461 = pneg %p285
        %p462 = pneg %p282
        %p463 = pneg %p306
        %p464 = pneg %p303
        %p465 = pneg %p327
        %p466 = pneg %p324
        %p467 = pneg %p353
        %p468 = pneg %p350
        %s469 = sand.u32 %s340, 1
        %s470 = scalar_lea.sflag [#allocation3], %s469
        %s471 = sand.u32 %s340, 1
        %s472 = scalar_lea.vmem [#allocation2], %s471
        %p473 = scmp.lt.s32.totalorder %s28, 1
        %s474 = scalar_select %p473, %s28, 1
        %s475 = smul.addr %s474, 8
        %s476 = scalar_lea.vmem %s0, %s475
        %p477 = scmp.lt.s32.totalorder %s28, 1
        %s478 = scalar_select %p477, %s28, 1
        %s479 = smul.addr %s478, 2
        %s480 = smul.addr %s479, 8
        %s481 = scalar_lea.vmem %s1, %s480
        %v482 = vld [vmem:[%s476] sm:$0xff]
        %v483 = vld [vmem:[%s481] sm:$0xff]
        %v484 = vld [vmem:[%s481 + $0x8] sm:$0xff]
        %v485 = vld [vmem:[%s2] sm:$0xff]
        %v486 = vld [vmem:[%s2 + $0x8] sm:$0xff]
        %v487 = vld [vmem:[%s2 + $0x10] sm:$0xff]
        %v488 = vld [vmem:[%s2 + $0x18] sm:$0xff]
        %v489 = vld [vmem:[%s2 + $0x20] sm:$0xff]
        %v490 = vld [vmem:[%s2 + $0x28] sm:$0xff]
        %v491 = vld [vmem:[%s2 + $0x30] sm:$0xff]
        %v492 = vld [vmem:[%s2 + $0x38] sm:$0xff]
        %v493 = vld [vmem:[%s2 + $0x40] sm:$0xff]
        %v494 = vld [vmem:[%s2 + $0x48] sm:$0xff]
        %v495 = vld [vmem:[%s2 + $0x50] sm:$0xff]
        %v496 = vld [vmem:[%s2 + $0x58] sm:$0xff]
        %v497 = vld [vmem:[%s2 + $0x60] sm:$0xff]
        %v498 = vld [vmem:[%s2 + $0x68] sm:$0xff]
        %v499 = vld [vmem:[%s2 + $0x70] sm:$0xff]
        %v500 = vld [vmem:[%s2 + $0x78] sm:$0xff]
        %v501 = vld [vmem:[%s3] sm:$0x3]
        %v502 = vld [vmem:[%s4] sm:$0xff]
        %v503 = vld [vmem:[%s4 + $0x8] sm:$0xff]
        %v504 = vld [vmem:[%s4 + $0x10] sm:$0xff]
        %v505 = vld [vmem:[%s4 + $0x18] sm:$0xff]
        %v506 = vld [vmem:[%s4 + $0x20] sm:$0xff]
        %v507 = vld [vmem:[%s4 + $0x28] sm:$0xff]
        %v508 = vld [vmem:[%s4 + $0x30] sm:$0xff]
        %v509 = vld [vmem:[%s4 + $0x38] sm:$0xff]
        %v511 = vperm.slane %v501, 0
        %vm513 = vcmask 523264
        %v515 = vsel %vm513, %v483, 0
        %v518 = vsel %vm513, %v484, 0
        %520 = vmatpush.msra.mxu0 0.0
        %521 = vmatpush.msra.mxu0 0.0
        %522 = vmatpush.msra.mxu0 0.0
        %523 = vmatpush.msra.mxu0 0.0
        %524 = vmatpush.msra.mxu0 0.0
        %525 = vmatpush.msra.mxu0 0.0
        %526 = vmatpush.msra.mxu0 0.0
        %527 = vmatpush.msra.mxu0 0.0
        %528 = vmatpush.msra.mxu0 %v499
        %529 = vmatpush.msra.mxu0 %v497
        %530 = vmatpush.msra.mxu0 %v495
        %531 = vmatpush.msra.mxu0 %v493
        %532 = vmatpush.msra.mxu0 %v491
        %533 = vmatpush.msra.mxu0 %v489
        %534 = vmatpush.msra.mxu0 %v487
        %535 = vmatpush.msra.mxu0 %v485
        %536 = vmatmul.f32.gmra.mxu0 %v515
        %v537 = vpop.f32.mrf.mxu0
        %v538 = vadd.f32 %v511, %v537
        %539 = vmatmul.f32.gmra.mxu0 %v518
        %v540 = vpop.f32.mrf.mxu0
        %v541 = vadd.f32 %v511, %v540
        %542 = vdwg.mxu0
        %v543 = vperm.slane %v501, 1
        %560 = vrot.lane.b32.xlu0 %v485, 64
        %v561 = vpop.permute.xlu0 %560
        %562 = vrot.lane.b32.xlu0 %v486, 64
        %v563 = vpop.permute.xlu0 %562
        %564 = vrot.lane.b32.xlu0 %v487, 64
        %v565 = vpop.permute.xlu0 %564
        %566 = vrot.lane.b32.xlu0 %v488, 64
        %v567 = vpop.permute.xlu0 %566
        %568 = vrot.lane.b32.xlu0 %v489, 64
        %v569 = vpop.permute.xlu0 %568
        %570 = vrot.lane.b32.xlu0 %v490, 64
        %v571 = vpop.permute.xlu0 %570
        %572 = vrot.lane.b32.xlu0 %v491, 64
        %v573 = vpop.permute.xlu0 %572
        %574 = vrot.lane.b32.xlu0 %v492, 64
        %v575 = vpop.permute.xlu0 %574
        %576 = vrot.lane.b32.xlu0 %v493, 64
        %v577 = vpop.permute.xlu0 %576
        %578 = vrot.lane.b32.xlu0 %v494, 64
        %v579 = vpop.permute.xlu0 %578
        %580 = vrot.lane.b32.xlu0 %v495, 64
        %v581 = vpop.permute.xlu0 %580
        %582 = vrot.lane.b32.xlu0 %v496, 64
        %v583 = vpop.permute.xlu0 %582
        %584 = vrot.lane.b32.xlu0 %v497, 64
        %v585 = vpop.permute.xlu0 %584
        %586 = vrot.lane.b32.xlu0 %v498, 64
        %v587 = vpop.permute.xlu0 %586
        %588 = vrot.lane.b32.xlu0 %v499, 64
        %v589 = vpop.permute.xlu0 %588
        %590 = vrot.lane.b32.xlu0 %v500, 64
        %v591 = vpop.permute.xlu0 %590
        %v592 = vsel %vm513, %v561, %v563
        %v593 = vsel %vm513, %v565, %v567
        %v594 = vsel %vm513, %v569, %v571
        %v595 = vsel %vm513, %v573, %v575
        %v596 = vsel %vm513, %v577, %v579
        %v597 = vsel %vm513, %v581, %v583
        %v598 = vsel %vm513, %v585, %v587
        %v599 = vsel %vm513, %v589, %v591
        %608 = vrot.lane.b32.xlu0 %v511, 64
        %v609 = vpop.permute.xlu0 %608
        %610 = vrot.lane.b32.xlu0 %v543, 64
        %v611 = vpop.permute.xlu0 %610
        %v612 = vsel %vm513, %v609, %v611
        %v615 = vsel %vm513, %v482, 0
        %617 = vmatpush.msra.mxu0 0.0
        %618 = vmatpush.msra.mxu0 0.0
        %619 = vmatpush.msra.mxu0 0.0
        %620 = vmatpush.msra.mxu0 0.0
        %621 = vmatpush.msra.mxu0 0.0
        %622 = vmatpush.msra.mxu0 0.0
        %623 = vmatpush.msra.mxu0 0.0
        %624 = vmatpush.msra.mxu0 0.0
        %625 = vmatpush.msra.mxu0 %v599
        %626 = vmatpush.msra.mxu0 %v598
        %627 = vmatpush.msra.mxu0 %v597
        %628 = vmatpush.msra.mxu0 %v596
        %629 = vmatpush.msra.mxu0 %v595
        %630 = vmatpush.msra.mxu0 %v594
        %631 = vmatpush.msra.mxu0 %v593
        %632 = vmatpush.msra.mxu0 %v592
        %633 = vmatmul.f32.gmra.mxu0 %v615
        %v634 = vpop.f32.mrf.mxu0
        %v635 = vadd.f32 %v612, %v634
        %636 = vdwg.mxu0
        %vm637 = vcmask 130048
        %v639 = vsel %vm637, %v538, 0
        %v642 = vsel %vm637, %v541, 0
        %v645 = vsel %vm637, %v635, 0
        %647 = vmatpush.xpose.msra.mxu0 0.0
        %648 = vmatpush.xpose.msra.mxu0 0.0
        %649 = vmatpush.xpose.msra.mxu0 0.0
        %650 = vmatpush.xpose.msra.mxu0 0.0
        %651 = vmatpush.xpose.msra.mxu0 0.0
        %652 = vmatpush.xpose.msra.mxu0 0.0
        %653 = vmatpush.xpose.msra.mxu0 0.0
        %654 = vmatpush.xpose.msra.mxu0 0.0
        %655 = vmatpush.xpose.msra.mxu0 0.0
        %656 = vmatpush.xpose.msra.mxu0 0.0
        %657 = vmatpush.xpose.msra.mxu0 0.0
        %658 = vmatpush.xpose.msra.mxu0 0.0
        %659 = vmatpush.xpose.msra.mxu0 0.0
        %660 = vmatpush.xpose.msra.mxu0 0.0
        %661 = vmatpush.xpose.msra.mxu0 0.0
        %662 = vmatpush.xpose.msra.mxu0 %v645
        %663 = vmatmul.f32.gmra.mxu0 %v639
        %v664 = vpop.f32.mrf.mxu0
        %v665 = vadd.f32 0.0, %v664
        %666 = vmatmul.f32.gmra.mxu0 %v642
        %v667 = vpop.f32.mrf.mxu0
        %v668 = vadd.f32 0.0, %v667
        %669 = vdwg.mxu0
        %vm670 = vcmask 64512
        %v671 = vsel %vm670, %v665, -inf
        %672 = vmax.xlane.f32.xlu0 %v671
        %v673 = vpop.xlane.xlu0 %672
        %v674 = vsel %vm670, %v668, -inf
        %675 = vmax.xlane.f32.xlu0 %v674
        %v676 = vpop.xlane.xlu0 %675
        %v677 = vsub.f32 %v665, %v673
        %v678 = vsub.f32 %v668, %v676
        %v679 = vmul.f32 %v677, 1.442695
        %v680 = vpow.pop %v679
        %v681 = vmul.f32 %v678, 1.442695
        %v682 = vpow.pop %v681
        %v683 = vsel %vm670, %v680, 0.0
        %684 = vadd.xlane.f32.xlu0 %v683
        %v685 = vpop.xlane.xlu0 %684
        %v686 = vsel %vm670, %v682, 0.0
        %687 = vadd.xlane.f32.xlu0 %v686
        %v688 = vpop.xlane.xlu0 %687
        %v689 = vrcp.pop %v685
        %v690 = vrcp.pop %v688
        %v691 = vmul.f32 %v680, %v689
        %v692 = vmul.f32 %v682, %v690
        %693 = vrot.lane.b32.xlu0 %v635, 64
        %v694 = vpop.permute.xlu0 %693
        %v697 = vsel %vm670, %v691, 0
        %v700 = vsel %vm670, %v692, 0
        %702 = vmatpush.msra.mxu0 0.0
        %703 = vmatpush.msra.mxu0 0.0
        %704 = vmatpush.msra.mxu0 0.0
        %705 = vmatpush.msra.mxu0 0.0
        %706 = vmatpush.msra.mxu0 0.0
        %707 = vmatpush.msra.mxu0 0.0
        %708 = vmatpush.msra.mxu0 0.0
        %709 = vmatpush.msra.mxu0 0.0
        %710 = vmatpush.msra.mxu0 0.0
        %711 = vmatpush.msra.mxu0 0.0
        %712 = vmatpush.msra.mxu0 0.0
        %713 = vmatpush.msra.mxu0 0.0
        %714 = vmatpush.msra.mxu0 0.0
        %715 = vmatpush.msra.mxu0 0.0
        %716 = vmatpush.msra.mxu0 0.0
        %717 = vmatpush.msra.mxu0 %v694
        %718 = vmatmul.f32.gmra.mxu0 %v697
        %v719 = vpop.f32.mrf.mxu0
        %v720 = vadd.f32 0.0, %v719
        %721 = vmatmul.f32.gmra.mxu0 %v700
        %v722 = vpop.f32.mrf.mxu0
        %v723 = vadd.f32 0.0, %v722
        %724 = vdwg.mxu0
        %725 = vrot.lane.b32.xlu0 %v538, 112
        %v726 = vpop.permute.xlu0 %725
        %727 = vrot.lane.b32.xlu0 %v541, 112
        %v728 = vpop.permute.xlu0 %727
        %729 = vrot.lane.b32.xlu0 %v635, 112
        %v730 = vpop.permute.xlu0 %729
        %v731 = vsel %vm637, %v726, 0
        %v733 = vsel %vm637, %v728, 0
        %v735 = vsel %vm637, %v730, 0
        %737 = vmatpush.xpose.msra.mxu0 0.0
        %738 = vmatpush.xpose.msra.mxu0 0.0
        %739 = vmatpush.xpose.msra.mxu0 0.0
        %740 = vmatpush.xpose.msra.mxu0 0.0
        %741 = vmatpush.xpose.msra.mxu0 0.0
        %742 = vmatpush.xpose.msra.mxu0 0.0
        %743 = vmatpush.xpose.msra.mxu0 0.0
        %744 = vmatpush.xpose.msra.mxu0 0.0
        %745 = vmatpush.xpose.msra.mxu0 0.0
        %746 = vmatpush.xpose.msra.mxu0 0.0
        %747 = vmatpush.xpose.msra.mxu0 0.0
        %748 = vmatpush.xpose.msra.mxu0 0.0
        %749 = vmatpush.xpose.msra.mxu0 0.0
        %750 = vmatpush.xpose.msra.mxu0 0.0
        %751 = vmatpush.xpose.msra.mxu0 0.0
        %752 = vmatpush.xpose.msra.mxu0 %v735
        %753 = vmatmul.f32.gmra.mxu0 %v731
        %v754 = vpop.f32.mrf.mxu0
        %v755 = vadd.f32 0.0, %v754
        %756 = vmatmul.f32.gmra.mxu0 %v733
        %v757 = vpop.f32.mrf.mxu0
        %v758 = vadd.f32 0.0, %v757
        %759 = vdwg.mxu0
        %v760 = vsel %vm670, %v755, -inf
        %761 = vmax.xlane.f32.xlu0 %v760
        %v762 = vpop.xlane.xlu0 %761
        %v763 = vsel %vm670, %v758, -inf
        %764 = vmax.xlane.f32.xlu0 %v763
        %v765 = vpop.xlane.xlu0 %764
        %v766 = vsub.f32 %v755, %v762
        %v767 = vsub.f32 %v758, %v765
        %v768 = vmul.f32 %v766, 1.442695
        %v769 = vpow.pop %v768
        %v770 = vmul.f32 %v767, 1.442695
        %v771 = vpow.pop %v770
        %v772 = vsel %vm670, %v769, 0.0
        %773 = vadd.xlane.f32.xlu0 %v772
        %v774 = vpop.xlane.xlu0 %773
        %v775 = vsel %vm670, %v771, 0.0
        %776 = vadd.xlane.f32.xlu0 %v775
        %v777 = vpop.xlane.xlu0 %776
        %v778 = vrcp.pop %v774
        %v779 = vrcp.pop %v777
        %v780 = vmul.f32 %v769, %v778
        %v781 = vmul.f32 %v771, %v779
        %782 = vrot.lane.b32.xlu0 %v635, 48
        %v783 = vpop.permute.xlu0 %782
        %v786 = vsel %vm670, %v780, 0
        %v789 = vsel %vm670, %v781, 0
        %791 = vmatpush.msra.mxu0 0.0
        %792 = vmatpush.msra.mxu0 0.0
        %793 = vmatpush.msra.mxu0 0.0
        %794 = vmatpush.msra.mxu0 0.0
        %795 = vmatpush.msra.mxu0 0.0
        %796 = vmatpush.msra.mxu0 0.0
        %797 = vmatpush.msra.mxu0 0.0
        %798 = vmatpush.msra.mxu0 0.0
        %799 = vmatpush.msra.mxu0 0.0
        %800 = vmatpush.msra.mxu0 0.0
        %801 = vmatpush.msra.mxu0 0.0
        %802 = vmatpush.msra.mxu0 0.0
        %803 = vmatpush.msra.mxu0 0.0
        %804 = vmatpush.msra.mxu0 0.0
        %805 = vmatpush.msra.mxu0 0.0
        %806 = vmatpush.msra.mxu0 %v783
        %807 = vmatmul.f32.gmra.mxu0 %v786
        %v808 = vpop.f32.mrf.mxu0
        %v809 = vadd.f32 0.0, %v808
        %810 = vmatmul.f32.gmra.mxu0 %v789
        %v811 = vpop.f32.mrf.mxu0
        %v812 = vadd.f32 0.0, %v811
        %813 = vdwg.mxu0
        %v815 = vsel %vm637, %v809, 0
        %v818 = vsel %vm637, %v812, 0
        %820 = vmatpush.msra.mxu0 0.0
        %821 = vmatpush.msra.mxu0 0.0
        %822 = vmatpush.msra.mxu0 0.0
        %823 = vmatpush.msra.mxu0 0.0
        %824 = vmatpush.msra.mxu0 0.0
        %825 = vmatpush.msra.mxu0 0.0
        %826 = vmatpush.msra.mxu0 0.0
        %827 = vmatpush.msra.mxu0 0.0
        %828 = vmatpush.msra.mxu0 0.0
        %829 = vmatpush.msra.mxu0 0.0
        %830 = vmatpush.msra.mxu0 0.0
        %831 = vmatpush.msra.mxu0 0.0
        %832 = vmatpush.msra.mxu0 0.0
        %833 = vmatpush.msra.mxu0 0.0
        %834 = vmatpush.msra.mxu0 %v505
        %835 = vmatpush.msra.mxu0 %v504
        %836 = vmatmul.f32.gmra.mxu0 %v815
        %v837 = vpop.f32.mrf.mxu0
        %v838 = vadd.f32 0.0, %v837
        %839 = vmatmul.f32.gmra.mxu0 %v818
        %v840 = vpop.f32.mrf.mxu0
        %v841 = vadd.f32 0.0, %v840
        %842 = vdwg.mxu0
        %v844 = vsel %vm637, %v720, 0
        %v847 = vsel %vm637, %v723, 0
        %849 = vmatpush.msra.mxu0 0.0
        %850 = vmatpush.msra.mxu0 0.0
        %851 = vmatpush.msra.mxu0 0.0
        %852 = vmatpush.msra.mxu0 0.0
        %853 = vmatpush.msra.mxu0 0.0
        %854 = vmatpush.msra.mxu0 0.0
        %855 = vmatpush.msra.mxu0 0.0
        %856 = vmatpush.msra.mxu0 0.0
        %857 = vmatpush.msra.mxu0 0.0
        %858 = vmatpush.msra.mxu0 0.0
        %859 = vmatpush.msra.mxu0 0.0
        %860 = vmatpush.msra.mxu0 0.0
        %861 = vmatpush.msra.mxu0 0.0
        %862 = vmatpush.msra.mxu0 0.0
        %863 = vmatpush.msra.mxu0 %v503
        %864 = vmatpush.msra.mxu0 %v502
        %865 = vmatmul.f32.gmra.mxu0 %v844
        %v866 = vpop.f32.mrf.mxu0
        %v867 = vadd.f32 %v838, %v866
        %868 = vmatmul.f32.gmra.mxu0 %v847
        %v869 = vpop.f32.mrf.mxu0
        %v870 = vadd.f32 %v841, %v869
        %871 = vdwg.mxu0
        %872 = vrot.lane.b32.xlu0 %v538, 96
        %v873 = vpop.permute.xlu0 %872
        %874 = vrot.lane.b32.xlu0 %v541, 96
        %v875 = vpop.permute.xlu0 %874
        %876 = vrot.lane.b32.xlu0 %v635, 96
        %v877 = vpop.permute.xlu0 %876
        %v878 = vsel %vm637, %v873, 0
        %v880 = vsel %vm637, %v875, 0
        %v882 = vsel %vm637, %v877, 0
        %884 = vmatpush.xpose.msra.mxu0 0.0
        %885 = vmatpush.xpose.msra.mxu0 0.0
        %886 = vmatpush.xpose.msra.mxu0 0.0
        %887 = vmatpush.xpose.msra.mxu0 0.0
        %888 = vmatpush.xpose.msra.mxu0 0.0
        %889 = vmatpush.xpose.msra.mxu0 0.0
        %890 = vmatpush.xpose.msra.mxu0 0.0
        %891 = vmatpush.xpose.msra.mxu0 0.0
        %892 = vmatpush.xpose.msra.mxu0 0.0
        %893 = vmatpush.xpose.msra.mxu0 0.0
        %894 = vmatpush.xpose.msra.mxu0 0.0
        %895 = vmatpush.xpose.msra.mxu0 0.0
        %896 = vmatpush.xpose.msra.mxu0 0.0
        %897 = vmatpush.xpose.msra.mxu0 0.0
        %898 = vmatpush.xpose.msra.mxu0 0.0
        %899 = vmatpush.xpose.msra.mxu0 %v882
        %900 = vmatmul.f32.gmra.mxu0 %v878
        %v901 = vpop.f32.mrf.mxu0
        %v902 = vadd.f32 0.0, %v901
        %903 = vmatmul.f32.gmra.mxu0 %v880
        %v904 = vpop.f32.mrf.mxu0
        %v905 = vadd.f32 0.0, %v904
        %906 = vdwg.mxu0
        %v907 = vsel %vm670, %v902, -inf
        %908 = vmax.xlane.f32.xlu0 %v907
        %v909 = vpop.xlane.xlu0 %908
        %v910 = vsel %vm670, %v905, -inf
        %911 = vmax.xlane.f32.xlu0 %v910
        %v912 = vpop.xlane.xlu0 %911
        %v913 = vsub.f32 %v902, %v909
        %v914 = vsub.f32 %v905, %v912
        %v915 = vmul.f32 %v913, 1.442695
        %v916 = vpow.pop %v915
        %v917 = vmul.f32 %v914, 1.442695
        %v918 = vpow.pop %v917
        %v919 = vsel %vm670, %v916, 0.0
        %920 = vadd.xlane.f32.xlu0 %v919
        %v921 = vpop.xlane.xlu0 %920
        %v922 = vsel %vm670, %v918, 0.0
        %923 = vadd.xlane.f32.xlu0 %v922
        %v924 = vpop.xlane.xlu0 %923
        %v925 = vrcp.pop %v921
        %v926 = vrcp.pop %v924
        %v927 = vmul.f32 %v916, %v925
        %v928 = vmul.f32 %v918, %v926
        %929 = vrot.lane.b32.xlu0 %v635, 32
        %v930 = vpop.permute.xlu0 %929
        %v933 = vsel %vm670, %v927, 0
        %v936 = vsel %vm670, %v928, 0
        %938 = vmatpush.msra.mxu0 0.0
        %939 = vmatpush.msra.mxu0 0.0
        %940 = vmatpush.msra.mxu0 0.0
        %941 = vmatpush.msra.mxu0 0.0
        %942 = vmatpush.msra.mxu0 0.0
        %943 = vmatpush.msra.mxu0 0.0
        %944 = vmatpush.msra.mxu0 0.0
        %945 = vmatpush.msra.mxu0 0.0
        %946 = vmatpush.msra.mxu0 0.0
        %947 = vmatpush.msra.mxu0 0.0
        %948 = vmatpush.msra.mxu0 0.0
        %949 = vmatpush.msra.mxu0 0.0
        %950 = vmatpush.msra.mxu0 0.0
        %951 = vmatpush.msra.mxu0 0.0
        %952 = vmatpush.msra.mxu0 0.0
        %953 = vmatpush.msra.mxu0 %v930
        %954 = vmatmul.f32.gmra.mxu0 %v933
        %v955 = vpop.f32.mrf.mxu0
        %v956 = vadd.f32 0.0, %v955
        %957 = vmatmul.f32.gmra.mxu0 %v936
        %v958 = vpop.f32.mrf.mxu0
        %v959 = vadd.f32 0.0, %v958
        %960 = vdwg.mxu0
        %v962 = vsel %vm637, %v956, 0
        %v965 = vsel %vm637, %v959, 0
        %967 = vmatpush.msra.mxu0 0.0
        %968 = vmatpush.msra.mxu0 0.0
        %969 = vmatpush.msra.mxu0 0.0
        %970 = vmatpush.msra.mxu0 0.0
        %971 = vmatpush.msra.mxu0 0.0
        %972 = vmatpush.msra.mxu0 0.0
        %973 = vmatpush.msra.mxu0 0.0
        %974 = vmatpush.msra.mxu0 0.0
        %975 = vmatpush.msra.mxu0 0.0
        %976 = vmatpush.msra.mxu0 0.0
        %977 = vmatpush.msra.mxu0 0.0
        %978 = vmatpush.msra.mxu0 0.0
        %979 = vmatpush.msra.mxu0 0.0
        %980 = vmatpush.msra.mxu0 0.0
        %981 = vmatpush.msra.mxu0 %v507
        %982 = vmatpush.msra.mxu0 %v506
        %983 = vmatmul.f32.gmra.mxu0 %v962
        %v984 = vpop.f32.mrf.mxu0
        %v985 = vadd.f32 0.0, %v984
        %986 = vmatmul.f32.gmra.mxu0 %v965
        %v987 = vpop.f32.mrf.mxu0
        %v988 = vadd.f32 0.0, %v987
        %989 = vdwg.mxu0
        %v990 = vadd.f32 %v867, %v985
        %v991 = vadd.f32 %v870, %v988
        %992 = vrot.lane.b32.xlu0 %v538, 80
        %v993 = vpop.permute.xlu0 %992
        %994 = vrot.lane.b32.xlu0 %v541, 80
        %v995 = vpop.permute.xlu0 %994
        %996 = vrot.lane.b32.xlu0 %v635, 80
        %v997 = vpop.permute.xlu0 %996
        %v998 = vsel %vm637, %v993, 0
        %v1000 = vsel %vm637, %v995, 0
        %v1002 = vsel %vm637, %v997, 0
        %1004 = vmatpush.xpose.msra.mxu0 0.0
        %1005 = vmatpush.xpose.msra.mxu0 0.0
        %1006 = vmatpush.xpose.msra.mxu0 0.0
        %1007 = vmatpush.xpose.msra.mxu0 0.0
        %1008 = vmatpush.xpose.msra.mxu0 0.0
        %1009 = vmatpush.xpose.msra.mxu0 0.0
        %1010 = vmatpush.xpose.msra.mxu0 0.0
        %1011 = vmatpush.xpose.msra.mxu0 0.0
        %1012 = vmatpush.xpose.msra.mxu0 0.0
        %1013 = vmatpush.xpose.msra.mxu0 0.0
        %1014 = vmatpush.xpose.msra.mxu0 0.0
        %1015 = vmatpush.xpose.msra.mxu0 0.0
        %1016 = vmatpush.xpose.msra.mxu0 0.0
        %1017 = vmatpush.xpose.msra.mxu0 0.0
        %1018 = vmatpush.xpose.msra.mxu0 0.0
        %1019 = vmatpush.xpose.msra.mxu0 %v1002
        %1020 = vmatmul.f32.gmra.mxu0 %v998
        %v1021 = vpop.f32.mrf.mxu0
        %v1022 = vadd.f32 0.0, %v1021
        %1023 = vmatmul.f32.gmra.mxu0 %v1000
        %v1024 = vpop.f32.mrf.mxu0
        %v1025 = vadd.f32 0.0, %v1024
        %1026 = vdwg.mxu0
        %v1027 = vsel %vm670, %v1022, -inf
        %1028 = vmax.xlane.f32.xlu0 %v1027
        %v1029 = vpop.xlane.xlu0 %1028
        %v1030 = vsel %vm670, %v1025, -inf
        %1031 = vmax.xlane.f32.xlu0 %v1030
        %v1032 = vpop.xlane.xlu0 %1031
        %v1033 = vsub.f32 %v1022, %v1029
        %v1034 = vsub.f32 %v1025, %v1032
        %v1035 = vmul.f32 %v1033, 1.442695
        %v1036 = vpow.pop %v1035
        %v1037 = vmul.f32 %v1034, 1.442695
        %v1038 = vpow.pop %v1037
        %v1039 = vsel %vm670, %v1036, 0.0
        %1040 = vadd.xlane.f32.xlu0 %v1039
        %v1041 = vpop.xlane.xlu0 %1040
        %v1042 = vsel %vm670, %v1038, 0.0
        %1043 = vadd.xlane.f32.xlu0 %v1042
        %v1044 = vpop.xlane.xlu0 %1043
        %v1045 = vrcp.pop %v1041
        %v1046 = vrcp.pop %v1044
        %v1047 = vmul.f32 %v1036, %v1045
        %v1048 = vmul.f32 %v1038, %v1046
        %1049 = vrot.lane.b32.xlu0 %v635, 16
        %v1050 = vpop.permute.xlu0 %1049
        %v1053 = vsel %vm670, %v1047, 0
        %v1056 = vsel %vm670, %v1048, 0
        %1058 = vmatpush.msra.mxu0 0.0
        %1059 = vmatpush.msra.mxu0 0.0
        %1060 = vmatpush.msra.mxu0 0.0
        %1061 = vmatpush.msra.mxu0 0.0
        %1062 = vmatpush.msra.mxu0 0.0
        %1063 = vmatpush.msra.mxu0 0.0
        %1064 = vmatpush.msra.mxu0 0.0
        %1065 = vmatpush.msra.mxu0 0.0
        %1066 = vmatpush.msra.mxu0 0.0
        %1067 = vmatpush.msra.mxu0 0.0
        %1068 = vmatpush.msra.mxu0 0.0
        %1069 = vmatpush.msra.mxu0 0.0
        %1070 = vmatpush.msra.mxu0 0.0
        %1071 = vmatpush.msra.mxu0 0.0
        %1072 = vmatpush.msra.mxu0 0.0
        %1073 = vmatpush.msra.mxu0 %v1050
        %1074 = vmatmul.f32.gmra.mxu0 %v1053
        %v1075 = vpop.f32.mrf.mxu0
        %v1076 = vadd.f32 0.0, %v1075
        %1077 = vmatmul.f32.gmra.mxu0 %v1056
        %v1078 = vpop.f32.mrf.mxu0
        %v1079 = vadd.f32 0.0, %v1078
        %1080 = vdwg.mxu0
        %v1082 = vsel %vm637, %v1076, 0
        %v1085 = vsel %vm637, %v1079, 0
        %1087 = vmatpush.msra.mxu0 0.0
        %1088 = vmatpush.msra.mxu0 0.0
        %1089 = vmatpush.msra.mxu0 0.0
        %1090 = vmatpush.msra.mxu0 0.0
        %1091 = vmatpush.msra.mxu0 0.0
        %1092 = vmatpush.msra.mxu0 0.0
        %1093 = vmatpush.msra.mxu0 0.0
        %1094 = vmatpush.msra.mxu0 0.0
        %1095 = vmatpush.msra.mxu0 0.0
        %1096 = vmatpush.msra.mxu0 0.0
        %1097 = vmatpush.msra.mxu0 0.0
        %1098 = vmatpush.msra.mxu0 0.0
        %1099 = vmatpush.msra.mxu0 0.0
        %1100 = vmatpush.msra.mxu0 0.0
        %1101 = vmatpush.msra.mxu0 %v509
        %1102 = vmatpush.msra.mxu0 %v508
        %1103 = vmatmul.f32.gmra.mxu0 %v1082
        %v1104 = vpop.f32.mrf.mxu0
        %v1105 = vadd.f32 0.0, %v1104
        %1106 = vmatmul.f32.gmra.mxu0 %v1085
        %v1107 = vpop.f32.mrf.mxu0
        %v1108 = vadd.f32 0.0, %v1107
        %1109 = vdwg.mxu0
        %v1110 = vadd.f32 %v990, %v1105
        %v1111 = vadd.f32 %v991, %v1108
        %v1112 = vld [vmem:[%s5] sm:$0x1]
        %v1114 = vperm.slane %v1112, 0
        %v1116 = vadd.f32 %v1110, %v1114
        %v1117 = vadd.f32 %v1111, %v1114
        %s1118 = scalar_lea.vmem %s2, 128
        %v1119 = vld [vmem:[%s1118] sm:$0xff]
        %v1120 = vld [vmem:[%s1118 + $0x8] sm:$0xff]
        %v1121 = vld [vmem:[%s1118 + $0x10] sm:$0xff]
        %v1122 = vld [vmem:[%s1118 + $0x18] sm:$0xff]
        %v1123 = vld [vmem:[%s1118 + $0x20] sm:$0xff]
        %v1124 = vld [vmem:[%s1118 + $0x28] sm:$0xff]
        %v1125 = vld [vmem:[%s1118 + $0x30] sm:$0xff]
        %v1126 = vld [vmem:[%s1118 + $0x38] sm:$0xff]
        %v1127 = vld [vmem:[%s1118 + $0x40] sm:$0xff]
        %v1128 = vld [vmem:[%s1118 + $0x48] sm:$0xff]
        %v1129 = vld [vmem:[%s1118 + $0x50] sm:$0xff]
        %v1130 = vld [vmem:[%s1118 + $0x58] sm:$0xff]
        %v1131 = vld [vmem:[%s1118 + $0x60] sm:$0xff]
        %v1132 = vld [vmem:[%s1118 + $0x68] sm:$0xff]
        %v1133 = vld [vmem:[%s1118 + $0x70] sm:$0xff]
        %v1134 = vld [vmem:[%s1118 + $0x78] sm:$0xff]
        %s1135 = scalar_lea.vmem %s3, 2
        %v1136 = vld [vmem:[%s1135] sm:$0x3]
        %s1137 = scalar_lea.vmem %s4, 64
        %v1138 = vld [vmem:[%s1137] sm:$0xff]
        %v1139 = vld [vmem:[%s1137 + $0x8] sm:$0xff]
        %v1140 = vld [vmem:[%s1137 + $0x10] sm:$0xff]
        %v1141 = vld [vmem:[%s1137 + $0x18] sm:$0xff]
        %v1142 = vld [vmem:[%s1137 + $0x20] sm:$0xff]
        %v1143 = vld [vmem:[%s1137 + $0x28] sm:$0xff]
        %v1144 = vld [vmem:[%s1137 + $0x30] sm:$0xff]
        %v1145 = vld [vmem:[%s1137 + $0x38] sm:$0xff]
        %v1147 = vperm.slane %v1136, 0
        %1149 = vmatpush.msra.mxu0 0.0
        %1150 = vmatpush.msra.mxu0 0.0
        %1151 = vmatpush.msra.mxu0 0.0
        %1152 = vmatpush.msra.mxu0 0.0
        %1153 = vmatpush.msra.mxu0 0.0
        %1154 = vmatpush.msra.mxu0 0.0
        %1155 = vmatpush.msra.mxu0 0.0
        %1156 = vmatpush.msra.mxu0 0.0
        %1157 = vmatpush.msra.mxu0 %v1133
        %1158 = vmatpush.msra.mxu0 %v1131
        %1159 = vmatpush.msra.mxu0 %v1129
        %1160 = vmatpush.msra.mxu0 %v1127
        %1161 = vmatpush.msra.mxu0 %v1125
        %1162 = vmatpush.msra.mxu0 %v1123
        %1163 = vmatpush.msra.mxu0 %v1121
        %1164 = vmatpush.msra.mxu0 %v1119
        %1165 = vmatmul.f32.gmra.mxu0 %v615
        %v1166 = vpop.f32.mrf.mxu0
        %v1167 = vadd.f32 %v1147, %v1166
        %1168 = vdwg.mxu0
        %v1169 = vperm.slane %v1136, 1
        %1186 = vrot.lane.b32.xlu0 %v1119, 64
        %v1187 = vpop.permute.xlu0 %1186
        %1188 = vrot.lane.b32.xlu0 %v1120, 64
        %v1189 = vpop.permute.xlu0 %1188
        %1190 = vrot.lane.b32.xlu0 %v1121, 64
        %v1191 = vpop.permute.xlu0 %1190
        %1192 = vrot.lane.b32.xlu0 %v1122, 64
        %v1193 = vpop.permute.xlu0 %1192
        %1194 = vrot.lane.b32.xlu0 %v1123, 64
        %v1195 = vpop.permute.xlu0 %1194
        %1196 = vrot.lane.b32.xlu0 %v1124, 64
        %v1197 = vpop.permute.xlu0 %1196
        %1198 = vrot.lane.b32.xlu0 %v1125, 64
        %v1199 = vpop.permute.xlu0 %1198
        %1200 = vrot.lane.b32.xlu0 %v1126, 64
        %v1201 = vpop.permute.xlu0 %1200
        %1202 = vrot.lane.b32.xlu0 %v1127, 64
        %v1203 = vpop.permute.xlu0 %1202
        %1204 = vrot.lane.b32.xlu0 %v1128, 64
        %v1205 = vpop.permute.xlu0 %1204
        %1206 = vrot.lane.b32.xlu0 %v1129, 64
        %v1207 = vpop.permute.xlu0 %1206
        %1208 = vrot.lane.b32.xlu0 %v1130, 64
        %v1209 = vpop.permute.xlu0 %1208
        %1210 = vrot.lane.b32.xlu0 %v1131, 64
        %v1211 = vpop.permute.xlu0 %1210
        %1212 = vrot.lane.b32.xlu0 %v1132, 64
        %v1213 = vpop.permute.xlu0 %1212
        %1214 = vrot.lane.b32.xlu0 %v1133, 64
        %v1215 = vpop.permute.xlu0 %1214
        %1216 = vrot.lane.b32.xlu0 %v1134, 64
        %v1217 = vpop.permute.xlu0 %1216
        %v1218 = vsel %vm513, %v1187, %v1189
        %v1219 = vsel %vm513, %v1191, %v1193
        %v1220 = vsel %vm513, %v1195, %v1197
        %v1221 = vsel %vm513, %v1199, %v1201
        %v1222 = vsel %vm513, %v1203, %v1205
        %v1223 = vsel %vm513, %v1207, %v1209
        %v1224 = vsel %vm513, %v1211, %v1213
        %v1225 = vsel %vm513, %v1215, %v1217
        %1234 = vrot.lane.b32.xlu0 %v1147, 64
        %v1235 = vpop.permute.xlu0 %1234
        %1236 = vrot.lane.b32.xlu0 %v1169, 64
        %v1237 = vpop.permute.xlu0 %1236
        %v1238 = vsel %vm513, %v1235, %v1237
        %1240 = vmatpush.msra.mxu0 0.0
        %1241 = vmatpush.msra.mxu0 0.0
        %1242 = vmatpush.msra.mxu0 0.0
        %1243 = vmatpush.msra.mxu0 0.0
        %1244 = vmatpush.msra.mxu0 0.0
        %1245 = vmatpush.msra.mxu0 0.0
        %1246 = vmatpush.msra.mxu0 0.0
        %1247 = vmatpush.msra.mxu0 0.0
        %1248 = vmatpush.msra.mxu0 %v1225
        %1249 = vmatpush.msra.mxu0 %v1224
        %1250 = vmatpush.msra.mxu0 %v1223
        %1251 = vmatpush.msra.mxu0 %v1222
        %1252 = vmatpush.msra.mxu0 %v1221
        %1253 = vmatpush.msra.mxu0 %v1220
        %1254 = vmatpush.msra.mxu0 %v1219
        %1255 = vmatpush.msra.mxu0 %v1218
        %1256 = vmatmul.f32.gmra.mxu0 %v515
        %v1257 = vpop.f32.mrf.mxu0
        %v1258 = vadd.f32 %v1238, %v1257
        %1259 = vmatmul.f32.gmra.mxu0 %v518
        %v1260 = vpop.f32.mrf.mxu0
        %v1261 = vadd.f32 %v1238, %v1260
        %1262 = vdwg.mxu0
        %v1264 = vsel %vm637, %v1167, 0
        %v1267 = vsel %vm637, %v1258, 0
        %v1270 = vsel %vm637, %v1261, 0
        %1272 = vmatpush.xpose.msra.mxu0 0.0
        %1273 = vmatpush.xpose.msra.mxu0 0.0
        %1274 = vmatpush.xpose.msra.mxu0 0.0
        %1275 = vmatpush.xpose.msra.mxu0 0.0
        %1276 = vmatpush.xpose.msra.mxu0 0.0
        %1277 = vmatpush.xpose.msra.mxu0 0.0
        %1278 = vmatpush.xpose.msra.mxu0 0.0
        %1279 = vmatpush.xpose.msra.mxu0 0.0
        %1280 = vmatpush.xpose.msra.mxu0 0.0
        %1281 = vmatpush.xpose.msra.mxu0 0.0
        %1282 = vmatpush.xpose.msra.mxu0 0.0
        %1283 = vmatpush.xpose.msra.mxu0 0.0
        %1284 = vmatpush.xpose.msra.mxu0 0.0
        %1285 = vmatpush.xpose.msra.mxu0 0.0
        %1286 = vmatpush.xpose.msra.mxu0 %v1270
        %1287 = vmatpush.xpose.msra.mxu0 %v1267
        %1288 = vmatmul.f32.gmra.mxu0 %v1264
        %v1289 = vpop.f32.mrf.mxu0
        %v1290 = vadd.f32 0.0, %v1289
        %1291 = vdwg.mxu0
        %v1292 = vsel %vm637, %v1290, -inf
        %1293 = vmax.xlane.f32.xlu0 %v1292
        %v1294 = vpop.xlane.xlu0 %1293
        %v1295 = vsub.f32 %v1290, %v1294
        %v1296 = vmul.f32 %v1295, 1.442695
        %v1297 = vpow.pop %v1296
        %v1298 = vsel %vm637, %v1297, 0.0
        %1299 = vadd.xlane.f32.xlu0 %v1298
        %v1300 = vpop.xlane.xlu0 %1299
        %v1301 = vrcp.pop %v1300
        %v1302 = vmul.f32 %v1297, %v1301
        %1303 = vrot.lane.b32.xlu0 %v1258, 64
        %v1304 = vpop.permute.xlu0 %1303
        %1305 = vrot.lane.b32.xlu0 %v1261, 64
        %v1306 = vpop.permute.xlu0 %1305
        %v1310 = vsel %vm637, %v1302, 0
        %1312 = vmatpush.msra.mxu0 0.0
        %1313 = vmatpush.msra.mxu0 0.0
        %1314 = vmatpush.msra.mxu0 0.0
        %1315 = vmatpush.msra.mxu0 0.0
        %1316 = vmatpush.msra.mxu0 0.0
        %1317 = vmatpush.msra.mxu0 0.0
        %1318 = vmatpush.msra.mxu0 0.0
        %1319 = vmatpush.msra.mxu0 0.0
        %1320 = vmatpush.msra.mxu0 0.0
        %1321 = vmatpush.msra.mxu0 0.0
        %1322 = vmatpush.msra.mxu0 0.0
        %1323 = vmatpush.msra.mxu0 0.0
        %1324 = vmatpush.msra.mxu0 0.0
        %1325 = vmatpush.msra.mxu0 0.0
        %1326 = vmatpush.msra.mxu0 %v1306
        %1327 = vmatpush.msra.mxu0 %v1304
        %1328 = vmatmul.f32.gmra.mxu0 %v1310
        %v1329 = vpop.f32.mrf.mxu0
        %v1330 = vadd.f32 0.0, %v1329
        %1331 = vdwg.mxu0
        %1332 = vrot.lane.b32.xlu0 %v1167, 112
        %v1333 = vpop.permute.xlu0 %1332
        %1334 = vrot.lane.b32.xlu0 %v1258, 112
        %v1335 = vpop.permute.xlu0 %1334
        %1336 = vrot.lane.b32.xlu0 %v1261, 112
        %v1337 = vpop.permute.xlu0 %1336
        %v1338 = vsel %vm637, %v1333, 0
        %v1340 = vsel %vm637, %v1335, 0
        %v1342 = vsel %vm637, %v1337, 0
        %1344 = vmatpush.xpose.msra.mxu0 0.0
        %1345 = vmatpush.xpose.msra.mxu0 0.0
        %1346 = vmatpush.xpose.msra.mxu0 0.0
        %1347 = vmatpush.xpose.msra.mxu0 0.0
        %1348 = vmatpush.xpose.msra.mxu0 0.0
        %1349 = vmatpush.xpose.msra.mxu0 0.0
        %1350 = vmatpush.xpose.msra.mxu0 0.0
        %1351 = vmatpush.xpose.msra.mxu0 0.0
        %1352 = vmatpush.xpose.msra.mxu0 0.0
        %1353 = vmatpush.xpose.msra.mxu0 0.0
        %1354 = vmatpush.xpose.msra.mxu0 0.0
        %1355 = vmatpush.xpose.msra.mxu0 0.0
        %1356 = vmatpush.xpose.msra.mxu0 0.0
        %1357 = vmatpush.xpose.msra.mxu0 0.0
        %1358 = vmatpush.xpose.msra.mxu0 %v1342
        %1359 = vmatpush.xpose.msra.mxu0 %v1340
        %1360 = vmatmul.f32.gmra.mxu0 %v1338
        %v1361 = vpop.f32.mrf.mxu0
        %v1362 = vadd.f32 0.0, %v1361
        %1363 = vdwg.mxu0
        %v1364 = vsel %vm637, %v1362, -inf
        %1365 = vmax.xlane.f32.xlu0 %v1364
        %v1366 = vpop.xlane.xlu0 %1365
        %v1367 = vsub.f32 %v1362, %v1366
        %v1368 = vmul.f32 %v1367, 1.442695
        %v1369 = vpow.pop %v1368
        %v1370 = vsel %vm637, %v1369, 0.0
        %1371 = vadd.xlane.f32.xlu0 %v1370
        %v1372 = vpop.xlane.xlu0 %1371
        %v1373 = vrcp.pop %v1372
        %v1374 = vmul.f32 %v1369, %v1373
        %1375 = vrot.lane.b32.xlu0 %v1258, 48
        %v1376 = vpop.permute.xlu0 %1375
        %1377 = vrot.lane.b32.xlu0 %v1261, 48
        %v1378 = vpop.permute.xlu0 %1377
        %v1382 = vsel %vm637, %v1374, 0
        %1384 = vmatpush.msra.mxu0 0.0
        %1385 = vmatpush.msra.mxu0 0.0
        %1386 = vmatpush.msra.mxu0 0.0
        %1387 = vmatpush.msra.mxu0 0.0
        %1388 = vmatpush.msra.mxu0 0.0
        %1389 = vmatpush.msra.mxu0 0.0
        %1390 = vmatpush.msra.mxu0 0.0
        %1391 = vmatpush.msra.mxu0 0.0
        %1392 = vmatpush.msra.mxu0 0.0
        %1393 = vmatpush.msra.mxu0 0.0
        %1394 = vmatpush.msra.mxu0 0.0
        %1395 = vmatpush.msra.mxu0 0.0
        %1396 = vmatpush.msra.mxu0 0.0
        %1397 = vmatpush.msra.mxu0 0.0
        %1398 = vmatpush.msra.mxu0 %v1378
        %1399 = vmatpush.msra.mxu0 %v1376
        %1400 = vmatmul.f32.gmra.mxu0 %v1382
        %v1401 = vpop.f32.mrf.mxu0
        %v1402 = vadd.f32 0.0, %v1401
        %1403 = vdwg.mxu0
        %v1405 = vsel %vm637, %v1402, 0
        %1407 = vmatpush.msra.mxu0 0.0
        %1408 = vmatpush.msra.mxu0 0.0
        %1409 = vmatpush.msra.mxu0 0.0
        %1410 = vmatpush.msra.mxu0 0.0
        %1411 = vmatpush.msra.mxu0 0.0
        %1412 = vmatpush.msra.mxu0 0.0
        %1413 = vmatpush.msra.mxu0 0.0
        %1414 = vmatpush.msra.mxu0 0.0
        %1415 = vmatpush.msra.mxu0 0.0
        %1416 = vmatpush.msra.mxu0 0.0
        %1417 = vmatpush.msra.mxu0 0.0
        %1418 = vmatpush.msra.mxu0 0.0
        %1419 = vmatpush.msra.mxu0 0.0
        %1420 = vmatpush.msra.mxu0 0.0
        %1421 = vmatpush.msra.mxu0 %v1141
        %1422 = vmatpush.msra.mxu0 %v1140
        %1423 = vmatmul.f32.gmra.mxu0 %v1405
        %v1424 = vpop.f32.mrf.mxu0
        %v1425 = vadd.f32 0.0, %v1424
        %1426 = vdwg.mxu0
        %v1428 = vsel %vm637, %v1330, 0
        %1430 = vmatpush.msra.mxu0 0.0
        %1431 = vmatpush.msra.mxu0 0.0
        %1432 = vmatpush.msra.mxu0 0.0
        %1433 = vmatpush.msra.mxu0 0.0
        %1434 = vmatpush.msra.mxu0 0.0
        %1435 = vmatpush.msra.mxu0 0.0
        %1436 = vmatpush.msra.mxu0 0.0
        %1437 = vmatpush.msra.mxu0 0.0
        %1438 = vmatpush.msra.mxu0 0.0
        %1439 = vmatpush.msra.mxu0 0.0
        %1440 = vmatpush.msra.mxu0 0.0
        %1441 = vmatpush.msra.mxu0 0.0
        %1442 = vmatpush.msra.mxu0 0.0
        %1443 = vmatpush.msra.mxu0 0.0
        %1444 = vmatpush.msra.mxu0 %v1139
        %1445 = vmatpush.msra.mxu0 %v1138
        %1446 = vmatmul.f32.gmra.mxu0 %v1428
        %v1447 = vpop.f32.mrf.mxu0
        %v1448 = vadd.f32 %v1425, %v1447
        %1449 = vdwg.mxu0
        %1450 = vrot.lane.b32.xlu0 %v1167, 96
        %v1451 = vpop.permute.xlu0 %1450
        %1452 = vrot.lane.b32.xlu0 %v1258, 96
        %v1453 = vpop.permute.xlu0 %1452
        %1454 = vrot.lane.b32.xlu0 %v1261, 96
        %v1455 = vpop.permute.xlu0 %1454
        %v1456 = vsel %vm637, %v1451, 0
        %v1458 = vsel %vm637, %v1453, 0
        %v1460 = vsel %vm637, %v1455, 0
        %1462 = vmatpush.xpose.msra.mxu0 0.0
        %1463 = vmatpush.xpose.msra.mxu0 0.0
        %1464 = vmatpush.xpose.msra.mxu0 0.0
        %1465 = vmatpush.xpose.msra.mxu0 0.0
        %1466 = vmatpush.xpose.msra.mxu0 0.0
        %1467 = vmatpush.xpose.msra.mxu0 0.0
        %1468 = vmatpush.xpose.msra.mxu0 0.0
        %1469 = vmatpush.xpose.msra.mxu0 0.0
        %1470 = vmatpush.xpose.msra.mxu0 0.0
        %1471 = vmatpush.xpose.msra.mxu0 0.0
        %1472 = vmatpush.xpose.msra.mxu0 0.0
        %1473 = vmatpush.xpose.msra.mxu0 0.0
        %1474 = vmatpush.xpose.msra.mxu0 0.0
        %1475 = vmatpush.xpose.msra.mxu0 0.0
        %1476 = vmatpush.xpose.msra.mxu0 %v1460
        %1477 = vmatpush.xpose.msra.mxu0 %v1458
        %1478 = vmatmul.f32.gmra.mxu0 %v1456
        %v1479 = vpop.f32.mrf.mxu0
        %v1480 = vadd.f32 0.0, %v1479
        %1481 = vdwg.mxu0
        %v1482 = vsel %vm637, %v1480, -inf
        %1483 = vmax.xlane.f32.xlu0 %v1482
        %v1484 = vpop.xlane.xlu0 %1483
        %v1485 = vsub.f32 %v1480, %v1484
        %v1486 = vmul.f32 %v1485, 1.442695
        %v1487 = vpow.pop %v1486
        %v1488 = vsel %vm637, %v1487, 0.0
        %1489 = vadd.xlane.f32.xlu0 %v1488
        %v1490 = vpop.xlane.xlu0 %1489
        %v1491 = vrcp.pop %v1490
        %v1492 = vmul.f32 %v1487, %v1491
        %1493 = vrot.lane.b32.xlu0 %v1258, 32
        %v1494 = vpop.permute.xlu0 %1493
        %1495 = vrot.lane.b32.xlu0 %v1261, 32
        %v1496 = vpop.permute.xlu0 %1495
        %v1500 = vsel %vm637, %v1492, 0
        %1502 = vmatpush.msra.mxu0 0.0
        %1503 = vmatpush.msra.mxu0 0.0
        %1504 = vmatpush.msra.mxu0 0.0
        %1505 = vmatpush.msra.mxu0 0.0
        %1506 = vmatpush.msra.mxu0 0.0
        %1507 = vmatpush.msra.mxu0 0.0
        %1508 = vmatpush.msra.mxu0 0.0
        %1509 = vmatpush.msra.mxu0 0.0
        %1510 = vmatpush.msra.mxu0 0.0
        %1511 = vmatpush.msra.mxu0 0.0
        %1512 = vmatpush.msra.mxu0 0.0
        %1513 = vmatpush.msra.mxu0 0.0
        %1514 = vmatpush.msra.mxu0 0.0
        %1515 = vmatpush.msra.mxu0 0.0
        %1516 = vmatpush.msra.mxu0 %v1496
        %1517 = vmatpush.msra.mxu0 %v1494
        %1518 = vmatmul.f32.gmra.mxu0 %v1500
        %v1519 = vpop.f32.mrf.mxu0
        %v1520 = vadd.f32 0.0, %v1519
        %1521 = vdwg.mxu0
        %v1523 = vsel %vm637, %v1520, 0
        %1525 = vmatpush.msra.mxu0 0.0
        %1526 = vmatpush.msra.mxu0 0.0
        %1527 = vmatpush.msra.mxu0 0.0
        %1528 = vmatpush.msra.mxu0 0.0
        %1529 = vmatpush.msra.mxu0 0.0
        %1530 = vmatpush.msra.mxu0 0.0
        %1531 = vmatpush.msra.mxu0 0.0
        %1532 = vmatpush.msra.mxu0 0.0
        %1533 = vmatpush.msra.mxu0 0.0
        %1534 = vmatpush.msra.mxu0 0.0
        %1535 = vmatpush.msra.mxu0 0.0
        %1536 = vmatpush.msra.mxu0 0.0
        %1537 = vmatpush.msra.mxu0 0.0
        %1538 = vmatpush.msra.mxu0 0.0
        %1539 = vmatpush.msra.mxu0 %v1143
        %1540 = vmatpush.msra.mxu0 %v1142
        %1541 = vmatmul.f32.gmra.mxu0 %v1523
        %v1542 = vpop.f32.mrf.mxu0
        %v1543 = vadd.f32 0.0, %v1542
        %1544 = vdwg.mxu0
        %v1545 = vadd.f32 %v1448, %v1543
        %1546 = vrot.lane.b32.xlu0 %v1167, 80
        %v1547 = vpop.permute.xlu0 %1546
        %1548 = vrot.lane.b32.xlu0 %v1258, 80
        %v1549 = vpop.permute.xlu0 %1548
        %1550 = vrot.lane.b32.xlu0 %v1261, 80
        %v1551 = vpop.permute.xlu0 %1550
        %v1552 = vsel %vm637, %v1547, 0
        %v1554 = vsel %vm637, %v1549, 0
        %v1556 = vsel %vm637, %v1551, 0
        %1558 = vmatpush.xpose.msra.mxu0 0.0
        %1559 = vmatpush.xpose.msra.mxu0 0.0
        %1560 = vmatpush.xpose.msra.mxu0 0.0
        %1561 = vmatpush.xpose.msra.mxu0 0.0
        %1562 = vmatpush.xpose.msra.mxu0 0.0
        %1563 = vmatpush.xpose.msra.mxu0 0.0
        %1564 = vmatpush.xpose.msra.mxu0 0.0
        %1565 = vmatpush.xpose.msra.mxu0 0.0
        %1566 = vmatpush.xpose.msra.mxu0 0.0
        %1567 = vmatpush.xpose.msra.mxu0 0.0
        %1568 = vmatpush.xpose.msra.mxu0 0.0
        %1569 = vmatpush.xpose.msra.mxu0 0.0
        %1570 = vmatpush.xpose.msra.mxu0 0.0
        %1571 = vmatpush.xpose.msra.mxu0 0.0
        %1572 = vmatpush.xpose.msra.mxu0 %v1556
        %1573 = vmatpush.xpose.msra.mxu0 %v1554
        %1574 = vmatmul.f32.gmra.mxu0 %v1552
        %v1575 = vpop.f32.mrf.mxu0
        %v1576 = vadd.f32 0.0, %v1575
        %1577 = vdwg.mxu0
        %v1578 = vsel %vm637, %v1576, -inf
        %1579 = vmax.xlane.f32.xlu0 %v1578
        %v1580 = vpop.xlane.xlu0 %1579
        %v1581 = vsub.f32 %v1576, %v1580
        %v1582 = vmul.f32 %v1581, 1.442695
        %v1583 = vpow.pop %v1582
        %v1584 = vsel %vm637, %v1583, 0.0
        %1585 = vadd.xlane.f32.xlu0 %v1584
        %v1586 = vpop.xlane.xlu0 %1585
        %v1587 = vrcp.pop %v1586
        %v1588 = vmul.f32 %v1583, %v1587
        %1589 = vrot.lane.b32.xlu0 %v1258, 16
        %v1590 = vpop.permute.xlu0 %1589
        %1591 = vrot.lane.b32.xlu0 %v1261, 16
        %v1592 = vpop.permute.xlu0 %1591
        %v1596 = vsel %vm637, %v1588, 0
        %1598 = vmatpush.msra.mxu0 0.0
        %1599 = vmatpush.msra.mxu0 0.0
        %1600 = vmatpush.msra.mxu0 0.0
        %1601 = vmatpush.msra.mxu0 0.0
        %1602 = vmatpush.msra.mxu0 0.0
        %1603 = vmatpush.msra.mxu0 0.0
        %1604 = vmatpush.msra.mxu0 0.0
        %1605 = vmatpush.msra.mxu0 0.0
        %1606 = vmatpush.msra.mxu0 0.0
        %1607 = vmatpush.msra.mxu0 0.0
        %1608 = vmatpush.msra.mxu0 0.0
        %1609 = vmatpush.msra.mxu0 0.0
        %1610 = vmatpush.msra.mxu0 0.0
        %1611 = vmatpush.msra.mxu0 0.0
        %1612 = vmatpush.msra.mxu0 %v1592
        %1613 = vmatpush.msra.mxu0 %v1590
        %1614 = vmatmul.f32.gmra.mxu0 %v1596
        %v1615 = vpop.f32.mrf.mxu0
        %v1616 = vadd.f32 0.0, %v1615
        %1617 = vdwg.mxu0
        %v1619 = vsel %vm637, %v1616, 0
        %1621 = vmatpush.msra.mxu0 0.0
        %1622 = vmatpush.msra.mxu0 0.0
        %1623 = vmatpush.msra.mxu0 0.0
        %1624 = vmatpush.msra.mxu0 0.0
        %1625 = vmatpush.msra.mxu0 0.0
        %1626 = vmatpush.msra.mxu0 0.0
        %1627 = vmatpush.msra.mxu0 0.0
        %1628 = vmatpush.msra.mxu0 0.0
        %1629 = vmatpush.msra.mxu0 0.0
        %1630 = vmatpush.msra.mxu0 0.0
        %1631 = vmatpush.msra.mxu0 0.0
        %1632 = vmatpush.msra.mxu0 0.0
        %1633 = vmatpush.msra.mxu0 0.0
        %1634 = vmatpush.msra.mxu0 0.0
        %1635 = vmatpush.msra.mxu0 %v1145
        %1636 = vmatpush.msra.mxu0 %v1144
        %1637 = vmatmul.f32.gmra.mxu0 %v1619
        %v1638 = vpop.f32.mrf.mxu0
        %v1639 = vadd.f32 0.0, %v1638
        %1640 = vdwg.mxu0
        %v1641 = vadd.f32 %v1545, %v1639
        %s1642 = scalar_lea.vmem %s5, 1
        %v1643 = vld [vmem:[%s1642] sm:$0x1]
        %v1645 = vperm.slane %v1643, 0
        %v1647 = vadd.f32 %v1641, %v1645
        %s1648 = scalar_lea.vmem %s2, 256
        %v1649 = vld [vmem:[%s1648] sm:$0xff]
        %v1650 = vld [vmem:[%s1648 + $0x8] sm:$0xff]
        %v1651 = vld [vmem:[%s1648 + $0x10] sm:$0xff]
        %v1652 = vld [vmem:[%s1648 + $0x18] sm:$0xff]
        %v1653 = vld [vmem:[%s1648 + $0x20] sm:$0xff]
        %v1654 = vld [vmem:[%s1648 + $0x28] sm:$0xff]
        %v1655 = vld [vmem:[%s1648 + $0x30] sm:$0xff]
        %v1656 = vld [vmem:[%s1648 + $0x38] sm:$0xff]
        %v1657 = vld [vmem:[%s1648 + $0x40] sm:$0xff]
        %v1658 = vld [vmem:[%s1648 + $0x48] sm:$0xff]
        %v1659 = vld [vmem:[%s1648 + $0x50] sm:$0xff]
        %v1660 = vld [vmem:[%s1648 + $0x58] sm:$0xff]
        %v1661 = vld [vmem:[%s1648 + $0x60] sm:$0xff]
        %v1662 = vld [vmem:[%s1648 + $0x68] sm:$0xff]
        %v1663 = vld [vmem:[%s1648 + $0x70] sm:$0xff]
        %v1664 = vld [vmem:[%s1648 + $0x78] sm:$0xff]
        %s1665 = scalar_lea.vmem %s3, 4
        %v1666 = vld [vmem:[%s1665] sm:$0x3]
        %s1667 = scalar_lea.vmem %s4, 128
        %v1668 = vld [vmem:[%s1667] sm:$0xff]
        %v1669 = vld [vmem:[%s1667 + $0x8] sm:$0xff]
        %v1670 = vld [vmem:[%s1667 + $0x10] sm:$0xff]
        %v1671 = vld [vmem:[%s1667 + $0x18] sm:$0xff]
        %v1672 = vld [vmem:[%s1667 + $0x20] sm:$0xff]
        %v1673 = vld [vmem:[%s1667 + $0x28] sm:$0xff]
        %v1674 = vld [vmem:[%s1667 + $0x30] sm:$0xff]
        %v1675 = vld [vmem:[%s1667 + $0x38] sm:$0xff]
        %v1677 = vperm.slane %v1666, 0
        %v1680 = vsel %vm513, %v1116, 0
        %v1683 = vsel %vm513, %v1117, 0
        %1685 = vmatpush.msra.mxu0 0.0
        %1686 = vmatpush.msra.mxu0 0.0
        %1687 = vmatpush.msra.mxu0 0.0
        %1688 = vmatpush.msra.mxu0 0.0
        %1689 = vmatpush.msra.mxu0 0.0
        %1690 = vmatpush.msra.mxu0 0.0
        %1691 = vmatpush.msra.mxu0 0.0
        %1692 = vmatpush.msra.mxu0 0.0
        %1693 = vmatpush.msra.mxu0 %v1663
        %1694 = vmatpush.msra.mxu0 %v1661
        %1695 = vmatpush.msra.mxu0 %v1659
        %1696 = vmatpush.msra.mxu0 %v1657
        %1697 = vmatpush.msra.mxu0 %v1655
        %1698 = vmatpush.msra.mxu0 %v1653
        %1699 = vmatpush.msra.mxu0 %v1651
        %1700 = vmatpush.msra.mxu0 %v1649
        %1701 = vmatmul.f32.gmra.mxu0 %v1680
        %v1702 = vpop.f32.mrf.mxu0
        %v1703 = vadd.f32 %v1677, %v1702
        %1704 = vmatmul.f32.gmra.mxu0 %v1683
        %v1705 = vpop.f32.mrf.mxu0
        %v1706 = vadd.f32 %v1677, %v1705
        %1707 = vdwg.mxu0
        %v1708 = vperm.slane %v1666, 1
        %1725 = vrot.lane.b32.xlu0 %v1649, 64
        %v1726 = vpop.permute.xlu0 %1725
        %1727 = vrot.lane.b32.xlu0 %v1650, 64
        %v1728 = vpop.permute.xlu0 %1727
        %1729 = vrot.lane.b32.xlu0 %v1651, 64
        %v1730 = vpop.permute.xlu0 %1729
        %1731 = vrot.lane.b32.xlu0 %v1652, 64
        %v1732 = vpop.permute.xlu0 %1731
        %1733 = vrot.lane.b32.xlu0 %v1653, 64
        %v1734 = vpop.permute.xlu0 %1733
        %1735 = vrot.lane.b32.xlu0 %v1654, 64
        %v1736 = vpop.permute.xlu0 %1735
        %1737 = vrot.lane.b32.xlu0 %v1655, 64
        %v1738 = vpop.permute.xlu0 %1737
        %1739 = vrot.lane.b32.xlu0 %v1656, 64
        %v1740 = vpop.permute.xlu0 %1739
        %1741 = vrot.lane.b32.xlu0 %v1657, 64
        %v1742 = vpop.permute.xlu0 %1741
        %1743 = vrot.lane.b32.xlu0 %v1658, 64
        %v1744 = vpop.permute.xlu0 %1743
        %1745 = vrot.lane.b32.xlu0 %v1659, 64
        %v1746 = vpop.permute.xlu0 %1745
        %1747 = vrot.lane.b32.xlu0 %v1660, 64
        %v1748 = vpop.permute.xlu0 %1747
        %1749 = vrot.lane.b32.xlu0 %v1661, 64
        %v1750 = vpop.permute.xlu0 %1749
        %1751 = vrot.lane.b32.xlu0 %v1662, 64
        %v1752 = vpop.permute.xlu0 %1751
        %1753 = vrot.lane.b32.xlu0 %v1663, 64
        %v1754 = vpop.permute.xlu0 %1753
        %1755 = vrot.lane.b32.xlu0 %v1664, 64
        %v1756 = vpop.permute.xlu0 %1755
        %v1757 = vsel %vm513, %v1726, %v1728
        %v1758 = vsel %vm513, %v1730, %v1732
        %v1759 = vsel %vm513, %v1734, %v1736
        %v1760 = vsel %vm513, %v1738, %v1740
        %v1761 = vsel %vm513, %v1742, %v1744
        %v1762 = vsel %vm513, %v1746, %v1748
        %v1763 = vsel %vm513, %v1750, %v1752
        %v1764 = vsel %vm513, %v1754, %v1756
        %1773 = vrot.lane.b32.xlu0 %v1677, 64
        %v1774 = vpop.permute.xlu0 %1773
        %1775 = vrot.lane.b32.xlu0 %v1708, 64
        %v1776 = vpop.permute.xlu0 %1775
        %v1777 = vsel %vm513, %v1774, %v1776
        %1779 = vmatpush.msra.mxu0 0.0
        %1780 = vmatpush.msra.mxu0 0.0
        %1781 = vmatpush.msra.mxu0 0.0
        %1782 = vmatpush.msra.mxu0 0.0
        %1783 = vmatpush.msra.mxu0 0.0
        %1784 = vmatpush.msra.mxu0 0.0
        %1785 = vmatpush.msra.mxu0 0.0
        %1786 = vmatpush.msra.mxu0 0.0
        %1787 = vmatpush.msra.mxu0 %v1764
        %1788 = vmatpush.msra.mxu0 %v1763
        %1789 = vmatpush.msra.mxu0 %v1762
        %1790 = vmatpush.msra.mxu0 %v1761
        %1791 = vmatpush.msra.mxu0 %v1760
        %1792 = vmatpush.msra.mxu0 %v1759
        %1793 = vmatpush.msra.mxu0 %v1758
        %1794 = vmatpush.msra.mxu0 %v1757
        %1795 = vmatmul.f32.gmra.mxu0 %v1680
        %v1796 = vpop.f32.mrf.mxu0
        %v1797 = vadd.f32 %v1777, %v1796
        %1798 = vmatmul.f32.gmra.mxu0 %v1683
        %v1799 = vpop.f32.mrf.mxu0
        %v1800 = vadd.f32 %v1777, %v1799
        %1801 = vdwg.mxu0
        %v1803 = vsel %vm637, %v1703, 0
        %v1806 = vsel %vm637, %v1706, 0
        %v1809 = vsel %vm637, %v1797, 0
        %v1812 = vsel %vm637, %v1800, 0
        %1814 = vmatpush.xpose.msra.mxu0 0.0
        %1815 = vmatpush.xpose.msra.mxu0 0.0
        %1816 = vmatpush.xpose.msra.mxu0 0.0
        %1817 = vmatpush.xpose.msra.mxu0 0.0
        %1818 = vmatpush.xpose.msra.mxu0 0.0
        %1819 = vmatpush.xpose.msra.mxu0 0.0
        %1820 = vmatpush.xpose.msra.mxu0 0.0
        %1821 = vmatpush.xpose.msra.mxu0 0.0
        %1822 = vmatpush.xpose.msra.mxu0 0.0
        %1823 = vmatpush.xpose.msra.mxu0 0.0
        %1824 = vmatpush.xpose.msra.mxu0 0.0
        %1825 = vmatpush.xpose.msra.mxu0 0.0
        %1826 = vmatpush.xpose.msra.mxu0 0.0
        %1827 = vmatpush.xpose.msra.mxu0 0.0
        %1828 = vmatpush.xpose.msra.mxu0 %v1812
        %1829 = vmatpush.xpose.msra.mxu0 %v1809
        %1830 = vmatmul.f32.gmra.mxu0 %v1803
        %v1831 = vpop.f32.mrf.mxu0
        %v1832 = vadd.f32 0.0, %v1831
        %1833 = vmatmul.f32.gmra.mxu0 %v1806
        %v1834 = vpop.f32.mrf.mxu0
        %v1835 = vadd.f32 0.0, %v1834
        %1836 = vdwg.mxu0
        %v1837 = vsel %vm637, %v1832, -inf
        %1838 = vmax.xlane.f32.xlu0 %v1837
        %v1839 = vpop.xlane.xlu0 %1838
        %v1840 = vsel %vm637, %v1835, -inf
        %1841 = vmax.xlane.f32.xlu0 %v1840
        %v1842 = vpop.xlane.xlu0 %1841
        %v1843 = vsub.f32 %v1832, %v1839
        %v1844 = vsub.f32 %v1835, %v1842
        %v1845 = vmul.f32 %v1843, 1.442695
        %v1846 = vpow.pop %v1845
        %v1847 = vmul.f32 %v1844, 1.442695
        %v1848 = vpow.pop %v1847
        %v1849 = vsel %vm637, %v1846, 0.0
        %1850 = vadd.xlane.f32.xlu0 %v1849
        %v1851 = vpop.xlane.xlu0 %1850
        %v1852 = vsel %vm637, %v1848, 0.0
        %1853 = vadd.xlane.f32.xlu0 %v1852
        %v1854 = vpop.xlane.xlu0 %1853
        %v1855 = vrcp.pop %v1851
        %v1856 = vrcp.pop %v1854
        %v1857 = vmul.f32 %v1846, %v1855
        %v1858 = vmul.f32 %v1848, %v1856
        %1859 = vrot.lane.b32.xlu0 %v1797, 64
        %v1860 = vpop.permute.xlu0 %1859
        %1861 = vrot.lane.b32.xlu0 %v1800, 64
        %v1862 = vpop.permute.xlu0 %1861
        %v1866 = vsel %vm637, %v1857, 0
        %v1869 = vsel %vm637, %v1858, 0
        %1871 = vmatpush.msra.mxu0 0.0
        %1872 = vmatpush.msra.mxu0 0.0
        %1873 = vmatpush.msra.mxu0 0.0
        %1874 = vmatpush.msra.mxu0 0.0
        %1875 = vmatpush.msra.mxu0 0.0
        %1876 = vmatpush.msra.mxu0 0.0
        %1877 = vmatpush.msra.mxu0 0.0
        %1878 = vmatpush.msra.mxu0 0.0
        %1879 = vmatpush.msra.mxu0 0.0
        %1880 = vmatpush.msra.mxu0 0.0
        %1881 = vmatpush.msra.mxu0 0.0
        %1882 = vmatpush.msra.mxu0 0.0
        %1883 = vmatpush.msra.mxu0 0.0
        %1884 = vmatpush.msra.mxu0 0.0
        %1885 = vmatpush.msra.mxu0 %v1862
        %1886 = vmatpush.msra.mxu0 %v1860
        %1887 = vmatmul.f32.gmra.mxu0 %v1866
        %v1888 = vpop.f32.mrf.mxu0
        %v1889 = vadd.f32 0.0, %v1888
        %1890 = vmatmul.f32.gmra.mxu0 %v1869
        %v1891 = vpop.f32.mrf.mxu0
        %v1892 = vadd.f32 0.0, %v1891
        %1893 = vdwg.mxu0
        %1894 = vrot.lane.b32.xlu0 %v1703, 112
        %v1895 = vpop.permute.xlu0 %1894
        %1896 = vrot.lane.b32.xlu0 %v1706, 112
        %v1897 = vpop.permute.xlu0 %1896
        %1898 = vrot.lane.b32.xlu0 %v1797, 112
        %v1899 = vpop.permute.xlu0 %1898
        %1900 = vrot.lane.b32.xlu0 %v1800, 112
        %v1901 = vpop.permute.xlu0 %1900
        %v1902 = vsel %vm637, %v1895, 0
        %v1904 = vsel %vm637, %v1897, 0
        %v1906 = vsel %vm637, %v1899, 0
        %v1908 = vsel %vm637, %v1901, 0
        %1910 = vmatpush.xpose.msra.mxu0 0.0
        %1911 = vmatpush.xpose.msra.mxu0 0.0
        %1912 = vmatpush.xpose.msra.mxu0 0.0
        %1913 = vmatpush.xpose.msra.mxu0 0.0
        %1914 = vmatpush.xpose.msra.mxu0 0.0
        %1915 = vmatpush.xpose.msra.mxu0 0.0
        %1916 = vmatpush.xpose.msra.mxu0 0.0
        %1917 = vmatpush.xpose.msra.mxu0 0.0
        %1918 = vmatpush.xpose.msra.mxu0 0.0
        %1919 = vmatpush.xpose.msra.mxu0 0.0
        %1920 = vmatpush.xpose.msra.mxu0 0.0
        %1921 = vmatpush.xpose.msra.mxu0 0.0
        %1922 = vmatpush.xpose.msra.mxu0 0.0
        %1923 = vmatpush.xpose.msra.mxu0 0.0
        %1924 = vmatpush.xpose.msra.mxu0 %v1908
        %1925 = vmatpush.xpose.msra.mxu0 %v1906
        %1926 = vmatmul.f32.gmra.mxu0 %v1902
        %v1927 = vpop.f32.mrf.mxu0
        %v1928 = vadd.f32 0.0, %v1927
        %1929 = vmatmul.f32.gmra.mxu0 %v1904
        %v1930 = vpop.f32.mrf.mxu0
        %v1931 = vadd.f32 0.0, %v1930
        %1932 = vdwg.mxu0
        %v1933 = vsel %vm637, %v1928, -inf
        %1934 = vmax.xlane.f32.xlu0 %v1933
        %v1935 = vpop.xlane.xlu0 %1934
        %v1936 = vsel %vm637, %v1931, -inf
        %1937 = vmax.xlane.f32.xlu0 %v1936
        %v1938 = vpop.xlane.xlu0 %1937
        %v1939 = vsub.f32 %v1928, %v1935
        %v1940 = vsub.f32 %v1931, %v1938
        %v1941 = vmul.f32 %v1939, 1.442695
        %v1942 = vpow.pop %v1941
        %v1943 = vmul.f32 %v1940, 1.442695
        %v1944 = vpow.pop %v1943
        %v1945 = vsel %vm637, %v1942, 0.0
        %1946 = vadd.xlane.f32.xlu0 %v1945
        %v1947 = vpop.xlane.xlu0 %1946
        %v1948 = vsel %vm637, %v1944, 0.0
        %1949 = vadd.xlane.f32.xlu0 %v1948
        %v1950 = vpop.xlane.xlu0 %1949
        %v1951 = vrcp.pop %v1947
        %v1952 = vrcp.pop %v1950
        %v1953 = vmul.f32 %v1942, %v1951
        %v1954 = vmul.f32 %v1944, %v1952
        %1955 = vrot.lane.b32.xlu0 %v1797, 48
        %v1956 = vpop.permute.xlu0 %1955
        %1957 = vrot.lane.b32.xlu0 %v1800, 48
        %v1958 = vpop.permute.xlu0 %1957
        %v1962 = vsel %vm637, %v1953, 0
        %v1965 = vsel %vm637, %v1954, 0
        %1967 = vmatpush.msra.mxu0 0.0
        %1968 = vmatpush.msra.mxu0 0.0
        %1969 = vmatpush.msra.mxu0 0.0
        %1970 = vmatpush.msra.mxu0 0.0
        %1971 = vmatpush.msra.mxu0 0.0
        %1972 = vmatpush.msra.mxu0 0.0
        %1973 = vmatpush.msra.mxu0 0.0
        %1974 = vmatpush.msra.mxu0 0.0
        %1975 = vmatpush.msra.mxu0 0.0
        %1976 = vmatpush.msra.mxu0 0.0
        %1977 = vmatpush.msra.mxu0 0.0
        %1978 = vmatpush.msra.mxu0 0.0
        %1979 = vmatpush.msra.mxu0 0.0
        %1980 = vmatpush.msra.mxu0 0.0
        %1981 = vmatpush.msra.mxu0 %v1958
        %1982 = vmatpush.msra.mxu0 %v1956
        %1983 = vmatmul.f32.gmra.mxu0 %v1962
        %v1984 = vpop.f32.mrf.mxu0
        %v1985 = vadd.f32 0.0, %v1984
        %1986 = vmatmul.f32.gmra.mxu0 %v1965
        %v1987 = vpop.f32.mrf.mxu0
        %v1988 = vadd.f32 0.0, %v1987
        %1989 = vdwg.mxu0
        %v1991 = vsel %vm637, %v1985, 0
        %v1994 = vsel %vm637, %v1988, 0
        %1996 = vmatpush.msra.mxu0 0.0
        %1997 = vmatpush.msra.mxu0 0.0
        %1998 = vmatpush.msra.mxu0 0.0
        %1999 = vmatpush.msra.mxu0 0.0
        %2000 = vmatpush.msra.mxu0 0.0
        %2001 = vmatpush.msra.mxu0 0.0
        %2002 = vmatpush.msra.mxu0 0.0
        %2003 = vmatpush.msra.mxu0 0.0
        %2004 = vmatpush.msra.mxu0 0.0
        %2005 = vmatpush.msra.mxu0 0.0
        %2006 = vmatpush.msra.mxu0 0.0
        %2007 = vmatpush.msra.mxu0 0.0
        %2008 = vmatpush.msra.mxu0 0.0
        %2009 = vmatpush.msra.mxu0 0.0
        %2010 = vmatpush.msra.mxu0 %v1671
        %2011 = vmatpush.msra.mxu0 %v1670
        %2012 = vmatmul.f32.gmra.mxu0 %v1991
        %v2013 = vpop.f32.mrf.mxu0
        %v2014 = vadd.f32 0.0, %v2013
        %2015 = vmatmul.f32.gmra.mxu0 %v1994
        %v2016 = vpop.f32.mrf.mxu0
        %v2017 = vadd.f32 0.0, %v2016
        %2018 = vdwg.mxu0
        %v2020 = vsel %vm637, %v1889, 0
        %v2023 = vsel %vm637, %v1892, 0
        %2025 = vmatpush.msra.mxu0 0.0
        %2026 = vmatpush.msra.mxu0 0.0
        %2027 = vmatpush.msra.mxu0 0.0
        %2028 = vmatpush.msra.mxu0 0.0
        %2029 = vmatpush.msra.mxu0 0.0
        %2030 = vmatpush.msra.mxu0 0.0
        %2031 = vmatpush.msra.mxu0 0.0
        %2032 = vmatpush.msra.mxu0 0.0
        %2033 = vmatpush.msra.mxu0 0.0
        %2034 = vmatpush.msra.mxu0 0.0
        %2035 = vmatpush.msra.mxu0 0.0
        %2036 = vmatpush.msra.mxu0 0.0
        %2037 = vmatpush.msra.mxu0 0.0
        %2038 = vmatpush.msra.mxu0 0.0
        %2039 = vmatpush.msra.mxu0 %v1669
        %2040 = vmatpush.msra.mxu0 %v1668
        %2041 = vmatmul.f32.gmra.mxu0 %v2020
        %v2042 = vpop.f32.mrf.mxu0
        %v2043 = vadd.f32 %v2014, %v2042
        %2044 = vmatmul.f32.gmra.mxu0 %v2023
        %v2045 = vpop.f32.mrf.mxu0
        %v2046 = vadd.f32 %v2017, %v2045
        %2047 = vdwg.mxu0
        %2048 = vrot.lane.b32.xlu0 %v1703, 96
        %v2049 = vpop.permute.xlu0 %2048
        %2050 = vrot.lane.b32.xlu0 %v1706, 96
        %v2051 = vpop.permute.xlu0 %2050
        %2052 = vrot.lane.b32.xlu0 %v1797, 96
        %v2053 = vpop.permute.xlu0 %2052
        %2054 = vrot.lane.b32.xlu0 %v1800, 96
        %v2055 = vpop.permute.xlu0 %2054
        %v2056 = vsel %vm637, %v2049, 0
        %v2058 = vsel %vm637, %v2051, 0
        %v2060 = vsel %vm637, %v2053, 0
        %v2062 = vsel %vm637, %v2055, 0
        %2064 = vmatpush.xpose.msra.mxu0 0.0
        %2065 = vmatpush.xpose.msra.mxu0 0.0
        %2066 = vmatpush.xpose.msra.mxu0 0.0
        %2067 = vmatpush.xpose.msra.mxu0 0.0
        %2068 = vmatpush.xpose.msra.mxu0 0.0
        %2069 = vmatpush.xpose.msra.mxu0 0.0
        %2070 = vmatpush.xpose.msra.mxu0 0.0
        %2071 = vmatpush.xpose.msra.mxu0 0.0
        %2072 = vmatpush.xpose.msra.mxu0 0.0
        %2073 = vmatpush.xpose.msra.mxu0 0.0
        %2074 = vmatpush.xpose.msra.mxu0 0.0
        %2075 = vmatpush.xpose.msra.mxu0 0.0
        %2076 = vmatpush.xpose.msra.mxu0 0.0
        %2077 = vmatpush.xpose.msra.mxu0 0.0
        %2078 = vmatpush.xpose.msra.mxu0 %v2062
        %2079 = vmatpush.xpose.msra.mxu0 %v2060
        %2080 = vmatmul.f32.gmra.mxu0 %v2056
        %v2081 = vpop.f32.mrf.mxu0
        %v2082 = vadd.f32 0.0, %v2081
        %2083 = vmatmul.f32.gmra.mxu0 %v2058
        %v2084 = vpop.f32.mrf.mxu0
        %v2085 = vadd.f32 0.0, %v2084
        %2086 = vdwg.mxu0
        %v2087 = vsel %vm637, %v2082, -inf
        %2088 = vmax.xlane.f32.xlu0 %v2087
        %v2089 = vpop.xlane.xlu0 %2088
        %v2090 = vsel %vm637, %v2085, -inf
        %2091 = vmax.xlane.f32.xlu0 %v2090
        %v2092 = vpop.xlane.xlu0 %2091
        %v2093 = vsub.f32 %v2082, %v2089
        %v2094 = vsub.f32 %v2085, %v2092
        %v2095 = vmul.f32 %v2093, 1.442695
        %v2096 = vpow.pop %v2095
        %v2097 = vmul.f32 %v2094, 1.442695
        %v2098 = vpow.pop %v2097
        %v2099 = vsel %vm637, %v2096, 0.0
        %2100 = vadd.xlane.f32.xlu0 %v2099
        %v2101 = vpop.xlane.xlu0 %2100
        %v2102 = vsel %vm637, %v2098, 0.0
        %2103 = vadd.xlane.f32.xlu0 %v2102
        %v2104 = vpop.xlane.xlu0 %2103
        %v2105 = vrcp.pop %v2101
        %v2106 = vrcp.pop %v2104
        %v2107 = vmul.f32 %v2096, %v2105
        %v2108 = vmul.f32 %v2098, %v2106
        %2109 = vrot.lane.b32.xlu0 %v1797, 32
        %v2110 = vpop.permute.xlu0 %2109
        %2111 = vrot.lane.b32.xlu0 %v1800, 32
        %v2112 = vpop.permute.xlu0 %2111
        %v2116 = vsel %vm637, %v2107, 0
        %v2119 = vsel %vm637, %v2108, 0
        %2121 = vmatpush.msra.mxu0 0.0
        %2122 = vmatpush.msra.mxu0 0.0
        %2123 = vmatpush.msra.mxu0 0.0
        %2124 = vmatpush.msra.mxu0 0.0
        %2125 = vmatpush.msra.mxu0 0.0
        %2126 = vmatpush.msra.mxu0 0.0
        %2127 = vmatpush.msra.mxu0 0.0
        %2128 = vmatpush.msra.mxu0 0.0
        %2129 = vmatpush.msra.mxu0 0.0
        %2130 = vmatpush.msra.mxu0 0.0
        %2131 = vmatpush.msra.mxu0 0.0
        %2132 = vmatpush.msra.mxu0 0.0
        %2133 = vmatpush.msra.mxu0 0.0
        %2134 = vmatpush.msra.mxu0 0.0
        %2135 = vmatpush.msra.mxu0 %v2112
        %2136 = vmatpush.msra.mxu0 %v2110
        %2137 = vmatmul.f32.gmra.mxu0 %v2116
        %v2138 = vpop.f32.mrf.mxu0
        %v2139 = vadd.f32 0.0, %v2138
        %2140 = vmatmul.f32.gmra.mxu0 %v2119
        %v2141 = vpop.f32.mrf.mxu0
        %v2142 = vadd.f32 0.0, %v2141
        %2143 = vdwg.mxu0
        %v2145 = vsel %vm637, %v2139, 0
        %v2148 = vsel %vm637, %v2142, 0
        %2150 = vmatpush.msra.mxu0 0.0
        %2151 = vmatpush.msra.mxu0 0.0
        %2152 = vmatpush.msra.mxu0 0.0
        %2153 = vmatpush.msra.mxu0 0.0
        %2154 = vmatpush.msra.mxu0 0.0
        %2155 = vmatpush.msra.mxu0 0.0
        %2156 = vmatpush.msra.mxu0 0.0
        %2157 = vmatpush.msra.mxu0 0.0
        %2158 = vmatpush.msra.mxu0 0.0
        %2159 = vmatpush.msra.mxu0 0.0
        %2160 = vmatpush.msra.mxu0 0.0
        %2161 = vmatpush.msra.mxu0 0.0
        %2162 = vmatpush.msra.mxu0 0.0
        %2163 = vmatpush.msra.mxu0 0.0
        %2164 = vmatpush.msra.mxu0 %v1673
        %2165 = vmatpush.msra.mxu0 %v1672
        %2166 = vmatmul.f32.gmra.mxu0 %v2145
        %v2167 = vpop.f32.mrf.mxu0
        %v2168 = vadd.f32 0.0, %v2167
        %2169 = vmatmul.f32.gmra.mxu0 %v2148
        %v2170 = vpop.f32.mrf.mxu0
        %v2171 = vadd.f32 0.0, %v2170
        %2172 = vdwg.mxu0
        %v2173 = vadd.f32 %v2043, %v2168
        %v2174 = vadd.f32 %v2046, %v2171
        %2175 = vrot.lane.b32.xlu0 %v1703, 80
        %v2176 = vpop.permute.xlu0 %2175
        %2177 = vrot.lane.b32.xlu0 %v1706, 80
        %v2178 = vpop.permute.xlu0 %2177
        %2179 = vrot.lane.b32.xlu0 %v1797, 80
        %v2180 = vpop.permute.xlu0 %2179
        %2181 = vrot.lane.b32.xlu0 %v1800, 80
        %v2182 = vpop.permute.xlu0 %2181
        %v2183 = vsel %vm637, %v2176, 0
        %v2185 = vsel %vm637, %v2178, 0
        %v2187 = vsel %vm637, %v2180, 0
        %v2189 = vsel %vm637, %v2182, 0
        %2191 = vmatpush.xpose.msra.mxu0 0.0
        %2192 = vmatpush.xpose.msra.mxu0 0.0
        %2193 = vmatpush.xpose.msra.mxu0 0.0
        %2194 = vmatpush.xpose.msra.mxu0 0.0
        %2195 = vmatpush.xpose.msra.mxu0 0.0
        %2196 = vmatpush.xpose.msra.mxu0 0.0
        %2197 = vmatpush.xpose.msra.mxu0 0.0
        %2198 = vmatpush.xpose.msra.mxu0 0.0
        %2199 = vmatpush.xpose.msra.mxu0 0.0
        %2200 = vmatpush.xpose.msra.mxu0 0.0
        %2201 = vmatpush.xpose.msra.mxu0 0.0
        %2202 = vmatpush.xpose.msra.mxu0 0.0
        %2203 = vmatpush.xpose.msra.mxu0 0.0
        %2204 = vmatpush.xpose.msra.mxu0 0.0
        %2205 = vmatpush.xpose.msra.mxu0 %v2189
        %2206 = vmatpush.xpose.msra.mxu0 %v2187
        %2207 = vmatmul.f32.gmra.mxu0 %v2183
        %v2208 = vpop.f32.mrf.mxu0
        %v2209 = vadd.f32 0.0, %v2208
        %2210 = vmatmul.f32.gmra.mxu0 %v2185
        %v2211 = vpop.f32.mrf.mxu0
        %v2212 = vadd.f32 0.0, %v2211
        %2213 = vdwg.mxu0
        %v2214 = vsel %vm637, %v2209, -inf
        %2215 = vmax.xlane.f32.xlu0 %v2214
        %v2216 = vpop.xlane.xlu0 %2215
        %v2217 = vsel %vm637, %v2212, -inf
        %2218 = vmax.xlane.f32.xlu0 %v2217
        %v2219 = vpop.xlane.xlu0 %2218
        %v2220 = vsub.f32 %v2209, %v2216
        %v2221 = vsub.f32 %v2212, %v2219
        %v2222 = vmul.f32 %v2220, 1.442695
        %v2223 = vpow.pop %v2222
        %v2224 = vmul.f32 %v2221, 1.442695
        %v2225 = vpow.pop %v2224
        %v2226 = vsel %vm637, %v2223, 0.0
        %2227 = vadd.xlane.f32.xlu0 %v2226
        %v2228 = vpop.xlane.xlu0 %2227
        %v2229 = vsel %vm637, %v2225, 0.0
        %2230 = vadd.xlane.f32.xlu0 %v2229
        %v2231 = vpop.xlane.xlu0 %2230
        %v2232 = vrcp.pop %v2228
        %v2233 = vrcp.pop %v2231
        %v2234 = vmul.f32 %v2223, %v2232
        %v2235 = vmul.f32 %v2225, %v2233
        %2236 = vrot.lane.b32.xlu0 %v1797, 16
        %v2237 = vpop.permute.xlu0 %2236
        %2238 = vrot.lane.b32.xlu0 %v1800, 16
        %v2239 = vpop.permute.xlu0 %2238
        %v2243 = vsel %vm637, %v2234, 0
        %v2246 = vsel %vm637, %v2235, 0
        %2248 = vmatpush.msra.mxu0 0.0
        %2249 = vmatpush.msra.mxu0 0.0
        %2250 = vmatpush.msra.mxu0 0.0
        %2251 = vmatpush.msra.mxu0 0.0
        %2252 = vmatpush.msra.mxu0 0.0
        %2253 = vmatpush.msra.mxu0 0.0
        %2254 = vmatpush.msra.mxu0 0.0
        %2255 = vmatpush.msra.mxu0 0.0
        %2256 = vmatpush.msra.mxu0 0.0
        %2257 = vmatpush.msra.mxu0 0.0
        %2258 = vmatpush.msra.mxu0 0.0
        %2259 = vmatpush.msra.mxu0 0.0
        %2260 = vmatpush.msra.mxu0 0.0
        %2261 = vmatpush.msra.mxu0 0.0
        %2262 = vmatpush.msra.mxu0 %v2239
        %2263 = vmatpush.msra.mxu0 %v2237
        %2264 = vmatmul.f32.gmra.mxu0 %v2243
        %v2265 = vpop.f32.mrf.mxu0
        %v2266 = vadd.f32 0.0, %v2265
        %2267 = vmatmul.f32.gmra.mxu0 %v2246
        %v2268 = vpop.f32.mrf.mxu0
        %v2269 = vadd.f32 0.0, %v2268
        %2270 = vdwg.mxu0
        %v2272 = vsel %vm637, %v2266, 0
        %v2275 = vsel %vm637, %v2269, 0
        %2277 = vmatpush.msra.mxu0 0.0
        %2278 = vmatpush.msra.mxu0 0.0
        %2279 = vmatpush.msra.mxu0 0.0
        %2280 = vmatpush.msra.mxu0 0.0
        %2281 = vmatpush.msra.mxu0 0.0
        %2282 = vmatpush.msra.mxu0 0.0
        %2283 = vmatpush.msra.mxu0 0.0
        %2284 = vmatpush.msra.mxu0 0.0
        %2285 = vmatpush.msra.mxu0 0.0
        %2286 = vmatpush.msra.mxu0 0.0
        %2287 = vmatpush.msra.mxu0 0.0
        %2288 = vmatpush.msra.mxu0 0.0
        %2289 = vmatpush.msra.mxu0 0.0
        %2290 = vmatpush.msra.mxu0 0.0
        %2291 = vmatpush.msra.mxu0 %v1675
        %2292 = vmatpush.msra.mxu0 %v1674
        %2293 = vmatmul.f32.gmra.mxu0 %v2272
        %v2294 = vpop.f32.mrf.mxu0
        %v2295 = vadd.f32 0.0, %v2294
        %2296 = vmatmul.f32.gmra.mxu0 %v2275
        %v2297 = vpop.f32.mrf.mxu0
        %v2298 = vadd.f32 0.0, %v2297
        %2299 = vdwg.mxu0
        %v2300 = vadd.f32 %v2173, %v2295
        %v2301 = vadd.f32 %v2174, %v2298
        %s2302 = scalar_lea.vmem %s5, 2
        %v2303 = vld [vmem:[%s2302] sm:$0x1]
        %v2305 = vperm.slane %v2303, 0
        %v2307 = vadd.f32 %v2300, %v2305
        %v2308 = vadd.f32 %v2301, %v2305
        %v2309 = vadd.f32 %v1116, %v2307
        %v2310 = vadd.f32 %v1117, %v2308
        %v2311 = vsel %vm513, %v2309, 0.0
        %2312 = vadd.xlane.f32.xlu0 %v2311
        %v2313 = vpop.xlane.xlu0 %2312
        %v2314 = vsel %vm513, %v2310, 0.0
        %2315 = vadd.xlane.f32.xlu0 %v2314
        %v2316 = vpop.xlane.xlu0 %2315
        %v2317 = vrcp.pop 64.0
        %v2318 = vmul.f32 64.0, %v2317
        %v2319 = vsub.f32 1.0, %v2318
        %v2320 = vmul.f32 %v2317, %v2319
        %v2321 = vadd.f32 %v2317, %v2320
        %vm2322 = vweird.f32 %v2317
        %v2323 = vsel %vm2322, %v2317, %v2321
        %v2324 = vmul.f32 %v2313, %v2323
        %v2325 = vmul.f32 %v2316, %v2323
        %v2326 = vsub.f32 %v2309, %v2324
        %v2327 = vsub.f32 %v2310, %v2325
        %v2328 = vmul.f32 %v2326, %v2326
        %v2329 = vmul.f32 %v2327, %v2327
        %v2330 = vsel %vm513, %v2328, 0.0
        %2331 = vadd.xlane.f32.xlu0 %v2330
        %v2332 = vpop.xlane.xlu0 %2331
        %v2333 = vsel %vm513, %v2329, 0.0
        %2334 = vadd.xlane.f32.xlu0 %v2333
        %v2335 = vpop.xlane.xlu0 %2334
        %v2336 = vmul.f32 %v2332, %v2323
        %v2337 = vmul.f32 %v2335, %v2323
        %v2338 = vadd.f32 %v2336, 1e-05
        %v2339 = vadd.f32 %v2337, 1e-05
        %v2340 = vrsqrt.pop %v2338
        %v2341 = vmul.f32 %v2340, %v2338
        %v2342 = vmul.f32 %v2341, %v2340
        %v2343 = vmul.f32 0.5, %v2342
        %v2344 = vsub.f32 1.5, %v2343
        %v2345 = vmul.f32 %v2340, %v2344
        %vm2346 = vweird.f32 %v2338
        %vm2347 = vweird.f32 %v2340
        %vm2348 = vmor %vm2346, %vm2347
        %v2349 = vsel %vm2348, %v2340, %v2345
        %v2350 = vrsqrt.pop %v2339
        %v2351 = vmul.f32 %v2350, %v2339
        %v2352 = vmul.f32 %v2351, %v2350
        %v2353 = vmul.f32 0.5, %v2352
        %v2354 = vsub.f32 1.5, %v2353
        %v2355 = vmul.f32 %v2350, %v2354
        %vm2356 = vweird.f32 %v2339
        %vm2357 = vweird.f32 %v2350
        %vm2358 = vmor %vm2356, %vm2357
        %v2359 = vsel %vm2358, %v2350, %v2355
        %v2360 = vmul.f32 %v2326, %v2349
        %v2361 = vmul.f32 %v2327, %v2359
        %v2362 = vld [vmem:[%s10] sm:$0x1]
        %v2364 = vperm.slane %v2362, 0
        %v2366 = vmul.f32 %v2360, %v2364
        %v2367 = vmul.f32 %v2361, %v2364
        %v2368 = vld [vmem:[%s11] sm:$0x1]
        %v2370 = vperm.slane %v2368, 0
        %v2372 = vadd.f32 %v2366, %v2370
        %v2373 = vadd.f32 %v2367, %v2370
        %v2374 = vld [vmem:[%s6] sm:$0xff]
        %v2375 = vld [vmem:[%s6 + $0x8] sm:$0xff]
        %v2376 = vld [vmem:[%s6 + $0x10] sm:$0xff]
        %v2377 = vld [vmem:[%s6 + $0x18] sm:$0xff]
        %v2378 = vld [vmem:[%s6 + $0x20] sm:$0xff]
        %v2379 = vld [vmem:[%s6 + $0x28] sm:$0xff]
        %v2380 = vld [vmem:[%s6 + $0x30] sm:$0xff]
        %v2381 = vld [vmem:[%s6 + $0x38] sm:$0xff]
        %v2382 = vld [vmem:[%s7] sm:$0x1]
        %v2384 = vperm.slane %v2382, 0
        %v2387 = vsel %vm513, %v2372, 0
        %v2390 = vsel %vm513, %v2373, 0
        %2392 = vmatpush.msra.mxu0 0.0
        %2393 = vmatpush.msra.mxu0 0.0
        %2394 = vmatpush.msra.mxu0 0.0
        %2395 = vmatpush.msra.mxu0 0.0
        %2396 = vmatpush.msra.mxu0 0.0
        %2397 = vmatpush.msra.mxu0 0.0
        %2398 = vmatpush.msra.mxu0 0.0
        %2399 = vmatpush.msra.mxu0 0.0
        %2400 = vmatpush.msra.mxu0 %v2381
        %2401 = vmatpush.msra.mxu0 %v2380
        %2402 = vmatpush.msra.mxu0 %v2379
        %2403 = vmatpush.msra.mxu0 %v2378
        %2404 = vmatpush.msra.mxu0 %v2377
        %2405 = vmatpush.msra.mxu0 %v2376
        %2406 = vmatpush.msra.mxu0 %v2375
        %2407 = vmatpush.msra.mxu0 %v2374
        %2408 = vmatmul.f32.gmra.mxu0 %v2387
        %v2409 = vpop.f32.mrf.mxu0
        %v2410 = vadd.f32 %v2384, %v2409
        %2411 = vmatmul.f32.gmra.mxu0 %v2390
        %v2412 = vpop.f32.mrf.mxu0
        %v2413 = vadd.f32 %v2384, %v2412
        %2414 = vdwg.mxu0
        %v2415 = vmax.f32 %v2410, 0.0
        %v2416 = vmax.f32 %v2413, 0.0
        %v2417 = vld [vmem:[%s8] sm:$0xff]
        %v2418 = vld [vmem:[%s8 + $0x8] sm:$0xff]
        %v2419 = vld [vmem:[%s8 + $0x10] sm:$0xff]
        %v2420 = vld [vmem:[%s8 + $0x18] sm:$0xff]
        %v2421 = vld [vmem:[%s9] sm:$0x1]
        %v2423 = vperm.slane %v2421, 0
        %vm2425 = vcmask 261120
        %v2427 = vsel %vm2425, %v2415, 0
        %v2430 = vsel %vm2425, %v2416, 0
        %2432 = vmatpush.msra.mxu0 0.0
        %2433 = vmatpush.msra.mxu0 0.0
        %2434 = vmatpush.msra.mxu0 0.0
        %2435 = vmatpush.msra.mxu0 0.0
        %2436 = vmatpush.msra.mxu0 0.0
        %2437 = vmatpush.msra.mxu0 0.0
        %2438 = vmatpush.msra.mxu0 0.0
        %2439 = vmatpush.msra.mxu0 0.0
        %2440 = vmatpush.msra.mxu0 0.0
        %2441 = vmatpush.msra.mxu0 0.0
        %2442 = vmatpush.msra.mxu0 0.0
        %2443 = vmatpush.msra.mxu0 0.0
        %2444 = vmatpush.msra.mxu0 %v2420
        %2445 = vmatpush.msra.mxu0 %v2419
        %2446 = vmatpush.msra.mxu0 %v2418
        %2447 = vmatpush.msra.mxu0 %v2417
        %2448 = vmatmul.f32.gmra.mxu0 %v2427
        %v2449 = vpop.f32.mrf.mxu0
        %v2450 = vadd.f32 %v2423, %v2449
        %2451 = vmatmul.f32.gmra.mxu0 %v2430
        %v2452 = vpop.f32.mrf.mxu0
        %v2453 = vadd.f32 %v2423, %v2452
        %2454 = vdwg.mxu0
        %v2455 = vadd.f32 %v2372, %v2450
        %v2456 = vadd.f32 %v2373, %v2453
        %v2457 = vsel %vm513, %v2455, 0.0
        %2458 = vadd.xlane.f32.xlu0 %v2457
        %v2459 = vpop.xlane.xlu0 %2458
        %v2460 = vsel %vm513, %v2456, 0.0
        %2461 = vadd.xlane.f32.xlu0 %v2460
        %v2462 = vpop.xlane.xlu0 %2461
        %v2463 = vmul.f32 %v2459, %v2323
        %v2464 = vmul.f32 %v2462, %v2323
        %v2465 = vsub.f32 %v2455, %v2463
        %v2466 = vsub.f32 %v2456, %v2464
        %v2467 = vmul.f32 %v2465, %v2465
        %v2468 = vmul.f32 %v2466, %v2466
        %v2469 = vsel %vm513, %v2467, 0.0
        %2470 = vadd.xlane.f32.xlu0 %v2469
        %v2471 = vpop.xlane.xlu0 %2470
        %v2472 = vsel %vm513, %v2468, 0.0
        %2473 = vadd.xlane.f32.xlu0 %v2472
        %v2474 = vpop.xlane.xlu0 %2473
        %v2475 = vmul.f32 %v2471, %v2323
        %v2476 = vmul.f32 %v2474, %v2323
        %v2477 = vadd.f32 %v2475, 1e-05
        %v2478 = vadd.f32 %v2476, 1e-05
        %v2479 = vrsqrt.pop %v2477
        %v2480 = vmul.f32 %v2479, %v2477
        %v2481 = vmul.f32 %v2480, %v2479
        %v2482 = vmul.f32 0.5, %v2481
        %v2483 = vsub.f32 1.5, %v2482
        %v2484 = vmul.f32 %v2479, %v2483
        %vm2485 = vweird.f32 %v2477
        %vm2486 = vweird.f32 %v2479
        %vm2487 = vmor %vm2485, %vm2486
        %v2488 = vsel %vm2487, %v2479, %v2484
        %v2489 = vrsqrt.pop %v2478
        %v2490 = vmul.f32 %v2489, %v2478
        %v2491 = vmul.f32 %v2490, %v2489
        %v2492 = vmul.f32 0.5, %v2491
        %v2493 = vsub.f32 1.5, %v2492
        %v2494 = vmul.f32 %v2489, %v2493
        %vm2495 = vweird.f32 %v2478
        %vm2496 = vweird.f32 %v2489
        %vm2497 = vmor %vm2495, %vm2496
        %v2498 = vsel %vm2497, %v2489, %v2494
        %v2499 = vmul.f32 %v2465, %v2488
        %v2500 = vmul.f32 %v2466, %v2498
        %s2501 = scalar_lea.vmem %s10, 1
        %v2502 = vld [vmem:[%s2501] sm:$0x1]
        %v2504 = vperm.slane %v2502, 0
        %v2506 = vmul.f32 %v2499, %v2504
        %v2507 = vmul.f32 %v2500, %v2504
        %s2508 = scalar_lea.vmem %s11, 1
        %v2509 = vld [vmem:[%s2508] sm:$0x1]
        %v2511 = vperm.slane %v2509, 0
        %v2513 = vadd.f32 %v2506, %v2511
        %v2514 = vadd.f32 %v2507, %v2511
        %s2515 = scalar_lea.vmem %s2, 384
        %v2516 = vld [vmem:[%s2515] sm:$0xff]
        %v2517 = vld [vmem:[%s2515 + $0x8] sm:$0xff]
        %v2518 = vld [vmem:[%s2515 + $0x10] sm:$0xff]
        %v2519 = vld [vmem:[%s2515 + $0x18] sm:$0xff]
        %v2520 = vld [vmem:[%s2515 + $0x20] sm:$0xff]
        %v2521 = vld [vmem:[%s2515 + $0x28] sm:$0xff]
        %v2522 = vld [vmem:[%s2515 + $0x30] sm:$0xff]
        %v2523 = vld [vmem:[%s2515 + $0x38] sm:$0xff]
        %v2524 = vld [vmem:[%s2515 + $0x40] sm:$0xff]
        %v2525 = vld [vmem:[%s2515 + $0x48] sm:$0xff]
        %v2526 = vld [vmem:[%s2515 + $0x50] sm:$0xff]
        %v2527 = vld [vmem:[%s2515 + $0x58] sm:$0xff]
        %v2528 = vld [vmem:[%s2515 + $0x60] sm:$0xff]
        %v2529 = vld [vmem:[%s2515 + $0x68] sm:$0xff]
        %v2530 = vld [vmem:[%s2515 + $0x70] sm:$0xff]
        %v2531 = vld [vmem:[%s2515 + $0x78] sm:$0xff]
        %s2532 = scalar_lea.vmem %s3, 6
        %v2533 = vld [vmem:[%s2532] sm:$0x3]
        %s2534 = scalar_lea.vmem %s4, 192
        %v2535 = vld [vmem:[%s2534] sm:$0xff]
        %v2536 = vld [vmem:[%s2534 + $0x8] sm:$0xff]
        %v2537 = vld [vmem:[%s2534 + $0x10] sm:$0xff]
        %v2538 = vld [vmem:[%s2534 + $0x18] sm:$0xff]
        %v2539 = vld [vmem:[%s2534 + $0x20] sm:$0xff]
        %v2540 = vld [vmem:[%s2534 + $0x28] sm:$0xff]
        %v2541 = vld [vmem:[%s2534 + $0x30] sm:$0xff]
        %v2542 = vld [vmem:[%s2534 + $0x38] sm:$0xff]
        %v2544 = vperm.slane %v2533, 0
        %v2547 = vsel %vm513, %v1647, 0
        %2549 = vmatpush.msra.mxu0 0.0
        %2550 = vmatpush.msra.mxu0 0.0
        %2551 = vmatpush.msra.mxu0 0.0
        %2552 = vmatpush.msra.mxu0 0.0
        %2553 = vmatpush.msra.mxu0 0.0
        %2554 = vmatpush.msra.mxu0 0.0
        %2555 = vmatpush.msra.mxu0 0.0
        %2556 = vmatpush.msra.mxu0 0.0
        %2557 = vmatpush.msra.mxu0 %v2530
        %2558 = vmatpush.msra.mxu0 %v2528
        %2559 = vmatpush.msra.mxu0 %v2526
        %2560 = vmatpush.msra.mxu0 %v2524
        %2561 = vmatpush.msra.mxu0 %v2522
        %2562 = vmatpush.msra.mxu0 %v2520
        %2563 = vmatpush.msra.mxu0 %v2518
        %2564 = vmatpush.msra.mxu0 %v2516
        %2565 = vmatmul.f32.gmra.mxu0 %v2547
        %v2566 = vpop.f32.mrf.mxu0
        %v2567 = vadd.f32 %v2544, %v2566
        %2568 = vdwg.mxu0
        %v2569 = vperm.slane %v2533, 1
        %2586 = vrot.lane.b32.xlu0 %v2516, 64
        %v2587 = vpop.permute.xlu0 %2586
        %2588 = vrot.lane.b32.xlu0 %v2517, 64
        %v2589 = vpop.permute.xlu0 %2588
        %2590 = vrot.lane.b32.xlu0 %v2518, 64
        %v2591 = vpop.permute.xlu0 %2590
        %2592 = vrot.lane.b32.xlu0 %v2519, 64
        %v2593 = vpop.permute.xlu0 %2592
        %2594 = vrot.lane.b32.xlu0 %v2520, 64
        %v2595 = vpop.permute.xlu0 %2594
        %2596 = vrot.lane.b32.xlu0 %v2521, 64
        %v2597 = vpop.permute.xlu0 %2596
        %2598 = vrot.lane.b32.xlu0 %v2522, 64
        %v2599 = vpop.permute.xlu0 %2598
        %2600 = vrot.lane.b32.xlu0 %v2523, 64
        %v2601 = vpop.permute.xlu0 %2600
        %2602 = vrot.lane.b32.xlu0 %v2524, 64
        %v2603 = vpop.permute.xlu0 %2602
        %2604 = vrot.lane.b32.xlu0 %v2525, 64
        %v2605 = vpop.permute.xlu0 %2604
        %2606 = vrot.lane.b32.xlu0 %v2526, 64
        %v2607 = vpop.permute.xlu0 %2606
        %2608 = vrot.lane.b32.xlu0 %v2527, 64
        %v2609 = vpop.permute.xlu0 %2608
        %2610 = vrot.lane.b32.xlu0 %v2528, 64
        %v2611 = vpop.permute.xlu0 %2610
        %2612 = vrot.lane.b32.xlu0 %v2529, 64
        %v2613 = vpop.permute.xlu0 %2612
        %2614 = vrot.lane.b32.xlu0 %v2530, 64
        %v2615 = vpop.permute.xlu0 %2614
        %2616 = vrot.lane.b32.xlu0 %v2531, 64
        %v2617 = vpop.permute.xlu0 %2616
        %v2618 = vsel %vm513, %v2587, %v2589
        %v2619 = vsel %vm513, %v2591, %v2593
        %v2620 = vsel %vm513, %v2595, %v2597
        %v2621 = vsel %vm513, %v2599, %v2601
        %v2622 = vsel %vm513, %v2603, %v2605
        %v2623 = vsel %vm513, %v2607, %v2609
        %v2624 = vsel %vm513, %v2611, %v2613
        %v2625 = vsel %vm513, %v2615, %v2617
        %2634 = vrot.lane.b32.xlu0 %v2544, 64
        %v2635 = vpop.permute.xlu0 %2634
        %2636 = vrot.lane.b32.xlu0 %v2569, 64
        %v2637 = vpop.permute.xlu0 %2636
        %v2638 = vsel %vm513, %v2635, %v2637
        %2640 = vmatpush.msra.mxu0 0.0
        %2641 = vmatpush.msra.mxu0 0.0
        %2642 = vmatpush.msra.mxu0 0.0
        %2643 = vmatpush.msra.mxu0 0.0
        %2644 = vmatpush.msra.mxu0 0.0
        %2645 = vmatpush.msra.mxu0 0.0
        %2646 = vmatpush.msra.mxu0 0.0
        %2647 = vmatpush.msra.mxu0 0.0
        %2648 = vmatpush.msra.mxu0 %v2625
        %2649 = vmatpush.msra.mxu0 %v2624
        %2650 = vmatpush.msra.mxu0 %v2623
        %2651 = vmatpush.msra.mxu0 %v2622
        %2652 = vmatpush.msra.mxu0 %v2621
        %2653 = vmatpush.msra.mxu0 %v2620
        %2654 = vmatpush.msra.mxu0 %v2619
        %2655 = vmatpush.msra.mxu0 %v2618
        %2656 = vmatmul.f32.gmra.mxu0 %v2547
        %v2657 = vpop.f32.mrf.mxu0
        %v2658 = vadd.f32 %v2638, %v2657
        %2659 = vdwg.mxu0
        %v2661 = vsel %vm637, %v2567, 0
        %v2664 = vsel %vm637, %v2658, 0
        %2666 = vmatpush.xpose.msra.mxu0 0.0
        %2667 = vmatpush.xpose.msra.mxu0 0.0
        %2668 = vmatpush.xpose.msra.mxu0 0.0
        %2669 = vmatpush.xpose.msra.mxu0 0.0
        %2670 = vmatpush.xpose.msra.mxu0 0.0
        %2671 = vmatpush.xpose.msra.mxu0 0.0
        %2672 = vmatpush.xpose.msra.mxu0 0.0
        %2673 = vmatpush.xpose.msra.mxu0 0.0
        %2674 = vmatpush.xpose.msra.mxu0 0.0
        %2675 = vmatpush.xpose.msra.mxu0 0.0
        %2676 = vmatpush.xpose.msra.mxu0 0.0
        %2677 = vmatpush.xpose.msra.mxu0 0.0
        %2678 = vmatpush.xpose.msra.mxu0 0.0
        %2679 = vmatpush.xpose.msra.mxu0 0.0
        %2680 = vmatpush.xpose.msra.mxu0 0.0
        %2681 = vmatpush.xpose.msra.mxu0 %v2664
        %2682 = vmatmul.f32.gmra.mxu0 %v2661
        %v2683 = vpop.f32.mrf.mxu0
        %v2684 = vadd.f32 0.0, %v2683
        %2685 = vdwg.mxu0
        %v2686 = vsel %vm670, %v2684, -inf
        %2687 = vmax.xlane.f32.xlu0 %v2686
        %v2688 = vpop.xlane.xlu0 %2687
        %v2689 = vsub.f32 %v2684, %v2688
        %v2690 = vmul.f32 %v2689, 1.442695
        %v2691 = vpow.pop %v2690
        %v2692 = vsel %vm670, %v2691, 0.0
        %2693 = vadd.xlane.f32.xlu0 %v2692
        %v2694 = vpop.xlane.xlu0 %2693
        %v2695 = vrcp.pop %v2694
        %v2696 = vmul.f32 %v2691, %v2695
        %2697 = vrot.lane.b32.xlu0 %v2658, 64
        %v2698 = vpop.permute.xlu0 %2697
        %v2701 = vsel %vm670, %v2696, 0
        %2703 = vmatpush.msra.mxu0 0.0
        %2704 = vmatpush.msra.mxu0 0.0
        %2705 = vmatpush.msra.mxu0 0.0
        %2706 = vmatpush.msra.mxu0 0.0
        %2707 = vmatpush.msra.mxu0 0.0
        %2708 = vmatpush.msra.mxu0 0.0
        %2709 = vmatpush.msra.mxu0 0.0
        %2710 = vmatpush.msra.mxu0 0.0
        %2711 = vmatpush.msra.mxu0 0.0
        %2712 = vmatpush.msra.mxu0 0.0
        %2713 = vmatpush.msra.mxu0 0.0
        %2714 = vmatpush.msra.mxu0 0.0
        %2715 = vmatpush.msra.mxu0 0.0
        %2716 = vmatpush.msra.mxu0 0.0
        %2717 = vmatpush.msra.mxu0 0.0
        %2718 = vmatpush.msra.mxu0 %v2698
        %2719 = vmatmul.f32.gmra.mxu0 %v2701
        %v2720 = vpop.f32.mrf.mxu0
        %v2721 = vadd.f32 0.0, %v2720
        %2722 = vdwg.mxu0
        %2723 = vrot.lane.b32.xlu0 %v2567, 112
        %v2724 = vpop.permute.xlu0 %2723
        %2725 = vrot.lane.b32.xlu0 %v2658, 112
        %v2726 = vpop.permute.xlu0 %2725
        %v2727 = vsel %vm637, %v2724, 0
        %v2729 = vsel %vm637, %v2726, 0
        %2731 = vmatpush.xpose.msra.mxu0 0.0
        %2732 = vmatpush.xpose.msra.mxu0 0.0
        %2733 = vmatpush.xpose.msra.mxu0 0.0
        %2734 = vmatpush.xpose.msra.mxu0 0.0
        %2735 = vmatpush.xpose.msra.mxu0 0.0
        %2736 = vmatpush.xpose.msra.mxu0 0.0
        %2737 = vmatpush.xpose.msra.mxu0 0.0
        %2738 = vmatpush.xpose.msra.mxu0 0.0
        %2739 = vmatpush.xpose.msra.mxu0 0.0
        %2740 = vmatpush.xpose.msra.mxu0 0.0
        %2741 = vmatpush.xpose.msra.mxu0 0.0
        %2742 = vmatpush.xpose.msra.mxu0 0.0
        %2743 = vmatpush.xpose.msra.mxu0 0.0
        %2744 = vmatpush.xpose.msra.mxu0 0.0
        %2745 = vmatpush.xpose.msra.mxu0 0.0
        %2746 = vmatpush.xpose.msra.mxu0 %v2729
        %2747 = vmatmul.f32.gmra.mxu0 %v2727
        %v2748 = vpop.f32.mrf.mxu0
        %v2749 = vadd.f32 0.0, %v2748
        %2750 = vdwg.mxu0
        %v2751 = vsel %vm670, %v2749, -inf
        %2752 = vmax.xlane.f32.xlu0 %v2751
        %v2753 = vpop.xlane.xlu0 %2752
        %v2754 = vsub.f32 %v2749, %v2753
        %v2755 = vmul.f32 %v2754, 1.442695
        %v2756 = vpow.pop %v2755
        %v2757 = vsel %vm670, %v2756, 0.0
        %2758 = vadd.xlane.f32.xlu0 %v2757
        %v2759 = vpop.xlane.xlu0 %2758
        %v2760 = vrcp.pop %v2759
        %v2761 = vmul.f32 %v2756, %v2760
        %2762 = vrot.lane.b32.xlu0 %v2658, 48
        %v2763 = vpop.permute.xlu0 %2762
        %v2766 = vsel %vm670, %v2761, 0
        %2768 = vmatpush.msra.mxu0 0.0
        %2769 = vmatpush.msra.mxu0 0.0
        %2770 = vmatpush.msra.mxu0 0.0
        %2771 = vmatpush.msra.mxu0 0.0
        %2772 = vmatpush.msra.mxu0 0.0
        %2773 = vmatpush.msra.mxu0 0.0
        %2774 = vmatpush.msra.mxu0 0.0
        %2775 = vmatpush.msra.mxu0 0.0
        %2776 = vmatpush.msra.mxu0 0.0
        %2777 = vmatpush.msra.mxu0 0.0
        %2778 = vmatpush.msra.mxu0 0.0
        %2779 = vmatpush.msra.mxu0 0.0
        %2780 = vmatpush.msra.mxu0 0.0
        %2781 = vmatpush.msra.mxu0 0.0
        %2782 = vmatpush.msra.mxu0 0.0
        %2783 = vmatpush.msra.mxu0 %v2763
        %2784 = vmatmul.f32.gmra.mxu0 %v2766
        %v2785 = vpop.f32.mrf.mxu0
        %v2786 = vadd.f32 0.0, %v2785
        %2787 = vdwg.mxu0
        %v2789 = vsel %vm637, %v2786, 0
        %2791 = vmatpush.msra.mxu0 0.0
        %2792 = vmatpush.msra.mxu0 0.0
        %2793 = vmatpush.msra.mxu0 0.0
        %2794 = vmatpush.msra.mxu0 0.0
        %2795 = vmatpush.msra.mxu0 0.0
        %2796 = vmatpush.msra.mxu0 0.0
        %2797 = vmatpush.msra.mxu0 0.0
        %2798 = vmatpush.msra.mxu0 0.0
        %2799 = vmatpush.msra.mxu0 0.0
        %2800 = vmatpush.msra.mxu0 0.0
        %2801 = vmatpush.msra.mxu0 0.0
        %2802 = vmatpush.msra.mxu0 0.0
        %2803 = vmatpush.msra.mxu0 0.0
        %2804 = vmatpush.msra.mxu0 0.0
        %2805 = vmatpush.msra.mxu0 %v2538
        %2806 = vmatpush.msra.mxu0 %v2537
        %2807 = vmatmul.f32.gmra.mxu0 %v2789
        %v2808 = vpop.f32.mrf.mxu0
        %v2809 = vadd.f32 0.0, %v2808
        %2810 = vdwg.mxu0
        %v2812 = vsel %vm637, %v2721, 0
        %2814 = vmatpush.msra.mxu0 0.0
        %2815 = vmatpush.msra.mxu0 0.0
        %2816 = vmatpush.msra.mxu0 0.0
        %2817 = vmatpush.msra.mxu0 0.0
        %2818 = vmatpush.msra.mxu0 0.0
        %2819 = vmatpush.msra.mxu0 0.0
        %2820 = vmatpush.msra.mxu0 0.0
        %2821 = vmatpush.msra.mxu0 0.0
        %2822 = vmatpush.msra.mxu0 0.0
        %2823 = vmatpush.msra.mxu0 0.0
        %2824 = vmatpush.msra.mxu0 0.0
        %2825 = vmatpush.msra.mxu0 0.0
        %2826 = vmatpush.msra.mxu0 0.0
        %2827 = vmatpush.msra.mxu0 0.0
        %2828 = vmatpush.msra.mxu0 %v2536
        %2829 = vmatpush.msra.mxu0 %v2535
        %2830 = vmatmul.f32.gmra.mxu0 %v2812
        %v2831 = vpop.f32.mrf.mxu0
        %v2832 = vadd.f32 %v2809, %v2831
        %2833 = vdwg.mxu0
        %2834 = vrot.lane.b32.xlu0 %v2567, 96
        %v2835 = vpop.permute.xlu0 %2834
        %2836 = vrot.lane.b32.xlu0 %v2658, 96
        %v2837 = vpop.permute.xlu0 %2836
        %v2838 = vsel %vm637, %v2835, 0
        %v2840 = vsel %vm637, %v2837, 0
        %2842 = vmatpush.xpose.msra.mxu0 0.0
        %2843 = vmatpush.xpose.msra.mxu0 0.0
        %2844 = vmatpush.xpose.msra.mxu0 0.0
        %2845 = vmatpush.xpose.msra.mxu0 0.0
        %2846 = vmatpush.xpose.msra.mxu0 0.0
        %2847 = vmatpush.xpose.msra.mxu0 0.0
        %2848 = vmatpush.xpose.msra.mxu0 0.0
        %2849 = vmatpush.xpose.msra.mxu0 0.0
        %2850 = vmatpush.xpose.msra.mxu0 0.0
        %2851 = vmatpush.xpose.msra.mxu0 0.0
        %2852 = vmatpush.xpose.msra.mxu0 0.0
        %2853 = vmatpush.xpose.msra.mxu0 0.0
        %2854 = vmatpush.xpose.msra.mxu0 0.0
        %2855 = vmatpush.xpose.msra.mxu0 0.0
        %2856 = vmatpush.xpose.msra.mxu0 0.0
        %2857 = vmatpush.xpose.msra.mxu0 %v2840
        %2858 = vmatmul.f32.gmra.mxu0 %v2838
        %v2859 = vpop.f32.mrf.mxu0
        %v2860 = vadd.f32 0.0, %v2859
        %2861 = vdwg.mxu0
        %v2862 = vsel %vm670, %v2860, -inf
        %2863 = vmax.xlane.f32.xlu0 %v2862
        %v2864 = vpop.xlane.xlu0 %2863
        %v2865 = vsub.f32 %v2860, %v2864
        %v2866 = vmul.f32 %v2865, 1.442695
        %v2867 = vpow.pop %v2866
        %v2868 = vsel %vm670, %v2867, 0.0
        %2869 = vadd.xlane.f32.xlu0 %v2868
        %v2870 = vpop.xlane.xlu0 %2869
        %v2871 = vrcp.pop %v2870
        %v2872 = vmul.f32 %v2867, %v2871
        %2873 = vrot.lane.b32.xlu0 %v2658, 32
        %v2874 = vpop.permute.xlu0 %2873
        %v2877 = vsel %vm670, %v2872, 0
        %2879 = vmatpush.msra.mxu0 0.0
        %2880 = vmatpush.msra.mxu0 0.0
        %2881 = vmatpush.msra.mxu0 0.0
        %2882 = vmatpush.msra.mxu0 0.0
        %2883 = vmatpush.msra.mxu0 0.0
        %2884 = vmatpush.msra.mxu0 0.0
        %2885 = vmatpush.msra.mxu0 0.0
        %2886 = vmatpush.msra.mxu0 0.0
        %2887 = vmatpush.msra.mxu0 0.0
        %2888 = vmatpush.msra.mxu0 0.0
        %2889 = vmatpush.msra.mxu0 0.0
        %2890 = vmatpush.msra.mxu0 0.0
        %2891 = vmatpush.msra.mxu0 0.0
        %2892 = vmatpush.msra.mxu0 0.0
        %2893 = vmatpush.msra.mxu0 0.0
        %2894 = vmatpush.msra.mxu0 %v2874
        %2895 = vmatmul.f32.gmra.mxu0 %v2877
        %v2896 = vpop.f32.mrf.mxu0
        %v2897 = vadd.f32 0.0, %v2896
        %2898 = vdwg.mxu0
        %v2900 = vsel %vm637, %v2897, 0
        %2902 = vmatpush.msra.mxu0 0.0
        %2903 = vmatpush.msra.mxu0 0.0
        %2904 = vmatpush.msra.mxu0 0.0
        %2905 = vmatpush.msra.mxu0 0.0
        %2906 = vmatpush.msra.mxu0 0.0
        %2907 = vmatpush.msra.mxu0 0.0
        %2908 = vmatpush.msra.mxu0 0.0
        %2909 = vmatpush.msra.mxu0 0.0
        %2910 = vmatpush.msra.mxu0 0.0
        %2911 = vmatpush.msra.mxu0 0.0
        %2912 = vmatpush.msra.mxu0 0.0
        %2913 = vmatpush.msra.mxu0 0.0
        %2914 = vmatpush.msra.mxu0 0.0
        %2915 = vmatpush.msra.mxu0 0.0
        %2916 = vmatpush.msra.mxu0 %v2540
        %2917 = vmatpush.msra.mxu0 %v2539
        %2918 = vmatmul.f32.gmra.mxu0 %v2900
        %v2919 = vpop.f32.mrf.mxu0
        %v2920 = vadd.f32 0.0, %v2919
        %2921 = vdwg.mxu0
        %v2922 = vadd.f32 %v2832, %v2920
        %2923 = vrot.lane.b32.xlu0 %v2567, 80
        %v2924 = vpop.permute.xlu0 %2923
        %2925 = vrot.lane.b32.xlu0 %v2658, 80
        %v2926 = vpop.permute.xlu0 %2925
        %v2927 = vsel %vm637, %v2924, 0
        %v2929 = vsel %vm637, %v2926, 0
        %2931 = vmatpush.xpose.msra.mxu0 0.0
        %2932 = vmatpush.xpose.msra.mxu0 0.0
        %2933 = vmatpush.xpose.msra.mxu0 0.0
        %2934 = vmatpush.xpose.msra.mxu0 0.0
        %2935 = vmatpush.xpose.msra.mxu0 0.0
        %2936 = vmatpush.xpose.msra.mxu0 0.0
        %2937 = vmatpush.xpose.msra.mxu0 0.0
        %2938 = vmatpush.xpose.msra.mxu0 0.0
        %2939 = vmatpush.xpose.msra.mxu0 0.0
        %2940 = vmatpush.xpose.msra.mxu0 0.0
        %2941 = vmatpush.xpose.msra.mxu0 0.0
        %2942 = vmatpush.xpose.msra.mxu0 0.0
        %2943 = vmatpush.xpose.msra.mxu0 0.0
        %2944 = vmatpush.xpose.msra.mxu0 0.0
        %2945 = vmatpush.xpose.msra.mxu0 0.0
        %2946 = vmatpush.xpose.msra.mxu0 %v2929
        %2947 = vmatmul.f32.gmra.mxu0 %v2927
        %v2948 = vpop.f32.mrf.mxu0
        %v2949 = vadd.f32 0.0, %v2948
        %2950 = vdwg.mxu0
        %v2951 = vsel %vm670, %v2949, -inf
        %2952 = vmax.xlane.f32.xlu0 %v2951
        %v2953 = vpop.xlane.xlu0 %2952
        %v2954 = vsub.f32 %v2949, %v2953
        %v2955 = vmul.f32 %v2954, 1.442695
        %v2956 = vpow.pop %v2955
        %v2957 = vsel %vm670, %v2956, 0.0
        %2958 = vadd.xlane.f32.xlu0 %v2957
        %v2959 = vpop.xlane.xlu0 %2958
        %v2960 = vrcp.pop %v2959
        %v2961 = vmul.f32 %v2956, %v2960
        %2962 = vrot.lane.b32.xlu0 %v2658, 16
        %v2963 = vpop.permute.xlu0 %2962
        %v2966 = vsel %vm670, %v2961, 0
        %2968 = vmatpush.msra.mxu0 0.0
        %2969 = vmatpush.msra.mxu0 0.0
        %2970 = vmatpush.msra.mxu0 0.0
        %2971 = vmatpush.msra.mxu0 0.0
        %2972 = vmatpush.msra.mxu0 0.0
        %2973 = vmatpush.msra.mxu0 0.0
        %2974 = vmatpush.msra.mxu0 0.0
        %2975 = vmatpush.msra.mxu0 0.0
        %2976 = vmatpush.msra.mxu0 0.0
        %2977 = vmatpush.msra.mxu0 0.0
        %2978 = vmatpush.msra.mxu0 0.0
        %2979 = vmatpush.msra.mxu0 0.0
        %2980 = vmatpush.msra.mxu0 0.0
        %2981 = vmatpush.msra.mxu0 0.0
        %2982 = vmatpush.msra.mxu0 0.0
        %2983 = vmatpush.msra.mxu0 %v2963
        %2984 = vmatmul.f32.gmra.mxu0 %v2966
        %v2985 = vpop.f32.mrf.mxu0
        %v2986 = vadd.f32 0.0, %v2985
        %2987 = vdwg.mxu0
        %v2989 = vsel %vm637, %v2986, 0
        %2991 = vmatpush.msra.mxu0 0.0
        %2992 = vmatpush.msra.mxu0 0.0
        %2993 = vmatpush.msra.mxu0 0.0
        %2994 = vmatpush.msra.mxu0 0.0
        %2995 = vmatpush.msra.mxu0 0.0
        %2996 = vmatpush.msra.mxu0 0.0
        %2997 = vmatpush.msra.mxu0 0.0
        %2998 = vmatpush.msra.mxu0 0.0
        %2999 = vmatpush.msra.mxu0 0.0
        %3000 = vmatpush.msra.mxu0 0.0
        %3001 = vmatpush.msra.mxu0 0.0
        %3002 = vmatpush.msra.mxu0 0.0
        %3003 = vmatpush.msra.mxu0 0.0
        %3004 = vmatpush.msra.mxu0 0.0
        %3005 = vmatpush.msra.mxu0 %v2542
        %3006 = vmatpush.msra.mxu0 %v2541
        %3007 = vmatmul.f32.gmra.mxu0 %v2989
        %v3008 = vpop.f32.mrf.mxu0
        %v3009 = vadd.f32 0.0, %v3008
        %3010 = vdwg.mxu0
        %v3011 = vadd.f32 %v2922, %v3009
        %s3012 = scalar_lea.vmem %s5, 3
        %v3013 = vld [vmem:[%s3012] sm:$0x1]
        %v3015 = vperm.slane %v3013, 0
        %v3017 = vadd.f32 %v3011, %v3015
        %v3018 = vadd.f32 %v1647, %v3017
        %v3019 = vsel %vm513, %v3018, 0.0
        %3020 = vadd.xlane.f32.xlu0 %v3019
        %v3021 = vpop.xlane.xlu0 %3020
        %v3022 = vmul.f32 %v3021, %v2323
        %v3023 = vsub.f32 %v3018, %v3022
        %v3024 = vmul.f32 %v3023, %v3023
        %v3025 = vsel %vm513, %v3024, 0.0
        %3026 = vadd.xlane.f32.xlu0 %v3025
        %v3027 = vpop.xlane.xlu0 %3026
        %v3028 = vmul.f32 %v3027, %v2323
        %v3029 = vadd.f32 %v3028, 1e-05
        %v3030 = vrsqrt.pop %v3029
        %v3031 = vmul.f32 %v3030, %v3029
        %v3032 = vmul.f32 %v3031, %v3030
        %v3033 = vmul.f32 0.5, %v3032
        %v3034 = vsub.f32 1.5, %v3033
        %v3035 = vmul.f32 %v3030, %v3034
        %vm3036 = vweird.f32 %v3029
        %vm3037 = vweird.f32 %v3030
        %vm3038 = vmor %vm3036, %vm3037
        %v3039 = vsel %vm3038, %v3030, %v3035
        %v3040 = vmul.f32 %v3023, %v3039
        %s3041 = scalar_lea.vmem %s10, 2
        %v3042 = vld [vmem:[%s3041] sm:$0x1]
        %v3044 = vperm.slane %v3042, 0
        %v3046 = vmul.f32 %v3040, %v3044
        %s3047 = scalar_lea.vmem %s11, 2
        %v3048 = vld [vmem:[%s3047] sm:$0x1]
        %v3050 = vperm.slane %v3048, 0
        %v3052 = vadd.f32 %v3046, %v3050
        %s3053 = scalar_lea.vmem %s6, 64
        %v3054 = vld [vmem:[%s3053] sm:$0xff]
        %v3055 = vld [vmem:[%s3053 + $0x8] sm:$0xff]
        %v3056 = vld [vmem:[%s3053 + $0x10] sm:$0xff]
        %v3057 = vld [vmem:[%s3053 + $0x18] sm:$0xff]
        %v3058 = vld [vmem:[%s3053 + $0x20] sm:$0xff]
        %v3059 = vld [vmem:[%s3053 + $0x28] sm:$0xff]
        %v3060 = vld [vmem:[%s3053 + $0x30] sm:$0xff]
        %v3061 = vld [vmem:[%s3053 + $0x38] sm:$0xff]
        %s3062 = scalar_lea.vmem %s7, 1
        %v3063 = vld [vmem:[%s3062] sm:$0x1]
        %v3065 = vperm.slane %v3063, 0
        %v3068 = vsel %vm513, %v3052, 0
        %3070 = vmatpush.msra.mxu0 0.0
        %3071 = vmatpush.msra.mxu0 0.0
        %3072 = vmatpush.msra.mxu0 0.0
        %3073 = vmatpush.msra.mxu0 0.0
        %3074 = vmatpush.msra.mxu0 0.0
        %3075 = vmatpush.msra.mxu0 0.0
        %3076 = vmatpush.msra.mxu0 0.0
        %3077 = vmatpush.msra.mxu0 0.0
        %3078 = vmatpush.msra.mxu0 %v3061
        %3079 = vmatpush.msra.mxu0 %v3060
        %3080 = vmatpush.msra.mxu0 %v3059
        %3081 = vmatpush.msra.mxu0 %v3058
        %3082 = vmatpush.msra.mxu0 %v3057
        %3083 = vmatpush.msra.mxu0 %v3056
        %3084 = vmatpush.msra.mxu0 %v3055
        %3085 = vmatpush.msra.mxu0 %v3054
        %3086 = vmatmul.f32.gmra.mxu0 %v3068
        %v3087 = vpop.f32.mrf.mxu0
        %v3088 = vadd.f32 %v3065, %v3087
        %3089 = vdwg.mxu0
        %v3090 = vmax.f32 %v3088, 0.0
        %s3091 = scalar_lea.vmem %s8, 32
        %v3092 = vld [vmem:[%s3091] sm:$0xff]
        %v3093 = vld [vmem:[%s3091 + $0x8] sm:$0xff]
        %v3094 = vld [vmem:[%s3091 + $0x10] sm:$0xff]
        %v3095 = vld [vmem:[%s3091 + $0x18] sm:$0xff]
        %s3096 = scalar_lea.vmem %s9, 1
        %v3097 = vld [vmem:[%s3096] sm:$0x1]
        %v3099 = vperm.slane %v3097, 0
        %v3102 = vsel %vm2425, %v3090, 0
        %3104 = vmatpush.msra.mxu0 0.0
        %3105 = vmatpush.msra.mxu0 0.0
        %3106 = vmatpush.msra.mxu0 0.0
        %3107 = vmatpush.msra.mxu0 0.0
        %3108 = vmatpush.msra.mxu0 0.0
        %3109 = vmatpush.msra.mxu0 0.0
        %3110 = vmatpush.msra.mxu0 0.0
        %3111 = vmatpush.msra.mxu0 0.0
        %3112 = vmatpush.msra.mxu0 0.0
        %3113 = vmatpush.msra.mxu0 0.0
        %3114 = vmatpush.msra.mxu0 0.0
        %3115 = vmatpush.msra.mxu0 0.0
        %3116 = vmatpush.msra.mxu0 %v3095
        %3117 = vmatpush.msra.mxu0 %v3094
        %3118 = vmatpush.msra.mxu0 %v3093
        %3119 = vmatpush.msra.mxu0 %v3092
        %3120 = vmatmul.f32.gmra.mxu0 %v3102
        %v3121 = vpop.f32.mrf.mxu0
        %v3122 = vadd.f32 %v3099, %v3121
        %3123 = vdwg.mxu0
        %v3124 = vadd.f32 %v3052, %v3122
        %v3125 = vsel %vm513, %v3124, 0.0
        %3126 = vadd.xlane.f32.xlu0 %v3125
        %v3127 = vpop.xlane.xlu0 %3126
        %v3128 = vmul.f32 %v3127, %v2323
        %v3129 = vsub.f32 %v3124, %v3128
        %v3130 = vmul.f32 %v3129, %v3129
        %v3131 = vsel %vm513, %v3130, 0.0
        %3132 = vadd.xlane.f32.xlu0 %v3131
        %v3133 = vpop.xlane.xlu0 %3132
        %v3134 = vmul.f32 %v3133, %v2323
        %v3135 = vadd.f32 %v3134, 1e-05
        %v3136 = vrsqrt.pop %v3135
        %v3137 = vmul.f32 %v3136, %v3135
        %v3138 = vmul.f32 %v3137, %v3136
        %v3139 = vmul.f32 0.5, %v3138
        %v3140 = vsub.f32 1.5, %v3139
        %v3141 = vmul.f32 %v3136, %v3140
        %vm3142 = vweird.f32 %v3135
        %vm3143 = vweird.f32 %v3136
        %vm3144 = vmor %vm3142, %vm3143
        %v3145 = vsel %vm3144, %v3136, %v3141
        %v3146 = vmul.f32 %v3129, %v3145
        %s3147 = scalar_lea.vmem %s10, 3
        %v3148 = vld [vmem:[%s3147] sm:$0x1]
        %v3150 = vperm.slane %v3148, 0
        %v3152 = vmul.f32 %v3146, %v3150
        %s3153 = scalar_lea.vmem %s11, 3
        %v3154 = vld [vmem:[%s3153] sm:$0x1]
        %v3156 = vperm.slane %v3154, 0
        %v3158 = vadd.f32 %v3152, %v3156
        %s3159 = scalar_lea.vmem %s2, 512
        %v3160 = vld [vmem:[%s3159] sm:$0xff]
        %v3161 = vld [vmem:[%s3159 + $0x8] sm:$0xff]
        %v3162 = vld [vmem:[%s3159 + $0x10] sm:$0xff]
        %v3163 = vld [vmem:[%s3159 + $0x18] sm:$0xff]
        %v3164 = vld [vmem:[%s3159 + $0x20] sm:$0xff]
        %v3165 = vld [vmem:[%s3159 + $0x28] sm:$0xff]
        %v3166 = vld [vmem:[%s3159 + $0x30] sm:$0xff]
        %v3167 = vld [vmem:[%s3159 + $0x38] sm:$0xff]
        %v3168 = vld [vmem:[%s3159 + $0x40] sm:$0xff]
        %v3169 = vld [vmem:[%s3159 + $0x48] sm:$0xff]
        %v3170 = vld [vmem:[%s3159 + $0x50] sm:$0xff]
        %v3171 = vld [vmem:[%s3159 + $0x58] sm:$0xff]
        %v3172 = vld [vmem:[%s3159 + $0x60] sm:$0xff]
        %v3173 = vld [vmem:[%s3159 + $0x68] sm:$0xff]
        %v3174 = vld [vmem:[%s3159 + $0x70] sm:$0xff]
        %v3175 = vld [vmem:[%s3159 + $0x78] sm:$0xff]
        %s3176 = scalar_lea.vmem %s3, 8
        %v3177 = vld [vmem:[%s3176] sm:$0x3]
        %s3178 = scalar_lea.vmem %s4, 256
        %v3179 = vld [vmem:[%s3178] sm:$0xff]
        %v3180 = vld [vmem:[%s3178 + $0x8] sm:$0xff]
        %v3181 = vld [vmem:[%s3178 + $0x10] sm:$0xff]
        %v3182 = vld [vmem:[%s3178 + $0x18] sm:$0xff]
        %v3183 = vld [vmem:[%s3178 + $0x20] sm:$0xff]
        %v3184 = vld [vmem:[%s3178 + $0x28] sm:$0xff]
        %v3185 = vld [vmem:[%s3178 + $0x30] sm:$0xff]
        %v3186 = vld [vmem:[%s3178 + $0x38] sm:$0xff]
        %v3188 = vperm.slane %v3177, 0
        %v3191 = vsel %vm513, %v3158, 0
        %3193 = vmatpush.msra.mxu0 0.0
        %3194 = vmatpush.msra.mxu0 0.0
        %3195 = vmatpush.msra.mxu0 0.0
        %3196 = vmatpush.msra.mxu0 0.0
        %3197 = vmatpush.msra.mxu0 0.0
        %3198 = vmatpush.msra.mxu0 0.0
        %3199 = vmatpush.msra.mxu0 0.0
        %3200 = vmatpush.msra.mxu0 0.0
        %3201 = vmatpush.msra.mxu0 %v3174
        %3202 = vmatpush.msra.mxu0 %v3172
        %3203 = vmatpush.msra.mxu0 %v3170
        %3204 = vmatpush.msra.mxu0 %v3168
        %3205 = vmatpush.msra.mxu0 %v3166
        %3206 = vmatpush.msra.mxu0 %v3164
        %3207 = vmatpush.msra.mxu0 %v3162
        %3208 = vmatpush.msra.mxu0 %v3160
        %3209 = vmatmul.f32.gmra.mxu0 %v3191
        %v3210 = vpop.f32.mrf.mxu0
        %v3211 = vadd.f32 %v3188, %v3210
        %3212 = vdwg.mxu0
        %v3213 = vperm.slane %v3177, 1
        %3230 = vrot.lane.b32.xlu0 %v3160, 64
        %v3231 = vpop.permute.xlu0 %3230
        %3232 = vrot.lane.b32.xlu0 %v3161, 64
        %v3233 = vpop.permute.xlu0 %3232
        %3234 = vrot.lane.b32.xlu0 %v3162, 64
        %v3235 = vpop.permute.xlu0 %3234
        %3236 = vrot.lane.b32.xlu0 %v3163, 64
        %v3237 = vpop.permute.xlu0 %3236
        %3238 = vrot.lane.b32.xlu0 %v3164, 64
        %v3239 = vpop.permute.xlu0 %3238
        %3240 = vrot.lane.b32.xlu0 %v3165, 64
        %v3241 = vpop.permute.xlu0 %3240
        %3242 = vrot.lane.b32.xlu0 %v3166, 64
        %v3243 = vpop.permute.xlu0 %3242
        %3244 = vrot.lane.b32.xlu0 %v3167, 64
        %v3245 = vpop.permute.xlu0 %3244
        %3246 = vrot.lane.b32.xlu0 %v3168, 64
        %v3247 = vpop.permute.xlu0 %3246
        %3248 = vrot.lane.b32.xlu0 %v3169, 64
        %v3249 = vpop.permute.xlu0 %3248
        %3250 = vrot.lane.b32.xlu0 %v3170, 64
        %v3251 = vpop.permute.xlu0 %3250
        %3252 = vrot.lane.b32.xlu0 %v3171, 64
        %v3253 = vpop.permute.xlu0 %3252
        %3254 = vrot.lane.b32.xlu0 %v3172, 64
        %v3255 = vpop.permute.xlu0 %3254
        %3256 = vrot.lane.b32.xlu0 %v3173, 64
        %v3257 = vpop.permute.xlu0 %3256
        %3258 = vrot.lane.b32.xlu0 %v3174, 64
        %v3259 = vpop.permute.xlu0 %3258
        %3260 = vrot.lane.b32.xlu0 %v3175, 64
        %v3261 = vpop.permute.xlu0 %3260
        %v3262 = vsel %vm513, %v3231, %v3233
        %v3263 = vsel %vm513, %v3235, %v3237
        %v3264 = vsel %vm513, %v3239, %v3241
        %v3265 = vsel %vm513, %v3243, %v3245
        %v3266 = vsel %vm513, %v3247, %v3249
        %v3267 = vsel %vm513, %v3251, %v3253
        %v3268 = vsel %vm513, %v3255, %v3257
        %v3269 = vsel %vm513, %v3259, %v3261
        %3278 = vrot.lane.b32.xlu0 %v3188, 64
        %v3279 = vpop.permute.xlu0 %3278
        %3280 = vrot.lane.b32.xlu0 %v3213, 64
        %v3281 = vpop.permute.xlu0 %3280
        %v3282 = vsel %vm513, %v3279, %v3281
        %v3285 = vsel %vm513, %v2513, 0
        %v3288 = vsel %vm513, %v2514, 0
        %3290 = vmatpush.msra.mxu0 0.0
        %3291 = vmatpush.msra.mxu0 0.0
        %3292 = vmatpush.msra.mxu0 0.0
        %3293 = vmatpush.msra.mxu0 0.0
        %3294 = vmatpush.msra.mxu0 0.0
        %3295 = vmatpush.msra.mxu0 0.0
        %3296 = vmatpush.msra.mxu0 0.0
        %3297 = vmatpush.msra.mxu0 0.0
        %3298 = vmatpush.msra.mxu0 %v3269
        %3299 = vmatpush.msra.mxu0 %v3268
        %3300 = vmatpush.msra.mxu0 %v3267
        %3301 = vmatpush.msra.mxu0 %v3266
        %3302 = vmatpush.msra.mxu0 %v3265
        %3303 = vmatpush.msra.mxu0 %v3264
        %3304 = vmatpush.msra.mxu0 %v3263
        %3305 = vmatpush.msra.mxu0 %v3262
        %3306 = vmatmul.f32.gmra.mxu0 %v3285
        %v3307 = vpop.f32.mrf.mxu0
        %v3308 = vadd.f32 %v3282, %v3307
        %3309 = vmatmul.f32.gmra.mxu0 %v3288
        %v3310 = vpop.f32.mrf.mxu0
        %v3311 = vadd.f32 %v3282, %v3310
        %3312 = vdwg.mxu0
        %v3314 = vsel %vm637, %v3211, 0
        %v3317 = vsel %vm637, %v3308, 0
        %v3320 = vsel %vm637, %v3311, 0
        %3322 = vmatpush.xpose.msra.mxu0 0.0
        %3323 = vmatpush.xpose.msra.mxu0 0.0
        %3324 = vmatpush.xpose.msra.mxu0 0.0
        %3325 = vmatpush.xpose.msra.mxu0 0.0
        %3326 = vmatpush.xpose.msra.mxu0 0.0
        %3327 = vmatpush.xpose.msra.mxu0 0.0
        %3328 = vmatpush.xpose.msra.mxu0 0.0
        %3329 = vmatpush.xpose.msra.mxu0 0.0
        %3330 = vmatpush.xpose.msra.mxu0 0.0
        %3331 = vmatpush.xpose.msra.mxu0 0.0
        %3332 = vmatpush.xpose.msra.mxu0 0.0
        %3333 = vmatpush.xpose.msra.mxu0 0.0
        %3334 = vmatpush.xpose.msra.mxu0 0.0
        %3335 = vmatpush.xpose.msra.mxu0 0.0
        %3336 = vmatpush.xpose.msra.mxu0 %v3320
        %3337 = vmatpush.xpose.msra.mxu0 %v3317
        %3338 = vmatmul.f32.gmra.mxu0 %v3314
        %v3339 = vpop.f32.mrf.mxu0
        %v3340 = vadd.f32 0.0, %v3339
        %3341 = vdwg.mxu0
        %v3342 = vsel %vm637, %v3340, -inf
        %3343 = vmax.xlane.f32.xlu0 %v3342
        %v3344 = vpop.xlane.xlu0 %3343
        %v3345 = vsub.f32 %v3340, %v3344
        %v3346 = vmul.f32 %v3345, 1.442695
        %v3347 = vpow.pop %v3346
        %v3348 = vsel %vm637, %v3347, 0.0
        %3349 = vadd.xlane.f32.xlu0 %v3348
        %v3350 = vpop.xlane.xlu0 %3349
        %v3351 = vrcp.pop %v3350
        %v3352 = vmul.f32 %v3347, %v3351
        %3353 = vrot.lane.b32.xlu0 %v3308, 64
        %v3354 = vpop.permute.xlu0 %3353
        %3355 = vrot.lane.b32.xlu0 %v3311, 64
        %v3356 = vpop.permute.xlu0 %3355
        %v3360 = vsel %vm637, %v3352, 0
        %3362 = vmatpush.msra.mxu0 0.0
        %3363 = vmatpush.msra.mxu0 0.0
        %3364 = vmatpush.msra.mxu0 0.0
        %3365 = vmatpush.msra.mxu0 0.0
        %3366 = vmatpush.msra.mxu0 0.0
        %3367 = vmatpush.msra.mxu0 0.0
        %3368 = vmatpush.msra.mxu0 0.0
        %3369 = vmatpush.msra.mxu0 0.0
        %3370 = vmatpush.msra.mxu0 0.0
        %3371 = vmatpush.msra.mxu0 0.0
        %3372 = vmatpush.msra.mxu0 0.0
        %3373 = vmatpush.msra.mxu0 0.0
        %3374 = vmatpush.msra.mxu0 0.0
        %3375 = vmatpush.msra.mxu0 0.0
        %3376 = vmatpush.msra.mxu0 %v3356
        %3377 = vmatpush.msra.mxu0 %v3354
        %3378 = vmatmul.f32.gmra.mxu0 %v3360
        %v3379 = vpop.f32.mrf.mxu0
        %v3380 = vadd.f32 0.0, %v3379
        %3381 = vdwg.mxu0
        %3382 = vrot.lane.b32.xlu0 %v3211, 112
        %v3383 = vpop.permute.xlu0 %3382
        %3384 = vrot.lane.b32.xlu0 %v3308, 112
        %v3385 = vpop.permute.xlu0 %3384
        %3386 = vrot.lane.b32.xlu0 %v3311, 112
        %v3387 = vpop.permute.xlu0 %3386
        %v3388 = vsel %vm637, %v3383, 0
        %v3390 = vsel %vm637, %v3385, 0
        %v3392 = vsel %vm637, %v3387, 0
        %3394 = vmatpush.xpose.msra.mxu0 0.0
        %3395 = vmatpush.xpose.msra.mxu0 0.0
        %3396 = vmatpush.xpose.msra.mxu0 0.0
        %3397 = vmatpush.xpose.msra.mxu0 0.0
        %3398 = vmatpush.xpose.msra.mxu0 0.0
        %3399 = vmatpush.xpose.msra.mxu0 0.0
        %3400 = vmatpush.xpose.msra.mxu0 0.0
        %3401 = vmatpush.xpose.msra.mxu0 0.0
        %3402 = vmatpush.xpose.msra.mxu0 0.0
        %3403 = vmatpush.xpose.msra.mxu0 0.0
        %3404 = vmatpush.xpose.msra.mxu0 0.0
        %3405 = vmatpush.xpose.msra.mxu0 0.0
        %3406 = vmatpush.xpose.msra.mxu0 0.0
        %3407 = vmatpush.xpose.msra.mxu0 0.0
        %3408 = vmatpush.xpose.msra.mxu0 %v3392
        %3409 = vmatpush.xpose.msra.mxu0 %v3390
        %3410 = vmatmul.f32.gmra.mxu0 %v3388
        %v3411 = vpop.f32.mrf.mxu0
        %v3412 = vadd.f32 0.0, %v3411
        %3413 = vdwg.mxu0
        %v3414 = vsel %vm637, %v3412, -inf
        %3415 = vmax.xlane.f32.xlu0 %v3414
        %v3416 = vpop.xlane.xlu0 %3415
        %v3417 = vsub.f32 %v3412, %v3416
        %v3418 = vmul.f32 %v3417, 1.442695
        %v3419 = vpow.pop %v3418
        %v3420 = vsel %vm637, %v3419, 0.0
        %3421 = vadd.xlane.f32.xlu0 %v3420
        %v3422 = vpop.xlane.xlu0 %3421
        %v3423 = vrcp.pop %v3422
        %v3424 = vmul.f32 %v3419, %v3423
        %3425 = vrot.lane.b32.xlu0 %v3308, 48
        %v3426 = vpop.permute.xlu0 %3425
        %3427 = vrot.lane.b32.xlu0 %v3311, 48
        %v3428 = vpop.permute.xlu0 %3427
        %v3432 = vsel %vm637, %v3424, 0
        %3434 = vmatpush.msra.mxu0 0.0
        %3435 = vmatpush.msra.mxu0 0.0
        %3436 = vmatpush.msra.mxu0 0.0
        %3437 = vmatpush.msra.mxu0 0.0
        %3438 = vmatpush.msra.mxu0 0.0
        %3439 = vmatpush.msra.mxu0 0.0
        %3440 = vmatpush.msra.mxu0 0.0
        %3441 = vmatpush.msra.mxu0 0.0
        %3442 = vmatpush.msra.mxu0 0.0
        %3443 = vmatpush.msra.mxu0 0.0
        %3444 = vmatpush.msra.mxu0 0.0
        %3445 = vmatpush.msra.mxu0 0.0
        %3446 = vmatpush.msra.mxu0 0.0
        %3447 = vmatpush.msra.mxu0 0.0
        %3448 = vmatpush.msra.mxu0 %v3428
        %3449 = vmatpush.msra.mxu0 %v3426
        %3450 = vmatmul.f32.gmra.mxu0 %v3432
        %v3451 = vpop.f32.mrf.mxu0
        %v3452 = vadd.f32 0.0, %v3451
        %3453 = vdwg.mxu0
        %v3455 = vsel %vm637, %v3452, 0
        %3457 = vmatpush.msra.mxu0 0.0
        %3458 = vmatpush.msra.mxu0 0.0
        %3459 = vmatpush.msra.mxu0 0.0
        %3460 = vmatpush.msra.mxu0 0.0
        %3461 = vmatpush.msra.mxu0 0.0
        %3462 = vmatpush.msra.mxu0 0.0
        %3463 = vmatpush.msra.mxu0 0.0
        %3464 = vmatpush.msra.mxu0 0.0
        %3465 = vmatpush.msra.mxu0 0.0
        %3466 = vmatpush.msra.mxu0 0.0
        %3467 = vmatpush.msra.mxu0 0.0
        %3468 = vmatpush.msra.mxu0 0.0
        %3469 = vmatpush.msra.mxu0 0.0
        %3470 = vmatpush.msra.mxu0 0.0
        %3471 = vmatpush.msra.mxu0 %v3182
        %3472 = vmatpush.msra.mxu0 %v3181
        %3473 = vmatmul.f32.gmra.mxu0 %v3455
        %v3474 = vpop.f32.mrf.mxu0
        %v3475 = vadd.f32 0.0, %v3474
        %3476 = vdwg.mxu0
        %v3478 = vsel %vm637, %v3380, 0
        %3480 = vmatpush.msra.mxu0 0.0
        %3481 = vmatpush.msra.mxu0 0.0
        %3482 = vmatpush.msra.mxu0 0.0
        %3483 = vmatpush.msra.mxu0 0.0
        %3484 = vmatpush.msra.mxu0 0.0
        %3485 = vmatpush.msra.mxu0 0.0
        %3486 = vmatpush.msra.mxu0 0.0
        %3487 = vmatpush.msra.mxu0 0.0
        %3488 = vmatpush.msra.mxu0 0.0
        %3489 = vmatpush.msra.mxu0 0.0
        %3490 = vmatpush.msra.mxu0 0.0
        %3491 = vmatpush.msra.mxu0 0.0
        %3492 = vmatpush.msra.mxu0 0.0
        %3493 = vmatpush.msra.mxu0 0.0
        %3494 = vmatpush.msra.mxu0 %v3180
        %3495 = vmatpush.msra.mxu0 %v3179
        %3496 = vmatmul.f32.gmra.mxu0 %v3478
        %v3497 = vpop.f32.mrf.mxu0
        %v3498 = vadd.f32 %v3475, %v3497
        %3499 = vdwg.mxu0
        %3500 = vrot.lane.b32.xlu0 %v3211, 96
        %v3501 = vpop.permute.xlu0 %3500
        %3502 = vrot.lane.b32.xlu0 %v3308, 96
        %v3503 = vpop.permute.xlu0 %3502
        %3504 = vrot.lane.b32.xlu0 %v3311, 96
        %v3505 = vpop.permute.xlu0 %3504
        %v3506 = vsel %vm637, %v3501, 0
        %v3508 = vsel %vm637, %v3503, 0
        %v3510 = vsel %vm637, %v3505, 0
        %3512 = vmatpush.xpose.msra.mxu0 0.0
        %3513 = vmatpush.xpose.msra.mxu0 0.0
        %3514 = vmatpush.xpose.msra.mxu0 0.0
        %3515 = vmatpush.xpose.msra.mxu0 0.0
        %3516 = vmatpush.xpose.msra.mxu0 0.0
        %3517 = vmatpush.xpose.msra.mxu0 0.0
        %3518 = vmatpush.xpose.msra.mxu0 0.0
        %3519 = vmatpush.xpose.msra.mxu0 0.0
        %3520 = vmatpush.xpose.msra.mxu0 0.0
        %3521 = vmatpush.xpose.msra.mxu0 0.0
        %3522 = vmatpush.xpose.msra.mxu0 0.0
        %3523 = vmatpush.xpose.msra.mxu0 0.0
        %3524 = vmatpush.xpose.msra.mxu0 0.0
        %3525 = vmatpush.xpose.msra.mxu0 0.0
        %3526 = vmatpush.xpose.msra.mxu0 %v3510
        %3527 = vmatpush.xpose.msra.mxu0 %v3508
        %3528 = vmatmul.f32.gmra.mxu0 %v3506
        %v3529 = vpop.f32.mrf.mxu0
        %v3530 = vadd.f32 0.0, %v3529
        %3531 = vdwg.mxu0
        %v3532 = vsel %vm637, %v3530, -inf
        %3533 = vmax.xlane.f32.xlu0 %v3532
        %v3534 = vpop.xlane.xlu0 %3533
        %v3535 = vsub.f32 %v3530, %v3534
        %v3536 = vmul.f32 %v3535, 1.442695
        %v3537 = vpow.pop %v3536
        %v3538 = vsel %vm637, %v3537, 0.0
        %3539 = vadd.xlane.f32.xlu0 %v3538
        %v3540 = vpop.xlane.xlu0 %3539
        %v3541 = vrcp.pop %v3540
        %v3542 = vmul.f32 %v3537, %v3541
        %3543 = vrot.lane.b32.xlu0 %v3308, 32
        %v3544 = vpop.permute.xlu0 %3543
        %3545 = vrot.lane.b32.xlu0 %v3311, 32
        %v3546 = vpop.permute.xlu0 %3545
        %v3550 = vsel %vm637, %v3542, 0
        %3552 = vmatpush.msra.mxu0 0.0
        %3553 = vmatpush.msra.mxu0 0.0
        %3554 = vmatpush.msra.mxu0 0.0
        %3555 = vmatpush.msra.mxu0 0.0
        %3556 = vmatpush.msra.mxu0 0.0
        %3557 = vmatpush.msra.mxu0 0.0
        %3558 = vmatpush.msra.mxu0 0.0
        %3559 = vmatpush.msra.mxu0 0.0
        %3560 = vmatpush.msra.mxu0 0.0
        %3561 = vmatpush.msra.mxu0 0.0
        %3562 = vmatpush.msra.mxu0 0.0
        %3563 = vmatpush.msra.mxu0 0.0
        %3564 = vmatpush.msra.mxu0 0.0
        %3565 = vmatpush.msra.mxu0 0.0
        %3566 = vmatpush.msra.mxu0 %v3546
        %3567 = vmatpush.msra.mxu0 %v3544
        %3568 = vmatmul.f32.gmra.mxu0 %v3550
        %v3569 = vpop.f32.mrf.mxu0
        %v3570 = vadd.f32 0.0, %v3569
        %3571 = vdwg.mxu0
        %v3573 = vsel %vm637, %v3570, 0
        %3575 = vmatpush.msra.mxu0 0.0
        %3576 = vmatpush.msra.mxu0 0.0
        %3577 = vmatpush.msra.mxu0 0.0
        %3578 = vmatpush.msra.mxu0 0.0
        %3579 = vmatpush.msra.mxu0 0.0
        %3580 = vmatpush.msra.mxu0 0.0
        %3581 = vmatpush.msra.mxu0 0.0
        %3582 = vmatpush.msra.mxu0 0.0
        %3583 = vmatpush.msra.mxu0 0.0
        %3584 = vmatpush.msra.mxu0 0.0
        %3585 = vmatpush.msra.mxu0 0.0
        %3586 = vmatpush.msra.mxu0 0.0
        %3587 = vmatpush.msra.mxu0 0.0
        %3588 = vmatpush.msra.mxu0 0.0
        %3589 = vmatpush.msra.mxu0 %v3184
        %3590 = vmatpush.msra.mxu0 %v3183
        %3591 = vmatmul.f32.gmra.mxu0 %v3573
        %v3592 = vpop.f32.mrf.mxu0
        %v3593 = vadd.f32 0.0, %v3592
        %3594 = vdwg.mxu0
        %v3595 = vadd.f32 %v3498, %v3593
        %3596 = vrot.lane.b32.xlu0 %v3211, 80
        %v3597 = vpop.permute.xlu0 %3596
        %3598 = vrot.lane.b32.xlu0 %v3308, 80
        %v3599 = vpop.permute.xlu0 %3598
        %3600 = vrot.lane.b32.xlu0 %v3311, 80
        %v3601 = vpop.permute.xlu0 %3600
        %v3602 = vsel %vm637, %v3597, 0
        %v3604 = vsel %vm637, %v3599, 0
        %v3606 = vsel %vm637, %v3601, 0
        %3608 = vmatpush.xpose.msra.mxu0 0.0
        %3609 = vmatpush.xpose.msra.mxu0 0.0
        %3610 = vmatpush.xpose.msra.mxu0 0.0
        %3611 = vmatpush.xpose.msra.mxu0 0.0
        %3612 = vmatpush.xpose.msra.mxu0 0.0
        %3613 = vmatpush.xpose.msra.mxu0 0.0
        %3614 = vmatpush.xpose.msra.mxu0 0.0
        %3615 = vmatpush.xpose.msra.mxu0 0.0
        %3616 = vmatpush.xpose.msra.mxu0 0.0
        %3617 = vmatpush.xpose.msra.mxu0 0.0
        %3618 = vmatpush.xpose.msra.mxu0 0.0
        %3619 = vmatpush.xpose.msra.mxu0 0.0
        %3620 = vmatpush.xpose.msra.mxu0 0.0
        %3621 = vmatpush.xpose.msra.mxu0 0.0
        %3622 = vmatpush.xpose.msra.mxu0 %v3606
        %3623 = vmatpush.xpose.msra.mxu0 %v3604
        %3624 = vmatmul.f32.gmra.mxu0 %v3602
        %v3625 = vpop.f32.mrf.mxu0
        %v3626 = vadd.f32 0.0, %v3625
        %3627 = vdwg.mxu0
        %v3628 = vsel %vm637, %v3626, -inf
        %3629 = vmax.xlane.f32.xlu0 %v3628
        %v3630 = vpop.xlane.xlu0 %3629
        %v3631 = vsub.f32 %v3626, %v3630
        %v3632 = vmul.f32 %v3631, 1.442695
        %v3633 = vpow.pop %v3632
        %v3634 = vsel %vm637, %v3633, 0.0
        %3635 = vadd.xlane.f32.xlu0 %v3634
        %v3636 = vpop.xlane.xlu0 %3635
        %v3637 = vrcp.pop %v3636
        %v3638 = vmul.f32 %v3633, %v3637
        %3639 = vrot.lane.b32.xlu0 %v3308, 16
        %v3640 = vpop.permute.xlu0 %3639
        %3641 = vrot.lane.b32.xlu0 %v3311, 16
        %v3642 = vpop.permute.xlu0 %3641
        %v3646 = vsel %vm637, %v3638, 0
        %3648 = vmatpush.msra.mxu0 0.0
        %3649 = vmatpush.msra.mxu0 0.0
        %3650 = vmatpush.msra.mxu0 0.0
        %3651 = vmatpush.msra.mxu0 0.0
        %3652 = vmatpush.msra.mxu0 0.0
        %3653 = vmatpush.msra.mxu0 0.0
        %3654 = vmatpush.msra.mxu0 0.0
        %3655 = vmatpush.msra.mxu0 0.0
        %3656 = vmatpush.msra.mxu0 0.0
        %3657 = vmatpush.msra.mxu0 0.0
        %3658 = vmatpush.msra.mxu0 0.0
        %3659 = vmatpush.msra.mxu0 0.0
        %3660 = vmatpush.msra.mxu0 0.0
        %3661 = vmatpush.msra.mxu0 0.0
        %3662 = vmatpush.msra.mxu0 %v3642
        %3663 = vmatpush.msra.mxu0 %v3640
        %3664 = vmatmul.f32.gmra.mxu0 %v3646
        %v3665 = vpop.f32.mrf.mxu0
        %v3666 = vadd.f32 0.0, %v3665
        %3667 = vdwg.mxu0
        %v3669 = vsel %vm637, %v3666, 0
        %3671 = vmatpush.msra.mxu0 0.0
        %3672 = vmatpush.msra.mxu0 0.0
        %3673 = vmatpush.msra.mxu0 0.0
        %3674 = vmatpush.msra.mxu0 0.0
        %3675 = vmatpush.msra.mxu0 0.0
        %3676 = vmatpush.msra.mxu0 0.0
        %3677 = vmatpush.msra.mxu0 0.0
        %3678 = vmatpush.msra.mxu0 0.0
        %3679 = vmatpush.msra.mxu0 0.0
        %3680 = vmatpush.msra.mxu0 0.0
        %3681 = vmatpush.msra.mxu0 0.0
        %3682 = vmatpush.msra.mxu0 0.0
        %3683 = vmatpush.msra.mxu0 0.0
        %3684 = vmatpush.msra.mxu0 0.0
        %3685 = vmatpush.msra.mxu0 %v3186
        %3686 = vmatpush.msra.mxu0 %v3185
        %3687 = vmatmul.f32.gmra.mxu0 %v3669
        %v3688 = vpop.f32.mrf.mxu0
        %v3689 = vadd.f32 0.0, %v3688
        %3690 = vdwg.mxu0
        %v3691 = vadd.f32 %v3595, %v3689
        %s3692 = scalar_lea.vmem %s5, 4
        %v3693 = vld [vmem:[%s3692] sm:$0x1]
        %v3695 = vperm.slane %v3693, 0
        %v3697 = vadd.f32 %v3691, %v3695
        %s3698 = scalar_lea.vmem %s2, 640
        %v3699 = vld [vmem:[%s3698] sm:$0xff]
        %v3700 = vld [vmem:[%s3698 + $0x8] sm:$0xff]
        %v3701 = vld [vmem:[%s3698 + $0x10] sm:$0xff]
        %v3702 = vld [vmem:[%s3698 + $0x18] sm:$0xff]
        %v3703 = vld [vmem:[%s3698 + $0x20] sm:$0xff]
        %v3704 = vld [vmem:[%s3698 + $0x28] sm:$0xff]
        %v3705 = vld [vmem:[%s3698 + $0x30] sm:$0xff]
        %v3706 = vld [vmem:[%s3698 + $0x38] sm:$0xff]
        %v3707 = vld [vmem:[%s3698 + $0x40] sm:$0xff]
        %v3708 = vld [vmem:[%s3698 + $0x48] sm:$0xff]
        %v3709 = vld [vmem:[%s3698 + $0x50] sm:$0xff]
        %v3710 = vld [vmem:[%s3698 + $0x58] sm:$0xff]
        %v3711 = vld [vmem:[%s3698 + $0x60] sm:$0xff]
        %v3712 = vld [vmem:[%s3698 + $0x68] sm:$0xff]
        %v3713 = vld [vmem:[%s3698 + $0x70] sm:$0xff]
        %v3714 = vld [vmem:[%s3698 + $0x78] sm:$0xff]
        %s3715 = scalar_lea.vmem %s3, 10
        %v3716 = vld [vmem:[%s3715] sm:$0x3]
        %s3717 = scalar_lea.vmem %s4, 320
        %v3718 = vld [vmem:[%s3717] sm:$0xff]
        %v3719 = vld [vmem:[%s3717 + $0x8] sm:$0xff]
        %v3720 = vld [vmem:[%s3717 + $0x10] sm:$0xff]
        %v3721 = vld [vmem:[%s3717 + $0x18] sm:$0xff]
        %v3722 = vld [vmem:[%s3717 + $0x20] sm:$0xff]
        %v3723 = vld [vmem:[%s3717 + $0x28] sm:$0xff]
        %v3724 = vld [vmem:[%s3717 + $0x30] sm:$0xff]
        %v3725 = vld [vmem:[%s3717 + $0x38] sm:$0xff]
        %v3727 = vperm.slane %v3716, 0
        %3729 = vmatpush.msra.mxu0 0.0
        %3730 = vmatpush.msra.mxu0 0.0
        %3731 = vmatpush.msra.mxu0 0.0
        %3732 = vmatpush.msra.mxu0 0.0
        %3733 = vmatpush.msra.mxu0 0.0
        %3734 = vmatpush.msra.mxu0 0.0
        %3735 = vmatpush.msra.mxu0 0.0
        %3736 = vmatpush.msra.mxu0 0.0
        %3737 = vmatpush.msra.mxu0 %v3713
        %3738 = vmatpush.msra.mxu0 %v3711
        %3739 = vmatpush.msra.mxu0 %v3709
        %3740 = vmatpush.msra.mxu0 %v3707
        %3741 = vmatpush.msra.mxu0 %v3705
        %3742 = vmatpush.msra.mxu0 %v3703
        %3743 = vmatpush.msra.mxu0 %v3701
        %3744 = vmatpush.msra.mxu0 %v3699
        %3745 = vmatmul.f32.gmra.mxu0 %v3285
        %v3746 = vpop.f32.mrf.mxu0
        %v3747 = vadd.f32 %v3727, %v3746
        %3748 = vmatmul.f32.gmra.mxu0 %v3288
        %v3749 = vpop.f32.mrf.mxu0
        %v3750 = vadd.f32 %v3727, %v3749
        %3751 = vdwg.mxu0
        %v3752 = vperm.slane %v3716, 1
        %3769 = vrot.lane.b32.xlu0 %v3699, 64
        %v3770 = vpop.permute.xlu0 %3769
        %3771 = vrot.lane.b32.xlu0 %v3700, 64
        %v3772 = vpop.permute.xlu0 %3771
        %3773 = vrot.lane.b32.xlu0 %v3701, 64
        %v3774 = vpop.permute.xlu0 %3773
        %3775 = vrot.lane.b32.xlu0 %v3702, 64
        %v3776 = vpop.permute.xlu0 %3775
        %3777 = vrot.lane.b32.xlu0 %v3703, 64
        %v3778 = vpop.permute.xlu0 %3777
        %3779 = vrot.lane.b32.xlu0 %v3704, 64
        %v3780 = vpop.permute.xlu0 %3779
        %3781 = vrot.lane.b32.xlu0 %v3705, 64
        %v3782 = vpop.permute.xlu0 %3781
        %3783 = vrot.lane.b32.xlu0 %v3706, 64
        %v3784 = vpop.permute.xlu0 %3783
        %3785 = vrot.lane.b32.xlu0 %v3707, 64
        %v3786 = vpop.permute.xlu0 %3785
        %3787 = vrot.lane.b32.xlu0 %v3708, 64
        %v3788 = vpop.permute.xlu0 %3787
        %3789 = vrot.lane.b32.xlu0 %v3709, 64
        %v3790 = vpop.permute.xlu0 %3789
        %3791 = vrot.lane.b32.xlu0 %v3710, 64
        %v3792 = vpop.permute.xlu0 %3791
        %3793 = vrot.lane.b32.xlu0 %v3711, 64
        %v3794 = vpop.permute.xlu0 %3793
        %3795 = vrot.lane.b32.xlu0 %v3712, 64
        %v3796 = vpop.permute.xlu0 %3795
        %3797 = vrot.lane.b32.xlu0 %v3713, 64
        %v3798 = vpop.permute.xlu0 %3797
        %3799 = vrot.lane.b32.xlu0 %v3714, 64
        %v3800 = vpop.permute.xlu0 %3799
        %v3801 = vsel %vm513, %v3770, %v3772
        %v3802 = vsel %vm513, %v3774, %v3776
        %v3803 = vsel %vm513, %v3778, %v3780
        %v3804 = vsel %vm513, %v3782, %v3784
        %v3805 = vsel %vm513, %v3786, %v3788
        %v3806 = vsel %vm513, %v3790, %v3792
        %v3807 = vsel %vm513, %v3794, %v3796
        %v3808 = vsel %vm513, %v3798, %v3800
        %3817 = vrot.lane.b32.xlu0 %v3727, 64
        %v3818 = vpop.permute.xlu0 %3817
        %3819 = vrot.lane.b32.xlu0 %v3752, 64
        %v3820 = vpop.permute.xlu0 %3819
        %v3821 = vsel %vm513, %v3818, %v3820
        %3823 = vmatpush.msra.mxu0 0.0
        %3824 = vmatpush.msra.mxu0 0.0
        %3825 = vmatpush.msra.mxu0 0.0
        %3826 = vmatpush.msra.mxu0 0.0
        %3827 = vmatpush.msra.mxu0 0.0
        %3828 = vmatpush.msra.mxu0 0.0
        %3829 = vmatpush.msra.mxu0 0.0
        %3830 = vmatpush.msra.mxu0 0.0
        %3831 = vmatpush.msra.mxu0 %v3808
        %3832 = vmatpush.msra.mxu0 %v3807
        %3833 = vmatpush.msra.mxu0 %v3806
        %3834 = vmatpush.msra.mxu0 %v3805
        %3835 = vmatpush.msra.mxu0 %v3804
        %3836 = vmatpush.msra.mxu0 %v3803
        %3837 = vmatpush.msra.mxu0 %v3802
        %3838 = vmatpush.msra.mxu0 %v3801
        %3839 = vmatmul.f32.gmra.mxu0 %v3191
        %v3840 = vpop.f32.mrf.mxu0
        %v3841 = vadd.f32 %v3821, %v3840
        %3842 = vdwg.mxu0
        %v3844 = vsel %vm637, %v3747, 0
        %v3847 = vsel %vm637, %v3750, 0
        %v3850 = vsel %vm637, %v3841, 0
        %3852 = vmatpush.xpose.msra.mxu0 0.0
        %3853 = vmatpush.xpose.msra.mxu0 0.0
        %3854 = vmatpush.xpose.msra.mxu0 0.0
        %3855 = vmatpush.xpose.msra.mxu0 0.0
        %3856 = vmatpush.xpose.msra.mxu0 0.0
        %3857 = vmatpush.xpose.msra.mxu0 0.0
        %3858 = vmatpush.xpose.msra.mxu0 0.0
        %3859 = vmatpush.xpose.msra.mxu0 0.0
        %3860 = vmatpush.xpose.msra.mxu0 0.0
        %3861 = vmatpush.xpose.msra.mxu0 0.0
        %3862 = vmatpush.xpose.msra.mxu0 0.0
        %3863 = vmatpush.xpose.msra.mxu0 0.0
        %3864 = vmatpush.xpose.msra.mxu0 0.0
        %3865 = vmatpush.xpose.msra.mxu0 0.0
        %3866 = vmatpush.xpose.msra.mxu0 0.0
        %3867 = vmatpush.xpose.msra.mxu0 %v3850
        %3868 = vmatmul.f32.gmra.mxu0 %v3844
        %v3869 = vpop.f32.mrf.mxu0
        %v3870 = vadd.f32 0.0, %v3869
        %3871 = vmatmul.f32.gmra.mxu0 %v3847
        %v3872 = vpop.f32.mrf.mxu0
        %v3873 = vadd.f32 0.0, %v3872
        %3874 = vdwg.mxu0
        %v3875 = vsel %vm670, %v3870, -inf
        %3876 = vmax.xlane.f32.xlu0 %v3875
        %v3877 = vpop.xlane.xlu0 %3876
        %v3878 = vsel %vm670, %v3873, -inf
        %3879 = vmax.xlane.f32.xlu0 %v3878
        %v3880 = vpop.xlane.xlu0 %3879
        %v3881 = vsub.f32 %v3870, %v3877
        %v3882 = vsub.f32 %v3873, %v3880
        %v3883 = vmul.f32 %v3881, 1.442695
        %v3884 = vpow.pop %v3883
        %v3885 = vmul.f32 %v3882, 1.442695
        %v3886 = vpow.pop %v3885
        %v3887 = vsel %vm670, %v3884, 0.0
        %3888 = vadd.xlane.f32.xlu0 %v3887
        %v3889 = vpop.xlane.xlu0 %3888
        %v3890 = vsel %vm670, %v3886, 0.0
        %3891 = vadd.xlane.f32.xlu0 %v3890
        %v3892 = vpop.xlane.xlu0 %3891
        %v3893 = vrcp.pop %v3889
        %v3894 = vrcp.pop %v3892
        %v3895 = vmul.f32 %v3884, %v3893
        %v3896 = vmul.f32 %v3886, %v3894
        %3897 = vrot.lane.b32.xlu0 %v3841, 64
        %v3898 = vpop.permute.xlu0 %3897
        %v3901 = vsel %vm670, %v3895, 0
        %v3904 = vsel %vm670, %v3896, 0
        %3906 = vmatpush.msra.mxu0 0.0
        %3907 = vmatpush.msra.mxu0 0.0
        %3908 = vmatpush.msra.mxu0 0.0
        %3909 = vmatpush.msra.mxu0 0.0
        %3910 = vmatpush.msra.mxu0 0.0
        %3911 = vmatpush.msra.mxu0 0.0
        %3912 = vmatpush.msra.mxu0 0.0
        %3913 = vmatpush.msra.mxu0 0.0
        %3914 = vmatpush.msra.mxu0 0.0
        %3915 = vmatpush.msra.mxu0 0.0
        %3916 = vmatpush.msra.mxu0 0.0
        %3917 = vmatpush.msra.mxu0 0.0
        %3918 = vmatpush.msra.mxu0 0.0
        %3919 = vmatpush.msra.mxu0 0.0
        %3920 = vmatpush.msra.mxu0 0.0
        %3921 = vmatpush.msra.mxu0 %v3898
        %3922 = vmatmul.f32.gmra.mxu0 %v3901
        %v3923 = vpop.f32.mrf.mxu0
        %v3924 = vadd.f32 0.0, %v3923
        %3925 = vmatmul.f32.gmra.mxu0 %v3904
        %v3926 = vpop.f32.mrf.mxu0
        %v3927 = vadd.f32 0.0, %v3926
        %3928 = vdwg.mxu0
        %3929 = vrot.lane.b32.xlu0 %v3747, 112
        %v3930 = vpop.permute.xlu0 %3929
        %3931 = vrot.lane.b32.xlu0 %v3750, 112
        %v3932 = vpop.permute.xlu0 %3931
        %3933 = vrot.lane.b32.xlu0 %v3841, 112
        %v3934 = vpop.permute.xlu0 %3933
        %v3935 = vsel %vm637, %v3930, 0
        %v3937 = vsel %vm637, %v3932, 0
        %v3939 = vsel %vm637, %v3934, 0
        %3941 = vmatpush.xpose.msra.mxu0 0.0
        %3942 = vmatpush.xpose.msra.mxu0 0.0
        %3943 = vmatpush.xpose.msra.mxu0 0.0
        %3944 = vmatpush.xpose.msra.mxu0 0.0
        %3945 = vmatpush.xpose.msra.mxu0 0.0
        %3946 = vmatpush.xpose.msra.mxu0 0.0
        %3947 = vmatpush.xpose.msra.mxu0 0.0
        %3948 = vmatpush.xpose.msra.mxu0 0.0
        %3949 = vmatpush.xpose.msra.mxu0 0.0
        %3950 = vmatpush.xpose.msra.mxu0 0.0
        %3951 = vmatpush.xpose.msra.mxu0 0.0
        %3952 = vmatpush.xpose.msra.mxu0 0.0
        %3953 = vmatpush.xpose.msra.mxu0 0.0
        %3954 = vmatpush.xpose.msra.mxu0 0.0
        %3955 = vmatpush.xpose.msra.mxu0 0.0
        %3956 = vmatpush.xpose.msra.mxu0 %v3939
        %3957 = vmatmul.f32.gmra.mxu0 %v3935
        %v3958 = vpop.f32.mrf.mxu0
        %v3959 = vadd.f32 0.0, %v3958
        %3960 = vmatmul.f32.gmra.mxu0 %v3937
        %v3961 = vpop.f32.mrf.mxu0
        %v3962 = vadd.f32 0.0, %v3961
        %3963 = vdwg.mxu0
        %v3964 = vsel %vm670, %v3959, -inf
        %3965 = vmax.xlane.f32.xlu0 %v3964
        %v3966 = vpop.xlane.xlu0 %3965
        %v3967 = vsel %vm670, %v3962, -inf
        %3968 = vmax.xlane.f32.xlu0 %v3967
        %v3969 = vpop.xlane.xlu0 %3968
        %v3970 = vsub.f32 %v3959, %v3966
        %v3971 = vsub.f32 %v3962, %v3969
        %v3972 = vmul.f32 %v3970, 1.442695
        %v3973 = vpow.pop %v3972
        %v3974 = vmul.f32 %v3971, 1.442695
        %v3975 = vpow.pop %v3974
        %v3976 = vsel %vm670, %v3973, 0.0
        %3977 = vadd.xlane.f32.xlu0 %v3976
        %v3978 = vpop.xlane.xlu0 %3977
        %v3979 = vsel %vm670, %v3975, 0.0
        %3980 = vadd.xlane.f32.xlu0 %v3979
        %v3981 = vpop.xlane.xlu0 %3980
        %v3982 = vrcp.pop %v3978
        %v3983 = vrcp.pop %v3981
        %v3984 = vmul.f32 %v3973, %v3982
        %v3985 = vmul.f32 %v3975, %v3983
        %3986 = vrot.lane.b32.xlu0 %v3841, 48
        %v3987 = vpop.permute.xlu0 %3986
        %v3990 = vsel %vm670, %v3984, 0
        %v3993 = vsel %vm670, %v3985, 0
        %3995 = vmatpush.msra.mxu0 0.0
        %3996 = vmatpush.msra.mxu0 0.0
        %3997 = vmatpush.msra.mxu0 0.0
        %3998 = vmatpush.msra.mxu0 0.0
        %3999 = vmatpush.msra.mxu0 0.0
        %4000 = vmatpush.msra.mxu0 0.0
        %4001 = vmatpush.msra.mxu0 0.0
        %4002 = vmatpush.msra.mxu0 0.0
        %4003 = vmatpush.msra.mxu0 0.0
        %4004 = vmatpush.msra.mxu0 0.0
        %4005 = vmatpush.msra.mxu0 0.0
        %4006 = vmatpush.msra.mxu0 0.0
        %4007 = vmatpush.msra.mxu0 0.0
        %4008 = vmatpush.msra.mxu0 0.0
        %4009 = vmatpush.msra.mxu0 0.0
        %4010 = vmatpush.msra.mxu0 %v3987
        %4011 = vmatmul.f32.gmra.mxu0 %v3990
        %v4012 = vpop.f32.mrf.mxu0
        %v4013 = vadd.f32 0.0, %v4012
        %4014 = vmatmul.f32.gmra.mxu0 %v3993
        %v4015 = vpop.f32.mrf.mxu0
        %v4016 = vadd.f32 0.0, %v4015
        %4017 = vdwg.mxu0
        %v4019 = vsel %vm637, %v4013, 0
        %v4022 = vsel %vm637, %v4016, 0
        %4024 = vmatpush.msra.mxu0 0.0
        %4025 = vmatpush.msra.mxu0 0.0
        %4026 = vmatpush.msra.mxu0 0.0
        %4027 = vmatpush.msra.mxu0 0.0
        %4028 = vmatpush.msra.mxu0 0.0
        %4029 = vmatpush.msra.mxu0 0.0
        %4030 = vmatpush.msra.mxu0 0.0
        %4031 = vmatpush.msra.mxu0 0.0
        %4032 = vmatpush.msra.mxu0 0.0
        %4033 = vmatpush.msra.mxu0 0.0
        %4034 = vmatpush.msra.mxu0 0.0
        %4035 = vmatpush.msra.mxu0 0.0
        %4036 = vmatpush.msra.mxu0 0.0
        %4037 = vmatpush.msra.mxu0 0.0
        %4038 = vmatpush.msra.mxu0 %v3721
        %4039 = vmatpush.msra.mxu0 %v3720
        %4040 = vmatmul.f32.gmra.mxu0 %v4019
        %v4041 = vpop.f32.mrf.mxu0
        %v4042 = vadd.f32 0.0, %v4041
        %4043 = vmatmul.f32.gmra.mxu0 %v4022
        %v4044 = vpop.f32.mrf.mxu0
        %v4045 = vadd.f32 0.0, %v4044
        %4046 = vdwg.mxu0
        %v4048 = vsel %vm637, %v3924, 0
        %v4051 = vsel %vm637, %v3927, 0
        %4053 = vmatpush.msra.mxu0 0.0
        %4054 = vmatpush.msra.mxu0 0.0
        %4055 = vmatpush.msra.mxu0 0.0
        %4056 = vmatpush.msra.mxu0 0.0
        %4057 = vmatpush.msra.mxu0 0.0
        %4058 = vmatpush.msra.mxu0 0.0
        %4059 = vmatpush.msra.mxu0 0.0
        %4060 = vmatpush.msra.mxu0 0.0
        %4061 = vmatpush.msra.mxu0 0.0
        %4062 = vmatpush.msra.mxu0 0.0
        %4063 = vmatpush.msra.mxu0 0.0
        %4064 = vmatpush.msra.mxu0 0.0
        %4065 = vmatpush.msra.mxu0 0.0
        %4066 = vmatpush.msra.mxu0 0.0
        %4067 = vmatpush.msra.mxu0 %v3719
        %4068 = vmatpush.msra.mxu0 %v3718
        %4069 = vmatmul.f32.gmra.mxu0 %v4048
        %v4070 = vpop.f32.mrf.mxu0
        %v4071 = vadd.f32 %v4042, %v4070
        %4072 = vmatmul.f32.gmra.mxu0 %v4051
        %v4073 = vpop.f32.mrf.mxu0
        %v4074 = vadd.f32 %v4045, %v4073
        %4075 = vdwg.mxu0
        %4076 = vrot.lane.b32.xlu0 %v3747, 96
        %v4077 = vpop.permute.xlu0 %4076
        %4078 = vrot.lane.b32.xlu0 %v3750, 96
        %v4079 = vpop.permute.xlu0 %4078
        %4080 = vrot.lane.b32.xlu0 %v3841, 96
        %v4081 = vpop.permute.xlu0 %4080
        %v4082 = vsel %vm637, %v4077, 0
        %v4084 = vsel %vm637, %v4079, 0
        %v4086 = vsel %vm637, %v4081, 0
        %4088 = vmatpush.xpose.msra.mxu0 0.0
        %4089 = vmatpush.xpose.msra.mxu0 0.0
        %4090 = vmatpush.xpose.msra.mxu0 0.0
        %4091 = vmatpush.xpose.msra.mxu0 0.0
        %4092 = vmatpush.xpose.msra.mxu0 0.0
        %4093 = vmatpush.xpose.msra.mxu0 0.0
        %4094 = vmatpush.xpose.msra.mxu0 0.0
        %4095 = vmatpush.xpose.msra.mxu0 0.0
        %4096 = vmatpush.xpose.msra.mxu0 0.0
        %4097 = vmatpush.xpose.msra.mxu0 0.0
        %4098 = vmatpush.xpose.msra.mxu0 0.0
        %4099 = vmatpush.xpose.msra.mxu0 0.0
        %4100 = vmatpush.xpose.msra.mxu0 0.0
        %4101 = vmatpush.xpose.msra.mxu0 0.0
        %4102 = vmatpush.xpose.msra.mxu0 0.0
        %4103 = vmatpush.xpose.msra.mxu0 %v4086
        %4104 = vmatmul.f32.gmra.mxu0 %v4082
        %v4105 = vpop.f32.mrf.mxu0
        %v4106 = vadd.f32 0.0, %v4105
        %4107 = vmatmul.f32.gmra.mxu0 %v4084
        %v4108 = vpop.f32.mrf.mxu0
        %v4109 = vadd.f32 0.0, %v4108
        %4110 = vdwg.mxu0
        %v4111 = vsel %vm670, %v4106, -inf
        %4112 = vmax.xlane.f32.xlu0 %v4111
        %v4113 = vpop.xlane.xlu0 %4112
        %v4114 = vsel %vm670, %v4109, -inf
        %4115 = vmax.xlane.f32.xlu0 %v4114
        %v4116 = vpop.xlane.xlu0 %4115
        %v4117 = vsub.f32 %v4106, %v4113
        %v4118 = vsub.f32 %v4109, %v4116
        %v4119 = vmul.f32 %v4117, 1.442695
        %v4120 = vpow.pop %v4119
        %v4121 = vmul.f32 %v4118, 1.442695
        %v4122 = vpow.pop %v4121
        %v4123 = vsel %vm670, %v4120, 0.0
        %4124 = vadd.xlane.f32.xlu0 %v4123
        %v4125 = vpop.xlane.xlu0 %4124
        %v4126 = vsel %vm670, %v4122, 0.0
        %4127 = vadd.xlane.f32.xlu0 %v4126
        %v4128 = vpop.xlane.xlu0 %4127
        %v4129 = vrcp.pop %v4125
        %v4130 = vrcp.pop %v4128
        %v4131 = vmul.f32 %v4120, %v4129
        %v4132 = vmul.f32 %v4122, %v4130
        %4133 = vrot.lane.b32.xlu0 %v3841, 32
        %v4134 = vpop.permute.xlu0 %4133
        %v4137 = vsel %vm670, %v4131, 0
        %v4140 = vsel %vm670, %v4132, 0
        %4142 = vmatpush.msra.mxu0 0.0
        %4143 = vmatpush.msra.mxu0 0.0
        %4144 = vmatpush.msra.mxu0 0.0
        %4145 = vmatpush.msra.mxu0 0.0
        %4146 = vmatpush.msra.mxu0 0.0
        %4147 = vmatpush.msra.mxu0 0.0
        %4148 = vmatpush.msra.mxu0 0.0
        %4149 = vmatpush.msra.mxu0 0.0
        %4150 = vmatpush.msra.mxu0 0.0
        %4151 = vmatpush.msra.mxu0 0.0
        %4152 = vmatpush.msra.mxu0 0.0
        %4153 = vmatpush.msra.mxu0 0.0
        %4154 = vmatpush.msra.mxu0 0.0
        %4155 = vmatpush.msra.mxu0 0.0
        %4156 = vmatpush.msra.mxu0 0.0
        %4157 = vmatpush.msra.mxu0 %v4134
        %4158 = vmatmul.f32.gmra.mxu0 %v4137
        %v4159 = vpop.f32.mrf.mxu0
        %v4160 = vadd.f32 0.0, %v4159
        %4161 = vmatmul.f32.gmra.mxu0 %v4140
        %v4162 = vpop.f32.mrf.mxu0
        %v4163 = vadd.f32 0.0, %v4162
        %4164 = vdwg.mxu0
        %v4166 = vsel %vm637, %v4160, 0
        %v4169 = vsel %vm637, %v4163, 0
        %4171 = vmatpush.msra.mxu0 0.0
        %4172 = vmatpush.msra.mxu0 0.0
        %4173 = vmatpush.msra.mxu0 0.0
        %4174 = vmatpush.msra.mxu0 0.0
        %4175 = vmatpush.msra.mxu0 0.0
        %4176 = vmatpush.msra.mxu0 0.0
        %4177 = vmatpush.msra.mxu0 0.0
        %4178 = vmatpush.msra.mxu0 0.0
        %4179 = vmatpush.msra.mxu0 0.0
        %4180 = vmatpush.msra.mxu0 0.0
        %4181 = vmatpush.msra.mxu0 0.0
        %4182 = vmatpush.msra.mxu0 0.0
        %4183 = vmatpush.msra.mxu0 0.0
        %4184 = vmatpush.msra.mxu0 0.0
        %4185 = vmatpush.msra.mxu0 %v3723
        %4186 = vmatpush.msra.mxu0 %v3722
        %4187 = vmatmul.f32.gmra.mxu0 %v4166
        %v4188 = vpop.f32.mrf.mxu0
        %v4189 = vadd.f32 0.0, %v4188
        %4190 = vmatmul.f32.gmra.mxu0 %v4169
        %v4191 = vpop.f32.mrf.mxu0
        %v4192 = vadd.f32 0.0, %v4191
        %4193 = vdwg.mxu0
        %v4194 = vadd.f32 %v4071, %v4189
        %v4195 = vadd.f32 %v4074, %v4192
        %4196 = vrot.lane.b32.xlu0 %v3747, 80
        %v4197 = vpop.permute.xlu0 %4196
        %4198 = vrot.lane.b32.xlu0 %v3750, 80
        %v4199 = vpop.permute.xlu0 %4198
        %4200 = vrot.lane.b32.xlu0 %v3841, 80
        %v4201 = vpop.permute.xlu0 %4200
        %v4202 = vsel %vm637, %v4197, 0
        %v4204 = vsel %vm637, %v4199, 0
        %v4206 = vsel %vm637, %v4201, 0
        %4208 = vmatpush.xpose.msra.mxu0 0.0
        %4209 = vmatpush.xpose.msra.mxu0 0.0
        %4210 = vmatpush.xpose.msra.mxu0 0.0
        %4211 = vmatpush.xpose.msra.mxu0 0.0
        %4212 = vmatpush.xpose.msra.mxu0 0.0
        %4213 = vmatpush.xpose.msra.mxu0 0.0
        %4214 = vmatpush.xpose.msra.mxu0 0.0
        %4215 = vmatpush.xpose.msra.mxu0 0.0
        %4216 = vmatpush.xpose.msra.mxu0 0.0
        %4217 = vmatpush.xpose.msra.mxu0 0.0
        %4218 = vmatpush.xpose.msra.mxu0 0.0
        %4219 = vmatpush.xpose.msra.mxu0 0.0
        %4220 = vmatpush.xpose.msra.mxu0 0.0
        %4221 = vmatpush.xpose.msra.mxu0 0.0
        %4222 = vmatpush.xpose.msra.mxu0 0.0
        %4223 = vmatpush.xpose.msra.mxu0 %v4206
        %4224 = vmatmul.f32.gmra.mxu0 %v4202
        %v4225 = vpop.f32.mrf.mxu0
        %v4226 = vadd.f32 0.0, %v4225
        %4227 = vmatmul.f32.gmra.mxu0 %v4204
        %v4228 = vpop.f32.mrf.mxu0
        %v4229 = vadd.f32 0.0, %v4228
        %4230 = vdwg.mxu0
        %v4231 = vsel %vm670, %v4226, -inf
        %4232 = vmax.xlane.f32.xlu0 %v4231
        %v4233 = vpop.xlane.xlu0 %4232
        %v4234 = vsel %vm670, %v4229, -inf
        %4235 = vmax.xlane.f32.xlu0 %v4234
        %v4236 = vpop.xlane.xlu0 %4235
        %v4237 = vsub.f32 %v4226, %v4233
        %v4238 = vsub.f32 %v4229, %v4236
        %v4239 = vmul.f32 %v4237, 1.442695
        %v4240 = vpow.pop %v4239
        %v4241 = vmul.f32 %v4238, 1.442695
        %v4242 = vpow.pop %v4241
        %v4243 = vsel %vm670, %v4240, 0.0
        %4244 = vadd.xlane.f32.xlu0 %v4243
        %v4245 = vpop.xlane.xlu0 %4244
        %v4246 = vsel %vm670, %v4242, 0.0
        %4247 = vadd.xlane.f32.xlu0 %v4246
        %v4248 = vpop.xlane.xlu0 %4247
        %v4249 = vrcp.pop %v4245
        %v4250 = vrcp.pop %v4248
        %v4251 = vmul.f32 %v4240, %v4249
        %v4252 = vmul.f32 %v4242, %v4250
        %4253 = vrot.lane.b32.xlu0 %v3841, 16
        %v4254 = vpop.permute.xlu0 %4253
        %v4257 = vsel %vm670, %v4251, 0
        %v4260 = vsel %vm670, %v4252, 0
        %4262 = vmatpush.msra.mxu0 0.0
        %4263 = vmatpush.msra.mxu0 0.0
        %4264 = vmatpush.msra.mxu0 0.0
        %4265 = vmatpush.msra.mxu0 0.0
        %4266 = vmatpush.msra.mxu0 0.0
        %4267 = vmatpush.msra.mxu0 0.0
        %4268 = vmatpush.msra.mxu0 0.0
        %4269 = vmatpush.msra.mxu0 0.0
        %4270 = vmatpush.msra.mxu0 0.0
        %4271 = vmatpush.msra.mxu0 0.0
        %4272 = vmatpush.msra.mxu0 0.0
        %4273 = vmatpush.msra.mxu0 0.0
        %4274 = vmatpush.msra.mxu0 0.0
        %4275 = vmatpush.msra.mxu0 0.0
        %4276 = vmatpush.msra.mxu0 0.0
        %4277 = vmatpush.msra.mxu0 %v4254
        %4278 = vmatmul.f32.gmra.mxu0 %v4257
        %v4279 = vpop.f32.mrf.mxu0
        %v4280 = vadd.f32 0.0, %v4279
        %4281 = vmatmul.f32.gmra.mxu0 %v4260
        %v4282 = vpop.f32.mrf.mxu0
        %v4283 = vadd.f32 0.0, %v4282
        %4284 = vdwg.mxu0
        %v4286 = vsel %vm637, %v4280, 0
        %v4289 = vsel %vm637, %v4283, 0
        %4291 = vmatpush.msra.mxu0 0.0
        %4292 = vmatpush.msra.mxu0 0.0
        %4293 = vmatpush.msra.mxu0 0.0
        %4294 = vmatpush.msra.mxu0 0.0
        %4295 = vmatpush.msra.mxu0 0.0
        %4296 = vmatpush.msra.mxu0 0.0
        %4297 = vmatpush.msra.mxu0 0.0
        %4298 = vmatpush.msra.mxu0 0.0
        %4299 = vmatpush.msra.mxu0 0.0
        %4300 = vmatpush.msra.mxu0 0.0
        %4301 = vmatpush.msra.mxu0 0.0
        %4302 = vmatpush.msra.mxu0 0.0
        %4303 = vmatpush.msra.mxu0 0.0
        %4304 = vmatpush.msra.mxu0 0.0
        %4305 = vmatpush.msra.mxu0 %v3725
        %4306 = vmatpush.msra.mxu0 %v3724
        %4307 = vmatmul.f32.gmra.mxu0 %v4286
        %v4308 = vpop.f32.mrf.mxu0
        %v4309 = vadd.f32 0.0, %v4308
        %4310 = vmatmul.f32.gmra.mxu0 %v4289
        %v4311 = vpop.f32.mrf.mxu0
        %v4312 = vadd.f32 0.0, %v4311
        %4313 = vdwg.mxu0
        %v4314 = vadd.f32 %v4194, %v4309
        %v4315 = vadd.f32 %v4195, %v4312
        %s4316 = scalar_lea.vmem %s5, 5
        %v4317 = vld [vmem:[%s4316] sm:$0x1]
        %v4319 = vperm.slane %v4317, 0
        %v4321 = vadd.f32 %v4314, %v4319
        %v4322 = vadd.f32 %v4315, %v4319
        %s4323 = scalar_lea.vmem %s2, 768
        %v4324 = vld [vmem:[%s4323] sm:$0xff]
        %v4325 = vld [vmem:[%s4323 + $0x8] sm:$0xff]
        %v4326 = vld [vmem:[%s4323 + $0x10] sm:$0xff]
        %v4327 = vld [vmem:[%s4323 + $0x18] sm:$0xff]
        %v4328 = vld [vmem:[%s4323 + $0x20] sm:$0xff]
        %v4329 = vld [vmem:[%s4323 + $0x28] sm:$0xff]
        %v4330 = vld [vmem:[%s4323 + $0x30] sm:$0xff]
        %v4331 = vld [vmem:[%s4323 + $0x38] sm:$0xff]
        %v4332 = vld [vmem:[%s4323 + $0x40] sm:$0xff]
        %v4333 = vld [vmem:[%s4323 + $0x48] sm:$0xff]
        %v4334 = vld [vmem:[%s4323 + $0x50] sm:$0xff]
        %v4335 = vld [vmem:[%s4323 + $0x58] sm:$0xff]
        %v4336 = vld [vmem:[%s4323 + $0x60] sm:$0xff]
        %v4337 = vld [vmem:[%s4323 + $0x68] sm:$0xff]
        %v4338 = vld [vmem:[%s4323 + $0x70] sm:$0xff]
        %v4339 = vld [vmem:[%s4323 + $0x78] sm:$0xff]
        %s4340 = scalar_lea.vmem %s3, 12
        %v4341 = vld [vmem:[%s4340] sm:$0x3]
        %s4342 = scalar_lea.vmem %s4, 384
        %v4343 = vld [vmem:[%s4342] sm:$0xff]
        %v4344 = vld [vmem:[%s4342 + $0x8] sm:$0xff]
        %v4345 = vld [vmem:[%s4342 + $0x10] sm:$0xff]
        %v4346 = vld [vmem:[%s4342 + $0x18] sm:$0xff]
        %v4347 = vld [vmem:[%s4342 + $0x20] sm:$0xff]
        %v4348 = vld [vmem:[%s4342 + $0x28] sm:$0xff]
        %v4349 = vld [vmem:[%s4342 + $0x30] sm:$0xff]
        %v4350 = vld [vmem:[%s4342 + $0x38] sm:$0xff]
        %v4352 = vperm.slane %v4341, 0
        %v4355 = vsel %vm513, %v3697, 0
        %4357 = vmatpush.msra.mxu0 0.0
        %4358 = vmatpush.msra.mxu0 0.0
        %4359 = vmatpush.msra.mxu0 0.0
        %4360 = vmatpush.msra.mxu0 0.0
        %4361 = vmatpush.msra.mxu0 0.0
        %4362 = vmatpush.msra.mxu0 0.0
        %4363 = vmatpush.msra.mxu0 0.0
        %4364 = vmatpush.msra.mxu0 0.0
        %4365 = vmatpush.msra.mxu0 %v4338
        %4366 = vmatpush.msra.mxu0 %v4336
        %4367 = vmatpush.msra.mxu0 %v4334
        %4368 = vmatpush.msra.mxu0 %v4332
        %4369 = vmatpush.msra.mxu0 %v4330
        %4370 = vmatpush.msra.mxu0 %v4328
        %4371 = vmatpush.msra.mxu0 %v4326
        %4372 = vmatpush.msra.mxu0 %v4324
        %4373 = vmatmul.f32.gmra.mxu0 %v4355
        %v4374 = vpop.f32.mrf.mxu0
        %v4375 = vadd.f32 %v4352, %v4374
        %4376 = vdwg.mxu0
        %v4377 = vperm.slane %v4341, 1
        %4394 = vrot.lane.b32.xlu0 %v4324, 64
        %v4395 = vpop.permute.xlu0 %4394
        %4396 = vrot.lane.b32.xlu0 %v4325, 64
        %v4397 = vpop.permute.xlu0 %4396
        %4398 = vrot.lane.b32.xlu0 %v4326, 64
        %v4399 = vpop.permute.xlu0 %4398
        %4400 = vrot.lane.b32.xlu0 %v4327, 64
        %v4401 = vpop.permute.xlu0 %4400
        %4402 = vrot.lane.b32.xlu0 %v4328, 64
        %v4403 = vpop.permute.xlu0 %4402
        %4404 = vrot.lane.b32.xlu0 %v4329, 64
        %v4405 = vpop.permute.xlu0 %4404
        %4406 = vrot.lane.b32.xlu0 %v4330, 64
        %v4407 = vpop.permute.xlu0 %4406
        %4408 = vrot.lane.b32.xlu0 %v4331, 64
        %v4409 = vpop.permute.xlu0 %4408
        %4410 = vrot.lane.b32.xlu0 %v4332, 64
        %v4411 = vpop.permute.xlu0 %4410
        %4412 = vrot.lane.b32.xlu0 %v4333, 64
        %v4413 = vpop.permute.xlu0 %4412
        %4414 = vrot.lane.b32.xlu0 %v4334, 64
        %v4415 = vpop.permute.xlu0 %4414
        %4416 = vrot.lane.b32.xlu0 %v4335, 64
        %v4417 = vpop.permute.xlu0 %4416
        %4418 = vrot.lane.b32.xlu0 %v4336, 64
        %v4419 = vpop.permute.xlu0 %4418
        %4420 = vrot.lane.b32.xlu0 %v4337, 64
        %v4421 = vpop.permute.xlu0 %4420
        %4422 = vrot.lane.b32.xlu0 %v4338, 64
        %v4423 = vpop.permute.xlu0 %4422
        %4424 = vrot.lane.b32.xlu0 %v4339, 64
        %v4425 = vpop.permute.xlu0 %4424
        %v4426 = vsel %vm513, %v4395, %v4397
        %v4427 = vsel %vm513, %v4399, %v4401
        %v4428 = vsel %vm513, %v4403, %v4405
        %v4429 = vsel %vm513, %v4407, %v4409
        %v4430 = vsel %vm513, %v4411, %v4413
        %v4431 = vsel %vm513, %v4415, %v4417
        %v4432 = vsel %vm513, %v4419, %v4421
        %v4433 = vsel %vm513, %v4423, %v4425
        %4442 = vrot.lane.b32.xlu0 %v4352, 64
        %v4443 = vpop.permute.xlu0 %4442
        %4444 = vrot.lane.b32.xlu0 %v4377, 64
        %v4445 = vpop.permute.xlu0 %4444
        %v4446 = vsel %vm513, %v4443, %v4445
        %4448 = vmatpush.msra.mxu0 0.0
        %4449 = vmatpush.msra.mxu0 0.0
        %4450 = vmatpush.msra.mxu0 0.0
        %4451 = vmatpush.msra.mxu0 0.0
        %4452 = vmatpush.msra.mxu0 0.0
        %4453 = vmatpush.msra.mxu0 0.0
        %4454 = vmatpush.msra.mxu0 0.0
        %4455 = vmatpush.msra.mxu0 0.0
        %4456 = vmatpush.msra.mxu0 %v4433
        %4457 = vmatpush.msra.mxu0 %v4432
        %4458 = vmatpush.msra.mxu0 %v4431
        %4459 = vmatpush.msra.mxu0 %v4430
        %4460 = vmatpush.msra.mxu0 %v4429
        %4461 = vmatpush.msra.mxu0 %v4428
        %4462 = vmatpush.msra.mxu0 %v4427
        %4463 = vmatpush.msra.mxu0 %v4426
        %4464 = vmatmul.f32.gmra.mxu0 %v4355
        %v4465 = vpop.f32.mrf.mxu0
        %v4466 = vadd.f32 %v4446, %v4465
        %4467 = vdwg.mxu0
        %v4469 = vsel %vm637, %v4375, 0
        %v4472 = vsel %vm637, %v4466, 0
        %4474 = vmatpush.xpose.msra.mxu0 0.0
        %4475 = vmatpush.xpose.msra.mxu0 0.0
        %4476 = vmatpush.xpose.msra.mxu0 0.0
        %4477 = vmatpush.xpose.msra.mxu0 0.0
        %4478 = vmatpush.xpose.msra.mxu0 0.0
        %4479 = vmatpush.xpose.msra.mxu0 0.0
        %4480 = vmatpush.xpose.msra.mxu0 0.0
        %4481 = vmatpush.xpose.msra.mxu0 0.0
        %4482 = vmatpush.xpose.msra.mxu0 0.0
        %4483 = vmatpush.xpose.msra.mxu0 0.0
        %4484 = vmatpush.xpose.msra.mxu0 0.0
        %4485 = vmatpush.xpose.msra.mxu0 0.0
        %4486 = vmatpush.xpose.msra.mxu0 0.0
        %4487 = vmatpush.xpose.msra.mxu0 0.0
        %4488 = vmatpush.xpose.msra.mxu0 0.0
        %4489 = vmatpush.xpose.msra.mxu0 %v4472
        %4490 = vmatmul.f32.gmra.mxu0 %v4469
        %v4491 = vpop.f32.mrf.mxu0
        %v4492 = vadd.f32 0.0, %v4491
        %4493 = vdwg.mxu0
        %v4494 = vsel %vm670, %v4492, -inf
        %4495 = vmax.xlane.f32.xlu0 %v4494
        %v4496 = vpop.xlane.xlu0 %4495
        %v4497 = vsub.f32 %v4492, %v4496
        %v4498 = vmul.f32 %v4497, 1.442695
        %v4499 = vpow.pop %v4498
        %v4500 = vsel %vm670, %v4499, 0.0
        %4501 = vadd.xlane.f32.xlu0 %v4500
        %v4502 = vpop.xlane.xlu0 %4501
        %v4503 = vrcp.pop %v4502
        %v4504 = vmul.f32 %v4499, %v4503
        %4505 = vrot.lane.b32.xlu0 %v4466, 64
        %v4506 = vpop.permute.xlu0 %4505
        %v4509 = vsel %vm670, %v4504, 0
        %4511 = vmatpush.msra.mxu0 0.0
        %4512 = vmatpush.msra.mxu0 0.0
        %4513 = vmatpush.msra.mxu0 0.0
        %4514 = vmatpush.msra.mxu0 0.0
        %4515 = vmatpush.msra.mxu0 0.0
        %4516 = vmatpush.msra.mxu0 0.0
        %4517 = vmatpush.msra.mxu0 0.0
        %4518 = vmatpush.msra.mxu0 0.0
        %4519 = vmatpush.msra.mxu0 0.0
        %4520 = vmatpush.msra.mxu0 0.0
        %4521 = vmatpush.msra.mxu0 0.0
        %4522 = vmatpush.msra.mxu0 0.0
        %4523 = vmatpush.msra.mxu0 0.0
        %4524 = vmatpush.msra.mxu0 0.0
        %4525 = vmatpush.msra.mxu0 0.0
        %4526 = vmatpush.msra.mxu0 %v4506
        %4527 = vmatmul.f32.gmra.mxu0 %v4509
        %v4528 = vpop.f32.mrf.mxu0
        %v4529 = vadd.f32 0.0, %v4528
        %4530 = vdwg.mxu0
        %4531 = vrot.lane.b32.xlu0 %v4375, 112
        %v4532 = vpop.permute.xlu0 %4531
        %4533 = vrot.lane.b32.xlu0 %v4466, 112
        %v4534 = vpop.permute.xlu0 %4533
        %v4535 = vsel %vm637, %v4532, 0
        %v4537 = vsel %vm637, %v4534, 0
        %4539 = vmatpush.xpose.msra.mxu0 0.0
        %4540 = vmatpush.xpose.msra.mxu0 0.0
        %4541 = vmatpush.xpose.msra.mxu0 0.0
        %4542 = vmatpush.xpose.msra.mxu0 0.0
        %4543 = vmatpush.xpose.msra.mxu0 0.0
        %4544 = vmatpush.xpose.msra.mxu0 0.0
        %4545 = vmatpush.xpose.msra.mxu0 0.0
        %4546 = vmatpush.xpose.msra.mxu0 0.0
        %4547 = vmatpush.xpose.msra.mxu0 0.0
        %4548 = vmatpush.xpose.msra.mxu0 0.0
        %4549 = vmatpush.xpose.msra.mxu0 0.0
        %4550 = vmatpush.xpose.msra.mxu0 0.0
        %4551 = vmatpush.xpose.msra.mxu0 0.0
        %4552 = vmatpush.xpose.msra.mxu0 0.0
        %4553 = vmatpush.xpose.msra.mxu0 0.0
        %4554 = vmatpush.xpose.msra.mxu0 %v4537
        %4555 = vmatmul.f32.gmra.mxu0 %v4535
        %v4556 = vpop.f32.mrf.mxu0
        %v4557 = vadd.f32 0.0, %v4556
        %4558 = vdwg.mxu0
        %v4559 = vsel %vm670, %v4557, -inf
        %4560 = vmax.xlane.f32.xlu0 %v4559
        %v4561 = vpop.xlane.xlu0 %4560
        %v4562 = vsub.f32 %v4557, %v4561
        %v4563 = vmul.f32 %v4562, 1.442695
        %v4564 = vpow.pop %v4563
        %v4565 = vsel %vm670, %v4564, 0.0
        %4566 = vadd.xlane.f32.xlu0 %v4565
        %v4567 = vpop.xlane.xlu0 %4566
        %v4568 = vrcp.pop %v4567
        %v4569 = vmul.f32 %v4564, %v4568
        %4570 = vrot.lane.b32.xlu0 %v4466, 48
        %v4571 = vpop.permute.xlu0 %4570
        %v4574 = vsel %vm670, %v4569, 0
        %4576 = vmatpush.msra.mxu0 0.0
        %4577 = vmatpush.msra.mxu0 0.0
        %4578 = vmatpush.msra.mxu0 0.0
        %4579 = vmatpush.msra.mxu0 0.0
        %4580 = vmatpush.msra.mxu0 0.0
        %4581 = vmatpush.msra.mxu0 0.0
        %4582 = vmatpush.msra.mxu0 0.0
        %4583 = vmatpush.msra.mxu0 0.0
        %4584 = vmatpush.msra.mxu0 0.0
        %4585 = vmatpush.msra.mxu0 0.0
        %4586 = vmatpush.msra.mxu0 0.0
        %4587 = vmatpush.msra.mxu0 0.0
        %4588 = vmatpush.msra.mxu0 0.0
        %4589 = vmatpush.msra.mxu0 0.0
        %4590 = vmatpush.msra.mxu0 0.0
        %4591 = vmatpush.msra.mxu0 %v4571
        %4592 = vmatmul.f32.gmra.mxu0 %v4574
        %v4593 = vpop.f32.mrf.mxu0
        %v4594 = vadd.f32 0.0, %v4593
        %4595 = vdwg.mxu0
        %v4597 = vsel %vm637, %v4594, 0
        %4599 = vmatpush.msra.mxu0 0.0
        %4600 = vmatpush.msra.mxu0 0.0
        %4601 = vmatpush.msra.mxu0 0.0
        %4602 = vmatpush.msra.mxu0 0.0
        %4603 = vmatpush.msra.mxu0 0.0
        %4604 = vmatpush.msra.mxu0 0.0
        %4605 = vmatpush.msra.mxu0 0.0
        %4606 = vmatpush.msra.mxu0 0.0
        %4607 = vmatpush.msra.mxu0 0.0
        %4608 = vmatpush.msra.mxu0 0.0
        %4609 = vmatpush.msra.mxu0 0.0
        %4610 = vmatpush.msra.mxu0 0.0
        %4611 = vmatpush.msra.mxu0 0.0
        %4612 = vmatpush.msra.mxu0 0.0
        %4613 = vmatpush.msra.mxu0 %v4346
        %4614 = vmatpush.msra.mxu0 %v4345
        %4615 = vmatmul.f32.gmra.mxu0 %v4597
        %v4616 = vpop.f32.mrf.mxu0
        %v4617 = vadd.f32 0.0, %v4616
        %4618 = vdwg.mxu0
        %v4620 = vsel %vm637, %v4529, 0
        %4622 = vmatpush.msra.mxu0 0.0
        %4623 = vmatpush.msra.mxu0 0.0
        %4624 = vmatpush.msra.mxu0 0.0
        %4625 = vmatpush.msra.mxu0 0.0
        %4626 = vmatpush.msra.mxu0 0.0
        %4627 = vmatpush.msra.mxu0 0.0
        %4628 = vmatpush.msra.mxu0 0.0
        %4629 = vmatpush.msra.mxu0 0.0
        %4630 = vmatpush.msra.mxu0 0.0
        %4631 = vmatpush.msra.mxu0 0.0
        %4632 = vmatpush.msra.mxu0 0.0
        %4633 = vmatpush.msra.mxu0 0.0
        %4634 = vmatpush.msra.mxu0 0.0
        %4635 = vmatpush.msra.mxu0 0.0
        %4636 = vmatpush.msra.mxu0 %v4344
        %4637 = vmatpush.msra.mxu0 %v4343
        %4638 = vmatmul.f32.gmra.mxu0 %v4620
        %v4639 = vpop.f32.mrf.mxu0
        %v4640 = vadd.f32 %v4617, %v4639
        %4641 = vdwg.mxu0
        %4642 = vrot.lane.b32.xlu0 %v4375, 96
        %v4643 = vpop.permute.xlu0 %4642
        %4644 = vrot.lane.b32.xlu0 %v4466, 96
        %v4645 = vpop.permute.xlu0 %4644
        %v4646 = vsel %vm637, %v4643, 0
        %v4648 = vsel %vm637, %v4645, 0
        %4650 = vmatpush.xpose.msra.mxu0 0.0
        %4651 = vmatpush.xpose.msra.mxu0 0.0
        %4652 = vmatpush.xpose.msra.mxu0 0.0
        %4653 = vmatpush.xpose.msra.mxu0 0.0
        %4654 = vmatpush.xpose.msra.mxu0 0.0
        %4655 = vmatpush.xpose.msra.mxu0 0.0
        %4656 = vmatpush.xpose.msra.mxu0 0.0
        %4657 = vmatpush.xpose.msra.mxu0 0.0
        %4658 = vmatpush.xpose.msra.mxu0 0.0
        %4659 = vmatpush.xpose.msra.mxu0 0.0
        %4660 = vmatpush.xpose.msra.mxu0 0.0
        %4661 = vmatpush.xpose.msra.mxu0 0.0
        %4662 = vmatpush.xpose.msra.mxu0 0.0
        %4663 = vmatpush.xpose.msra.mxu0 0.0
        %4664 = vmatpush.xpose.msra.mxu0 0.0
        %4665 = vmatpush.xpose.msra.mxu0 %v4648
        %4666 = vmatmul.f32.gmra.mxu0 %v4646
        %v4667 = vpop.f32.mrf.mxu0
        %v4668 = vadd.f32 0.0, %v4667
        %4669 = vdwg.mxu0
        %v4670 = vsel %vm670, %v4668, -inf
        %4671 = vmax.xlane.f32.xlu0 %v4670
        %v4672 = vpop.xlane.xlu0 %4671
        %v4673 = vsub.f32 %v4668, %v4672
        %v4674 = vmul.f32 %v4673, 1.442695
        %v4675 = vpow.pop %v4674
        %v4676 = vsel %vm670, %v4675, 0.0
        %4677 = vadd.xlane.f32.xlu0 %v4676
        %v4678 = vpop.xlane.xlu0 %4677
        %v4679 = vrcp.pop %v4678
        %v4680 = vmul.f32 %v4675, %v4679
        %4681 = vrot.lane.b32.xlu0 %v4466, 32
        %v4682 = vpop.permute.xlu0 %4681
        %v4685 = vsel %vm670, %v4680, 0
        %4687 = vmatpush.msra.mxu0 0.0
        %4688 = vmatpush.msra.mxu0 0.0
        %4689 = vmatpush.msra.mxu0 0.0
        %4690 = vmatpush.msra.mxu0 0.0
        %4691 = vmatpush.msra.mxu0 0.0
        %4692 = vmatpush.msra.mxu0 0.0
        %4693 = vmatpush.msra.mxu0 0.0
        %4694 = vmatpush.msra.mxu0 0.0
        %4695 = vmatpush.msra.mxu0 0.0
        %4696 = vmatpush.msra.mxu0 0.0
        %4697 = vmatpush.msra.mxu0 0.0
        %4698 = vmatpush.msra.mxu0 0.0
        %4699 = vmatpush.msra.mxu0 0.0
        %4700 = vmatpush.msra.mxu0 0.0
        %4701 = vmatpush.msra.mxu0 0.0
        %4702 = vmatpush.msra.mxu0 %v4682
        %4703 = vmatmul.f32.gmra.mxu0 %v4685
        %v4704 = vpop.f32.mrf.mxu0
        %v4705 = vadd.f32 0.0, %v4704
        %4706 = vdwg.mxu0
        %v4708 = vsel %vm637, %v4705, 0
        %4710 = vmatpush.msra.mxu0 0.0
        %4711 = vmatpush.msra.mxu0 0.0
        %4712 = vmatpush.msra.mxu0 0.0
        %4713 = vmatpush.msra.mxu0 0.0
        %4714 = vmatpush.msra.mxu0 0.0
        %4715 = vmatpush.msra.mxu0 0.0
        %4716 = vmatpush.msra.mxu0 0.0
        %4717 = vmatpush.msra.mxu0 0.0
        %4718 = vmatpush.msra.mxu0 0.0
        %4719 = vmatpush.msra.mxu0 0.0
        %4720 = vmatpush.msra.mxu0 0.0
        %4721 = vmatpush.msra.mxu0 0.0
        %4722 = vmatpush.msra.mxu0 0.0
        %4723 = vmatpush.msra.mxu0 0.0
        %4724 = vmatpush.msra.mxu0 %v4348
        %4725 = vmatpush.msra.mxu0 %v4347
        %4726 = vmatmul.f32.gmra.mxu0 %v4708
        %v4727 = vpop.f32.mrf.mxu0
        %v4728 = vadd.f32 0.0, %v4727
        %4729 = vdwg.mxu0
        %v4730 = vadd.f32 %v4640, %v4728
        %4731 = vrot.lane.b32.xlu0 %v4375, 80
        %v4732 = vpop.permute.xlu0 %4731
        %4733 = vrot.lane.b32.xlu0 %v4466, 80
        %v4734 = vpop.permute.xlu0 %4733
        %v4735 = vsel %vm637, %v4732, 0
        %v4737 = vsel %vm637, %v4734, 0
        %4739 = vmatpush.xpose.msra.mxu0 0.0
        %4740 = vmatpush.xpose.msra.mxu0 0.0
        %4741 = vmatpush.xpose.msra.mxu0 0.0
        %4742 = vmatpush.xpose.msra.mxu0 0.0
        %4743 = vmatpush.xpose.msra.mxu0 0.0
        %4744 = vmatpush.xpose.msra.mxu0 0.0
        %4745 = vmatpush.xpose.msra.mxu0 0.0
        %4746 = vmatpush.xpose.msra.mxu0 0.0
        %4747 = vmatpush.xpose.msra.mxu0 0.0
        %4748 = vmatpush.xpose.msra.mxu0 0.0
        %4749 = vmatpush.xpose.msra.mxu0 0.0
        %4750 = vmatpush.xpose.msra.mxu0 0.0
        %4751 = vmatpush.xpose.msra.mxu0 0.0
        %4752 = vmatpush.xpose.msra.mxu0 0.0
        %4753 = vmatpush.xpose.msra.mxu0 0.0
        %4754 = vmatpush.xpose.msra.mxu0 %v4737
        %4755 = vmatmul.f32.gmra.mxu0 %v4735
        %v4756 = vpop.f32.mrf.mxu0
        %v4757 = vadd.f32 0.0, %v4756
        %4758 = vdwg.mxu0
        %v4759 = vsel %vm670, %v4757, -inf
        %4760 = vmax.xlane.f32.xlu0 %v4759
        %v4761 = vpop.xlane.xlu0 %4760
        %v4762 = vsub.f32 %v4757, %v4761
        %v4763 = vmul.f32 %v4762, 1.442695
        %v4764 = vpow.pop %v4763
        %v4765 = vsel %vm670, %v4764, 0.0
        %4766 = vadd.xlane.f32.xlu0 %v4765
        %v4767 = vpop.xlane.xlu0 %4766
        %v4768 = vrcp.pop %v4767
        %v4769 = vmul.f32 %v4764, %v4768
        %4770 = vrot.lane.b32.xlu0 %v4466, 16
        %v4771 = vpop.permute.xlu0 %4770
        %v4774 = vsel %vm670, %v4769, 0
        %4776 = vmatpush.msra.mxu0 0.0
        %4777 = vmatpush.msra.mxu0 0.0
        %4778 = vmatpush.msra.mxu0 0.0
        %4779 = vmatpush.msra.mxu0 0.0
        %4780 = vmatpush.msra.mxu0 0.0
        %4781 = vmatpush.msra.mxu0 0.0
        %4782 = vmatpush.msra.mxu0 0.0
        %4783 = vmatpush.msra.mxu0 0.0
        %4784 = vmatpush.msra.mxu0 0.0
        %4785 = vmatpush.msra.mxu0 0.0
        %4786 = vmatpush.msra.mxu0 0.0
        %4787 = vmatpush.msra.mxu0 0.0
        %4788 = vmatpush.msra.mxu0 0.0
        %4789 = vmatpush.msra.mxu0 0.0
        %4790 = vmatpush.msra.mxu0 0.0
        %4791 = vmatpush.msra.mxu0 %v4771
        %4792 = vmatmul.f32.gmra.mxu0 %v4774
        %v4793 = vpop.f32.mrf.mxu0
        %v4794 = vadd.f32 0.0, %v4793
        %4795 = vdwg.mxu0
        %v4797 = vsel %vm637, %v4794, 0
        %4799 = vmatpush.msra.mxu0 0.0
        %4800 = vmatpush.msra.mxu0 0.0
        %4801 = vmatpush.msra.mxu0 0.0
        %4802 = vmatpush.msra.mxu0 0.0
        %4803 = vmatpush.msra.mxu0 0.0
        %4804 = vmatpush.msra.mxu0 0.0
        %4805 = vmatpush.msra.mxu0 0.0
        %4806 = vmatpush.msra.mxu0 0.0
        %4807 = vmatpush.msra.mxu0 0.0
        %4808 = vmatpush.msra.mxu0 0.0
        %4809 = vmatpush.msra.mxu0 0.0
        %4810 = vmatpush.msra.mxu0 0.0
        %4811 = vmatpush.msra.mxu0 0.0
        %4812 = vmatpush.msra.mxu0 0.0
        %4813 = vmatpush.msra.mxu0 %v4350
        %4814 = vmatpush.msra.mxu0 %v4349
        %4815 = vmatmul.f32.gmra.mxu0 %v4797
        %v4816 = vpop.f32.mrf.mxu0
        %v4817 = vadd.f32 0.0, %v4816
        %4818 = vdwg.mxu0
        %v4819 = vadd.f32 %v4730, %v4817
        %s4820 = scalar_lea.vmem %s5, 6
        %v4821 = vld [vmem:[%s4820] sm:$0x1]
        %v4823 = vperm.slane %v4821, 0
        %v4825 = vadd.f32 %v4819, %v4823
        %v4826 = vadd.f32 %v3697, %v4825
        %v4827 = vsel %vm513, %v4826, 0.0
        %4828 = vadd.xlane.f32.xlu0 %v4827
        %v4829 = vpop.xlane.xlu0 %4828
        %v4830 = vmul.f32 %v4829, %v2323
        %v4831 = vsub.f32 %v4826, %v4830
        %v4832 = vmul.f32 %v4831, %v4831
        %v4833 = vsel %vm513, %v4832, 0.0
        %4834 = vadd.xlane.f32.xlu0 %v4833
        %v4835 = vpop.xlane.xlu0 %4834
        %v4836 = vmul.f32 %v4835, %v2323
        %v4837 = vadd.f32 %v4836, 1e-05
        %v4838 = vrsqrt.pop %v4837
        %v4839 = vmul.f32 %v4838, %v4837
        %v4840 = vmul.f32 %v4839, %v4838
        %v4841 = vmul.f32 0.5, %v4840
        %v4842 = vsub.f32 1.5, %v4841
        %v4843 = vmul.f32 %v4838, %v4842
        %vm4844 = vweird.f32 %v4837
        %vm4845 = vweird.f32 %v4838
        %vm4846 = vmor %vm4844, %vm4845
        %v4847 = vsel %vm4846, %v4838, %v4843
        %v4848 = vmul.f32 %v4831, %v4847
        %s4849 = scalar_lea.vmem %s10, 4
        %v4850 = vld [vmem:[%s4849] sm:$0x1]
        %v4852 = vperm.slane %v4850, 0
        %v4854 = vmul.f32 %v4848, %v4852
        %s4855 = scalar_lea.vmem %s11, 4
        %v4856 = vld [vmem:[%s4855] sm:$0x1]
        %v4858 = vperm.slane %v4856, 0
        %v4860 = vadd.f32 %v4854, %v4858
        %s4861 = scalar_lea.vmem %s6, 128
        %v4862 = vld [vmem:[%s4861] sm:$0xff]
        %v4863 = vld [vmem:[%s4861 + $0x8] sm:$0xff]
        %v4864 = vld [vmem:[%s4861 + $0x10] sm:$0xff]
        %v4865 = vld [vmem:[%s4861 + $0x18] sm:$0xff]
        %v4866 = vld [vmem:[%s4861 + $0x20] sm:$0xff]
        %v4867 = vld [vmem:[%s4861 + $0x28] sm:$0xff]
        %v4868 = vld [vmem:[%s4861 + $0x30] sm:$0xff]
        %v4869 = vld [vmem:[%s4861 + $0x38] sm:$0xff]
        %s4870 = scalar_lea.vmem %s7, 2
        %v4871 = vld [vmem:[%s4870] sm:$0x1]
        %v4873 = vperm.slane %v4871, 0
        %v4876 = vsel %vm513, %v4860, 0
        %4878 = vmatpush.msra.mxu0 0.0
        %4879 = vmatpush.msra.mxu0 0.0
        %4880 = vmatpush.msra.mxu0 0.0
        %4881 = vmatpush.msra.mxu0 0.0
        %4882 = vmatpush.msra.mxu0 0.0
        %4883 = vmatpush.msra.mxu0 0.0
        %4884 = vmatpush.msra.mxu0 0.0
        %4885 = vmatpush.msra.mxu0 0.0
        %4886 = vmatpush.msra.mxu0 %v4869
        %4887 = vmatpush.msra.mxu0 %v4868
        %4888 = vmatpush.msra.mxu0 %v4867
        %4889 = vmatpush.msra.mxu0 %v4866
        %4890 = vmatpush.msra.mxu0 %v4865
        %4891 = vmatpush.msra.mxu0 %v4864
        %4892 = vmatpush.msra.mxu0 %v4863
        %4893 = vmatpush.msra.mxu0 %v4862
        %4894 = vmatmul.f32.gmra.mxu0 %v4876
        %v4895 = vpop.f32.mrf.mxu0
        %v4896 = vadd.f32 %v4873, %v4895
        %4897 = vdwg.mxu0
        %v4898 = vmax.f32 %v4896, 0.0
        %s4899 = scalar_lea.vmem %s8, 64
        %v4900 = vld [vmem:[%s4899] sm:$0xff]
        %v4901 = vld [vmem:[%s4899 + $0x8] sm:$0xff]
        %v4902 = vld [vmem:[%s4899 + $0x10] sm:$0xff]
        %v4903 = vld [vmem:[%s4899 + $0x18] sm:$0xff]
        %s4904 = scalar_lea.vmem %s9, 2
        %v4905 = vld [vmem:[%s4904] sm:$0x1]
        %v4907 = vperm.slane %v4905, 0
        %v4910 = vsel %vm2425, %v4898, 0
        %4912 = vmatpush.msra.mxu0 0.0
        %4913 = vmatpush.msra.mxu0 0.0
        %4914 = vmatpush.msra.mxu0 0.0
        %4915 = vmatpush.msra.mxu0 0.0
        %4916 = vmatpush.msra.mxu0 0.0
        %4917 = vmatpush.msra.mxu0 0.0
        %4918 = vmatpush.msra.mxu0 0.0
        %4919 = vmatpush.msra.mxu0 0.0
        %4920 = vmatpush.msra.mxu0 0.0
        %4921 = vmatpush.msra.mxu0 0.0
        %4922 = vmatpush.msra.mxu0 0.0
        %4923 = vmatpush.msra.mxu0 0.0
        %4924 = vmatpush.msra.mxu0 %v4903
        %4925 = vmatpush.msra.mxu0 %v4902
        %4926 = vmatpush.msra.mxu0 %v4901
        %4927 = vmatpush.msra.mxu0 %v4900
        %4928 = vmatmul.f32.gmra.mxu0 %v4910
        %v4929 = vpop.f32.mrf.mxu0
        %v4930 = vadd.f32 %v4907, %v4929
        %4931 = vdwg.mxu0
        %v4932 = vadd.f32 %v4860, %v4930
        %v4933 = vsel %vm513, %v4932, 0.0
        %4934 = vadd.xlane.f32.xlu0 %v4933
        %v4935 = vpop.xlane.xlu0 %4934
        %v4936 = vmul.f32 %v4935, %v2323
        %v4937 = vsub.f32 %v4932, %v4936
        %v4938 = vmul.f32 %v4937, %v4937
        %v4939 = vsel %vm513, %v4938, 0.0
        %4940 = vadd.xlane.f32.xlu0 %v4939
        %v4941 = vpop.xlane.xlu0 %4940
        %v4942 = vmul.f32 %v4941, %v2323
        %v4943 = vadd.f32 %v4942, 1e-05
        %v4944 = vrsqrt.pop %v4943
        %v4945 = vmul.f32 %v4944, %v4943
        %v4946 = vmul.f32 %v4945, %v4944
        %v4947 = vmul.f32 0.5, %v4946
        %v4948 = vsub.f32 1.5, %v4947
        %v4949 = vmul.f32 %v4944, %v4948
        %vm4950 = vweird.f32 %v4943
        %vm4951 = vweird.f32 %v4944
        %vm4952 = vmor %vm4950, %vm4951
        %v4953 = vsel %vm4952, %v4944, %v4949
        %v4954 = vmul.f32 %v4937, %v4953
        %s4955 = scalar_lea.vmem %s10, 5
        %v4956 = vld [vmem:[%s4955] sm:$0x1]
        %v4958 = vperm.slane %v4956, 0
        %v4960 = vmul.f32 %v4954, %v4958
        %s4961 = scalar_lea.vmem %s11, 5
        %v4962 = vld [vmem:[%s4961] sm:$0x1]
        %v4964 = vperm.slane %v4962, 0
        %v4966 = vadd.f32 %v4960, %v4964
        %s4967 = scalar_lea.vmem %s2, 896
        %v4968 = vld [vmem:[%s4967] sm:$0xff]
        %v4969 = vld [vmem:[%s4967 + $0x8] sm:$0xff]
        %v4970 = vld [vmem:[%s4967 + $0x10] sm:$0xff]
        %v4971 = vld [vmem:[%s4967 + $0x18] sm:$0xff]
        %v4972 = vld [vmem:[%s4967 + $0x20] sm:$0xff]
        %v4973 = vld [vmem:[%s4967 + $0x28] sm:$0xff]
        %v4974 = vld [vmem:[%s4967 + $0x30] sm:$0xff]
        %v4975 = vld [vmem:[%s4967 + $0x38] sm:$0xff]
        %v4976 = vld [vmem:[%s4967 + $0x40] sm:$0xff]
        %v4977 = vld [vmem:[%s4967 + $0x48] sm:$0xff]
        %v4978 = vld [vmem:[%s4967 + $0x50] sm:$0xff]
        %v4979 = vld [vmem:[%s4967 + $0x58] sm:$0xff]
        %v4980 = vld [vmem:[%s4967 + $0x60] sm:$0xff]
        %v4981 = vld [vmem:[%s4967 + $0x68] sm:$0xff]
        %v4982 = vld [vmem:[%s4967 + $0x70] sm:$0xff]
        %v4983 = vld [vmem:[%s4967 + $0x78] sm:$0xff]
        %s4984 = scalar_lea.vmem %s3, 14
        %v4985 = vld [vmem:[%s4984] sm:$0x3]
        %s4986 = scalar_lea.vmem %s4, 448
        %v4987 = vld [vmem:[%s4986] sm:$0xff]
        %v4988 = vld [vmem:[%s4986 + $0x8] sm:$0xff]
        %v4989 = vld [vmem:[%s4986 + $0x10] sm:$0xff]
        %v4990 = vld [vmem:[%s4986 + $0x18] sm:$0xff]
        %v4991 = vld [vmem:[%s4986 + $0x20] sm:$0xff]
        %v4992 = vld [vmem:[%s4986 + $0x28] sm:$0xff]
        %v4993 = vld [vmem:[%s4986 + $0x30] sm:$0xff]
        %v4994 = vld [vmem:[%s4986 + $0x38] sm:$0xff]
        %v4996 = vperm.slane %v4985, 0
        %v4999 = vsel %vm513, %v4321, 0
        %v5002 = vsel %vm513, %v4322, 0
        %5004 = vmatpush.msra.mxu0 0.0
        %5005 = vmatpush.msra.mxu0 0.0
        %5006 = vmatpush.msra.mxu0 0.0
        %5007 = vmatpush.msra.mxu0 0.0
        %5008 = vmatpush.msra.mxu0 0.0
        %5009 = vmatpush.msra.mxu0 0.0
        %5010 = vmatpush.msra.mxu0 0.0
        %5011 = vmatpush.msra.mxu0 0.0
        %5012 = vmatpush.msra.mxu0 %v4982
        %5013 = vmatpush.msra.mxu0 %v4980
        %5014 = vmatpush.msra.mxu0 %v4978
        %5015 = vmatpush.msra.mxu0 %v4976
        %5016 = vmatpush.msra.mxu0 %v4974
        %5017 = vmatpush.msra.mxu0 %v4972
        %5018 = vmatpush.msra.mxu0 %v4970
        %5019 = vmatpush.msra.mxu0 %v4968
        %5020 = vmatmul.f32.gmra.mxu0 %v4999
        %v5021 = vpop.f32.mrf.mxu0
        %v5022 = vadd.f32 %v4996, %v5021
        %5023 = vmatmul.f32.gmra.mxu0 %v5002
        %v5024 = vpop.f32.mrf.mxu0
        %v5025 = vadd.f32 %v4996, %v5024
        %5026 = vdwg.mxu0
        %v5027 = vperm.slane %v4985, 1
        %5044 = vrot.lane.b32.xlu0 %v4968, 64
        %v5045 = vpop.permute.xlu0 %5044
        %5046 = vrot.lane.b32.xlu0 %v4969, 64
        %v5047 = vpop.permute.xlu0 %5046
        %5048 = vrot.lane.b32.xlu0 %v4970, 64
        %v5049 = vpop.permute.xlu0 %5048
        %5050 = vrot.lane.b32.xlu0 %v4971, 64
        %v5051 = vpop.permute.xlu0 %5050
        %5052 = vrot.lane.b32.xlu0 %v4972, 64
        %v5053 = vpop.permute.xlu0 %5052
        %5054 = vrot.lane.b32.xlu0 %v4973, 64
        %v5055 = vpop.permute.xlu0 %5054
        %5056 = vrot.lane.b32.xlu0 %v4974, 64
        %v5057 = vpop.permute.xlu0 %5056
        %5058 = vrot.lane.b32.xlu0 %v4975, 64
        %v5059 = vpop.permute.xlu0 %5058
        %5060 = vrot.lane.b32.xlu0 %v4976, 64
        %v5061 = vpop.permute.xlu0 %5060
        %5062 = vrot.lane.b32.xlu0 %v4977, 64
        %v5063 = vpop.permute.xlu0 %5062
        %5064 = vrot.lane.b32.xlu0 %v4978, 64
        %v5065 = vpop.permute.xlu0 %5064
        %5066 = vrot.lane.b32.xlu0 %v4979, 64
        %v5067 = vpop.permute.xlu0 %5066
        %5068 = vrot.lane.b32.xlu0 %v4980, 64
        %v5069 = vpop.permute.xlu0 %5068
        %5070 = vrot.lane.b32.xlu0 %v4981, 64
        %v5071 = vpop.permute.xlu0 %5070
        %5072 = vrot.lane.b32.xlu0 %v4982, 64
        %v5073 = vpop.permute.xlu0 %5072
        %5074 = vrot.lane.b32.xlu0 %v4983, 64
        %v5075 = vpop.permute.xlu0 %5074
        %v5076 = vsel %vm513, %v5045, %v5047
        %v5077 = vsel %vm513, %v5049, %v5051
        %v5078 = vsel %vm513, %v5053, %v5055
        %v5079 = vsel %vm513, %v5057, %v5059
        %v5080 = vsel %vm513, %v5061, %v5063
        %v5081 = vsel %vm513, %v5065, %v5067
        %v5082 = vsel %vm513, %v5069, %v5071
        %v5083 = vsel %vm513, %v5073, %v5075
        %5092 = vrot.lane.b32.xlu0 %v4996, 64
        %v5093 = vpop.permute.xlu0 %5092
        %5094 = vrot.lane.b32.xlu0 %v5027, 64
        %v5095 = vpop.permute.xlu0 %5094
        %v5096 = vsel %vm513, %v5093, %v5095
        %5098 = vmatpush.msra.mxu0 0.0
        %5099 = vmatpush.msra.mxu0 0.0
        %5100 = vmatpush.msra.mxu0 0.0
        %5101 = vmatpush.msra.mxu0 0.0
        %5102 = vmatpush.msra.mxu0 0.0
        %5103 = vmatpush.msra.mxu0 0.0
        %5104 = vmatpush.msra.mxu0 0.0
        %5105 = vmatpush.msra.mxu0 0.0
        %5106 = vmatpush.msra.mxu0 %v5083
        %5107 = vmatpush.msra.mxu0 %v5082
        %5108 = vmatpush.msra.mxu0 %v5081
        %5109 = vmatpush.msra.mxu0 %v5080
        %5110 = vmatpush.msra.mxu0 %v5079
        %5111 = vmatpush.msra.mxu0 %v5078
        %5112 = vmatpush.msra.mxu0 %v5077
        %5113 = vmatpush.msra.mxu0 %v5076
        %5114 = vmatmul.f32.gmra.mxu0 %v4999
        %v5115 = vpop.f32.mrf.mxu0
        %v5116 = vadd.f32 %v5096, %v5115
        %5117 = vmatmul.f32.gmra.mxu0 %v5002
        %v5118 = vpop.f32.mrf.mxu0
        %v5119 = vadd.f32 %v5096, %v5118
        %5120 = vdwg.mxu0
        %v5122 = vsel %vm637, %v5022, 0
        %v5125 = vsel %vm637, %v5025, 0
        %v5128 = vsel %vm637, %v5116, 0
        %v5131 = vsel %vm637, %v5119, 0
        %5133 = vmatpush.xpose.msra.mxu0 0.0
        %5134 = vmatpush.xpose.msra.mxu0 0.0
        %5135 = vmatpush.xpose.msra.mxu0 0.0
        %5136 = vmatpush.xpose.msra.mxu0 0.0
        %5137 = vmatpush.xpose.msra.mxu0 0.0
        %5138 = vmatpush.xpose.msra.mxu0 0.0
        %5139 = vmatpush.xpose.msra.mxu0 0.0
        %5140 = vmatpush.xpose.msra.mxu0 0.0
        %5141 = vmatpush.xpose.msra.mxu0 0.0
        %5142 = vmatpush.xpose.msra.mxu0 0.0
        %5143 = vmatpush.xpose.msra.mxu0 0.0
        %5144 = vmatpush.xpose.msra.mxu0 0.0
        %5145 = vmatpush.xpose.msra.mxu0 0.0
        %5146 = vmatpush.xpose.msra.mxu0 0.0
        %5147 = vmatpush.xpose.msra.mxu0 %v5131
        %5148 = vmatpush.xpose.msra.mxu0 %v5128
        %5149 = vmatmul.f32.gmra.mxu0 %v5122
        %v5150 = vpop.f32.mrf.mxu0
        %v5151 = vadd.f32 0.0, %v5150
        %5152 = vmatmul.f32.gmra.mxu0 %v5125
        %v5153 = vpop.f32.mrf.mxu0
        %v5154 = vadd.f32 0.0, %v5153
        %5155 = vdwg.mxu0
        %v5156 = vsel %vm637, %v5151, -inf
        %5157 = vmax.xlane.f32.xlu0 %v5156
        %v5158 = vpop.xlane.xlu0 %5157
        %v5159 = vsel %vm637, %v5154, -inf
        %5160 = vmax.xlane.f32.xlu0 %v5159
        %v5161 = vpop.xlane.xlu0 %5160
        %v5162 = vsub.f32 %v5151, %v5158
        %v5163 = vsub.f32 %v5154, %v5161
        %v5164 = vmul.f32 %v5162, 1.442695
        %v5165 = vpow.pop %v5164
        %v5166 = vmul.f32 %v5163, 1.442695
        %v5167 = vpow.pop %v5166
        %v5168 = vsel %vm637, %v5165, 0.0
        %5169 = vadd.xlane.f32.xlu0 %v5168
        %v5170 = vpop.xlane.xlu0 %5169
        %v5171 = vsel %vm637, %v5167, 0.0
        %5172 = vadd.xlane.f32.xlu0 %v5171
        %v5173 = vpop.xlane.xlu0 %5172
        %v5174 = vrcp.pop %v5170
        %v5175 = vrcp.pop %v5173
        %v5176 = vmul.f32 %v5165, %v5174
        %v5177 = vmul.f32 %v5167, %v5175
        %5178 = vrot.lane.b32.xlu0 %v5116, 64
        %v5179 = vpop.permute.xlu0 %5178
        %5180 = vrot.lane.b32.xlu0 %v5119, 64
        %v5181 = vpop.permute.xlu0 %5180
        %v5185 = vsel %vm637, %v5176, 0
        %v5188 = vsel %vm637, %v5177, 0
        %5190 = vmatpush.msra.mxu0 0.0
        %5191 = vmatpush.msra.mxu0 0.0
        %5192 = vmatpush.msra.mxu0 0.0
        %5193 = vmatpush.msra.mxu0 0.0
        %5194 = vmatpush.msra.mxu0 0.0
        %5195 = vmatpush.msra.mxu0 0.0
        %5196 = vmatpush.msra.mxu0 0.0
        %5197 = vmatpush.msra.mxu0 0.0
        %5198 = vmatpush.msra.mxu0 0.0
        %5199 = vmatpush.msra.mxu0 0.0
        %5200 = vmatpush.msra.mxu0 0.0
        %5201 = vmatpush.msra.mxu0 0.0
        %5202 = vmatpush.msra.mxu0 0.0
        %5203 = vmatpush.msra.mxu0 0.0
        %5204 = vmatpush.msra.mxu0 %v5181
        %5205 = vmatpush.msra.mxu0 %v5179
        %5206 = vmatmul.f32.gmra.mxu0 %v5185
        %v5207 = vpop.f32.mrf.mxu0
        %v5208 = vadd.f32 0.0, %v5207
        %5209 = vmatmul.f32.gmra.mxu0 %v5188
        %v5210 = vpop.f32.mrf.mxu0
        %v5211 = vadd.f32 0.0, %v5210
        %5212 = vdwg.mxu0
        %5213 = vrot.lane.b32.xlu0 %v5022, 112
        %v5214 = vpop.permute.xlu0 %5213
        %5215 = vrot.lane.b32.xlu0 %v5025, 112
        %v5216 = vpop.permute.xlu0 %5215
        %5217 = vrot.lane.b32.xlu0 %v5116, 112
        %v5218 = vpop.permute.xlu0 %5217
        %5219 = vrot.lane.b32.xlu0 %v5119, 112
        %v5220 = vpop.permute.xlu0 %5219
        %v5221 = vsel %vm637, %v5214, 0
        %v5223 = vsel %vm637, %v5216, 0
        %v5225 = vsel %vm637, %v5218, 0
        %v5227 = vsel %vm637, %v5220, 0
        %5229 = vmatpush.xpose.msra.mxu0 0.0
        %5230 = vmatpush.xpose.msra.mxu0 0.0
        %5231 = vmatpush.xpose.msra.mxu0 0.0
        %5232 = vmatpush.xpose.msra.mxu0 0.0
        %5233 = vmatpush.xpose.msra.mxu0 0.0
        %5234 = vmatpush.xpose.msra.mxu0 0.0
        %5235 = vmatpush.xpose.msra.mxu0 0.0
        %5236 = vmatpush.xpose.msra.mxu0 0.0
        %5237 = vmatpush.xpose.msra.mxu0 0.0
        %5238 = vmatpush.xpose.msra.mxu0 0.0
        %5239 = vmatpush.xpose.msra.mxu0 0.0
        %5240 = vmatpush.xpose.msra.mxu0 0.0
        %5241 = vmatpush.xpose.msra.mxu0 0.0
        %5242 = vmatpush.xpose.msra.mxu0 0.0
        %5243 = vmatpush.xpose.msra.mxu0 %v5227
        %5244 = vmatpush.xpose.msra.mxu0 %v5225
        %5245 = vmatmul.f32.gmra.mxu0 %v5221
        %v5246 = vpop.f32.mrf.mxu0
        %v5247 = vadd.f32 0.0, %v5246
        %5248 = vmatmul.f32.gmra.mxu0 %v5223
        %v5249 = vpop.f32.mrf.mxu0
        %v5250 = vadd.f32 0.0, %v5249
        %5251 = vdwg.mxu0
        %v5252 = vsel %vm637, %v5247, -inf
        %5253 = vmax.xlane.f32.xlu0 %v5252
        %v5254 = vpop.xlane.xlu0 %5253
        %v5255 = vsel %vm637, %v5250, -inf
        %5256 = vmax.xlane.f32.xlu0 %v5255
        %v5257 = vpop.xlane.xlu0 %5256
        %v5258 = vsub.f32 %v5247, %v5254
        %v5259 = vsub.f32 %v5250, %v5257
        %v5260 = vmul.f32 %v5258, 1.442695
        %v5261 = vpow.pop %v5260
        %v5262 = vmul.f32 %v5259, 1.442695
        %v5263 = vpow.pop %v5262
        %v5264 = vsel %vm637, %v5261, 0.0
        %5265 = vadd.xlane.f32.xlu0 %v5264
        %v5266 = vpop.xlane.xlu0 %5265
        %v5267 = vsel %vm637, %v5263, 0.0
        %5268 = vadd.xlane.f32.xlu0 %v5267
        %v5269 = vpop.xlane.xlu0 %5268
        %v5270 = vrcp.pop %v5266
        %v5271 = vrcp.pop %v5269
        %v5272 = vmul.f32 %v5261, %v5270
        %v5273 = vmul.f32 %v5263, %v5271
        %5274 = vrot.lane.b32.xlu0 %v5116, 48
        %v5275 = vpop.permute.xlu0 %5274
        %5276 = vrot.lane.b32.xlu0 %v5119, 48
        %v5277 = vpop.permute.xlu0 %5276
        %v5281 = vsel %vm637, %v5272, 0
        %v5284 = vsel %vm637, %v5273, 0
        %5286 = vmatpush.msra.mxu0 0.0
        %5287 = vmatpush.msra.mxu0 0.0
        %5288 = vmatpush.msra.mxu0 0.0
        %5289 = vmatpush.msra.mxu0 0.0
        %5290 = vmatpush.msra.mxu0 0.0
        %5291 = vmatpush.msra.mxu0 0.0
        %5292 = vmatpush.msra.mxu0 0.0
        %5293 = vmatpush.msra.mxu0 0.0
        %5294 = vmatpush.msra.mxu0 0.0
        %5295 = vmatpush.msra.mxu0 0.0
        %5296 = vmatpush.msra.mxu0 0.0
        %5297 = vmatpush.msra.mxu0 0.0
        %5298 = vmatpush.msra.mxu0 0.0
        %5299 = vmatpush.msra.mxu0 0.0
        %5300 = vmatpush.msra.mxu0 %v5277
        %5301 = vmatpush.msra.mxu0 %v5275
        %5302 = vmatmul.f32.gmra.mxu0 %v5281
        %v5303 = vpop.f32.mrf.mxu0
        %v5304 = vadd.f32 0.0, %v5303
        %5305 = vmatmul.f32.gmra.mxu0 %v5284
        %v5306 = vpop.f32.mrf.mxu0
        %v5307 = vadd.f32 0.0, %v5306
        %5308 = vdwg.mxu0
        %v5310 = vsel %vm637, %v5304, 0
        %v5313 = vsel %vm637, %v5307, 0
        %5315 = vmatpush.msra.mxu0 0.0
        %5316 = vmatpush.msra.mxu0 0.0
        %5317 = vmatpush.msra.mxu0 0.0
        %5318 = vmatpush.msra.mxu0 0.0
        %5319 = vmatpush.msra.mxu0 0.0
        %5320 = vmatpush.msra.mxu0 0.0
        %5321 = vmatpush.msra.mxu0 0.0
        %5322 = vmatpush.msra.mxu0 0.0
        %5323 = vmatpush.msra.mxu0 0.0
        %5324 = vmatpush.msra.mxu0 0.0
        %5325 = vmatpush.msra.mxu0 0.0
        %5326 = vmatpush.msra.mxu0 0.0
        %5327 = vmatpush.msra.mxu0 0.0
        %5328 = vmatpush.msra.mxu0 0.0
        %5329 = vmatpush.msra.mxu0 %v4990
        %5330 = vmatpush.msra.mxu0 %v4989
        %5331 = vmatmul.f32.gmra.mxu0 %v5310
        %v5332 = vpop.f32.mrf.mxu0
        %v5333 = vadd.f32 0.0, %v5332
        %5334 = vmatmul.f32.gmra.mxu0 %v5313
        %v5335 = vpop.f32.mrf.mxu0
        %v5336 = vadd.f32 0.0, %v5335
        %5337 = vdwg.mxu0
        %v5339 = vsel %vm637, %v5208, 0
        %v5342 = vsel %vm637, %v5211, 0
        %5344 = vmatpush.msra.mxu0 0.0
        %5345 = vmatpush.msra.mxu0 0.0
        %5346 = vmatpush.msra.mxu0 0.0
        %5347 = vmatpush.msra.mxu0 0.0
        %5348 = vmatpush.msra.mxu0 0.0
        %5349 = vmatpush.msra.mxu0 0.0
        %5350 = vmatpush.msra.mxu0 0.0
        %5351 = vmatpush.msra.mxu0 0.0
        %5352 = vmatpush.msra.mxu0 0.0
        %5353 = vmatpush.msra.mxu0 0.0
        %5354 = vmatpush.msra.mxu0 0.0
        %5355 = vmatpush.msra.mxu0 0.0
        %5356 = vmatpush.msra.mxu0 0.0
        %5357 = vmatpush.msra.mxu0 0.0
        %5358 = vmatpush.msra.mxu0 %v4988
        %5359 = vmatpush.msra.mxu0 %v4987
        %5360 = vmatmul.f32.gmra.mxu0 %v5339
        %v5361 = vpop.f32.mrf.mxu0
        %v5362 = vadd.f32 %v5333, %v5361
        %5363 = vmatmul.f32.gmra.mxu0 %v5342
        %v5364 = vpop.f32.mrf.mxu0
        %v5365 = vadd.f32 %v5336, %v5364
        %5366 = vdwg.mxu0
        %5367 = vrot.lane.b32.xlu0 %v5022, 96
        %v5368 = vpop.permute.xlu0 %5367
        %5369 = vrot.lane.b32.xlu0 %v5025, 96
        %v5370 = vpop.permute.xlu0 %5369
        %5371 = vrot.lane.b32.xlu0 %v5116, 96
        %v5372 = vpop.permute.xlu0 %5371
        %5373 = vrot.lane.b32.xlu0 %v5119, 96
        %v5374 = vpop.permute.xlu0 %5373
        %v5375 = vsel %vm637, %v5368, 0
        %v5377 = vsel %vm637, %v5370, 0
        %v5379 = vsel %vm637, %v5372, 0
        %v5381 = vsel %vm637, %v5374, 0
        %5383 = vmatpush.xpose.msra.mxu0 0.0
        %5384 = vmatpush.xpose.msra.mxu0 0.0
        %5385 = vmatpush.xpose.msra.mxu0 0.0
        %5386 = vmatpush.xpose.msra.mxu0 0.0
        %5387 = vmatpush.xpose.msra.mxu0 0.0
        %5388 = vmatpush.xpose.msra.mxu0 0.0
        %5389 = vmatpush.xpose.msra.mxu0 0.0
        %5390 = vmatpush.xpose.msra.mxu0 0.0
        %5391 = vmatpush.xpose.msra.mxu0 0.0
        %5392 = vmatpush.xpose.msra.mxu0 0.0
        %5393 = vmatpush.xpose.msra.mxu0 0.0
        %5394 = vmatpush.xpose.msra.mxu0 0.0
        %5395 = vmatpush.xpose.msra.mxu0 0.0
        %5396 = vmatpush.xpose.msra.mxu0 0.0
        %5397 = vmatpush.xpose.msra.mxu0 %v5381
        %5398 = vmatpush.xpose.msra.mxu0 %v5379
        %5399 = vmatmul.f32.gmra.mxu0 %v5375
        %v5400 = vpop.f32.mrf.mxu0
        %v5401 = vadd.f32 0.0, %v5400
        %5402 = vmatmul.f32.gmra.mxu0 %v5377
        %v5403 = vpop.f32.mrf.mxu0
        %v5404 = vadd.f32 0.0, %v5403
        %5405 = vdwg.mxu0
        %v5406 = vsel %vm637, %v5401, -inf
        %5407 = vmax.xlane.f32.xlu0 %v5406
        %v5408 = vpop.xlane.xlu0 %5407
        %v5409 = vsel %vm637, %v5404, -inf
        %5410 = vmax.xlane.f32.xlu0 %v5409
        %v5411 = vpop.xlane.xlu0 %5410
        %v5412 = vsub.f32 %v5401, %v5408
        %v5413 = vsub.f32 %v5404, %v5411
        %v5414 = vmul.f32 %v5412, 1.442695
        %v5415 = vpow.pop %v5414
        %v5416 = vmul.f32 %v5413, 1.442695
        %v5417 = vpow.pop %v5416
        %v5418 = vsel %vm637, %v5415, 0.0
        %5419 = vadd.xlane.f32.xlu0 %v5418
        %v5420 = vpop.xlane.xlu0 %5419
        %v5421 = vsel %vm637, %v5417, 0.0
        %5422 = vadd.xlane.f32.xlu0 %v5421
        %v5423 = vpop.xlane.xlu0 %5422
        %v5424 = vrcp.pop %v5420
        %v5425 = vrcp.pop %v5423
        %v5426 = vmul.f32 %v5415, %v5424
        %v5427 = vmul.f32 %v5417, %v5425
        %5428 = vrot.lane.b32.xlu0 %v5116, 32
        %v5429 = vpop.permute.xlu0 %5428
        %5430 = vrot.lane.b32.xlu0 %v5119, 32
        %v5431 = vpop.permute.xlu0 %5430
        %v5435 = vsel %vm637, %v5426, 0
        %v5438 = vsel %vm637, %v5427, 0
        %5440 = vmatpush.msra.mxu0 0.0
        %5441 = vmatpush.msra.mxu0 0.0
        %5442 = vmatpush.msra.mxu0 0.0
        %5443 = vmatpush.msra.mxu0 0.0
        %5444 = vmatpush.msra.mxu0 0.0
        %5445 = vmatpush.msra.mxu0 0.0
        %5446 = vmatpush.msra.mxu0 0.0
        %5447 = vmatpush.msra.mxu0 0.0
        %5448 = vmatpush.msra.mxu0 0.0
        %5449 = vmatpush.msra.mxu0 0.0
        %5450 = vmatpush.msra.mxu0 0.0
        %5451 = vmatpush.msra.mxu0 0.0
        %5452 = vmatpush.msra.mxu0 0.0
        %5453 = vmatpush.msra.mxu0 0.0
        %5454 = vmatpush.msra.mxu0 %v5431
        %5455 = vmatpush.msra.mxu0 %v5429
        %5456 = vmatmul.f32.gmra.mxu0 %v5435
        %v5457 = vpop.f32.mrf.mxu0
        %v5458 = vadd.f32 0.0, %v5457
        %5459 = vmatmul.f32.gmra.mxu0 %v5438
        %v5460 = vpop.f32.mrf.mxu0
        %v5461 = vadd.f32 0.0, %v5460
        %5462 = vdwg.mxu0
        %v5464 = vsel %vm637, %v5458, 0
        %v5467 = vsel %vm637, %v5461, 0
        %5469 = vmatpush.msra.mxu0 0.0
        %5470 = vmatpush.msra.mxu0 0.0
        %5471 = vmatpush.msra.mxu0 0.0
        %5472 = vmatpush.msra.mxu0 0.0
        %5473 = vmatpush.msra.mxu0 0.0
        %5474 = vmatpush.msra.mxu0 0.0
        %5475 = vmatpush.msra.mxu0 0.0
        %5476 = vmatpush.msra.mxu0 0.0
        %5477 = vmatpush.msra.mxu0 0.0
        %5478 = vmatpush.msra.mxu0 0.0
        %5479 = vmatpush.msra.mxu0 0.0
        %5480 = vmatpush.msra.mxu0 0.0
        %5481 = vmatpush.msra.mxu0 0.0
        %5482 = vmatpush.msra.mxu0 0.0
        %5483 = vmatpush.msra.mxu0 %v4992
        %5484 = vmatpush.msra.mxu0 %v4991
        %5485 = vmatmul.f32.gmra.mxu0 %v5464
        %v5486 = vpop.f32.mrf.mxu0
        %v5487 = vadd.f32 0.0, %v5486
        %5488 = vmatmul.f32.gmra.mxu0 %v5467
        %v5489 = vpop.f32.mrf.mxu0
        %v5490 = vadd.f32 0.0, %v5489
        %5491 = vdwg.mxu0
        %v5492 = vadd.f32 %v5362, %v5487
        %v5493 = vadd.f32 %v5365, %v5490
        %5494 = vrot.lane.b32.xlu0 %v5022, 80
        %v5495 = vpop.permute.xlu0 %5494
        %5496 = vrot.lane.b32.xlu0 %v5025, 80
        %v5497 = vpop.permute.xlu0 %5496
        %5498 = vrot.lane.b32.xlu0 %v5116, 80
        %v5499 = vpop.permute.xlu0 %5498
        %5500 = vrot.lane.b32.xlu0 %v5119, 80
        %v5501 = vpop.permute.xlu0 %5500
        %v5502 = vsel %vm637, %v5495, 0
        %v5504 = vsel %vm637, %v5497, 0
        %v5506 = vsel %vm637, %v5499, 0
        %v5508 = vsel %vm637, %v5501, 0
        %5510 = vmatpush.xpose.msra.mxu0 0.0
        %5511 = vmatpush.xpose.msra.mxu0 0.0
        %5512 = vmatpush.xpose.msra.mxu0 0.0
        %5513 = vmatpush.xpose.msra.mxu0 0.0
        %5514 = vmatpush.xpose.msra.mxu0 0.0
        %5515 = vmatpush.xpose.msra.mxu0 0.0
        %5516 = vmatpush.xpose.msra.mxu0 0.0
        %5517 = vmatpush.xpose.msra.mxu0 0.0
        %5518 = vmatpush.xpose.msra.mxu0 0.0
        %5519 = vmatpush.xpose.msra.mxu0 0.0
        %5520 = vmatpush.xpose.msra.mxu0 0.0
        %5521 = vmatpush.xpose.msra.mxu0 0.0
        %5522 = vmatpush.xpose.msra.mxu0 0.0
        %5523 = vmatpush.xpose.msra.mxu0 0.0
        %5524 = vmatpush.xpose.msra.mxu0 %v5508
        %5525 = vmatpush.xpose.msra.mxu0 %v5506
        %5526 = vmatmul.f32.gmra.mxu0 %v5502
        %v5527 = vpop.f32.mrf.mxu0
        %v5528 = vadd.f32 0.0, %v5527
        %5529 = vmatmul.f32.gmra.mxu0 %v5504
        %v5530 = vpop.f32.mrf.mxu0
        %v5531 = vadd.f32 0.0, %v5530
        %5532 = vdwg.mxu0
        %v5533 = vsel %vm637, %v5528, -inf
        %5534 = vmax.xlane.f32.xlu0 %v5533
        %v5535 = vpop.xlane.xlu0 %5534
        %v5536 = vsel %vm637, %v5531, -inf
        %5537 = vmax.xlane.f32.xlu0 %v5536
        %v5538 = vpop.xlane.xlu0 %5537
        %v5539 = vsub.f32 %v5528, %v5535
        %v5540 = vsub.f32 %v5531, %v5538
        %v5541 = vmul.f32 %v5539, 1.442695
        %v5542 = vpow.pop %v5541
        %v5543 = vmul.f32 %v5540, 1.442695
        %v5544 = vpow.pop %v5543
        %v5545 = vsel %vm637, %v5542, 0.0
        %5546 = vadd.xlane.f32.xlu0 %v5545
        %v5547 = vpop.xlane.xlu0 %5546
        %v5548 = vsel %vm637, %v5544, 0.0
        %5549 = vadd.xlane.f32.xlu0 %v5548
        %v5550 = vpop.xlane.xlu0 %5549
        %v5551 = vrcp.pop %v5547
        %v5552 = vrcp.pop %v5550
        %v5553 = vmul.f32 %v5542, %v5551
        %v5554 = vmul.f32 %v5544, %v5552
        %5555 = vrot.lane.b32.xlu0 %v5116, 16
        %v5556 = vpop.permute.xlu0 %5555
        %5557 = vrot.lane.b32.xlu0 %v5119, 16
        %v5558 = vpop.permute.xlu0 %5557
        %v5562 = vsel %vm637, %v5553, 0
        %v5565 = vsel %vm637, %v5554, 0
        %5567 = vmatpush.msra.mxu0 0.0
        %5568 = vmatpush.msra.mxu0 0.0
        %5569 = vmatpush.msra.mxu0 0.0
        %5570 = vmatpush.msra.mxu0 0.0
        %5571 = vmatpush.msra.mxu0 0.0
        %5572 = vmatpush.msra.mxu0 0.0
        %5573 = vmatpush.msra.mxu0 0.0
        %5574 = vmatpush.msra.mxu0 0.0
        %5575 = vmatpush.msra.mxu0 0.0
        %5576 = vmatpush.msra.mxu0 0.0
        %5577 = vmatpush.msra.mxu0 0.0
        %5578 = vmatpush.msra.mxu0 0.0
        %5579 = vmatpush.msra.mxu0 0.0
        %5580 = vmatpush.msra.mxu0 0.0
        %5581 = vmatpush.msra.mxu0 %v5558
        %5582 = vmatpush.msra.mxu0 %v5556
        %5583 = vmatmul.f32.gmra.mxu0 %v5562
        %v5584 = vpop.f32.mrf.mxu0
        %v5585 = vadd.f32 0.0, %v5584
        %5586 = vmatmul.f32.gmra.mxu0 %v5565
        %v5587 = vpop.f32.mrf.mxu0
        %v5588 = vadd.f32 0.0, %v5587
        %5589 = vdwg.mxu0
        %v5591 = vsel %vm637, %v5585, 0
        %v5594 = vsel %vm637, %v5588, 0
        %5596 = vmatpush.msra.mxu0 0.0
        %5597 = vmatpush.msra.mxu0 0.0
        %5598 = vmatpush.msra.mxu0 0.0
        %5599 = vmatpush.msra.mxu0 0.0
        %5600 = vmatpush.msra.mxu0 0.0
        %5601 = vmatpush.msra.mxu0 0.0
        %5602 = vmatpush.msra.mxu0 0.0
        %5603 = vmatpush.msra.mxu0 0.0
        %5604 = vmatpush.msra.mxu0 0.0
        %5605 = vmatpush.msra.mxu0 0.0
        %5606 = vmatpush.msra.mxu0 0.0
        %5607 = vmatpush.msra.mxu0 0.0
        %5608 = vmatpush.msra.mxu0 0.0
        %5609 = vmatpush.msra.mxu0 0.0
        %5610 = vmatpush.msra.mxu0 %v4994
        %5611 = vmatpush.msra.mxu0 %v4993
        %5612 = vmatmul.f32.gmra.mxu0 %v5591
        %v5613 = vpop.f32.mrf.mxu0
        %v5614 = vadd.f32 0.0, %v5613
        %5615 = vmatmul.f32.gmra.mxu0 %v5594
        %v5616 = vpop.f32.mrf.mxu0
        %v5617 = vadd.f32 0.0, %v5616
        %5618 = vdwg.mxu0
        %v5619 = vadd.f32 %v5492, %v5614
        %v5620 = vadd.f32 %v5493, %v5617
        %s5621 = scalar_lea.vmem %s5, 7
        %v5622 = vld [vmem:[%s5621] sm:$0x1]
        %v5624 = vperm.slane %v5622, 0
        %v5626 = vadd.f32 %v5619, %v5624
        %v5627 = vadd.f32 %v5620, %v5624
        %v5628 = vadd.f32 %v4321, %v5626
        %v5629 = vadd.f32 %v4322, %v5627
        %v5630 = vsel %vm513, %v5628, 0.0
        %5631 = vadd.xlane.f32.xlu0 %v5630
        %v5632 = vpop.xlane.xlu0 %5631
        %v5633 = vsel %vm513, %v5629, 0.0
        %5634 = vadd.xlane.f32.xlu0 %v5633
        %v5635 = vpop.xlane.xlu0 %5634
        %v5636 = vmul.f32 %v5632, %v2323
        %v5637 = vmul.f32 %v5635, %v2323
        %v5638 = vsub.f32 %v5628, %v5636
        %v5639 = vsub.f32 %v5629, %v5637
        %v5640 = vmul.f32 %v5638, %v5638
        %v5641 = vmul.f32 %v5639, %v5639
        %v5642 = vsel %vm513, %v5640, 0.0
        %5643 = vadd.xlane.f32.xlu0 %v5642
        %v5644 = vpop.xlane.xlu0 %5643
        %v5645 = vsel %vm513, %v5641, 0.0
        %5646 = vadd.xlane.f32.xlu0 %v5645
        %v5647 = vpop.xlane.xlu0 %5646
        %v5648 = vmul.f32 %v5644, %v2323
        %v5649 = vmul.f32 %v5647, %v2323
        %v5650 = vadd.f32 %v5648, 1e-05
        %v5651 = vadd.f32 %v5649, 1e-05
        %v5652 = vrsqrt.pop %v5650
        %v5653 = vmul.f32 %v5652, %v5650
        %v5654 = vmul.f32 %v5653, %v5652
        %v5655 = vmul.f32 0.5, %v5654
        %v5656 = vsub.f32 1.5, %v5655
        %v5657 = vmul.f32 %v5652, %v5656
        %vm5658 = vweird.f32 %v5650
        %vm5659 = vweird.f32 %v5652
        %vm5660 = vmor %vm5658, %vm5659
        %v5661 = vsel %vm5660, %v5652, %v5657
        %v5662 = vrsqrt.pop %v5651
        %v5663 = vmul.f32 %v5662, %v5651
        %v5664 = vmul.f32 %v5663, %v5662
        %v5665 = vmul.f32 0.5, %v5664
        %v5666 = vsub.f32 1.5, %v5665
        %v5667 = vmul.f32 %v5662, %v5666
        %vm5668 = vweird.f32 %v5651
        %vm5669 = vweird.f32 %v5662
        %vm5670 = vmor %vm5668, %vm5669
        %v5671 = vsel %vm5670, %v5662, %v5667
        %v5672 = vmul.f32 %v5638, %v5661
        %v5673 = vmul.f32 %v5639, %v5671
        %s5674 = scalar_lea.vmem %s10, 6
        %v5675 = vld [vmem:[%s5674] sm:$0x1]
        %v5677 = vperm.slane %v5675, 0
        %v5679 = vmul.f32 %v5672, %v5677
        %v5680 = vmul.f32 %v5673, %v5677
        %s5681 = scalar_lea.vmem %s11, 6
        %v5682 = vld [vmem:[%s5681] sm:$0x1]
        %v5684 = vperm.slane %v5682, 0
        %v5686 = vadd.f32 %v5679, %v5684
        %v5687 = vadd.f32 %v5680, %v5684
        %s5688 = scalar_lea.vmem %s6, 192
        %v5689 = vld [vmem:[%s5688] sm:$0xff]
        %v5690 = vld [vmem:[%s5688 + $0x8] sm:$0xff]
        %v5691 = vld [vmem:[%s5688 + $0x10] sm:$0xff]
        %v5692 = vld [vmem:[%s5688 + $0x18] sm:$0xff]
        %v5693 = vld [vmem:[%s5688 + $0x20] sm:$0xff]
        %v5694 = vld [vmem:[%s5688 + $0x28] sm:$0xff]
        %v5695 = vld [vmem:[%s5688 + $0x30] sm:$0xff]
        %v5696 = vld [vmem:[%s5688 + $0x38] sm:$0xff]
        %s5697 = scalar_lea.vmem %s7, 3
        %v5698 = vld [vmem:[%s5697] sm:$0x1]
        %v5700 = vperm.slane %v5698, 0
        %v5703 = vsel %vm513, %v5686, 0
        %v5706 = vsel %vm513, %v5687, 0
        %5708 = vmatpush.msra.mxu0 0.0
        %5709 = vmatpush.msra.mxu0 0.0
        %5710 = vmatpush.msra.mxu0 0.0
        %5711 = vmatpush.msra.mxu0 0.0
        %5712 = vmatpush.msra.mxu0 0.0
        %5713 = vmatpush.msra.mxu0 0.0
        %5714 = vmatpush.msra.mxu0 0.0
        %5715 = vmatpush.msra.mxu0 0.0
        %5716 = vmatpush.msra.mxu0 %v5696
        %5717 = vmatpush.msra.mxu0 %v5695
        %5718 = vmatpush.msra.mxu0 %v5694
        %5719 = vmatpush.msra.mxu0 %v5693
        %5720 = vmatpush.msra.mxu0 %v5692
        %5721 = vmatpush.msra.mxu0 %v5691
        %5722 = vmatpush.msra.mxu0 %v5690
        %5723 = vmatpush.msra.mxu0 %v5689
        %5724 = vmatmul.f32.gmra.mxu0 %v5703
        %v5725 = vpop.f32.mrf.mxu0
        %v5726 = vadd.f32 %v5700, %v5725
        %5727 = vmatmul.f32.gmra.mxu0 %v5706
        %v5728 = vpop.f32.mrf.mxu0
        %v5729 = vadd.f32 %v5700, %v5728
        %5730 = vdwg.mxu0
        %v5731 = vmax.f32 %v5726, 0.0
        %v5732 = vmax.f32 %v5729, 0.0
        %s5733 = scalar_lea.vmem %s8, 96
        %v5734 = vld [vmem:[%s5733] sm:$0xff]
        %v5735 = vld [vmem:[%s5733 + $0x8] sm:$0xff]
        %v5736 = vld [vmem:[%s5733 + $0x10] sm:$0xff]
        %v5737 = vld [vmem:[%s5733 + $0x18] sm:$0xff]
        %s5738 = scalar_lea.vmem %s9, 3
        %v5739 = vld [vmem:[%s5738] sm:$0x1]
        %v5741 = vperm.slane %v5739, 0
        %v5744 = vsel %vm2425, %v5731, 0
        %v5747 = vsel %vm2425, %v5732, 0
        %5749 = vmatpush.msra.mxu0 0.0
        %5750 = vmatpush.msra.mxu0 0.0
        %5751 = vmatpush.msra.mxu0 0.0
        %5752 = vmatpush.msra.mxu0 0.0
        %5753 = vmatpush.msra.mxu0 0.0
        %5754 = vmatpush.msra.mxu0 0.0
        %5755 = vmatpush.msra.mxu0 0.0
        %5756 = vmatpush.msra.mxu0 0.0
        %5757 = vmatpush.msra.mxu0 0.0
        %5758 = vmatpush.msra.mxu0 0.0
        %5759 = vmatpush.msra.mxu0 0.0
        %5760 = vmatpush.msra.mxu0 0.0
        %5761 = vmatpush.msra.mxu0 %v5737
        %5762 = vmatpush.msra.mxu0 %v5736
        %5763 = vmatpush.msra.mxu0 %v5735
        %5764 = vmatpush.msra.mxu0 %v5734
        %5765 = vmatmul.f32.gmra.mxu0 %v5744
        %v5766 = vpop.f32.mrf.mxu0
        %v5767 = vadd.f32 %v5741, %v5766
        %5768 = vmatmul.f32.gmra.mxu0 %v5747
        %v5769 = vpop.f32.mrf.mxu0
        %v5770 = vadd.f32 %v5741, %v5769
        %5771 = vdwg.mxu0
        %v5772 = vadd.f32 %v5686, %v5767
        %v5773 = vadd.f32 %v5687, %v5770
        %v5774 = vsel %vm513, %v5772, 0.0
        %5775 = vadd.xlane.f32.xlu0 %v5774
        %v5776 = vpop.xlane.xlu0 %5775
        %v5777 = vsel %vm513, %v5773, 0.0
        %5778 = vadd.xlane.f32.xlu0 %v5777
        %v5779 = vpop.xlane.xlu0 %5778
        %v5780 = vmul.f32 %v5776, %v2323
        %v5781 = vmul.f32 %v5779, %v2323
        %v5782 = vsub.f32 %v5772, %v5780
        %v5783 = vsub.f32 %v5773, %v5781
        %v5784 = vmul.f32 %v5782, %v5782
        %v5785 = vmul.f32 %v5783, %v5783
        %v5786 = vsel %vm513, %v5784, 0.0
        %5787 = vadd.xlane.f32.xlu0 %v5786
        %v5788 = vpop.xlane.xlu0 %5787
        %v5789 = vsel %vm513, %v5785, 0.0
        %5790 = vadd.xlane.f32.xlu0 %v5789
        %v5791 = vpop.xlane.xlu0 %5790
        %v5792 = vmul.f32 %v5788, %v2323
        %v5793 = vmul.f32 %v5791, %v2323
        %v5794 = vadd.f32 %v5792, 1e-05
        %v5795 = vadd.f32 %v5793, 1e-05
        %v5796 = vrsqrt.pop %v5794
        %v5797 = vmul.f32 %v5796, %v5794
        %v5798 = vmul.f32 %v5797, %v5796
        %v5799 = vmul.f32 0.5, %v5798
        %v5800 = vsub.f32 1.5, %v5799
        %v5801 = vmul.f32 %v5796, %v5800
        %vm5802 = vweird.f32 %v5794
        %vm5803 = vweird.f32 %v5796
        %vm5804 = vmor %vm5802, %vm5803
        %v5805 = vsel %vm5804, %v5796, %v5801
        %v5806 = vrsqrt.pop %v5795
        %v5807 = vmul.f32 %v5806, %v5795
        %v5808 = vmul.f32 %v5807, %v5806
        %v5809 = vmul.f32 0.5, %v5808
        %v5810 = vsub.f32 1.5, %v5809
        %v5811 = vmul.f32 %v5806, %v5810
        %vm5812 = vweird.f32 %v5795
        %vm5813 = vweird.f32 %v5806
        %vm5814 = vmor %vm5812, %vm5813
        %v5815 = vsel %vm5814, %v5806, %v5811
        %v5816 = vmul.f32 %v5782, %v5805
        %v5817 = vmul.f32 %v5783, %v5815
        %s5818 = scalar_lea.vmem %s10, 7
        %v5819 = vld [vmem:[%s5818] sm:$0x1]
        %v5821 = vperm.slane %v5819, 0
        %v5823 = vmul.f32 %v5816, %v5821
        %v5824 = vmul.f32 %v5817, %v5821
        %s5825 = scalar_lea.vmem %s11, 7
        %v5826 = vld [vmem:[%s5825] sm:$0x1]
        %v5828 = vperm.slane %v5826, 0
        %v5830 = vadd.f32 %v5823, %v5828
        %v5831 = vadd.f32 %v5824, %v5828
        %v5832 = vsel %vm513, %v4966, 0.0
        %v5833 = vrot.slane %v5832, 4
        %v5834 = vadd.f32 %v5832, %v5833
        %v5835 = vrot.slane %v5834, 2
        %v5836 = vadd.f32 %v5834, %v5835
        %v5837 = vrot.slane %v5836, 1
        %v5838 = vadd.f32 %v5836, %v5837
        %v5839 = vrcp.pop 8.0
        %v5840 = vmul.f32 8.0, %v5839
        %v5841 = vsub.f32 1.0, %v5840
        %v5842 = vmul.f32 %v5839, %v5841
        %v5843 = vadd.f32 %v5839, %v5842
        %vm5844 = vweird.f32 %v5839
        %v5845 = vsel %vm5844, %v5839, %v5843
        %v5846 = vmul.f32 %v5838, %v5845
        %v5847 = vsel %vm513, %v5830, 0.0
        %v5848 = vsel %vm513, %v5831, 0.0
        %v5849 = vadd.f32 %v5847, %v5848
        %v5850 = vrot.slane %v5849, 4
        %v5851 = vadd.f32 %v5849, %v5850
        %v5852 = vrot.slane %v5851, 2
        %v5853 = vadd.f32 %v5851, %v5852
        %v5854 = vrot.slane %v5853, 1
        %v5855 = vadd.f32 %v5853, %v5854
        %v5856 = vrcp.pop 16.0
        %v5857 = vmul.f32 16.0, %v5856
        %v5858 = vsub.f32 1.0, %v5857
        %v5859 = vmul.f32 %v5856, %v5858
        %v5860 = vadd.f32 %v5856, %v5859
        %vm5861 = vweird.f32 %v5856
        %v5862 = vsel %vm5861, %v5856, %v5860
        %v5863 = vmul.f32 %v5855, %v5862
        %v5864 = vld [vmem:[%s12] sm:$0xff]
        %v5865 = vld [vmem:[%s12 + $0x8] sm:$0xff]
        %v5866 = vld [vmem:[%s12 + $0x10] sm:$0xff]
        %v5867 = vld [vmem:[%s12 + $0x18] sm:$0xff]
        %v5868 = vld [vmem:[%s12 + $0x20] sm:$0xff]
        %v5869 = vld [vmem:[%s12 + $0x28] sm:$0xff]
        %v5870 = vld [vmem:[%s12 + $0x30] sm:$0xff]
        %v5871 = vld [vmem:[%s12 + $0x38] sm:$0xff]
        %v5872 = vld [vmem:[%s12 + $0x40] sm:$0xff]
        %v5873 = vld [vmem:[%s12 + $0x48] sm:$0xff]
        %v5874 = vld [vmem:[%s12 + $0x50] sm:$0xff]
        %v5875 = vld [vmem:[%s12 + $0x58] sm:$0xff]
        %v5876 = vld [vmem:[%s12 + $0x60] sm:$0xff]
        %v5877 = vld [vmem:[%s12 + $0x68] sm:$0xff]
        %v5878 = vld [vmem:[%s12 + $0x70] sm:$0xff]
        %v5879 = vld [vmem:[%s12 + $0x78] sm:$0xff]
        %v5881 = vsel %vm513, %v5863, 0
        %5883 = vmatpush.msra.mxu0 0.0
        %5884 = vmatpush.msra.mxu0 0.0
        %5885 = vmatpush.msra.mxu0 0.0
        %5886 = vmatpush.msra.mxu0 0.0
        %5887 = vmatpush.msra.mxu0 0.0
        %5888 = vmatpush.msra.mxu0 0.0
        %5889 = vmatpush.msra.mxu0 0.0
        %5890 = vmatpush.msra.mxu0 0.0
        %5891 = vmatpush.msra.mxu0 %v5879
        %5892 = vmatpush.msra.mxu0 %v5878
        %5893 = vmatpush.msra.mxu0 %v5877
        %5894 = vmatpush.msra.mxu0 %v5876
        %5895 = vmatpush.msra.mxu0 %v5875
        %5896 = vmatpush.msra.mxu0 %v5874
        %5897 = vmatpush.msra.mxu0 %v5873
        %5898 = vmatpush.msra.mxu0 %v5872
        %5899 = vmatmul.f32.gmra.mxu0 %v5881
        %v5900 = vpop.f32.mrf.mxu0
        %v5901 = vadd.f32 0.0, %v5900
        %5902 = vdwg.mxu0
        %v5904 = vsel %vm513, %v5846, 0
        %5906 = vmatpush.msra.mxu0 0.0
        %5907 = vmatpush.msra.mxu0 0.0
        %5908 = vmatpush.msra.mxu0 0.0
        %5909 = vmatpush.msra.mxu0 0.0
        %5910 = vmatpush.msra.mxu0 0.0
        %5911 = vmatpush.msra.mxu0 0.0
        %5912 = vmatpush.msra.mxu0 0.0
        %5913 = vmatpush.msra.mxu0 0.0
        %5914 = vmatpush.msra.mxu0 %v5871
        %5915 = vmatpush.msra.mxu0 %v5870
        %5916 = vmatpush.msra.mxu0 %v5869
        %5917 = vmatpush.msra.mxu0 %v5868
        %5918 = vmatpush.msra.mxu0 %v5867
        %5919 = vmatpush.msra.mxu0 %v5866
        %5920 = vmatpush.msra.mxu0 %v5865
        %5921 = vmatpush.msra.mxu0 %v5864
        %5922 = vmatmul.f32.gmra.mxu0 %v5904
        %v5923 = vpop.f32.mrf.mxu0
        %v5924 = vadd.f32 %v5901, %v5923
        %5925 = vdwg.mxu0
        %v5926 = vld [vmem:[%s13] sm:$0x1]
        %v5927 = vadd.f32 %v5924, %v5926
        %vm5928 = vcmask 8192
        %5929 = vst.msk [vmem:[%s472] sm:$0x1] %vm5928, %v5927
        %s5930 = sand.u32 %s340, 1
        %s5931 = scalar_lea.sflag [#allocation3], %s5930
        %s5932 = sand.u32 %s340, 1
        %s5933 = scalar_lea.vmem [#allocation2], %s5932
        // Predicated region
        $region77: #{crossnet_forward.1} parent=75 // pred_check
          %p5934 = pneg %p350
        $region78: #{crossnet_forward.1} parent=75 // pred_check_branch
          %5936 = sbr.rel (%p5934) target = $region80
        $region79: #{crossnet_forward.1} parent=75 // pred_region
          %5938 = vsyncadd %s5931, 0
          %s5939 = scalar_lea.hbm %s14, %s28
          %s5941 = sshll.u32 %s5933, 4
          %s5942 = int_to_ptr.vmem [resolvable:$true] %s5941
          %s5943 = sshll.u32 %s5939, 4
          %s5944 = int_to_ptr.hbm [resolvable:$true] %s5943
          %5946 = dma.vmem_to_hbm [thread:$0]  %s5942, 16, %s5944, %s5931
        $region80: #{crossnet_forward.1} parent=75 // pred_fallthru
          _
      $region76: #{crossnet_forward.1} parent=5 // pred_fallthru
        _
      %p5947 = scmp.le.s32.totalorder 2, %s23
      // Predicated region
      $region81: #{crossnet_forward.1} parent=5 // pred_check
        %p5948 = pneg %p5947
      $region82: #{crossnet_forward.1} parent=5 // pred_check_branch
        %5950 = sbr.rel (%p5948) target = $region84
      $region83: #{crossnet_forward.1} parent=5 // pred_region
        %s5951 = ssub.s32 %s23, 2
        // Predicated region
        $region85: #{crossnet_forward.1} parent=83 // pred_check
          %p5952 = pneg %p356
        $region86: #{crossnet_forward.1} parent=83 // pred_check_branch
          %5954 = sbr.rel (%p5952) target = $region88
        $region87: #{crossnet_forward.1} parent=83 // pred_region
          %s5955 = sand.u32 %s341, 1
          %s5956 = scalar_lea.sflag [#allocation3], %s5955
          %s5957 = sand.u32 %s341, 1
          %s5958 = scalar_lea.vmem [#allocation2], %s5957
          %5960 = dma.done %s5956, 16
        $region88: #{crossnet_forward.1} parent=83 // pred_fallthru
          _
      $region84: #{crossnet_forward.1} parent=5 // pred_fallthru
        _
    $region6: #{crossnet_forward.1} parent=1 // loop_footer
      %s27 = sadd.s32 1, %s23
    $region7: #{crossnet_forward.1} parent=1 // loop_footer_branch
      %22 = sbr.rel target = $region3
    $region8: #{crossnet_forward.1} parent=1 // loop_exit
      _
    %5961 = vsyncpa [#allocation3], 1
    %s5962 = scalar_lea.sflag [#allocation3], 1
    %5963 = vsyncpa %s5962, 1

</llo_original>
